<compile_context>
chip_gen: v7x
topology: tpu7x:2x2x1
jax: 0.10.0
libtpu: 0.0.40
codegen_flags: <defaults>
</compile_context>

<pallas_src>
import functools
import math

import jax
import jax.numpy as jnp
from jax.experimental import pallas as pl
from jax.experimental.pallas import tpu as pltpu

VMEM = pltpu.MemorySpace.VMEM
SMEM = pltpu.MemorySpace.SMEM

CFG = dict(
    vocab=64, d_model=32, nheads=4, d_kv=8, d_ff=64,
    n_enc=2, n_dec=2, padding_idx=0, eos_idx=1,
    rel_buckets=8, rel_max_dist=16,
)

NEG_INF = -1e9


def _vspecs(n):
    return [pl.BlockSpec(memory_space=VMEM) for _ in range(n)]


def _rms(x, w):
    # T5 LayerNorm: no mean subtraction, no bias.
    var = jnp.mean(x * x, axis=-1, keepdims=True)
    return x * jax.lax.rsqrt(var + 1e-6) * w


# --------------------------- small helper kernel (runs once) -----------------

def _ln_matmul_kernel(x_ref, ln_ref, w_ref, o_ref):
    h = _rms(x_ref[...], ln_ref[...])
    o_ref[...] = jnp.dot(h.astype(jnp.bfloat16), w_ref[...].astype(jnp.bfloat16),
                         preferred_element_type=jnp.float32)


def pallas_ln_matmul(x, ln, w):
    return pl.pallas_call(
        _ln_matmul_kernel,
        out_shape=jax.ShapeDtypeStruct((x.shape[0], w.shape[1]), jnp.float32),
        in_specs=_vspecs(3),
        out_specs=pl.BlockSpec(memory_space=VMEM),
    )(x, ln, w)


# --------------------------- fused encoder layer -----------------------------

def _enc_layer_kernel(x_ref, kb_ref, rel_ref, sa_ln_ref, wqkv_ref, wo_ref,
                      ff_ln_ref, wi_ref, wo2_ref, o_ref):
    bf16, f32 = jnp.bfloat16, jnp.float32
    B, S = kb_ref.shape
    H = rel_ref.shape[0]
    HDk = wo_ref.shape[0]
    Dk = HDk // H

    x = x_ref[...]                                                     # (B*S, D)
    h_ln = _rms(x, sa_ln_ref[...])
    qkv = jnp.dot(h_ln.astype(bf16), wqkv_ref[...],
                  preferred_element_type=f32)                          # (B*S, 3*HDk)

    def heads(base):
        # (B*S, HDk) columns -> (B*H, S, Dk) via static slices (no XLA transpose glue)
        parts = [qkv[:, base + hh * Dk: base + (hh + 1) * Dk].reshape(B, 1, S, Dk)
                 for hh in range(H)]
        return jnp.concatenate(parts, axis=1).reshape(B * H, S, Dk)

    q = heads(0).astype(bf16)
    k = heads(HDk).astype(bf16)
    v = heads(2 * HDk).astype(bf16)

    sc = jnp.einsum("gqd,gkd->gqk", q, k, preferred_element_type=f32)  # (B*H, S, S)
    # bias composed with broadcasting adds on a view of the scores; no 4-D bias temp.
    sc = sc.reshape(B, H, S, S)
    sc = sc + kb_ref[...][:, None, None, :] + rel_ref[...][None, :, :, :]
    sc = sc.reshape(B * H, S, S)
    m = jnp.max(sc, axis=-1, keepdims=True)
    p = jnp.exp(sc - m)
    p = p / jnp.sum(p, axis=-1, keepdims=True)
    ctx = jnp.einsum("gqk,gkd->gqd", p.astype(bf16), v,
                     preferred_element_type=f32)                       # (B*H, S, Dk)
    ctx = ctx.reshape(B, H, S, Dk)
    merged = jnp.concatenate([ctx[:, hh] for hh in range(H)], axis=-1)  # (B, S, HDk)
    merged = merged.reshape(B * S, HDk)

    x = x + jnp.dot(merged.astype(bf16), wo_ref[...], preferred_element_type=f32)

    h_ln = _rms(x, ff_ln_ref[...])
    h_mid = jnp.maximum(
        jnp.dot(h_ln.astype(bf16), wi_ref[...], preferred_element_type=f32), 0.0)
    o_ref[...] = x + jnp.dot(h_mid.astype(bf16), wo2_ref[...],
                             preferred_element_type=f32)


def pallas_encoder_layer(x, kb, rel, sa_ln, wqkv, wo, ff_ln, wi, wo2):
    return pl.pallas_call(
        _enc_layer_kernel,
        out_shape=jax.ShapeDtypeStruct(x.shape, jnp.float32),
        in_specs=_vspecs(9),
        out_specs=pl.BlockSpec(memory_space=VMEM),
    )(x, kb, rel, sa_ln, wqkv, wo, ff_ln, wi, wo2)


# --------------------------- fused decode step kernel ------------------------

def _decode_step_kernel(
    s_ref, tok_ref, rows_ref,                      # SMEM scalars
    tokv_ref, emb_ref, kb_ref, kc_ref, vc_ref,
    ck_ref, cv_ref, mem_ref, rel_ref,
    sa_ln_ref, sa_wqkv_ref, sa_wo_ref,
    ca_ln_ref, ca_wq_ref, ca_wo_ref,
    ff_ln_ref, ff_wi_ref, ff_wo_ref,
    n2_ref, lm_ref,
    logp_ref, kb_out_ref, kc_out_ref, vc_out_ref,
):
    bf16, f32 = jnp.bfloat16, jnp.float32
    N, L = kb_ref.shape
    n_dec = kc_ref.shape[0]
    HDk = kc_ref.shape[-1]
    D = emb_ref.shape[1]
    H = rel_ref.shape[1]
    Dk = HDk // H
    bsz, S = mem_ref.shape
    beam = N // bsz

    s = s_ref[0]

    # ---- embedding gather for the new tokens (dynamic row loads, stays in VMEM) ----
    x = jnp.concatenate(
        [emb_ref[pl.ds(tok_ref[n], 1), :] for n in range(N)], axis=0)        # (N, D) f32

    # ---- key-padding bias: gather parent beam rows, (un)mask column s ----
    kb_rows = jnp.concatenate(
        [kb_ref[pl.ds(rows_ref[n], 1), :] for n in range(N)], axis=0)        # (N, L)
    pad_col = jnp.where(
        jnp.logical_and(s > 0, tokv_ref[...] == CFG["padding_idx"]),
        NEG_INF, 0.0).astype(f32)                                            # (N, 1)
    pos2 = jax.lax.broadcasted_iota(jnp.int32, (N, L), 1)
    kb = jnp.where(pos2 == s, pad_col, kb_rows)                              # (N, L)
    kb_out_ref[...] = kb

    rel_s = rel_ref[pl.ds(s, 1)]                                             # (1, H, L)

    for li in range(n_dec):
        # ---- self-attention: fused LN + QKV projection ----
        h_ln = _rms(x, sa_ln_ref[li])
        qkv = jnp.dot(h_ln.astype(bf16), sa_wqkv_ref[li],
                      preferred_element_type=f32)                            # (N, 3*HDk)
        q_all = qkv[:, :HDk]
        k_new = qkv[:, HDk:2 * HDk]
        v_new = qkv[:, 2 * HDk:]

        # gather parent cache rows (beam reorder folded in) and insert position s
        kc_rows = jnp.concatenate(
            [kc_ref[li, pl.ds(rows_ref[n], 1), :, :] for n in range(N)], axis=0)
        vc_rows = jnp.concatenate(
            [vc_ref[li, pl.ds(rows_ref[n], 1), :, :] for n in range(N)], axis=0)
        pos3 = jax.lax.broadcasted_iota(jnp.int32, (N, L, HDk), 1)
        kc_cur = jnp.where(pos3 == s, k_new[:, None, :], kc_rows.astype(f32))
        vc_cur = jnp.where(pos3 == s, v_new[:, None, :], vc_rows.astype(f32))
        kc_out_ref[li, :, :, :] = kc_cur.astype(bf16)
        vc_out_ref[li, :, :, :] = vc_cur.astype(bf16)

        # single-token-query attention on the VPU (no MXU for M=1)
        ctx_heads = []
        for hh in range(H):
            q_h = q_all[:, hh * Dk:(hh + 1) * Dk]                            # (N, Dk)
            k_h = kc_cur[:, :, hh * Dk:(hh + 1) * Dk]                        # (N, L, Dk)
            v_h = vc_cur[:, :, hh * Dk:(hh + 1) * Dk]
            sc = jnp.sum(q_h[:, None, :] * k_h, axis=-1)                     # (N, L)
            sc = sc + kb + rel_s[:, hh, :]
            m = jnp.max(sc, axis=-1, keepdims=True)
            p = jnp.exp(sc - m)
            p = p / jnp.sum(p, axis=-1, keepdims=True)
            ctx_heads.append(jnp.sum(p[:, :, None] * v_h, axis=1))           # (N, Dk)
        ctx = jnp.concatenate(ctx_heads, axis=-1)                            # (N, HDk)
        x = x + jnp.dot(ctx.astype(bf16), sa_wo_ref[li], preferred_element_type=f32)

        # ---- cross-attention: encoder K/V kept per batch row (no beam replication) ----
        h_ln = _rms(x, ca_ln_ref[li])
        q_c = jnp.dot(h_ln.astype(bf16), ca_wq_ref[li], preferred_element_type=f32)
        ck = ck_ref[li].astype(f32)                                          # (bsz, S, HDk)
        cv = cv_ref[li].astype(f32)
        mem = mem_ref[...]                                                   # (bsz, S)
        ctx_rows = []
        for b in range(bsz):
            q_b = q_c[b * beam:(b + 1) * beam, :]                            # (beam, HDk)
            k_b, v_b = ck[b], cv[b]                                          # (S, HDk)
            bias_b = mem[b:b + 1, :]                                         # (1, S)
            heads = []
            for hh in range(H):
                q_bh = q_b[:, hh * Dk:(hh + 1) * Dk]
                k_bh = k_b[:, hh * Dk:(hh + 1) * Dk]
                v_bh = v_b[:, hh * Dk:(hh + 1) * Dk]
                sc = jnp.sum(q_bh[:, None, :] * k_bh[None, :, :], axis=-1)   # (beam, S)
                sc = sc + bias_b
                m = jnp.max(sc, axis=-1, keepdims=True)
                p = jnp.exp(sc - m)
                p = p / jnp.sum(p, axis=-1, keepdims=True)
                heads.append(jnp.sum(p[:, :, None] * v_bh[None, :, :], axis=1))
            ctx_rows.append(jnp.concatenate(heads, axis=-1))                 # (beam, HDk)
        ctx_c = jnp.concatenate(ctx_rows, axis=0)                            # (N, HDk)
        x = x + jnp.dot(ctx_c.astype(bf16), ca_wo_ref[li], preferred_element_type=f32)

        # ---- FFN ----
        h_ln = _rms(x, ff_ln_ref[li])
        h_mid = jnp.maximum(
            jnp.dot(h_ln.astype(bf16), ff_wi_ref[li], preferred_element_type=f32), 0.0)
        x = x + jnp.dot(h_mid.astype(bf16), ff_wo_ref[li], preferred_element_type=f32)

    # ---- final norm + d_model^-0.5 scale + lm head + log_softmax ----
    h_ln = _rms(x, n2_ref[...]) * (D ** -0.5)
    logits = jnp.dot(h_ln.astype(bf16), lm_ref[...], preferred_element_type=f32)
    m = jnp.max(logits, axis=-1, keepdims=True)
    z = logits - m
    logp_ref[...] = z - jnp.log(jnp.sum(jnp.exp(z), axis=-1, keepdims=True))


def fused_decode_step(step_idx, tok, rows, kb, kc, vc, consts):
    (emb, cross_k, cross_v, mem_bias, rel_dec,
     sa_ln, sa_wqkv, sa_wo, ca_ln, ca_wq, ca_wo,
     ff_ln, ff_wi, ff_wo, norm2, lm_head) = consts
    N, _ = kb.shape
    V = lm_head.shape[1]
    smem = pl.BlockSpec(memory_space=SMEM)
    out_shape = (
        jax.ShapeDtypeStruct((N, V), jnp.float32),
        jax.ShapeDtypeStruct(kb.shape, jnp.float32),
        jax.ShapeDtypeStruct(kc.shape, jnp.bfloat16),
        jax.ShapeDtypeStruct(vc.shape, jnp.bfloat16),
    )
    return pl.pallas_call(
        _decode_step_kernel,
        out_shape=out_shape,
        in_specs=[smem, smem, smem] + _vspecs(20),
        out_specs=tuple(_vspecs(4)),
    )(jnp.full((1,), step_idx, jnp.int32), tok.astype(jnp.int32),
      rows.astype(jnp.int32), tok.reshape(N, 1).astype(jnp.int32),
      emb, kb, kc, vc, cross_k, cross_v, mem_bias, rel_dec,
      sa_ln, sa_wqkv, sa_wo, ca_ln, ca_wq, ca_wo, ff_ln, ff_wi, ff_wo,
      norm2, lm_head)


# --------------------------- parameter init ---------------------------------

def init_params(key):
    D, H, Dk, F, V = (CFG["d_model"], CFG["nheads"], CFG["d_kv"],
                      CFG["d_ff"], CFG["vocab"])
    keys = iter(jax.random.split(key, 64))

    def nrm(shape, scale=0.05, dtype=jnp.bfloat16):
        return (jax.random.normal(next(keys), shape) * scale).astype(dtype)

    def self_attn():
        return dict(ln=jnp.ones((1, D), jnp.float32),
                    wqkv=nrm((D, 3 * H * Dk)), wo=nrm((H * Dk, D)))

    def cross_attn():
        return dict(ln=jnp.ones((1, D), jnp.float32),
                    wq=nrm((D, H * Dk)), wkv=nrm((D, 2 * H * Dk)), wo=nrm((H * Dk, D)))

    def ffn():
        return dict(ln=jnp.ones((1, D), jnp.float32), wi=nrm((D, F)), wo=nrm((F, D)))

    p = {"emb": nrm((V, D), 1.0, jnp.float32)}
    p["enc"] = []
    for i in range(CFG["n_enc"]):
        layer = dict(sa=self_attn(), ff=ffn())
        if i == 0:  # T5: relative attention bias only in the first layer, shared
            layer["rel_bias"] = nrm((CFG["rel_buckets"], H), 0.1, jnp.float32)
        p["enc"].append(layer)
    p["dec"] = []
    for i in range(CFG["n_dec"]):
        layer = dict(sa=self_attn(), ca=cross_attn(), ff=ffn())
        if i == 0:
            layer["rel_bias"] = nrm((CFG["rel_buckets"], H), 0.1, jnp.float32)
        p["dec"].append(layer)
    p["norm1"] = jnp.ones((1, D), jnp.float32)
    p["norm2"] = jnp.ones((1, D), jnp.float32)
    p["lm_head"] = nrm((D, V))
    return p


# --------------------------- model glue --------------------------------------

def rel_pos_bias(table, q_len, k_len, bidirectional):
    nb, md = CFG["rel_buckets"], CFG["rel_max_dist"]
    ctx = jnp.arange(q_len, dtype=jnp.int32)[:, None]
    mem = jnp.arange(k_len, dtype=jnp.int32)[None, :]
    rp = mem - ctx
    if bidirectional:
        num_buckets = nb // 2
        ret = (rp > 0).astype(jnp.int32) * num_buckets
        n = jnp.abs(rp)
    else:
        num_buckets = nb
        ret = jnp.zeros_like(rp)
        n = -jnp.minimum(rp, 0)
    max_exact = num_buckets // 2
    is_small = n < max_exact
    val_large = max_exact + (
        jnp.log(jnp.maximum(n, 1).astype(jnp.float32) / max_exact)
        / math.log(md / max_exact) * (num_buckets - max_exact)
    ).astype(jnp.int32)
    val_large = jnp.minimum(val_large, num_buckets - 1)
    bucket = ret + jnp.where(is_small, n, val_large)
    bias = table[bucket]                      # (Tq, Tk, H)
    return jnp.transpose(bias, (2, 0, 1))     # (H, Tq, Tk)


def encode(params, tokens):
    D = CFG["d_model"]
    B, S = tokens.shape
    x = params["emb"][tokens].reshape(B * S, D)                   # embedding gather (glue)
    pad = tokens == CFG["padding_idx"]
    kb = jnp.where(pad, NEG_INF, 0.0).astype(jnp.float32)         # (B, S)
    rel = rel_pos_bias(params["enc"][0]["rel_bias"], S, S, True)  # (H, S, S)
    for layer in params["enc"]:
        x = pallas_encoder_layer(
            x, kb, rel,
            layer["sa"]["ln"], layer["sa"]["wqkv"], layer["sa"]["wo"],
            layer["ff"]["ln"], layer["ff"]["wi"], layer["ff"]["wo"])
    # final encoder norm (norm1) is folded into the cross-attention K/V projection
    return x, pad


# --------------------------- generate (beam search) ---------------------------

@functools.partial(jax.jit, static_argnames=("beam_size", "max_seq_len"))
def generate(params, encoder_tokens, *, beam_size, max_seq_len):
    H, Dk = CFG["nheads"], CFG["d_kv"]
    eos_idx = CFG["eos_idx"]
    HDk = H * Dk
    n_dec = CFG["n_dec"]
    bsz, S = encoder_tokens.shape
    N = bsz * beam_size
    L = max_seq_len

    enc_flat, enc_pad = encode(params, encoder_tokens)            # (bsz*S, D), (bsz, S)

    # cross-attention K/V per decoder layer, one copy per *batch* row (no beam
    # replication); norm1 folded into the projection; computed once per generate().
    ck_list, cv_list = [], []
    for layer in params["dec"]:
        kv = pallas_ln_matmul(enc_flat, params["norm1"], layer["ca"]["wkv"])
        ck_list.append(kv[:, :HDk].reshape(bsz, S, HDk).astype(jnp.bfloat16))
        cv_list.append(kv[:, HDk:].reshape(bsz, S, HDk).astype(jnp.bfloat16))
    cross_k = jnp.stack(ck_list)                                  # (n_dec, bsz, S, HDk)
    cross_v = jnp.stack(cv_list)
    mem_bias = jnp.where(enc_pad, NEG_INF, 0.0).astype(jnp.float32)   # (bsz, S)

    rel_dec = jnp.transpose(
        rel_pos_bias(params["dec"][0]["rel_bias"], L, L, False), (1, 0, 2))  # (L, H, L)

    def stack(a, b):
        return jnp.stack([layer[a][b] for layer in params["dec"]])

    consts = (
        params["emb"], cross_k, cross_v, mem_bias, rel_dec,
        stack("sa", "ln"), stack("sa", "wqkv"), stack("sa", "wo"),
        stack("ca", "ln"), stack("ca", "wq"), stack("ca", "wo"),
        stack("ff", "ln"), stack("ff", "wi"), stack("ff", "wo"),
        params["norm2"], params["lm_head"],
    )

    # KV caches / masks (fixed shapes; future positions masked NEG_INF)
    kb = jnp.full((N, L), NEG_INF, jnp.float32)
    kc = jnp.zeros((n_dec, N, L, HDk), jnp.bfloat16)
    vc = jnp.zeros((n_dec, N, L, HDk), jnp.bfloat16)
    tokens = jnp.zeros((N, L + 1), jnp.int32)                     # column 0 = BOS (= pad)
    incomplete = jnp.ones((N,), jnp.int32)
    identity_rows = jnp.arange(N, dtype=jnp.int32)

    def step(s, tok, rows, kb, kc, vc):
        return fused_decode_step(s, tok, rows, kb, kc, vc, consts)

    # ---- step 0: all beam copies identical; read beam-0 log-probs per batch ----
    logp, kb, kc, vc = step(jnp.asarray(0, jnp.int32), tokens[:, 0],
                            identity_rows, kb, kc, vc)
    top_vals, top_idx = jax.lax.top_k(
        logp.reshape(bsz, beam_size, -1)[:, 0], beam_size)
    scores = top_vals                                             # (bsz, beam)
    new_tok = top_idx.reshape(N).astype(jnp.int32) * incomplete
    incomplete = incomplete - (new_tok == eos_idx).astype(jnp.int32)
    tokens = tokens.at[:, 1].set(new_tok)
    rows = identity_rows

    # ---- steps 1..L-1: single fused kernel per step inside a while_loop ----
    def cond(carry):
        s, _, _, inc, _, _, _, _ = carry
        return jnp.logical_and(s < max_seq_len, jnp.any(inc != 0))

    def body(carry):
        s, tokens, scores, incomplete, kb, kc, vc, rows = carry
        tok = jax.lax.dynamic_index_in_dim(tokens, s, axis=1, keepdims=False)
        logp, kb, kc, vc = step(s, tok, rows, kb, kc, vc)

        top_vals, top_idx = jax.lax.top_k(logp, beam_size)                   # (N, beam)
        cand = (scores.reshape(N, 1) + top_vals).reshape(bsz, beam_size * beam_size)
        best_vals, best_idx = jax.lax.top_k(cand, beam_size)                 # (bsz, beam)
        rows = (jnp.arange(bsz, dtype=jnp.int32)[:, None] * beam_size
                + (best_idx // beam_size).astype(jnp.int32)).reshape(N)
        new_tok = jnp.take_along_axis(top_idx.reshape(bsz, beam_size * beam_size),
                                      best_idx, axis=1).reshape(N).astype(jnp.int32)

        # only the tiny arrays are reordered here; the KV caches and key bias are
        # reordered lazily inside next step's kernel via `rows`.
        tokens = tokens[rows]
        incomplete = incomplete[rows]
        scores = best_vals
        new_tok = new_tok * incomplete
        incomplete = incomplete - (new_tok == eos_idx).astype(jnp.int32)
        tokens = jax.lax.dynamic_update_slice(tokens, new_tok[:, None], (0, s + 1))
        return (s + 1, tokens, scores, incomplete, kb, kc, vc, rows)

    carry = (jnp.asarray(1, jnp.int32), tokens, scores, incomplete, kb, kc, vc, rows)
    _, tokens, _, _, _, _, _, _ = jax.lax.while_loop(cond, body, carry)
    return tokens.reshape(bsz, beam_size, -1)[:, 0, :]


def t5_wrapper_forward(params, encoder_tokens, beam_size, max_seq_len):
    # Mirrors T5Wrapper.forward: transform -> generate -> decode.
    # TODO(synk): T5Transform text tokenization/detokenization skipped; token ids in/out.
    return generate(params, encoder_tokens, beam_size=beam_size, max_seq_len=max_seq_len)


# --------------------------- main ---------------------------------------------

if __name__ == "__main__":
    root = jax.random.PRNGKey(0)
    k_params, k_tokens = jax.random.split(root)
    params = init_params(k_params)

    bsz, src_len = 2, 8
    encoder_tokens = jax.random.randint(
        k_tokens, (bsz, src_len), 2, CFG["vocab"], dtype=jnp.int32)
    encoder_tokens = encoder_tokens.at[1, 6:].set(CFG["padding_idx"])  # some padding

    beam_size, max_seq_len = 3, 4
    out_tokens = t5_wrapper_forward(params, encoder_tokens, beam_size, max_seq_len)
    jax.block_until_ready(out_tokens)
    assert out_tokens.shape == (bsz, max_seq_len + 1)
    print("KERNEL_OK")
</pallas_src>

<mosaic_0001>
module attributes {stable_mosaic.version = 11 : i64} {
  func.func @_enc_layer_kernel(%arg0: memref<16x32xf32, #tpu.memory_space<vmem>>, %arg1: memref<2x8xf32, #tpu.memory_space<vmem>>, %arg2: memref<4x8x8xf32, #tpu.memory_space<vmem>>, %arg3: memref<1x32xf32, #tpu.memory_space<vmem>>, %arg4: memref<32x96xbf16, #tpu.memory_space<vmem>>, %arg5: memref<32x32xbf16, #tpu.memory_space<vmem>>, %arg6: memref<1x32xf32, #tpu.memory_space<vmem>>, %arg7: memref<32x64xbf16, #tpu.memory_space<vmem>>, %arg8: memref<64x32xbf16, #tpu.memory_space<vmem>>, %arg9: memref<16x32xf32, #tpu.memory_space<vmem>>) attributes {dimension_semantics = [], scalar_prefetch = 0 : i64, scratch_operands = 0 : i64, tpu.core_type = #tpu.core_type<tc>} {
    %c0 = arith.constant 0 : index
    %c0_0 = arith.constant 0 : index
    %0 = vector.load %arg0[%c0, %c0_0] : memref<16x32xf32, #tpu.memory_space<vmem>>, vector<16x32xf32>
    %c0_1 = arith.constant 0 : index
    %c0_2 = arith.constant 0 : index
    %1 = vector.load %arg3[%c0_1, %c0_2] : memref<1x32xf32, #tpu.memory_space<vmem>>, vector<1x32xf32>
    %2 = arith.mulf %0, %0 : vector<16x32xf32>
    %cst = arith.constant dense<0.000000e+00> : vector<16xf32>
    %3 = vector.multi_reduction <add>, %2, %cst [1] : vector<16x32xf32> to vector<16xf32>
    %4 = vector.shape_cast %3 : vector<16xf32> to vector<16x1xf32>
    %cst_3 = arith.constant 3.200000e+01 : f32
    %5 = vector.broadcast %cst_3 : f32 to vector<16x1xf32>
    %6 = arith.divf %4, %5 : vector<16x1xf32>
    %cst_4 = arith.constant 9.99999997E-7 : f32
    %7 = vector.broadcast %cst_4 : f32 to vector<16x1xf32>
    %8 = arith.addf %6, %7 : vector<16x1xf32>
    %9 = math.rsqrt %8 : vector<16x1xf32>
    %10 = vector.broadcast %9 : vector<16x1xf32> to vector<16x32xf32>
    %11 = arith.mulf %0, %10 : vector<16x32xf32>
    %12 = vector.broadcast %1 : vector<1x32xf32> to vector<16x32xf32>
    %13 = arith.mulf %11, %12 : vector<16x32xf32>
    %14 = arith.truncf %13 : vector<16x32xf32> to vector<16x32xbf16>
    %c0_5 = arith.constant 0 : index
    %c0_6 = arith.constant 0 : index
    %15 = vector.load %arg4[%c0_5, %c0_6] : memref<32x96xbf16, #tpu.memory_space<vmem>>, vector<32x96xbf16>
    %cst_7 = arith.constant dense<0.000000e+00> : vector<16x96xf32>
    %16 = tpu.matmul %14, %15, %cst_7 {dimension_numbers = #tpu.dot_dimension_numbers<[1], [0], [0], [1], [0, 0, 1, 1], [], []>} : vector<16x32xbf16>, vector<32x96xbf16>, vector<16x96xf32> -> vector<16x96xf32>
    %17 = vector.extract_strided_slice %16 {offsets = [0, 0], sizes = [16, 8], strides = [1, 1]} : vector<16x96xf32> to vector<16x8xf32>
    %18 = vector.shape_cast %17 : vector<16x8xf32> to vector<2x1x8x8xf32>
    %19 = vector.extract_strided_slice %16 {offsets = [0, 8], sizes = [16, 8], strides = [1, 1]} : vector<16x96xf32> to vector<16x8xf32>
    %20 = vector.shape_cast %19 : vector<16x8xf32> to vector<2x1x8x8xf32>
    %21 = vector.extract_strided_slice %16 {offsets = [0, 16], sizes = [16, 8], strides = [1, 1]} : vector<16x96xf32> to vector<16x8xf32>
    %22 = vector.shape_cast %21 : vector<16x8xf32> to vector<2x1x8x8xf32>
    %23 = vector.extract_strided_slice %16 {offsets = [0, 24], sizes = [16, 8], strides = [1, 1]} : vector<16x96xf32> to vector<16x8xf32>
    %24 = vector.shape_cast %23 : vector<16x8xf32> to vector<2x1x8x8xf32>
    %25 = tpu.concatenate %18, %20, %22, %24 in 1 : vector<2x1x8x8xf32>, vector<2x1x8x8xf32>, vector<2x1x8x8xf32>, vector<2x1x8x8xf32> -> vector<2x4x8x8xf32>
    %26 = vector.shape_cast %25 : vector<2x4x8x8xf32> to vector<8x8x8xf32>
    %27 = arith.truncf %26 : vector<8x8x8xf32> to vector<8x8x8xbf16>
    %28 = vector.extract_strided_slice %16 {offsets = [0, 32], sizes = [16, 8], strides = [1, 1]} : vector<16x96xf32> to vector<16x8xf32>
    %29 = vector.shape_cast %28 : vector<16x8xf32> to vector<2x1x8x8xf32>
    %30 = vector.extract_strided_slice %16 {offsets = [0, 40], sizes = [16, 8], strides = [1, 1]} : vector<16x96xf32> to vector<16x8xf32>
    %31 = vector.shape_cast %30 : vector<16x8xf32> to vector<2x1x8x8xf32>
    %32 = vector.extract_strided_slice %16 {offsets = [0, 48], sizes = [16, 8], strides = [1, 1]} : vector<16x96xf32> to vector<16x8xf32>
    %33 = vector.shape_cast %32 : vector<16x8xf32> to vector<2x1x8x8xf32>
    %34 = vector.extract_strided_slice %16 {offsets = [0, 56], sizes = [16, 8], strides = [1, 1]} : vector<16x96xf32> to vector<16x8xf32>
    %35 = vector.shape_cast %34 : vector<16x8xf32> to vector<2x1x8x8xf32>
    %36 = tpu.concatenate %29, %31, %33, %35 in 1 : vector<2x1x8x8xf32>, vector<2x1x8x8xf32>, vector<2x1x8x8xf32>, vector<2x1x8x8xf32> -> vector<2x4x8x8xf32>
    %37 = vector.shape_cast %36 : vector<2x4x8x8xf32> to vector<8x8x8xf32>
    %38 = arith.truncf %37 : vector<8x8x8xf32> to vector<8x8x8xbf16>
    %39 = vector.extract_strided_slice %16 {offsets = [0, 64], sizes = [16, 8], strides = [1, 1]} : vector<16x96xf32> to vector<16x8xf32>
    %40 = vector.shape_cast %39 : vector<16x8xf32> to vector<2x1x8x8xf32>
    %41 = vector.extract_strided_slice %16 {offsets = [0, 72], sizes = [16, 8], strides = [1, 1]} : vector<16x96xf32> to vector<16x8xf32>
    %42 = vector.shape_cast %41 : vector<16x8xf32> to vector<2x1x8x8xf32>
    %43 = vector.extract_strided_slice %16 {offsets = [0, 80], sizes = [16, 8], strides = [1, 1]} : vector<16x96xf32> to vector<16x8xf32>
    %44 = vector.shape_cast %43 : vector<16x8xf32> to vector<2x1x8x8xf32>
    %45 = vector.extract_strided_slice %16 {offsets = [0, 88], sizes = [16, 8], strides = [1, 1]} : vector<16x96xf32> to vector<16x8xf32>
    %46 = vector.shape_cast %45 : vector<16x8xf32> to vector<2x1x8x8xf32>
    %47 = tpu.concatenate %40, %42, %44, %46 in 1 : vector<2x1x8x8xf32>, vector<2x1x8x8xf32>, vector<2x1x8x8xf32>, vector<2x1x8x8xf32> -> vector<2x4x8x8xf32>
    %48 = vector.shape_cast %47 : vector<2x4x8x8xf32> to vector<8x8x8xf32>
    %49 = arith.truncf %48 : vector<8x8x8xf32> to vector<8x8x8xbf16>
    "tpu.trace_start"() <{level = 10 : i32, message = "gqd,gkd->gqk"}> : () -> ()
    %cst_8 = arith.constant dense<0.000000e+00> : vector<8x8x8xf32>
    %50 = tpu.matmul %27, %38, %cst_8 {dimension_numbers = #tpu.dot_dimension_numbers<[2], [2], [1], [1], [0, 0, 0, 1, 1, 1], [0], [0]>} : vector<8x8x8xbf16>, vector<8x8x8xbf16>, vector<8x8x8xf32> -> vector<8x8x8xf32>
    "tpu.trace_stop"() : () -> ()
    %51 = vector.shape_cast %50 : vector<8x8x8xf32> to vector<2x4x8x8xf32>
    %c0_9 = arith.constant 0 : index
    %c0_10 = arith.constant 0 : index
    %52 = vector.load %arg1[%c0_9, %c0_10] : memref<2x8xf32, #tpu.memory_space<vmem>>, vector<2x8xf32>
    %53 = vector.shape_cast %52 : vector<2x8xf32> to vector<2x1x1x8xf32>
    %54 = vector.broadcast %53 : vector<2x1x1x8xf32> to vector<2x4x8x8xf32>
    %55 = arith.addf %51, %54 : vector<2x4x8x8xf32>
    %c0_11 = arith.constant 0 : index
    %c0_12 = arith.constant 0 : index
    %c0_13 = arith.constant 0 : index
    %56 = vector.load %arg2[%c0_11, %c0_12, %c0_13] : memref<4x8x8xf32, #tpu.memory_space<vmem>>, vector<4x8x8xf32>
    %57 = vector.shape_cast %56 : vector<4x8x8xf32> to vector<1x4x8x8xf32>
    %58 = vector.broadcast %57 : vector<1x4x8x8xf32> to vector<2x4x8x8xf32>
    %59 = arith.addf %55, %58 : vector<2x4x8x8xf32>
    %60 = vector.shape_cast %59 : vector<2x4x8x8xf32> to vector<8x8x8xf32>
    %cst_14 = arith.constant dense<0xFF800000> : vector<8x8xf32>
    %61 = vector.multi_reduction <maximumf>, %60, %cst_14 [2] : vector<8x8x8xf32> to vector<8x8xf32>
    %62 = vector.shape_cast %61 : vector<8x8xf32> to vector<8x8x1xf32>
    %63 = vector.broadcast %62 : vector<8x8x1xf32> to vector<8x8x8xf32>
    %64 = arith.subf %60, %63 : vector<8x8x8xf32>
    %65 = math.exp %64 : vector<8x8x8xf32>
    %cst_15 = arith.constant dense<0.000000e+00> : vector<8x8xf32>
    %66 = vector.multi_reduction <add>, %65, %cst_15 [2] : vector<8x8x8xf32> to vector<8x8xf32>
    %67 = vector.shape_cast %66 : vector<8x8xf32> to vector<8x8x1xf32>
    %68 = vector.broadcast %67 : vector<8x8x1xf32> to vector<8x8x8xf32>
    %69 = arith.divf %65, %68 : vector<8x8x8xf32>
    %70 = arith.truncf %69 : vector<8x8x8xf32> to vector<8x8x8xbf16>
    "tpu.trace_start"() <{level = 10 : i32, message = "gqk,gkd->gqd"}> : () -> ()
    %cst_16 = arith.constant dense<0.000000e+00> : vector<8x8x8xf32>
    %71 = tpu.matmul %70, %49, %cst_16 {dimension_numbers = #tpu.dot_dimension_numbers<[2], [1], [1], [2], [0, 0, 0, 1, 1, 2], [0], [0]>} : vector<8x8x8xbf16>, vector<8x8x8xbf16>, vector<8x8x8xf32> -> vector<8x8x8xf32>
    "tpu.trace_stop"() : () -> ()
    %72 = vector.shape_cast %71 : vector<8x8x8xf32> to vector<2x4x8x8xf32>
    %73 = vector.extract_strided_slice %72 {offsets = [0, 0, 0, 0], sizes = [2, 1, 8, 8], strides = [1, 1, 1, 1]} : vector<2x4x8x8xf32> to vector<2x1x8x8xf32>
    %74 = vector.shape_cast %73 : vector<2x1x8x8xf32> to vector<2x8x8xf32>
    %75 = vector.extract_strided_slice %72 {offsets = [0, 1, 0, 0], sizes = [2, 1, 8, 8], strides = [1, 1, 1, 1]} : vector<2x4x8x8xf32> to vector<2x1x8x8xf32>
    %76 = vector.shape_cast %75 : vector<2x1x8x8xf32> to vector<2x8x8xf32>
    %77 = vector.extract_strided_slice %72 {offsets = [0, 2, 0, 0], sizes = [2, 1, 8, 8], strides = [1, 1, 1, 1]} : vector<2x4x8x8xf32> to vector<2x1x8x8xf32>
    %78 = vector.shape_cast %77 : vector<2x1x8x8xf32> to vector<2x8x8xf32>
    %79 = vector.extract_strided_slice %72 {offsets = [0, 3, 0, 0], sizes = [2, 1, 8, 8], strides = [1, 1, 1, 1]} : vector<2x4x8x8xf32> to vector<2x1x8x8xf32>
    %80 = vector.shape_cast %79 : vector<2x1x8x8xf32> to vector<2x8x8xf32>
    %81 = tpu.concatenate %74, %76, %78, %80 in 2 : vector<2x8x8xf32>, vector<2x8x8xf32>, vector<2x8x8xf32>, vector<2x8x8xf32> -> vector<2x8x32xf32>
    %82 = vector.shape_cast %81 : vector<2x8x32xf32> to vector<16x32xf32>
    %83 = arith.truncf %82 : vector<16x32xf32> to vector<16x32xbf16>
    %c0_17 = arith.constant 0 : index
    %c0_18 = arith.constant 0 : index
    %84 = vector.load %arg5[%c0_17, %c0_18] : memref<32x32xbf16, #tpu.memory_space<vmem>>, vector<32x32xbf16>
    %cst_19 = arith.constant dense<0.000000e+00> : vector<16x32xf32>
    %85 = tpu.matmul %83, %84, %cst_19 {dimension_numbers = #tpu.dot_dimension_numbers<[1], [0], [0], [1], [0, 0, 1, 1], [], []>} : vector<16x32xbf16>, vector<32x32xbf16>, vector<16x32xf32> -> vector<16x32xf32>
    %86 = arith.addf %0, %85 : vector<16x32xf32>
    %c0_20 = arith.constant 0 : index
    %c0_21 = arith.constant 0 : index
    %87 = vector.load %arg6[%c0_20, %c0_21] : memref<1x32xf32, #tpu.memory_space<vmem>>, vector<1x32xf32>
    %88 = arith.mulf %86, %86 : vector<16x32xf32>
    %cst_22 = arith.constant dense<0.000000e+00> : vector<16xf32>
    %89 = vector.multi_reduction <add>, %88, %cst_22 [1] : vector<16x32xf32> to vector<16xf32>
    %90 = vector.shape_cast %89 : vector<16xf32> to vector<16x1xf32>
    %cst_23 = arith.constant 3.200000e+01 : f32
    %91 = vector.broadcast %cst_23 : f32 to vector<16x1xf32>
    %92 = arith.divf %90, %91 : vector<16x1xf32>
    %cst_24 = arith.constant 9.99999997E-7 : f32
    %93 = vector.broadcast %cst_24 : f32 to vector<16x1xf32>
    %94 = arith.addf %92, %93 : vector<16x1xf32>
    %95 = math.rsqrt %94 : vector<16x1xf32>
    %96 = vector.broadcast %95 : vector<16x1xf32> to vector<16x32xf32>
    %97 = arith.mulf %86, %96 : vector<16x32xf32>
    %98 = vector.broadcast %87 : vector<1x32xf32> to vector<16x32xf32>
    %99 = arith.mulf %97, %98 : vector<16x32xf32>
    %100 = arith.truncf %99 : vector<16x32xf32> to vector<16x32xbf16>
    %c0_25 = arith.constant 0 : index
    %c0_26 = arith.constant 0 : index
    %101 = vector.load %arg7[%c0_25, %c0_26] : memref<32x64xbf16, #tpu.memory_space<vmem>>, vector<32x64xbf16>
    %cst_27 = arith.constant dense<0.000000e+00> : vector<16x64xf32>
    %102 = tpu.matmul %100, %101, %cst_27 {dimension_numbers = #tpu.dot_dimension_numbers<[1], [0], [0], [1], [0, 0, 1, 1], [], []>} : vector<16x32xbf16>, vector<32x64xbf16>, vector<16x64xf32> -> vector<16x64xf32>
    %cst_28 = arith.constant 0.000000e+00 : f32
    %103 = vector.broadcast %cst_28 : f32 to vector<16x64xf32>
    %104 = arith.maximumf %102, %103 : vector<16x64xf32>
    %105 = arith.truncf %104 : vector<16x64xf32> to vector<16x64xbf16>
    %c0_29 = arith.constant 0 : index
    %c0_30 = arith.constant 0 : index
    %106 = vector.load %arg8[%c0_29, %c0_30] : memref<64x32xbf16, #tpu.memory_space<vmem>>, vector<64x32xbf16>
    %cst_31 = arith.constant dense<0.000000e+00> : vector<16x32xf32>
    %107 = tpu.matmul %105, %106, %cst_31 {dimension_numbers = #tpu.dot_dimension_numbers<[1], [0], [0], [1], [0, 0, 1, 1], [], []>} : vector<16x64xbf16>, vector<64x32xbf16>, vector<16x32xf32> -> vector<16x32xf32>
    %108 = arith.addf %86, %107 : vector<16x32xf32>
    %c0_32 = arith.constant 0 : index
    %c0_33 = arith.constant 0 : index
    %109 = vector.load %arg9[%c0_32, %c0_33] : memref<16x32xf32, #tpu.memory_space<vmem>>, vector<16x32xf32>
    tpu.vector_store %arg9[%c0_32, %c0_33], %108 {strides = array<i32>} : memref<16x32xf32, #tpu.memory_space<vmem>>, vector<16x32xf32>,
    return
  }
}

module attributes {stable_mosaic.version = 11 : i64} {
  func.func @_ln_matmul_kernel(%arg0: memref<16x32xf32, #tpu.memory_space<vmem>>, %arg1: memref<1x32xf32, #tpu.memory_space<vmem>>, %arg2: memref<32x64xbf16, #tpu.memory_space<vmem>>, %arg3: memref<16x64xf32, #tpu.memory_space<vmem>>) attributes {dimension_semantics = [], scalar_prefetch = 0 : i64, scratch_operands = 0 : i64, tpu.core_type = #tpu.core_type<tc>} {
    %c0 = arith.constant 0 : index
    %c0_0 = arith.constant 0 : index
    %0 = vector.load %arg0[%c0, %c0_0] : memref<16x32xf32, #tpu.memory_space<vmem>>, vector<16x32xf32>
    %c0_1 = arith.constant 0 : index
    %c0_2 = arith.constant 0 : index
    %1 = vector.load %arg1[%c0_1, %c0_2] : memref<1x32xf32, #tpu.memory_space<vmem>>, vector<1x32xf32>
    %2 = arith.mulf %0, %0 : vector<16x32xf32>
    %cst = arith.constant dense<0.000000e+00> : vector<16xf32>
    %3 = vector.multi_reduction <add>, %2, %cst [1] : vector<16x32xf32> to vector<16xf32>
    %4 = vector.shape_cast %3 : vector<16xf32> to vector<16x1xf32>
    %cst_3 = arith.constant 3.200000e+01 : f32
    %5 = vector.broadcast %cst_3 : f32 to vector<16x1xf32>
    %6 = arith.divf %4, %5 : vector<16x1xf32>
    %cst_4 = arith.constant 9.99999997E-7 : f32
    %7 = vector.broadcast %cst_4 : f32 to vector<16x1xf32>
    %8 = arith.addf %6, %7 : vector<16x1xf32>
    %9 = math.rsqrt %8 : vector<16x1xf32>
    %10 = vector.broadcast %9 : vector<16x1xf32> to vector<16x32xf32>
    %11 = arith.mulf %0, %10 : vector<16x32xf32>
    %12 = vector.broadcast %1 : vector<1x32xf32> to vector<16x32xf32>
    %13 = arith.mulf %11, %12 : vector<16x32xf32>
    %14 = arith.truncf %13 : vector<16x32xf32> to vector<16x32xbf16>
    %c0_5 = arith.constant 0 : index
    %c0_6 = arith.constant 0 : index
    %15 = vector.load %arg2[%c0_5, %c0_6] : memref<32x64xbf16, #tpu.memory_space<vmem>>, vector<32x64xbf16>
    %cst_7 = arith.constant dense<0.000000e+00> : vector<16x64xf32>
    %16 = tpu.matmul %14, %15, %cst_7 {dimension_numbers = #tpu.dot_dimension_numbers<[1], [0], [0], [1], [0, 0, 1, 1], [], []>} : vector<16x32xbf16>, vector<32x64xbf16>, vector<16x64xf32> -> vector<16x64xf32>
    %c0_8 = arith.constant 0 : index
    %c0_9 = arith.constant 0 : index
    %17 = vector.load %arg3[%c0_8, %c0_9] : memref<16x64xf32, #tpu.memory_space<vmem>>, vector<16x64xf32>
    tpu.vector_store %arg3[%c0_8, %c0_9], %16 {strides = array<i32>} : memref<16x64xf32, #tpu.memory_space<vmem>>, vector<16x64xf32>,
    return
  }
}

module attributes {stable_mosaic.version = 11 : i64} {
  func.func @_decode_step_kernel(%arg0: memref<1xi32, #tpu.memory_space<smem>>, %arg1: memref<6xi32, #tpu.memory_space<smem>>, %arg2: memref<6xi32, #tpu.memory_space<smem>>, %arg3: memref<6x1xi32, #tpu.memory_space<vmem>>, %arg4: memref<64x32xf32, #tpu.memory_space<vmem>>, %arg5: memref<6x4xf32, #tpu.memory_space<vmem>>, %arg6: memref<2x6x4x32xbf16, #tpu.memory_space<vmem>>, %arg7: memref<2x6x4x32xbf16, #tpu.memory_space<vmem>>, %arg8: memref<2x2x8x32xbf16, #tpu.memory_space<vmem>>, %arg9: memref<2x2x8x32xbf16, #tpu.memory_space<vmem>>, %arg10: memref<2x8xf32, #tpu.memory_space<vmem>>, %arg11: memref<4x4x4xf32, #tpu.memory_space<vmem>>, %arg12: memref<2x1x32xf32, #tpu.memory_space<vmem>>, %arg13: memref<2x32x96xbf16, #tpu.memory_space<vmem>>, %arg14: memref<2x32x32xbf16, #tpu.memory_space<vmem>>, %arg15: memref<2x1x32xf32, #tpu.memory_space<vmem>>, %arg16: memref<2x32x32xbf16, #tpu.memory_space<vmem>>, %arg17: memref<2x32x32xbf16, #tpu.memory_space<vmem>>, %arg18: memref<2x1x32xf32, #tpu.memory_space<vmem>>, %arg19: memref<2x32x64xbf16, #tpu.memory_space<vmem>>, %arg20: memref<2x64x32xbf16, #tpu.memory_space<vmem>>, %arg21: memref<1x32xf32, #tpu.memory_space<vmem>>, %arg22: memref<32x64xbf16, #tpu.memory_space<vmem>>, %arg23: memref<6x64xf32, #tpu.memory_space<vmem>>, %arg24: memref<6x4xf32, #tpu.memory_space<vmem>>, %arg25: memref<2x6x4x32xbf16, #tpu.memory_space<vmem>>, %arg26: memref<2x6x4x32xbf16, #tpu.memory_space<vmem>>) attributes {dimension_semantics = [], scalar_prefetch = 0 : i64, scratch_operands = 0 : i64, tpu.core_type = #tpu.core_type<tc>} {
    %c0 = arith.constant 0 : index
    %0 = memref.load %arg0[%c0] : memref<1xi32, #tpu.memory_space<smem>>
    %c0_0 = arith.constant 0 : index
    %1 = memref.load %arg1[%c0_0] : memref<6xi32, #tpu.memory_space<smem>>
    %2 = arith.index_cast %1 : i32 to index
    %c0_1 = arith.constant 0 : index
    %3 = vector.load %arg4[%2, %c0_1] : memref<64x32xf32, #tpu.memory_space<vmem>>, vector<1x32xf32>
    %c1 = arith.constant 1 : index
    %4 = memref.load %arg1[%c1] : memref<6xi32, #tpu.memory_space<smem>>
    %5 = arith.index_cast %4 : i32 to index
    %c0_2 = arith.constant 0 : index
    %6 = vector.load %arg4[%5, %c0_2] : memref<64x32xf32, #tpu.memory_space<vmem>>, vector<1x32xf32>
    %c2 = arith.constant 2 : index
    %7 = memref.load %arg1[%c2] : memref<6xi32, #tpu.memory_space<smem>>
    %8 = arith.index_cast %7 : i32 to index
    %c0_3 = arith.constant 0 : index
    %9 = vector.load %arg4[%8, %c0_3] : memref<64x32xf32, #tpu.memory_space<vmem>>, vector<1x32xf32>
    %c3 = arith.constant 3 : index
    %10 = memref.load %arg1[%c3] : memref<6xi32, #tpu.memory_space<smem>>
    %11 = arith.index_cast %10 : i32 to index
    %c0_4 = arith.constant 0 : index
    %12 = vector.load %arg4[%11, %c0_4] : memref<64x32xf32, #tpu.memory_space<vmem>>, vector<1x32xf32>
    %c4 = arith.constant 4 : index
    %13 = memref.load %arg1[%c4] : memref<6xi32, #tpu.memory_space<smem>>
    %14 = arith.index_cast %13 : i32 to index
    %c0_5 = arith.constant 0 : index
    %15 = vector.load %arg4[%14, %c0_5] : memref<64x32xf32, #tpu.memory_space<vmem>>, vector<1x32xf32>
    %c5 = arith.constant 5 : index
    %16 = memref.load %arg1[%c5] : memref<6xi32, #tpu.memory_space<smem>>
    %17 = arith.index_cast %16 : i32 to index
    %c0_6 = arith.constant 0 : index
    %18 = vector.load %arg4[%17, %c0_6] : memref<64x32xf32, #tpu.memory_space<vmem>>, vector<1x32xf32>
    %19 = tpu.concatenate %3, %6, %9, %12, %15, %18 in 0 : vector<1x32xf32>, vector<1x32xf32>, vector<1x32xf32>, vector<1x32xf32>, vector<1x32xf32>, vector<1x32xf32> -> vector<6x32xf32>
    %c0_7 = arith.constant 0 : index
    %20 = memref.load %arg2[%c0_7] : memref<6xi32, #tpu.memory_space<smem>>
    %21 = arith.index_cast %20 : i32 to index
    %c0_8 = arith.constant 0 : index
    %22 = vector.load %arg5[%21, %c0_8] : memref<6x4xf32, #tpu.memory_space<vmem>>, vector<1x4xf32>
    %c1_9 = arith.constant 1 : index
    %23 = memref.load %arg2[%c1_9] : memref<6xi32, #tpu.memory_space<smem>>
    %24 = arith.index_cast %23 : i32 to index
    %c0_10 = arith.constant 0 : index
    %25 = vector.load %arg5[%24, %c0_10] : memref<6x4xf32, #tpu.memory_space<vmem>>, vector<1x4xf32>
    %c2_11 = arith.constant 2 : index
    %26 = memref.load %arg2[%c2_11] : memref<6xi32, #tpu.memory_space<smem>>
    %27 = arith.index_cast %26 : i32 to index
    %c0_12 = arith.constant 0 : index
    %28 = vector.load %arg5[%27, %c0_12] : memref<6x4xf32, #tpu.memory_space<vmem>>, vector<1x4xf32>
    %c3_13 = arith.constant 3 : index
    %29 = memref.load %arg2[%c3_13] : memref<6xi32, #tpu.memory_space<smem>>
    %30 = arith.index_cast %29 : i32 to index
    %c0_14 = arith.constant 0 : index
    %31 = vector.load %arg5[%30, %c0_14] : memref<6x4xf32, #tpu.memory_space<vmem>>, vector<1x4xf32>
    %c4_15 = arith.constant 4 : index
    %32 = memref.load %arg2[%c4_15] : memref<6xi32, #tpu.memory_space<smem>>
    %33 = arith.index_cast %32 : i32 to index
    %c0_16 = arith.constant 0 : index
    %34 = vector.load %arg5[%33, %c0_16] : memref<6x4xf32, #tpu.memory_space<vmem>>, vector<1x4xf32>
    %c5_17 = arith.constant 5 : index
    %35 = memref.load %arg2[%c5_17] : memref<6xi32, #tpu.memory_space<smem>>
    %36 = arith.index_cast %35 : i32 to index
    %c0_18 = arith.constant 0 : index
    %37 = vector.load %arg5[%36, %c0_18] : memref<6x4xf32, #tpu.memory_space<vmem>>, vector<1x4xf32>
    %38 = tpu.concatenate %22, %25, %28, %31, %34, %37 in 0 : vector<1x4xf32>, vector<1x4xf32>, vector<1x4xf32>, vector<1x4xf32>, vector<1x4xf32>, vector<1x4xf32> -> vector<6x4xf32>
    %c0_i32 = arith.constant 0 : i32
    %39 = arith.cmpi sgt, %0, %c0_i32 : i32
    %c0_19 = arith.constant 0 : index
    %c0_20 = arith.constant 0 : index
    %40 = vector.load %arg3[%c0_19, %c0_20] : memref<6x1xi32, #tpu.memory_space<vmem>>, vector<6x1xi32>
    %c0_i32_21 = arith.constant 0 : i32
    %41 = vector.broadcast %c0_i32_21 : i32 to vector<6x1xi32>
    %42 = arith.cmpi eq, %40, %41 : vector<6x1xi32>
    %43 = vector.broadcast %39 : i1 to vector<6x1xi1>
    %44 = arith.andi %43, %42 : vector<6x1xi1>
    %cst = arith.constant -1.000000e+09 : f32
    %cst_22 = arith.constant 0.000000e+00 : f32
    %45 = vector.broadcast %cst : f32 to vector<6x1xf32>
    %46 = vector.broadcast %cst_22 : f32 to vector<6x1xf32>
    %47 = arith.select %44, %45, %46 : vector<6x1xi1>, vector<6x1xf32>
    %48 = tpu.iota {dimensions = array<i32: 1>} : vector<6x4xi32>
    %49 = vector.broadcast %0 : i32 to vector<6x4xi32>
    %50 = arith.cmpi eq, %48, %49 : vector<6x4xi32>
    %51 = vector.shape_cast %47 : vector<6x1xf32> to vector<6x1xf32>
    %52 = vector.broadcast %51 : vector<6x1xf32> to vector<6x4xf32>
    %53 = arith.select %50, %52, %38 : vector<6x4xi1>, vector<6x4xf32>
    %c0_23 = arith.constant 0 : index
    %c0_24 = arith.constant 0 : index
    %54 = vector.load %arg24[%c0_23, %c0_24] : memref<6x4xf32, #tpu.memory_space<vmem>>, vector<6x4xf32>
    tpu.vector_store %arg24[%c0_23, %c0_24], %53 {strides = array<i32>} : memref<6x4xf32, #tpu.memory_space<vmem>>, vector<6x4xf32>,
    %55 = arith.index_cast %0 : i32 to index
    %c0_25 = arith.constant 0 : index
    %c0_26 = arith.constant 0 : index
    %56 = vector.load %arg11[%55, %c0_25, %c0_26] : memref<4x4x4xf32, #tpu.memory_space<vmem>>, vector<1x4x4xf32>
    %c0_27 = arith.constant 0 : index
    %c0_28 = arith.constant 0 : index
    %c0_29 = arith.constant 0 : index
    %57 = vector.load %arg12[%c0_27, %c0_28, %c0_29] : memref<2x1x32xf32, #tpu.memory_space<vmem>>, vector<1x1x32xf32>
    %58 = vector.shape_cast %57 : vector<1x1x32xf32> to vector<1x32xf32>
    %59 = arith.mulf %19, %19 : vector<6x32xf32>
    %cst_30 = arith.constant dense<0.000000e+00> : vector<6xf32>
    %60 = vector.multi_reduction <add>, %59, %cst_30 [1] : vector<6x32xf32> to vector<6xf32>
    %61 = vector.shape_cast %60 : vector<6xf32> to vector<6x1xf32>
    %cst_31 = arith.constant 3.200000e+01 : f32
    %62 = vector.broadcast %cst_31 : f32 to vector<6x1xf32>
    %63 = arith.divf %61, %62 : vector<6x1xf32>
    %cst_32 = arith.constant 9.99999997E-7 : f32
    %64 = vector.broadcast %cst_32 : f32 to vector<6x1xf32>
    %65 = arith.addf %63, %64 : vector<6x1xf32>
    %66 = math.rsqrt %65 : vector<6x1xf32>
    %67 = vector.broadcast %66 : vector<6x1xf32> to vector<6x32xf32>
    %68 = arith.mulf %19, %67 : vector<6x32xf32>
    %69 = vector.broadcast %58 : vector<1x32xf32> to vector<6x32xf32>
    %70 = arith.mulf %68, %69 : vector<6x32xf32>
    %71 = arith.truncf %70 : vector<6x32xf32> to vector<6x32xbf16>
    %c0_33 = arith.constant 0 : index
    %c0_34 = arith.constant 0 : index
    %c0_35 = arith.constant 0 : index
    %72 = vector.load %arg13[%c0_33, %c0_34, %c0_35] : memref<2x32x96xbf16, #tpu.memory_space<vmem>>, vector<1x32x96xbf16>
    %73 = vector.shape_cast %72 : vector<1x32x96xbf16> to vector<32x96xbf16>
    %cst_36 = arith.constant dense<0.000000e+00> : vector<6x96xf32>
    %74 = tpu.matmul %71, %73, %cst_36 {dimension_numbers = #tpu.dot_dimension_numbers<[1], [0], [0], [1], [0, 0, 1, 1], [], []>} : vector<6x32xbf16>, vector<32x96xbf16>, vector<6x96xf32> -> vector<6x96xf32>
    %75 = vector.extract_strided_slice %74 {offsets = [0, 0], sizes = [6, 32], strides = [1, 1]} : vector<6x96xf32> to vector<6x32xf32>
    %76 = vector.extract_strided_slice %74 {offsets = [0, 32], sizes = [6, 32], strides = [1, 1]} : vector<6x96xf32> to vector<6x32xf32>
    %77 = vector.extract_strided_slice %74 {offsets = [0, 64], sizes = [6, 32], strides = [1, 1]} : vector<6x96xf32> to vector<6x32xf32>
    %c0_37 = arith.constant 0 : index
    %78 = memref.load %arg2[%c0_37] : memref<6xi32, #tpu.memory_space<smem>>
    %c0_38 = arith.constant 0 : index
    %79 = arith.index_cast %78 : i32 to index
    %c0_39 = arith.constant 0 : index
    %c0_40 = arith.constant 0 : index
    %80 = vector.load %arg6[%c0_38, %79, %c0_39, %c0_40] : memref<2x6x4x32xbf16, #tpu.memory_space<vmem>>, vector<1x1x4x32xbf16>
    %81 = vector.shape_cast %80 : vector<1x1x4x32xbf16> to vector<1x4x32xbf16>
    %c1_41 = arith.constant 1 : index
    %82 = memref.load %arg2[%c1_41] : memref<6xi32, #tpu.memory_space<smem>>
    %c0_42 = arith.constant 0 : index
    %83 = arith.index_cast %82 : i32 to index
    %c0_43 = arith.constant 0 : index
    %c0_44 = arith.constant 0 : index
    %84 = vector.load %arg6[%c0_42, %83, %c0_43, %c0_44] : memref<2x6x4x32xbf16, #tpu.memory_space<vmem>>, vector<1x1x4x32xbf16>
    %85 = vector.shape_cast %84 : vector<1x1x4x32xbf16> to vector<1x4x32xbf16>
    %c2_45 = arith.constant 2 : index
    %86 = memref.load %arg2[%c2_45] : memref<6xi32, #tpu.memory_space<smem>>
    %c0_46 = arith.constant 0 : index
    %87 = arith.index_cast %86 : i32 to index
    %c0_47 = arith.constant 0 : index
    %c0_48 = arith.constant 0 : index
    %88 = vector.load %arg6[%c0_46, %87, %c0_47, %c0_48] : memref<2x6x4x32xbf16, #tpu.memory_space<vmem>>, vector<1x1x4x32xbf16>
    %89 = vector.shape_cast %88 : vector<1x1x4x32xbf16> to vector<1x4x32xbf16>
    %c3_49 = arith.constant 3 : index
    %90 = memref.load %arg2[%c3_49] : memref<6xi32, #tpu.memory_space<smem>>
    %c0_50 = arith.constant 0 : index
    %91 = arith.index_cast %90 : i32 to index
    %c0_51 = arith.constant 0 : index
    %c0_52 = arith.constant 0 : index
    %92 = vector.load %arg6[%c0_50, %91, %c0_51, %c0_52] : memref<2x6x4x32xbf16, #tpu.memory_space<vmem>>, vector<1x1x4x32xbf16>
    %93 = vector.shape_cast %92 : vector<1x1x4x32xbf16> to vector<1x4x32xbf16>
    %c4_53 = arith.constant 4 : index
    %94 = memref.load %arg2[%c4_53] : memref<6xi32, #tpu.memory_space<smem>>
    %c0_54 = arith.constant 0 : index
    %95 = arith.index_cast %94 : i32 to index
    %c0_55 = arith.constant 0 : index
    %c0_56 = arith.constant 0 : index
    %96 = vector.load %arg6[%c0_54, %95, %c0_55, %c0_56] : memref<2x6x4x32xbf16, #tpu.memory_space<vmem>>, vector<1x1x4x32xbf16>
    %97 = vector.shape_cast %96 : vector<1x1x4x32xbf16> to vector<1x4x32xbf16>
    %c5_57 = arith.constant 5 : index
    %98 = memref.load %arg2[%c5_57] : memref<6xi32, #tpu.memory_space<smem>>
    %c0_58 = arith.constant 0 : index
    %99 = arith.index_cast %98 : i32 to index
    %c0_59 = arith.constant 0 : index
    %c0_60 = arith.constant 0 : index
    %100 = vector.load %arg6[%c0_58, %99, %c0_59, %c0_60] : memref<2x6x4x32xbf16, #tpu.memory_space<vmem>>, vector<1x1x4x32xbf16>
    %101 = vector.shape_cast %100 : vector<1x1x4x32xbf16> to vector<1x4x32xbf16>
    %102 = tpu.concatenate %81, %85, %89, %93, %97, %101 in 0 : vector<1x4x32xbf16>, vector<1x4x32xbf16>, vector<1x4x32xbf16>, vector<1x4x32xbf16>, vector<1x4x32xbf16>, vector<1x4x32xbf16> -> vector<6x4x32xbf16>
    %c0_61 = arith.constant 0 : index
    %103 = memref.load %arg2[%c0_61] : memref<6xi32, #tpu.memory_space<smem>>
    %c0_62 = arith.constant 0 : index
    %104 = arith.index_cast %103 : i32 to index
    %c0_63 = arith.constant 0 : index
    %c0_64 = arith.constant 0 : index
    %105 = vector.load %arg7[%c0_62, %104, %c0_63, %c0_64] : memref<2x6x4x32xbf16, #tpu.memory_space<vmem>>, vector<1x1x4x32xbf16>
    %106 = vector.shape_cast %105 : vector<1x1x4x32xbf16> to vector<1x4x32xbf16>
    %c1_65 = arith.constant 1 : index
    %107 = memref.load %arg2[%c1_65] : memref<6xi32, #tpu.memory_space<smem>>
    %c0_66 = arith.constant 0 : index
    %108 = arith.index_cast %107 : i32 to index
    %c0_67 = arith.constant 0 : index
    %c0_68 = arith.constant 0 : index
    %109 = vector.load %arg7[%c0_66, %108, %c0_67, %c0_68] : memref<2x6x4x32xbf16, #tpu.memory_space<vmem>>, vector<1x1x4x32xbf16>
    %110 = vector.shape_cast %109 : vector<1x1x4x32xbf16> to vector<1x4x32xbf16>
    %c2_69 = arith.constant 2 : index
    %111 = memref.load %arg2[%c2_69] : memref<6xi32, #tpu.memory_space<smem>>
    %c0_70 = arith.constant 0 : index
    %112 = arith.index_cast %111 : i32 to index
    %c0_71 = arith.constant 0 : index
    %c0_72 = arith.constant 0 : index
    %113 = vector.load %arg7[%c0_70, %112, %c0_71, %c0_72] : memref<2x6x4x32xbf16, #tpu.memory_space<vmem>>, vector<1x1x4x32xbf16>
    %114 = vector.shape_cast %113 : vector<1x1x4x32xbf16> to vector<1x4x32xbf16>
    %c3_73 = arith.constant 3 : index
    %115 = memref.load %arg2[%c3_73] : memref<6xi32, #tpu.memory_space<smem>>
    %c0_74 = arith.constant 0 : index
    %116 = arith.index_cast %115 : i32 to index
    %c0_75 = arith.constant 0 : index
    %c0_76 = arith.constant 0 : index
    %117 = vector.load %arg7[%c0_74, %116, %c0_75, %c0_76] : memref<2x6x4x32xbf16, #tpu.memory_space<vmem>>, vector<1x1x4x32xbf16>
    %118 = vector.shape_cast %117 : vector<1x1x4x32xbf16> to vector<1x4x32xbf16>
    %c4_77 = arith.constant 4 : index
    %119 = memref.load %arg2[%c4_77] : memref<6xi32, #tpu.memory_space<smem>>
    %c0_78 = arith.constant 0 : index
    %120 = arith.index_cast %119 : i32 to index
    %c0_79 = arith.constant 0 : index
    %c0_80 = arith.constant 0 : index
    %121 = vector.load %arg7[%c0_78, %120, %c0_79, %c0_80] : memref<2x6x4x32xbf16, #tpu.memory_space<vmem>>, vector<1x1x4x32xbf16>
    %122 = vector.shape_cast %121 : vector<1x1x4x32xbf16> to vector<1x4x32xbf16>
    %c5_81 = arith.constant 5 : index
    %123 = memref.load %arg2[%c5_81] : memref<6xi32, #tpu.memory_space<smem>>
    %c0_82 = arith.constant 0 : index
    %124 = arith.index_cast %123 : i32 to index
    %c0_83 = arith.constant 0 : index
    %c0_84 = arith.constant 0 : index
    %125 = vector.load %arg7[%c0_82, %124, %c0_83, %c0_84] : memref<2x6x4x32xbf16, #tpu.memory_space<vmem>>, vector<1x1x4x32xbf16>
    %126 = vector.shape_cast %125 : vector<1x1x4x32xbf16> to vector<1x4x32xbf16>
    %127 = tpu.concatenate %106, %110, %114, %118, %122, %126 in 0 : vector<1x4x32xbf16>, vector<1x4x32xbf16>, vector<1x4x32xbf16>, vector<1x4x32xbf16>, vector<1x4x32xbf16>, vector<1x4x32xbf16> -> vector<6x4x32xbf16>
    %128 = tpu.iota {dimensions = array<i32: 1>} : vector<6x4x32xi32>
    %129 = vector.broadcast %0 : i32 to vector<6x4x32xi32>
    %130 = arith.cmpi eq, %128, %129 : vector<6x4x32xi32>
    %131 = vector.shape_cast %76 : vector<6x32xf32> to vector<6x1x32xf32>
    %132 = arith.extf %102 : vector<6x4x32xbf16> to vector<6x4x32xf32>
    %133 = vector.shape_cast %131 : vector<6x1x32xf32> to vector<6x1x32xf32>
    %134 = vector.broadcast %133 : vector<6x1x32xf32> to vector<6x4x32xf32>
    %135 = arith.select %130, %134, %132 : vector<6x4x32xi1>, vector<6x4x32xf32>
    %136 = vector.broadcast %0 : i32 to vector<6x4x32xi32>
    %137 = arith.cmpi eq, %128, %136 : vector<6x4x32xi32>
    %138 = vector.shape_cast %77 : vector<6x32xf32> to vector<6x1x32xf32>
    %139 = arith.extf %127 : vector<6x4x32xbf16> to vector<6x4x32xf32>
    %140 = vector.shape_cast %138 : vector<6x1x32xf32> to vector<6x1x32xf32>
    %141 = vector.broadcast %140 : vector<6x1x32xf32> to vector<6x4x32xf32>
    %142 = arith.select %137, %141, %139 : vector<6x4x32xi1>, vector<6x4x32xf32>
    %143 = arith.truncf %135 : vector<6x4x32xf32> to vector<6x4x32xbf16>
    %c0_85 = arith.constant 0 : index
    %c0_86 = arith.constant 0 : index
    %c0_87 = arith.constant 0 : index
    %c0_88 = arith.constant 0 : index
    %144 = vector.load %arg25[%c0_85, %c0_86, %c0_87, %c0_88] : memref<2x6x4x32xbf16, #tpu.memory_space<vmem>>, vector<1x6x4x32xbf16>
    %145 = vector.shape_cast %144 : vector<1x6x4x32xbf16> to vector<6x4x32xbf16>
    %146 = vector.shape_cast %143 : vector<6x4x32xbf16> to vector<1x6x4x32xbf16>
    tpu.vector_store %arg25[%c0_85, %c0_86, %c0_87, %c0_88], %146 {strides = array<i32>} : memref<2x6x4x32xbf16, #tpu.memory_space<vmem>>, vector<1x6x4x32xbf16>,
    %147 = arith.truncf %142 : vector<6x4x32xf32> to vector<6x4x32xbf16>
    %c0_89 = arith.constant 0 : index
    %c0_90 = arith.constant 0 : index
    %c0_91 = arith.constant 0 : index
    %c0_92 = arith.constant 0 : index
    %148 = vector.load %arg26[%c0_89, %c0_90, %c0_91, %c0_92] : memref<2x6x4x32xbf16, #tpu.memory_space<vmem>>, vector<1x6x4x32xbf16>
    %149 = vector.shape_cast %148 : vector<1x6x4x32xbf16> to vector<6x4x32xbf16>
    %150 = vector.shape_cast %147 : vector<6x4x32xbf16> to vector<1x6x4x32xbf16>
    tpu.vector_store %arg26[%c0_89, %c0_90, %c0_91, %c0_92], %150 {strides = array<i32>} : memref<2x6x4x32xbf16, #tpu.memory_space<vmem>>, vector<1x6x4x32xbf16>,
    %151 = vector.extract_strided_slice %75 {offsets = [0, 0], sizes = [6, 8], strides = [1, 1]} : vector<6x32xf32> to vector<6x8xf32>
    %152 = vector.extract_strided_slice %135 {offsets = [0, 0, 0], sizes = [6, 4, 8], strides = [1, 1, 1]} : vector<6x4x32xf32> to vector<6x4x8xf32>
    %153 = vector.extract_strided_slice %142 {offsets = [0, 0, 0], sizes = [6, 4, 8], strides = [1, 1, 1]} : vector<6x4x32xf32> to vector<6x4x8xf32>
    %154 = vector.shape_cast %151 : vector<6x8xf32> to vector<6x1x8xf32>
    %155 = vector.broadcast %154 : vector<6x1x8xf32> to vector<6x4x8xf32>
    %156 = arith.mulf %155, %152 : vector<6x4x8xf32>
    %cst_93 = arith.constant dense<0.000000e+00> : vector<6x4xf32>
    %157 = vector.multi_reduction <add>, %156, %cst_93 [2] : vector<6x4x8xf32> to vector<6x4xf32>
    %158 = arith.addf %157, %53 : vector<6x4xf32>
    %159 = vector.extract_strided_slice %56 {offsets = [0, 0, 0], sizes = [1, 1, 4], strides = [1, 1, 1]} : vector<1x4x4xf32> to vector<1x1x4xf32>
    %160 = vector.shape_cast %159 : vector<1x1x4xf32> to vector<1x4xf32>
    %161 = vector.broadcast %160 : vector<1x4xf32> to vector<6x4xf32>
    %162 = arith.addf %158, %161 : vector<6x4xf32>
    %cst_94 = arith.constant dense<0xFF800000> : vector<6xf32>
    %163 = vector.multi_reduction <maximumf>, %162, %cst_94 [1] : vector<6x4xf32> to vector<6xf32>
    %164 = vector.shape_cast %163 : vector<6xf32> to vector<6x1xf32>
    %165 = vector.broadcast %164 : vector<6x1xf32> to vector<6x4xf32>
    %166 = arith.subf %162, %165 : vector<6x4xf32>
    %167 = math.exp %166 : vector<6x4xf32>
    %cst_95 = arith.constant dense<0.000000e+00> : vector<6xf32>
    %168 = vector.multi_reduction <add>, %167, %cst_95 [1] : vector<6x4xf32> to vector<6xf32>
    %169 = vector.shape_cast %168 : vector<6xf32> to vector<6x1xf32>
    %170 = vector.broadcast %169 : vector<6x1xf32> to vector<6x4xf32>
    %171 = arith.divf %167, %170 : vector<6x4xf32>
    %172 = vector.shape_cast %171 : vector<6x4xf32> to vector<6x4x1xf32>
    %173 = vector.broadcast %172 : vector<6x4x1xf32> to vector<6x4x8xf32>
    %174 = arith.mulf %173, %153 : vector<6x4x8xf32>
    %cst_96 = arith.constant dense<0.000000e+00> : vector<6x8xf32>
    %175 = vector.multi_reduction <add>, %174, %cst_96 [1] : vector<6x4x8xf32> to vector<6x8xf32>
    %176 = vector.extract_strided_slice %75 {offsets = [0, 8], sizes = [6, 8], strides = [1, 1]} : vector<6x32xf32> to vector<6x8xf32>
    %177 = vector.extract_strided_slice %135 {offsets = [0, 0, 8], sizes = [6, 4, 8], strides = [1, 1, 1]} : vector<6x4x32xf32> to vector<6x4x8xf32>
    %178 = vector.extract_strided_slice %142 {offsets = [0, 0, 8], sizes = [6, 4, 8], strides = [1, 1, 1]} : vector<6x4x32xf32> to vector<6x4x8xf32>
    %179 = vector.shape_cast %176 : vector<6x8xf32> to vector<6x1x8xf32>
    %180 = vector.broadcast %179 : vector<6x1x8xf32> to vector<6x4x8xf32>
    %181 = arith.mulf %180, %177 : vector<6x4x8xf32>
    %cst_97 = arith.constant dense<0.000000e+00> : vector<6x4xf32>
    %182 = vector.multi_reduction <add>, %181, %cst_97 [2] : vector<6x4x8xf32> to vector<6x4xf32>
    %183 = arith.addf %182, %53 : vector<6x4xf32>
    %184 = vector.extract_strided_slice %56 {offsets = [0, 1, 0], sizes = [1, 1, 4], strides = [1, 1, 1]} : vector<1x4x4xf32> to vector<1x1x4xf32>
    %185 = vector.shape_cast %184 : vector<1x1x4xf32> to vector<1x4xf32>
    %186 = vector.broadcast %185 : vector<1x4xf32> to vector<6x4xf32>
    %187 = arith.addf %183, %186 : vector<6x4xf32>
    %cst_98 = arith.constant dense<0xFF800000> : vector<6xf32>
    %188 = vector.multi_reduction <maximumf>, %187, %cst_98 [1] : vector<6x4xf32> to vector<6xf32>
    %189 = vector.shape_cast %188 : vector<6xf32> to vector<6x1xf32>
    %190 = vector.broadcast %189 : vector<6x1xf32> to vector<6x4xf32>
    %191 = arith.subf %187, %190 : vector<6x4xf32>
    %192 = math.exp %191 : vector<6x4xf32>
    %cst_99 = arith.constant dense<0.000000e+00> : vector<6xf32>
    %193 = vector.multi_reduction <add>, %192, %cst_99 [1] : vector<6x4xf32> to vector<6xf32>
    %194 = vector.shape_cast %193 : vector<6xf32> to vector<6x1xf32>
    %195 = vector.broadcast %194 : vector<6x1xf32> to vector<6x4xf32>
    %196 = arith.divf %192, %195 : vector<6x4xf32>
    %197 = vector.shape_cast %196 : vector<6x4xf32> to vector<6x4x1xf32>
    %198 = vector.broadcast %197 : vector<6x4x1xf32> to vector<6x4x8xf32>
    %199 = arith.mulf %198, %178 : vector<6x4x8xf32>
    %cst_100 = arith.constant dense<0.000000e+00> : vector<6x8xf32>
    %200 = vector.multi_reduction <add>, %199, %cst_100 [1] : vector<6x4x8xf32> to vector<6x8xf32>
    %201 = vector.extract_strided_slice %75 {offsets = [0, 16], sizes = [6, 8], strides = [1, 1]} : vector<6x32xf32> to vector<6x8xf32>
    %202 = vector.extract_strided_slice %135 {offsets = [0, 0, 16], sizes = [6, 4, 8], strides = [1, 1, 1]} : vector<6x4x32xf32> to vector<6x4x8xf32>
    %203 = vector.extract_strided_slice %142 {offsets = [0, 0, 16], sizes = [6, 4, 8], strides = [1, 1, 1]} : vector<6x4x32xf32> to vector<6x4x8xf32>
    %204 = vector.shape_cast %201 : vector<6x8xf32> to vector<6x1x8xf32>
    %205 = vector.broadcast %204 : vector<6x1x8xf32> to vector<6x4x8xf32>
    %206 = arith.mulf %205, %202 : vector<6x4x8xf32>
    %cst_101 = arith.constant dense<0.000000e+00> : vector<6x4xf32>
    %207 = vector.multi_reduction <add>, %206, %cst_101 [2] : vector<6x4x8xf32> to vector<6x4xf32>
    %208 = arith.addf %207, %53 : vector<6x4xf32>
    %209 = vector.extract_strided_slice %56 {offsets = [0, 2, 0], sizes = [1, 1, 4], strides = [1, 1, 1]} : vector<1x4x4xf32> to vector<1x1x4xf32>
    %210 = vector.shape_cast %209 : vector<1x1x4xf32> to vector<1x4xf32>
    %211 = vector.broadcast %210 : vector<1x4xf32> to vector<6x4xf32>
    %212 = arith.addf %208, %211 : vector<6x4xf32>
    %cst_102 = arith.constant dense<0xFF800000> : vector<6xf32>
    %213 = vector.multi_reduction <maximumf>, %212, %cst_102 [1] : vector<6x4xf32> to vector<6xf32>
    %214 = vector.shape_cast %213 : vector<6xf32> to vector<6x1xf32>
    %215 = vector.broadcast %214 : vector<6x1xf32> to vector<6x4xf32>
    %216 = arith.subf %212, %215 : vector<6x4xf32>
    %217 = math.exp %216 : vector<6x4xf32>
    %cst_103 = arith.constant dense<0.000000e+00> : vector<6xf32>
    %218 = vector.multi_reduction <add>, %217, %cst_103 [1] : vector<6x4xf32> to vector<6xf32>
    %219 = vector.shape_cast %218 : vector<6xf32> to vector<6x1xf32>
    %220 = vector.broadcast %219 : vector<6x1xf32> to vector<6x4xf32>
    %221 = arith.divf %217, %220 : vector<6x4xf32>
    %222 = vector.shape_cast %221 : vector<6x4xf32> to vector<6x4x1xf32>
    %223 = vector.broadcast %222 : vector<6x4x1xf32> to vector<6x4x8xf32>
    %224 = arith.mulf %223, %203 : vector<6x4x8xf32>
    %cst_104 = arith.constant dense<0.000000e+00> : vector<6x8xf32>
    %225 = vector.multi_reduction <add>, %224, %cst_104 [1] : vector<6x4x8xf32> to vector<6x8xf32>
    %226 = vector.extract_strided_slice %75 {offsets = [0, 24], sizes = [6, 8], strides = [1, 1]} : vector<6x32xf32> to vector<6x8xf32>
    %227 = vector.extract_strided_slice %135 {offsets = [0, 0, 24], sizes = [6, 4, 8], strides = [1, 1, 1]} : vector<6x4x32xf32> to vector<6x4x8xf32>
    %228 = vector.extract_strided_slice %142 {offsets = [0, 0, 24], sizes = [6, 4, 8], strides = [1, 1, 1]} : vector<6x4x32xf32> to vector<6x4x8xf32>
    %229 = vector.shape_cast %226 : vector<6x8xf32> to vector<6x1x8xf32>
    %230 = vector.broadcast %229 : vector<6x1x8xf32> to vector<6x4x8xf32>
    %231 = arith.mulf %230, %227 : vector<6x4x8xf32>
    %cst_105 = arith.constant dense<0.000000e+00> : vector<6x4xf32>
    %232 = vector.multi_reduction <add>, %231, %cst_105 [2] : vector<6x4x8xf32> to vector<6x4xf32>
    %233 = arith.addf %232, %53 : vector<6x4xf32>
    %234 = vector.extract_strided_slice %56 {offsets = [0, 3, 0], sizes = [1, 1, 4], strides = [1, 1, 1]} : vector<1x4x4xf32> to vector<1x1x4xf32>
    %235 = vector.shape_cast %234 : vector<1x1x4xf32> to vector<1x4xf32>
    %236 = vector.broadcast %235 : vector<1x4xf32> to vector<6x4xf32>
    %237 = arith.addf %233, %236 : vector<6x4xf32>
    %cst_106 = arith.constant dense<0xFF800000> : vector<6xf32>
    %238 = vector.multi_reduction <maximumf>, %237, %cst_106 [1] : vector<6x4xf32> to vector<6xf32>
    %239 = vector.shape_cast %238 : vector<6xf32> to vector<6x1xf32>
    %240 = vector.broadcast %239 : vector<6x1xf32> to vector<6x4xf32>
    %241 = arith.subf %237, %240 : vector<6x4xf32>
    %242 = math.exp %241 : vector<6x4xf32>
    %cst_107 = arith.constant dense<0.000000e+00> : vector<6xf32>
    %243 = vector.multi_reduction <add>, %242, %cst_107 [1] : vector<6x4xf32> to vector<6xf32>
    %244 = vector.shape_cast %243 : vector<6xf32> to vector<6x1xf32>
    %245 = vector.broadcast %244 : vector<6x1xf32> to vector<6x4xf32>
    %246 = arith.divf %242, %245 : vector<6x4xf32>
    %247 = vector.shape_cast %246 : vector<6x4xf32> to vector<6x4x1xf32>
    %248 = vector.broadcast %247 : vector<6x4x1xf32> to vector<6x4x8xf32>
    %249 = arith.mulf %248, %228 : vector<6x4x8xf32>
    %cst_108 = arith.constant dense<0.000000e+00> : vector<6x8xf32>
    %250 = vector.multi_reduction <add>, %249, %cst_108 [1] : vector<6x4x8xf32> to vector<6x8xf32>
    %251 = tpu.concatenate %175, %200, %225, %250 in 1 : vector<6x8xf32>, vector<6x8xf32>, vector<6x8xf32>, vector<6x8xf32> -> vector<6x32xf32>
    %252 = arith.truncf %251 : vector<6x32xf32> to vector<6x32xbf16>
    %c0_109 = arith.constant 0 : index
    %c0_110 = arith.constant 0 : index
    %c0_111 = arith.constant 0 : index
    %253 = vector.load %arg14[%c0_109, %c0_110, %c0_111] : memref<2x32x32xbf16, #tpu.memory_space<vmem>>, vector<1x32x32xbf16>
    %254 = vector.shape_cast %253 : vector<1x32x32xbf16> to vector<32x32xbf16>
    %cst_112 = arith.constant dense<0.000000e+00> : vector<6x32xf32>
    %255 = tpu.matmul %252, %254, %cst_112 {dimension_numbers = #tpu.dot_dimension_numbers<[1], [0], [0], [1], [0, 0, 1, 1], [], []>} : vector<6x32xbf16>, vector<32x32xbf16>, vector<6x32xf32> -> vector<6x32xf32>
    %256 = arith.addf %19, %255 : vector<6x32xf32>
    %c0_113 = arith.constant 0 : index
    %c0_114 = arith.constant 0 : index
    %c0_115 = arith.constant 0 : index
    %257 = vector.load %arg15[%c0_113, %c0_114, %c0_115] : memref<2x1x32xf32, #tpu.memory_space<vmem>>, vector<1x1x32xf32>
    %258 = vector.shape_cast %257 : vector<1x1x32xf32> to vector<1x32xf32>
    %259 = arith.mulf %256, %256 : vector<6x32xf32>
    %cst_116 = arith.constant dense<0.000000e+00> : vector<6xf32>
    %260 = vector.multi_reduction <add>, %259, %cst_116 [1] : vector<6x32xf32> to vector<6xf32>
    %261 = vector.shape_cast %260 : vector<6xf32> to vector<6x1xf32>
    %cst_117 = arith.constant 3.200000e+01 : f32
    %262 = vector.broadcast %cst_117 : f32 to vector<6x1xf32>
    %263 = arith.divf %261, %262 : vector<6x1xf32>
    %cst_118 = arith.constant 9.99999997E-7 : f32
    %264 = vector.broadcast %cst_118 : f32 to vector<6x1xf32>
    %265 = arith.addf %263, %264 : vector<6x1xf32>
    %266 = math.rsqrt %265 : vector<6x1xf32>
    %267 = vector.broadcast %266 : vector<6x1xf32> to vector<6x32xf32>
    %268 = arith.mulf %256, %267 : vector<6x32xf32>
    %269 = vector.broadcast %258 : vector<1x32xf32> to vector<6x32xf32>
    %270 = arith.mulf %268, %269 : vector<6x32xf32>
    %271 = arith.truncf %270 : vector<6x32xf32> to vector<6x32xbf16>
    %c0_119 = arith.constant 0 : index
    %c0_120 = arith.constant 0 : index
    %c0_121 = arith.constant 0 : index
    %272 = vector.load %arg16[%c0_119, %c0_120, %c0_121] : memref<2x32x32xbf16, #tpu.memory_space<vmem>>, vector<1x32x32xbf16>
    %273 = vector.shape_cast %272 : vector<1x32x32xbf16> to vector<32x32xbf16>
    %cst_122 = arith.constant dense<0.000000e+00> : vector<6x32xf32>
    %274 = tpu.matmul %271, %273, %cst_122 {dimension_numbers = #tpu.dot_dimension_numbers<[1], [0], [0], [1], [0, 0, 1, 1], [], []>} : vector<6x32xbf16>, vector<32x32xbf16>, vector<6x32xf32> -> vector<6x32xf32>
    %c0_123 = arith.constant 0 : index
    %c0_124 = arith.constant 0 : index
    %c0_125 = arith.constant 0 : index
    %c0_126 = arith.constant 0 : index
    %275 = vector.load %arg8[%c0_123, %c0_124, %c0_125, %c0_126] : memref<2x2x8x32xbf16, #tpu.memory_space<vmem>>, vector<1x2x8x32xbf16>
    %276 = vector.shape_cast %275 : vector<1x2x8x32xbf16> to vector<2x8x32xbf16>
    %277 = arith.extf %276 : vector<2x8x32xbf16> to vector<2x8x32xf32>
    %c0_127 = arith.constant 0 : index
    %c0_128 = arith.constant 0 : index
    %c0_129 = arith.constant 0 : index
    %c0_130 = arith.constant 0 : index
    %278 = vector.load %arg9[%c0_127, %c0_128, %c0_129, %c0_130] : memref<2x2x8x32xbf16, #tpu.memory_space<vmem>>, vector<1x2x8x32xbf16>
    %279 = vector.shape_cast %278 : vector<1x2x8x32xbf16> to vector<2x8x32xbf16>
    %280 = arith.extf %279 : vector<2x8x32xbf16> to vector<2x8x32xf32>
    %c0_131 = arith.constant 0 : index
    %c0_132 = arith.constant 0 : index
    %281 = vector.load %arg10[%c0_131, %c0_132] : memref<2x8xf32, #tpu.memory_space<vmem>>, vector<2x8xf32>
    %282 = vector.extract_strided_slice %274 {offsets = [0, 0], sizes = [3, 32], strides = [1, 1]} : vector<6x32xf32> to vector<3x32xf32>
    %283 = vector.extract_strided_slice %277 {offsets = [0, 0, 0], sizes = [1, 8, 32], strides = [1, 1, 1]} : vector<2x8x32xf32> to vector<1x8x32xf32>
    %284 = vector.shape_cast %283 : vector<1x8x32xf32> to vector<8x32xf32>
    %285 = vector.extract_strided_slice %280 {offsets = [0, 0, 0], sizes = [1, 8, 32], strides = [1, 1, 1]} : vector<2x8x32xf32> to vector<1x8x32xf32>
    %286 = vector.shape_cast %285 : vector<1x8x32xf32> to vector<8x32xf32>
    %287 = vector.extract_strided_slice %281 {offsets = [0, 0], sizes = [1, 8], strides = [1, 1]} : vector<2x8xf32> to vector<1x8xf32>
    %288 = vector.extract_strided_slice %282 {offsets = [0, 0], sizes = [3, 8], strides = [1, 1]} : vector<3x32xf32> to vector<3x8xf32>
    %289 = vector.extract_strided_slice %284 {offsets = [0, 0], sizes = [8, 8], strides = [1, 1]} : vector<8x32xf32> to vector<8x8xf32>
    %290 = vector.extract_strided_slice %286 {offsets = [0, 0], sizes = [8, 8], strides = [1, 1]} : vector<8x32xf32> to vector<8x8xf32>
    %291 = vector.shape_cast %288 : vector<3x8xf32> to vector<3x1x8xf32>
    %292 = vector.shape_cast %289 : vector<8x8xf32> to vector<1x8x8xf32>
    %293 = vector.broadcast %291 : vector<3x1x8xf32> to vector<3x8x8xf32>
    %294 = vector.broadcast %292 : vector<1x8x8xf32> to vector<3x8x8xf32>
    %295 = arith.mulf %293, %294 : vector<3x8x8xf32>
    %cst_133 = arith.constant dense<0.000000e+00> : vector<3x8xf32>
    %296 = vector.multi_reduction <add>, %295, %cst_133 [2] : vector<3x8x8xf32> to vector<3x8xf32>
    %297 = vector.broadcast %287 : vector<1x8xf32> to vector<3x8xf32>
    %298 = arith.addf %296, %297 : vector<3x8xf32>
    %cst_134 = arith.constant dense<0xFF800000> : vector<3xf32>
    %299 = vector.multi_reduction <maximumf>, %298, %cst_134 [1] : vector<3x8xf32> to vector<3xf32>
    %300 = vector.shape_cast %299 : vector<3xf32> to vector<3x1xf32>
    %301 = vector.broadcast %300 : vector<3x1xf32> to vector<3x8xf32>
    %302 = arith.subf %298, %301 : vector<3x8xf32>
    %303 = math.exp %302 : vector<3x8xf32>
    %cst_135 = arith.constant dense<0.000000e+00> : vector<3xf32>
    %304 = vector.multi_reduction <add>, %303, %cst_135 [1] : vector<3x8xf32> to vector<3xf32>
    %305 = vector.shape_cast %304 : vector<3xf32> to vector<3x1xf32>
    %306 = vector.broadcast %305 : vector<3x1xf32> to vector<3x8xf32>
    %307 = arith.divf %303, %306 : vector<3x8xf32>
    %308 = vector.shape_cast %307 : vector<3x8xf32> to vector<3x8x1xf32>
    %309 = vector.shape_cast %290 : vector<8x8xf32> to vector<1x8x8xf32>
    %310 = vector.broadcast %308 : vector<3x8x1xf32> to vector<3x8x8xf32>
    %311 = vector.broadcast %309 : vector<1x8x8xf32> to vector<3x8x8xf32>
    %312 = arith.mulf %310, %311 : vector<3x8x8xf32>
    %cst_136 = arith.constant dense<0.000000e+00> : vector<3x8xf32>
    %313 = vector.multi_reduction <add>, %312, %cst_136 [1] : vector<3x8x8xf32> to vector<3x8xf32>
    %314 = vector.extract_strided_slice %282 {offsets = [0, 8], sizes = [3, 8], strides = [1, 1]} : vector<3x32xf32> to vector<3x8xf32>
    %315 = vector.extract_strided_slice %284 {offsets = [0, 8], sizes = [8, 8], strides = [1, 1]} : vector<8x32xf32> to vector<8x8xf32>
    %316 = vector.extract_strided_slice %286 {offsets = [0, 8], sizes = [8, 8], strides = [1, 1]} : vector<8x32xf32> to vector<8x8xf32>
    %317 = vector.shape_cast %314 : vector<3x8xf32> to vector<3x1x8xf32>
    %318 = vector.shape_cast %315 : vector<8x8xf32> to vector<1x8x8xf32>
    %319 = vector.broadcast %317 : vector<3x1x8xf32> to vector<3x8x8xf32>
    %320 = vector.broadcast %318 : vector<1x8x8xf32> to vector<3x8x8xf32>
    %321 = arith.mulf %319, %320 : vector<3x8x8xf32>
    %cst_137 = arith.constant dense<0.000000e+00> : vector<3x8xf32>
    %322 = vector.multi_reduction <add>, %321, %cst_137 [2] : vector<3x8x8xf32> to vector<3x8xf32>
    %323 = vector.broadcast %287 : vector<1x8xf32> to vector<3x8xf32>
    %324 = arith.addf %322, %323 : vector<3x8xf32>
    %cst_138 = arith.constant dense<0xFF800000> : vector<3xf32>
    %325 = vector.multi_reduction <maximumf>, %324, %cst_138 [1] : vector<3x8xf32> to vector<3xf32>
    %326 = vector.shape_cast %325 : vector<3xf32> to vector<3x1xf32>
    %327 = vector.broadcast %326 : vector<3x1xf32> to vector<3x8xf32>
    %328 = arith.subf %324, %327 : vector<3x8xf32>
    %329 = math.exp %328 : vector<3x8xf32>
    %cst_139 = arith.constant dense<0.000000e+00> : vector<3xf32>
    %330 = vector.multi_reduction <add>, %329, %cst_139 [1] : vector<3x8xf32> to vector<3xf32>
    %331 = vector.shape_cast %330 : vector<3xf32> to vector<3x1xf32>
    %332 = vector.broadcast %331 : vector<3x1xf32> to vector<3x8xf32>
    %333 = arith.divf %329, %332 : vector<3x8xf32>
    %334 = vector.shape_cast %333 : vector<3x8xf32> to vector<3x8x1xf32>
    %335 = vector.shape_cast %316 : vector<8x8xf32> to vector<1x8x8xf32>
    %336 = vector.broadcast %334 : vector<3x8x1xf32> to vector<3x8x8xf32>
    %337 = vector.broadcast %335 : vector<1x8x8xf32> to vector<3x8x8xf32>
    %338 = arith.mulf %336, %337 : vector<3x8x8xf32>
    %cst_140 = arith.constant dense<0.000000e+00> : vector<3x8xf32>
    %339 = vector.multi_reduction <add>, %338, %cst_140 [1] : vector<3x8x8xf32> to vector<3x8xf32>
    %340 = vector.extract_strided_slice %282 {offsets = [0, 16], sizes = [3, 8], strides = [1, 1]} : vector<3x32xf32> to vector<3x8xf32>
    %341 = vector.extract_strided_slice %284 {offsets = [0, 16], sizes = [8, 8], strides = [1, 1]} : vector<8x32xf32> to vector<8x8xf32>
    %342 = vector.extract_strided_slice %286 {offsets = [0, 16], sizes = [8, 8], strides = [1, 1]} : vector<8x32xf32> to vector<8x8xf32>
    %343 = vector.shape_cast %340 : vector<3x8xf32> to vector<3x1x8xf32>
    %344 = vector.shape_cast %341 : vector<8x8xf32> to vector<1x8x8xf32>
    %345 = vector.broadcast %343 : vector<3x1x8xf32> to vector<3x8x8xf32>
    %346 = vector.broadcast %344 : vector<1x8x8xf32> to vector<3x8x8xf32>
    %347 = arith.mulf %345, %346 : vector<3x8x8xf32>
    %cst_141 = arith.constant dense<0.000000e+00> : vector<3x8xf32>
    %348 = vector.multi_reduction <add>, %347, %cst_141 [2] : vector<3x8x8xf32> to vector<3x8xf32>
    %349 = vector.broadcast %287 : vector<1x8xf32> to vector<3x8xf32>
    %350 = arith.addf %348, %349 : vector<3x8xf32>
    %cst_142 = arith.constant dense<0xFF800000> : vector<3xf32>
    %351 = vector.multi_reduction <maximumf>, %350, %cst_142 [1] : vector<3x8xf32> to vector<3xf32>
    %352 = vector.shape_cast %351 : vector<3xf32> to vector<3x1xf32>
    %353 = vector.broadcast %352 : vector<3x1xf32> to vector<3x8xf32>
    %354 = arith.subf %350, %353 : vector<3x8xf32>
    %355 = math.exp %354 : vector<3x8xf32>
    %cst_143 = arith.constant dense<0.000000e+00> : vector<3xf32>
    %356 = vector.multi_reduction <add>, %355, %cst_143 [1] : vector<3x8xf32> to vector<3xf32>
    %357 = vector.shape_cast %356 : vector<3xf32> to vector<3x1xf32>
    %358 = vector.broadcast %357 : vector<3x1xf32> to vector<3x8xf32>
    %359 = arith.divf %355, %358 : vector<3x8xf32>
    %360 = vector.shape_cast %359 : vector<3x8xf32> to vector<3x8x1xf32>
    %361 = vector.shape_cast %342 : vector<8x8xf32> to vector<1x8x8xf32>
    %362 = vector.broadcast %360 : vector<3x8x1xf32> to vector<3x8x8xf32>
    %363 = vector.broadcast %361 : vector<1x8x8xf32> to vector<3x8x8xf32>
    %364 = arith.mulf %362, %363 : vector<3x8x8xf32>
    %cst_144 = arith.constant dense<0.000000e+00> : vector<3x8xf32>
    %365 = vector.multi_reduction <add>, %364, %cst_144 [1] : vector<3x8x8xf32> to vector<3x8xf32>
    %366 = vector.extract_strided_slice %282 {offsets = [0, 24], sizes = [3, 8], strides = [1, 1]} : vector<3x32xf32> to vector<3x8xf32>
    %367 = vector.extract_strided_slice %284 {offsets = [0, 24], sizes = [8, 8], strides = [1, 1]} : vector<8x32xf32> to vector<8x8xf32>
    %368 = vector.extract_strided_slice %286 {offsets = [0, 24], sizes = [8, 8], strides = [1, 1]} : vector<8x32xf32> to vector<8x8xf32>
    %369 = vector.shape_cast %366 : vector<3x8xf32> to vector<3x1x8xf32>
    %370 = vector.shape_cast %367 : vector<8x8xf32> to vector<1x8x8xf32>
    %371 = vector.broadcast %369 : vector<3x1x8xf32> to vector<3x8x8xf32>
    %372 = vector.broadcast %370 : vector<1x8x8xf32> to vector<3x8x8xf32>
    %373 = arith.mulf %371, %372 : vector<3x8x8xf32>
    %cst_145 = arith.constant dense<0.000000e+00> : vector<3x8xf32>
    %374 = vector.multi_reduction <add>, %373, %cst_145 [2] : vector<3x8x8xf32> to vector<3x8xf32>
    %375 = vector.broadcast %287 : vector<1x8xf32> to vector<3x8xf32>
    %376 = arith.addf %374, %375 : vector<3x8xf32>
    %cst_146 = arith.constant dense<0xFF800000> : vector<3xf32>
    %377 = vector.multi_reduction <maximumf>, %376, %cst_146 [1] : vector<3x8xf32> to vector<3xf32>
    %378 = vector.shape_cast %377 : vector<3xf32> to vector<3x1xf32>
    %379 = vector.broadcast %378 : vector<3x1xf32> to vector<3x8xf32>
    %380 = arith.subf %376, %379 : vector<3x8xf32>
    %381 = math.exp %380 : vector<3x8xf32>
    %cst_147 = arith.constant dense<0.000000e+00> : vector<3xf32>
    %382 = vector.multi_reduction <add>, %381, %cst_147 [1] : vector<3x8xf32> to vector<3xf32>
    %383 = vector.shape_cast %382 : vector<3xf32> to vector<3x1xf32>
    %384 = vector.broadcast %383 : vector<3x1xf32> to vector<3x8xf32>
    %385 = arith.divf %381, %384 : vector<3x8xf32>
    %386 = vector.shape_cast %385 : vector<3x8xf32> to vector<3x8x1xf32>
    %387 = vector.shape_cast %368 : vector<8x8xf32> to vector<1x8x8xf32>
    %388 = vector.broadcast %386 : vector<3x8x1xf32> to vector<3x8x8xf32>
    %389 = vector.broadcast %387 : vector<1x8x8xf32> to vector<3x8x8xf32>
    %390 = arith.mulf %388, %389 : vector<3x8x8xf32>
    %cst_148 = arith.constant dense<0.000000e+00> : vector<3x8xf32>
    %391 = vector.multi_reduction <add>, %390, %cst_148 [1] : vector<3x8x8xf32> to vector<3x8xf32>
    %392 = tpu.concatenate %313, %339, %365, %391 in 1 : vector<3x8xf32>, vector<3x8xf32>, vector<3x8xf32>, vector<3x8xf32> -> vector<3x32xf32>
    %393 = vector.extract_strided_slice %274 {offsets = [3, 0], sizes = [3, 32], strides = [1, 1]} : vector<6x32xf32> to vector<3x32xf32>
    %394 = vector.extract_strided_slice %277 {offsets = [1, 0, 0], sizes = [1, 8, 32], strides = [1, 1, 1]} : vector<2x8x32xf32> to vector<1x8x32xf32>
    %395 = vector.shape_cast %394 : vector<1x8x32xf32> to vector<8x32xf32>
    %396 = vector.extract_strided_slice %280 {offsets = [1, 0, 0], sizes = [1, 8, 32], strides = [1, 1, 1]} : vector<2x8x32xf32> to vector<1x8x32xf32>
    %397 = vector.shape_cast %396 : vector<1x8x32xf32> to vector<8x32xf32>
    %398 = vector.extract_strided_slice %281 {offsets = [1, 0], sizes = [1, 8], strides = [1, 1]} : vector<2x8xf32> to vector<1x8xf32>
    %399 = vector.extract_strided_slice %393 {offsets = [0, 0], sizes = [3, 8], strides = [1, 1]} : vector<3x32xf32> to vector<3x8xf32>
    %400 = vector.extract_strided_slice %395 {offsets = [0, 0], sizes = [8, 8], strides = [1, 1]} : vector<8x32xf32> to vector<8x8xf32>
    %401 = vector.extract_strided_slice %397 {offsets = [0, 0], sizes = [8, 8], strides = [1, 1]} : vector<8x32xf32> to vector<8x8xf32>
    %402 = vector.shape_cast %399 : vector<3x8xf32> to vector<3x1x8xf32>
    %403 = vector.shape_cast %400 : vector<8x8xf32> to vector<1x8x8xf32>
    %404 = vector.broadcast %402 : vector<3x1x8xf32> to vector<3x8x8xf32>
    %405 = vector.broadcast %403 : vector<1x8x8xf32> to vector<3x8x8xf32>
    %406 = arith.mulf %404, %405 : vector<3x8x8xf32>
    %cst_149 = arith.constant dense<0.000000e+00> : vector<3x8xf32>
    %407 = vector.multi_reduction <add>, %406, %cst_149 [2] : vector<3x8x8xf32> to vector<3x8xf32>
    %408 = vector.broadcast %398 : vector<1x8xf32> to vector<3x8xf32>
    %409 = arith.addf %407, %408 : vector<3x8xf32>
    %cst_150 = arith.constant dense<0xFF800000> : vector<3xf32>
    %410 = vector.multi_reduction <maximumf>, %409, %cst_150 [1] : vector<3x8xf32> to vector<3xf32>
    %411 = vector.shape_cast %410 : vector<3xf32> to vector<3x1xf32>
    %412 = vector.broadcast %411 : vector<3x1xf32> to vector<3x8xf32>
    %413 = arith.subf %409, %412 : vector<3x8xf32>
    %414 = math.exp %413 : vector<3x8xf32>
    %cst_151 = arith.constant dense<0.000000e+00> : vector<3xf32>
    %415 = vector.multi_reduction <add>, %414, %cst_151 [1] : vector<3x8xf32> to vector<3xf32>
    %416 = vector.shape_cast %415 : vector<3xf32> to vector<3x1xf32>
    %417 = vector.broadcast %416 : vector<3x1xf32> to vector<3x8xf32>
    %418 = arith.divf %414, %417 : vector<3x8xf32>
    %419 = vector.shape_cast %418 : vector<3x8xf32> to vector<3x8x1xf32>
    %420 = vector.shape_cast %401 : vector<8x8xf32> to vector<1x8x8xf32>
    %421 = vector.broadcast %419 : vector<3x8x1xf32> to vector<3x8x8xf32>
    %422 = vector.broadcast %420 : vector<1x8x8xf32> to vector<3x8x8xf32>
    %423 = arith.mulf %421, %422 : vector<3x8x8xf32>
    %cst_152 = arith.constant dense<0.000000e+00> : vector<3x8xf32>
    %424 = vector.multi_reduction <add>, %423, %cst_152 [1] : vector<3x8x8xf32> to vector<3x8xf32>
    %425 = vector.extract_strided_slice %393 {offsets = [0, 8], sizes = [3, 8], strides = [1, 1]} : vector<3x32xf32> to vector<3x8xf32>
    %426 = vector.extract_strided_slice %395 {offsets = [0, 8], sizes = [8, 8], strides = [1, 1]} : vector<8x32xf32> to vector<8x8xf32>
    %427 = vector.extract_strided_slice %397 {offsets = [0, 8], sizes = [8, 8], strides = [1, 1]} : vector<8x32xf32> to vector<8x8xf32>
    %428 = vector.shape_cast %425 : vector<3x8xf32> to vector<3x1x8xf32>
    %429 = vector.shape_cast %426 : vector<8x8xf32> to vector<1x8x8xf32>
    %430 = vector.broadcast %428 : vector<3x1x8xf32> to vector<3x8x8xf32>
    %431 = vector.broadcast %429 : vector<1x8x8xf32> to vector<3x8x8xf32>
    %432 = arith.mulf %430, %431 : vector<3x8x8xf32>
    %cst_153 = arith.constant dense<0.000000e+00> : vector<3x8xf32>
    %433 = vector.multi_reduction <add>, %432, %cst_153 [2] : vector<3x8x8xf32> to vector<3x8xf32>
    %434 = vector.broadcast %398 : vector<1x8xf32> to vector<3x8xf32>
    %435 = arith.addf %433, %434 : vector<3x8xf32>
    %cst_154 = arith.constant dense<0xFF800000> : vector<3xf32>
    %436 = vector.multi_reduction <maximumf>, %435, %cst_154 [1] : vector<3x8xf32> to vector<3xf32>
    %437 = vector.shape_cast %436 : vector<3xf32> to vector<3x1xf32>
    %438 = vector.broadcast %437 : vector<3x1xf32> to vector<3x8xf32>
    %439 = arith.subf %435, %438 : vector<3x8xf32>
    %440 = math.exp %439 : vector<3x8xf32>
    %cst_155 = arith.constant dense<0.000000e+00> : vector<3xf32>
    %441 = vector.multi_reduction <add>, %440, %cst_155 [1] : vector<3x8xf32> to vector<3xf32>
    %442 = vector.shape_cast %441 : vector<3xf32> to vector<3x1xf32>
    %443 = vector.broadcast %442 : vector<3x1xf32> to vector<3x8xf32>
    %444 = arith.divf %440, %443 : vector<3x8xf32>
    %445 = vector.shape_cast %444 : vector<3x8xf32> to vector<3x8x1xf32>
    %446 = vector.shape_cast %427 : vector<8x8xf32> to vector<1x8x8xf32>
    %447 = vector.broadcast %445 : vector<3x8x1xf32> to vector<3x8x8xf32>
    %448 = vector.broadcast %446 : vector<1x8x8xf32> to vector<3x8x8xf32>
    %449 = arith.mulf %447, %448 : vector<3x8x8xf32>
    %cst_156 = arith.constant dense<0.000000e+00> : vector<3x8xf32>
    %450 = vector.multi_reduction <add>, %449, %cst_156 [1] : vector<3x8x8xf32> to vector<3x8xf32>
    %451 = vector.extract_strided_slice %393 {offsets = [0, 16], sizes = [3, 8], strides = [1, 1]} : vector<3x32xf32> to vector<3x8xf32>
    %452 = vector.extract_strided_slice %395 {offsets = [0, 16], sizes = [8, 8], strides = [1, 1]} : vector<8x32xf32> to vector<8x8xf32>
    %453 = vector.extract_strided_slice %397 {offsets = [0, 16], sizes = [8, 8], strides = [1, 1]} : vector<8x32xf32> to vector<8x8xf32>
    %454 = vector.shape_cast %451 : vector<3x8xf32> to vector<3x1x8xf32>
    %455 = vector.shape_cast %452 : vector<8x8xf32> to vector<1x8x8xf32>
    %456 = vector.broadcast %454 : vector<3x1x8xf32> to vector<3x8x8xf32>
    %457 = vector.broadcast %455 : vector<1x8x8xf32> to vector<3x8x8xf32>
    %458 = arith.mulf %456, %457 : vector<3x8x8xf32>
    %cst_157 = arith.constant dense<0.000000e+00> : vector<3x8xf32>
    %459 = vector.multi_reduction <add>, %458, %cst_157 [2] : vector<3x8x8xf32> to vector<3x8xf32>
    %460 = vector.broadcast %398 : vector<1x8xf32> to vector<3x8xf32>
    %461 = arith.addf %459, %460 : vector<3x8xf32>
    %cst_158 = arith.constant dense<0xFF800000> : vector<3xf32>
    %462 = vector.multi_reduction <maximumf>, %461, %cst_158 [1] : vector<3x8xf32> to vector<3xf32>
    %463 = vector.shape_cast %462 : vector<3xf32> to vector<3x1xf32>
    %464 = vector.broadcast %463 : vector<3x1xf32> to vector<3x8xf32>
    %465 = arith.subf %461, %464 : vector<3x8xf32>
    %466 = math.exp %465 : vector<3x8xf32>
    %cst_159 = arith.constant dense<0.000000e+00> : vector<3xf32>
    %467 = vector.multi_reduction <add>, %466, %cst_159 [1] : vector<3x8xf32> to vector<3xf32>
    %468 = vector.shape_cast %467 : vector<3xf32> to vector<3x1xf32>
    %469 = vector.broadcast %468 : vector<3x1xf32> to vector<3x8xf32>
    %470 = arith.divf %466, %469 : vector<3x8xf32>
    %471 = vector.shape_cast %470 : vector<3x8xf32> to vector<3x8x1xf32>
    %472 = vector.shape_cast %453 : vector<8x8xf32> to vector<1x8x8xf32>
    %473 = vector.broadcast %471 : vector<3x8x1xf32> to vector<3x8x8xf32>
    %474 = vector.broadcast %472 : vector<1x8x8xf32> to vector<3x8x8xf32>
    %475 = arith.mulf %473, %474 : vector<3x8x8xf32>
    %cst_160 = arith.constant dense<0.000000e+00> : vector<3x8xf32>
    %476 = vector.multi_reduction <add>, %475, %cst_160 [1] : vector<3x8x8xf32> to vector<3x8xf32>
    %477 = vector.extract_strided_slice %393 {offsets = [0, 24], sizes = [3, 8], strides = [1, 1]} : vector<3x32xf32> to vector<3x8xf32>
    %478 = vector.extract_strided_slice %395 {offsets = [0, 24], sizes = [8, 8], strides = [1, 1]} : vector<8x32xf32> to vector<8x8xf32>
    %479 = vector.extract_strided_slice %397 {offsets = [0, 24], sizes = [8, 8], strides = [1, 1]} : vector<8x32xf32> to vector<8x8xf32>
    %480 = vector.shape_cast %477 : vector<3x8xf32> to vector<3x1x8xf32>
    %481 = vector.shape_cast %478 : vector<8x8xf32> to vector<1x8x8xf32>
    %482 = vector.broadcast %480 : vector<3x1x8xf32> to vector<3x8x8xf32>
    %483 = vector.broadcast %481 : vector<1x8x8xf32> to vector<3x8x8xf32>
    %484 = arith.mulf %482, %483 : vector<3x8x8xf32>
    %cst_161 = arith.constant dense<0.000000e+00> : vector<3x8xf32>
    %485 = vector.multi_reduction <add>, %484, %cst_161 [2] : vector<3x8x8xf32> to vector<3x8xf32>
    %486 = vector.broadcast %398 : vector<1x8xf32> to vector<3x8xf32>
    %487 = arith.addf %485, %486 : vector<3x8xf32>
    %cst_162 = arith.constant dense<0xFF800000> : vector<3xf32>
    %488 = vector.multi_reduction <maximumf>, %487, %cst_162 [1] : vector<3x8xf32> to vector<3xf32>
    %489 = vector.shape_cast %488 : vector<3xf32> to vector<3x1xf32>
    %490 = vector.broadcast %489 : vector<3x1xf32> to vector<3x8xf32>
    %491 = arith.subf %487, %490 : vector<3x8xf32>
    %492 = math.exp %491 : vector<3x8xf32>
    %cst_163 = arith.constant dense<0.000000e+00> : vector<3xf32>
    %493 = vector.multi_reduction <add>, %492, %cst_163 [1] : vector<3x8xf32> to vector<3xf32>
    %494 = vector.shape_cast %493 : vector<3xf32> to vector<3x1xf32>
    %495 = vector.broadcast %494 : vector<3x1xf32> to vector<3x8xf32>
    %496 = arith.divf %492, %495 : vector<3x8xf32>
    %497 = vector.shape_cast %496 : vector<3x8xf32> to vector<3x8x1xf32>
    %498 = vector.shape_cast %479 : vector<8x8xf32> to vector<1x8x8xf32>
    %499 = vector.broadcast %497 : vector<3x8x1xf32> to vector<3x8x8xf32>
    %500 = vector.broadcast %498 : vector<1x8x8xf32> to vector<3x8x8xf32>
    %501 = arith.mulf %499, %500 : vector<3x8x8xf32>
    %cst_164 = arith.constant dense<0.000000e+00> : vector<3x8xf32>
    %502 = vector.multi_reduction <add>, %501, %cst_164 [1] : vector<3x8x8xf32> to vector<3x8xf32>
    %503 = tpu.concatenate %424, %450, %476, %502 in 1 : vector<3x8xf32>, vector<3x8xf32>, vector<3x8xf32>, vector<3x8xf32> -> vector<3x32xf32>
    %504 = tpu.concatenate %392, %503 in 0 : vector<3x32xf32>, vector<3x32xf32> -> vector<6x32xf32>
    %505 = arith.truncf %504 : vector<6x32xf32> to vector<6x32xbf16>
    %c0_165 = arith.constant 0 : index
    %c0_166 = arith.constant 0 : index
    %c0_167 = arith.constant 0 : index
    %506 = vector.load %arg17[%c0_165, %c0_166, %c0_167] : memref<2x32x32xbf16, #tpu.memory_space<vmem>>, vector<1x32x32xbf16>
    %507 = vector.shape_cast %506 : vector<1x32x32xbf16> to vector<32x32xbf16>
    %cst_168 = arith.constant dense<0.000000e+00> : vector<6x32xf32>
    %508 = tpu.matmul %505, %507, %cst_168 {dimension_numbers = #tpu.dot_dimension_numbers<[1], [0], [0], [1], [0, 0, 1, 1], [], []>} : vector<6x32xbf16>, vector<32x32xbf16>, vector<6x32xf32> -> vector<6x32xf32>
    %509 = arith.addf %256, %508 : vector<6x32xf32>
    %c0_169 = arith.constant 0 : index
    %c0_170 = arith.constant 0 : index
    %c0_171 = arith.constant 0 : index
    %510 = vector.load %arg18[%c0_169, %c0_170, %c0_171] : memref<2x1x32xf32, #tpu.memory_space<vmem>>, vector<1x1x32xf32>
    %511 = vector.shape_cast %510 : vector<1x1x32xf32> to vector<1x32xf32>
    %512 = arith.mulf %509, %509 : vector<6x32xf32>
    %cst_172 = arith.constant dense<0.000000e+00> : vector<6xf32>
    %513 = vector.multi_reduction <add>, %512, %cst_172 [1] : vector<6x32xf32> to vector<6xf32>
    %514 = vector.shape_cast %513 : vector<6xf32> to vector<6x1xf32>
    %cst_173 = arith.constant 3.200000e+01 : f32
    %515 = vector.broadcast %cst_173 : f32 to vector<6x1xf32>
    %516 = arith.divf %514, %515 : vector<6x1xf32>
    %cst_174 = arith.constant 9.99999997E-7 : f32
    %517 = vector.broadcast %cst_174 : f32 to vector<6x1xf32>
    %518 = arith.addf %516, %517 : vector<6x1xf32>
    %519 = math.rsqrt %518 : vector<6x1xf32>
    %520 = vector.broadcast %519 : vector<6x1xf32> to vector<6x32xf32>
    %521 = arith.mulf %509, %520 : vector<6x32xf32>
    %522 = vector.broadcast %511 : vector<1x32xf32> to vector<6x32xf32>
    %523 = arith.mulf %521, %522 : vector<6x32xf32>
    %524 = arith.truncf %523 : vector<6x32xf32> to vector<6x32xbf16>
    %c0_175 = arith.constant 0 : index
    %c0_176 = arith.constant 0 : index
    %c0_177 = arith.constant 0 : index
    %525 = vector.load %arg19[%c0_175, %c0_176, %c0_177] : memref<2x32x64xbf16, #tpu.memory_space<vmem>>, vector<1x32x64xbf16>
    %526 = vector.shape_cast %525 : vector<1x32x64xbf16> to vector<32x64xbf16>
    %cst_178 = arith.constant dense<0.000000e+00> : vector<6x64xf32>
    %527 = tpu.matmul %524, %526, %cst_178 {dimension_numbers = #tpu.dot_dimension_numbers<[1], [0], [0], [1], [0, 0, 1, 1], [], []>} : vector<6x32xbf16>, vector<32x64xbf16>, vector<6x64xf32> -> vector<6x64xf32>
    %cst_179 = arith.constant 0.000000e+00 : f32
    %528 = vector.broadcast %cst_179 : f32 to vector<6x64xf32>
    %529 = arith.maximumf %527, %528 : vector<6x64xf32>
    %530 = arith.truncf %529 : vector<6x64xf32> to vector<6x64xbf16>
    %c0_180 = arith.constant 0 : index
    %c0_181 = arith.constant 0 : index
    %c0_182 = arith.constant 0 : index
    %531 = vector.load %arg20[%c0_180, %c0_181, %c0_182] : memref<2x64x32xbf16, #tpu.memory_space<vmem>>, vector<1x64x32xbf16>
    %532 = vector.shape_cast %531 : vector<1x64x32xbf16> to vector<64x32xbf16>
    %cst_183 = arith.constant dense<0.000000e+00> : vector<6x32xf32>
    %533 = tpu.matmul %530, %532, %cst_183 {dimension_numbers = #tpu.dot_dimension_numbers<[1], [0], [0], [1], [0, 0, 1, 1], [], []>} : vector<6x64xbf16>, vector<64x32xbf16>, vector<6x32xf32> -> vector<6x32xf32>
    %534 = arith.addf %509, %533 : vector<6x32xf32>
    %c1_184 = arith.constant 1 : index
    %c0_185 = arith.constant 0 : index
    %c0_186 = arith.constant 0 : index
    %535 = vector.load %arg12[%c1_184, %c0_185, %c0_186] : memref<2x1x32xf32, #tpu.memory_space<vmem>>, vector<1x1x32xf32>
    %536 = vector.shape_cast %535 : vector<1x1x32xf32> to vector<1x32xf32>
    %537 = arith.mulf %534, %534 : vector<6x32xf32>
    %cst_187 = arith.constant dense<0.000000e+00> : vector<6xf32>
    %538 = vector.multi_reduction <add>, %537, %cst_187 [1] : vector<6x32xf32> to vector<6xf32>
    %539 = vector.shape_cast %538 : vector<6xf32> to vector<6x1xf32>
    %cst_188 = arith.constant 3.200000e+01 : f32
    %540 = vector.broadcast %cst_188 : f32 to vector<6x1xf32>
    %541 = arith.divf %539, %540 : vector<6x1xf32>
    %cst_189 = arith.constant 9.99999997E-7 : f32
    %542 = vector.broadcast %cst_189 : f32 to vector<6x1xf32>
    %543 = arith.addf %541, %542 : vector<6x1xf32>
    %544 = math.rsqrt %543 : vector<6x1xf32>
    %545 = vector.broadcast %544 : vector<6x1xf32> to vector<6x32xf32>
    %546 = arith.mulf %534, %545 : vector<6x32xf32>
    %547 = vector.broadcast %536 : vector<1x32xf32> to vector<6x32xf32>
    %548 = arith.mulf %546, %547 : vector<6x32xf32>
    %549 = arith.truncf %548 : vector<6x32xf32> to vector<6x32xbf16>
    %c1_190 = arith.constant 1 : index
    %c0_191 = arith.constant 0 : index
    %c0_192 = arith.constant 0 : index
    %550 = vector.load %arg13[%c1_190, %c0_191, %c0_192] : memref<2x32x96xbf16, #tpu.memory_space<vmem>>, vector<1x32x96xbf16>
    %551 = vector.shape_cast %550 : vector<1x32x96xbf16> to vector<32x96xbf16>
    %cst_193 = arith.constant dense<0.000000e+00> : vector<6x96xf32>
    %552 = tpu.matmul %549, %551, %cst_193 {dimension_numbers = #tpu.dot_dimension_numbers<[1], [0], [0], [1], [0, 0, 1, 1], [], []>} : vector<6x32xbf16>, vector<32x96xbf16>, vector<6x96xf32> -> vector<6x96xf32>
    %553 = vector.extract_strided_slice %552 {offsets = [0, 0], sizes = [6, 32], strides = [1, 1]} : vector<6x96xf32> to vector<6x32xf32>
    %554 = vector.extract_strided_slice %552 {offsets = [0, 32], sizes = [6, 32], strides = [1, 1]} : vector<6x96xf32> to vector<6x32xf32>
    %555 = vector.extract_strided_slice %552 {offsets = [0, 64], sizes = [6, 32], strides = [1, 1]} : vector<6x96xf32> to vector<6x32xf32>
    %c0_194 = arith.constant 0 : index
    %556 = memref.load %arg2[%c0_194] : memref<6xi32, #tpu.memory_space<smem>>
    %c1_195 = arith.constant 1 : index
    %557 = arith.index_cast %556 : i32 to index
    %c0_196 = arith.constant 0 : index
    %c0_197 = arith.constant 0 : index
    %558 = vector.load %arg6[%c1_195, %557, %c0_196, %c0_197] : memref<2x6x4x32xbf16, #tpu.memory_space<vmem>>, vector<1x1x4x32xbf16>
    %559 = vector.shape_cast %558 : vector<1x1x4x32xbf16> to vector<1x4x32xbf16>
    %c1_198 = arith.constant 1 : index
    %560 = memref.load %arg2[%c1_198] : memref<6xi32, #tpu.memory_space<smem>>
    %c1_199 = arith.constant 1 : index
    %561 = arith.index_cast %560 : i32 to index
    %c0_200 = arith.constant 0 : index
    %c0_201 = arith.constant 0 : index
    %562 = vector.load %arg6[%c1_199, %561, %c0_200, %c0_201] : memref<2x6x4x32xbf16, #tpu.memory_space<vmem>>, vector<1x1x4x32xbf16>
    %563 = vector.shape_cast %562 : vector<1x1x4x32xbf16> to vector<1x4x32xbf16>
    %c2_202 = arith.constant 2 : index
    %564 = memref.load %arg2[%c2_202] : memref<6xi32, #tpu.memory_space<smem>>
    %c1_203 = arith.constant 1 : index
    %565 = arith.index_cast %564 : i32 to index
    %c0_204 = arith.constant 0 : index
    %c0_205 = arith.constant 0 : index
    %566 = vector.load %arg6[%c1_203, %565, %c0_204, %c0_205] : memref<2x6x4x32xbf16, #tpu.memory_space<vmem>>, vector<1x1x4x32xbf16>
    %567 = vector.shape_cast %566 : vector<1x1x4x32xbf16> to vector<1x4x32xbf16>
    %c3_206 = arith.constant 3 : index
    %568 = memref.load %arg2[%c3_206] : memref<6xi32, #tpu.memory_space<smem>>
    %c1_207 = arith.constant 1 : index
    %569 = arith.index_cast %568 : i32 to index
    %c0_208 = arith.constant 0 : index
    %c0_209 = arith.constant 0 : index
    %570 = vector.load %arg6[%c1_207, %569, %c0_208, %c0_209] : memref<2x6x4x32xbf16, #tpu.memory_space<vmem>>, vector<1x1x4x32xbf16>
    %571 = vector.shape_cast %570 : vector<1x1x4x32xbf16> to vector<1x4x32xbf16>
    %c4_210 = arith.constant 4 : index
    %572 = memref.load %arg2[%c4_210] : memref<6xi32, #tpu.memory_space<smem>>
    %c1_211 = arith.constant 1 : index
    %573 = arith.index_cast %572 : i32 to index
    %c0_212 = arith.constant 0 : index
    %c0_213 = arith.constant 0 : index
    %574 = vector.load %arg6[%c1_211, %573, %c0_212, %c0_213] : memref<2x6x4x32xbf16, #tpu.memory_space<vmem>>, vector<1x1x4x32xbf16>
    %575 = vector.shape_cast %574 : vector<1x1x4x32xbf16> to vector<1x4x32xbf16>
    %c5_214 = arith.constant 5 : index
    %576 = memref.load %arg2[%c5_214] : memref<6xi32, #tpu.memory_space<smem>>
    %c1_215 = arith.constant 1 : index
    %577 = arith.index_cast %576 : i32 to index
    %c0_216 = arith.constant 0 : index
    %c0_217 = arith.constant 0 : index
    %578 = vector.load %arg6[%c1_215, %577, %c0_216, %c0_217] : memref<2x6x4x32xbf16, #tpu.memory_space<vmem>>, vector<1x1x4x32xbf16>
    %579 = vector.shape_cast %578 : vector<1x1x4x32xbf16> to vector<1x4x32xbf16>
    %580 = tpu.concatenate %559, %563, %567, %571, %575, %579 in 0 : vector<1x4x32xbf16>, vector<1x4x32xbf16>, vector<1x4x32xbf16>, vector<1x4x32xbf16>, vector<1x4x32xbf16>, vector<1x4x32xbf16> -> vector<6x4x32xbf16>
    %c0_218 = arith.constant 0 : index
    %581 = memref.load %arg2[%c0_218] : memref<6xi32, #tpu.memory_space<smem>>
    %c1_219 = arith.constant 1 : index
    %582 = arith.index_cast %581 : i32 to index
    %c0_220 = arith.constant 0 : index
    %c0_221 = arith.constant 0 : index
    %583 = vector.load %arg7[%c1_219, %582, %c0_220, %c0_221] : memref<2x6x4x32xbf16, #tpu.memory_space<vmem>>, vector<1x1x4x32xbf16>
    %584 = vector.shape_cast %583 : vector<1x1x4x32xbf16> to vector<1x4x32xbf16>
    %c1_222 = arith.constant 1 : index
    %585 = memref.load %arg2[%c1_222] : memref<6xi32, #tpu.memory_space<smem>>
    %c1_223 = arith.constant 1 : index
    %586 = arith.index_cast %585 : i32 to index
    %c0_224 = arith.constant 0 : index
    %c0_225 = arith.constant 0 : index
    %587 = vector.load %arg7[%c1_223, %586, %c0_224, %c0_225] : memref<2x6x4x32xbf16, #tpu.memory_space<vmem>>, vector<1x1x4x32xbf16>
    %588 = vector.shape_cast %587 : vector<1x1x4x32xbf16> to vector<1x4x32xbf16>
    %c2_226 = arith.constant 2 : index
    %589 = memref.load %arg2[%c2_226] : memref<6xi32, #tpu.memory_space<smem>>
    %c1_227 = arith.constant 1 : index
    %590 = arith.index_cast %589 : i32 to index
    %c0_228 = arith.constant 0 : index
    %c0_229 = arith.constant 0 : index
    %591 = vector.load %arg7[%c1_227, %590, %c0_228, %c0_229] : memref<2x6x4x32xbf16, #tpu.memory_space<vmem>>, vector<1x1x4x32xbf16>
    %592 = vector.shape_cast %591 : vector<1x1x4x32xbf16> to vector<1x4x32xbf16>
    %c3_230 = arith.constant 3 : index
    %593 = memref.load %arg2[%c3_230] : memref<6xi32, #tpu.memory_space<smem>>
    %c1_231 = arith.constant 1 : index
    %594 = arith.index_cast %593 : i32 to index
    %c0_232 = arith.constant 0 : index
    %c0_233 = arith.constant 0 : index
    %595 = vector.load %arg7[%c1_231, %594, %c0_232, %c0_233] : memref<2x6x4x32xbf16, #tpu.memory_space<vmem>>, vector<1x1x4x32xbf16>
    %596 = vector.shape_cast %595 : vector<1x1x4x32xbf16> to vector<1x4x32xbf16>
    %c4_234 = arith.constant 4 : index
    %597 = memref.load %arg2[%c4_234] : memref<6xi32, #tpu.memory_space<smem>>
    %c1_235 = arith.constant 1 : index
    %598 = arith.index_cast %597 : i32 to index
    %c0_236 = arith.constant 0 : index
    %c0_237 = arith.constant 0 : index
    %599 = vector.load %arg7[%c1_235, %598, %c0_236, %c0_237] : memref<2x6x4x32xbf16, #tpu.memory_space<vmem>>, vector<1x1x4x32xbf16>
    %600 = vector.shape_cast %599 : vector<1x1x4x32xbf16> to vector<1x4x32xbf16>
    %c5_238 = arith.constant 5 : index
    %601 = memref.load %arg2[%c5_238] : memref<6xi32, #tpu.memory_space<smem>>
    %c1_239 = arith.constant 1 : index
    %602 = arith.index_cast %601 : i32 to index
    %c0_240 = arith.constant 0 : index
    %c0_241 = arith.constant 0 : index
    %603 = vector.load %arg7[%c1_239, %602, %c0_240, %c0_241] : memref<2x6x4x32xbf16, #tpu.memory_space<vmem>>, vector<1x1x4x32xbf16>
    %604 = vector.shape_cast %603 : vector<1x1x4x32xbf16> to vector<1x4x32xbf16>
    %605 = tpu.concatenate %584, %588, %592, %596, %600, %604 in 0 : vector<1x4x32xbf16>, vector<1x4x32xbf16>, vector<1x4x32xbf16>, vector<1x4x32xbf16>, vector<1x4x32xbf16>, vector<1x4x32xbf16> -> vector<6x4x32xbf16>
    %606 = tpu.iota {dimensions = array<i32: 1>} : vector<6x4x32xi32>
    %607 = vector.broadcast %0 : i32 to vector<6x4x32xi32>
    %608 = arith.cmpi eq, %606, %607 : vector<6x4x32xi32>
    %609 = vector.shape_cast %554 : vector<6x32xf32> to vector<6x1x32xf32>
    %610 = arith.extf %580 : vector<6x4x32xbf16> to vector<6x4x32xf32>
    %611 = vector.shape_cast %609 : vector<6x1x32xf32> to vector<6x1x32xf32>
    %612 = vector.broadcast %611 : vector<6x1x32xf32> to vector<6x4x32xf32>
    %613 = arith.select %608, %612, %610 : vector<6x4x32xi1>, vector<6x4x32xf32>
    %614 = vector.broadcast %0 : i32 to vector<6x4x32xi32>
    %615 = arith.cmpi eq, %606, %614 : vector<6x4x32xi32>
    %616 = vector.shape_cast %555 : vector<6x32xf32> to vector<6x1x32xf32>
    %617 = arith.extf %605 : vector<6x4x32xbf16> to vector<6x4x32xf32>
    %618 = vector.shape_cast %616 : vector<6x1x32xf32> to vector<6x1x32xf32>
    %619 = vector.broadcast %618 : vector<6x1x32xf32> to vector<6x4x32xf32>
    %620 = arith.select %615, %619, %617 : vector<6x4x32xi1>, vector<6x4x32xf32>
    %621 = arith.truncf %613 : vector<6x4x32xf32> to vector<6x4x32xbf16>
    %c1_242 = arith.constant 1 : index
    %c0_243 = arith.constant 0 : index
    %c0_244 = arith.constant 0 : index
    %c0_245 = arith.constant 0 : index
    %622 = vector.load %arg25[%c1_242, %c0_243, %c0_244, %c0_245] : memref<2x6x4x32xbf16, #tpu.memory_space<vmem>>, vector<1x6x4x32xbf16>
    %623 = vector.shape_cast %622 : vector<1x6x4x32xbf16> to vector<6x4x32xbf16>
    %624 = vector.shape_cast %621 : vector<6x4x32xbf16> to vector<1x6x4x32xbf16>
    tpu.vector_store %arg25[%c1_242, %c0_243, %c0_244, %c0_245], %624 {strides = array<i32>} : memref<2x6x4x32xbf16, #tpu.memory_space<vmem>>, vector<1x6x4x32xbf16>,
    %625 = arith.truncf %620 : vector<6x4x32xf32> to vector<6x4x32xbf16>
    %c1_246 = arith.constant 1 : index
    %c0_247 = arith.constant 0 : index
    %c0_248 = arith.constant 0 : index
    %c0_249 = arith.constant 0 : index
    %626 = vector.load %arg26[%c1_246, %c0_247, %c0_248, %c0_249] : memref<2x6x4x32xbf16, #tpu.memory_space<vmem>>, vector<1x6x4x32xbf16>
    %627 = vector.shape_cast %626 : vector<1x6x4x32xbf16> to vector<6x4x32xbf16>
    %628 = vector.shape_cast %625 : vector<6x4x32xbf16> to vector<1x6x4x32xbf16>
    tpu.vector_store %arg26[%c1_246, %c0_247, %c0_248, %c0_249], %628 {strides = array<i32>} : memref<2x6x4x32xbf16, #tpu.memory_space<vmem>>, vector<1x6x4x32xbf16>,
    %629 = vector.extract_strided_slice %553 {offsets = [0, 0], sizes = [6, 8], strides = [1, 1]} : vector<6x32xf32> to vector<6x8xf32>
    %630 = vector.extract_strided_slice %613 {offsets = [0, 0, 0], sizes = [6, 4, 8], strides = [1, 1, 1]} : vector<6x4x32xf32> to vector<6x4x8xf32>
    %631 = vector.extract_strided_slice %620 {offsets = [0, 0, 0], sizes = [6, 4, 8], strides = [1, 1, 1]} : vector<6x4x32xf32> to vector<6x4x8xf32>
    %632 = vector.shape_cast %629 : vector<6x8xf32> to vector<6x1x8xf32>
    %633 = vector.broadcast %632 : vector<6x1x8xf32> to vector<6x4x8xf32>
    %634 = arith.mulf %633, %630 : vector<6x4x8xf32>
    %cst_250 = arith.constant dense<0.000000e+00> : vector<6x4xf32>
    %635 = vector.multi_reduction <add>, %634, %cst_250 [2] : vector<6x4x8xf32> to vector<6x4xf32>
    %636 = arith.addf %635, %53 : vector<6x4xf32>
    %637 = vector.extract_strided_slice %56 {offsets = [0, 0, 0], sizes = [1, 1, 4], strides = [1, 1, 1]} : vector<1x4x4xf32> to vector<1x1x4xf32>
    %638 = vector.shape_cast %637 : vector<1x1x4xf32> to vector<1x4xf32>
    %639 = vector.broadcast %638 : vector<1x4xf32> to vector<6x4xf32>
    %640 = arith.addf %636, %639 : vector<6x4xf32>
    %cst_251 = arith.constant dense<0xFF800000> : vector<6xf32>
    %641 = vector.multi_reduction <maximumf>, %640, %cst_251 [1] : vector<6x4xf32> to vector<6xf32>
    %642 = vector.shape_cast %641 : vector<6xf32> to vector<6x1xf32>
    %643 = vector.broadcast %642 : vector<6x1xf32> to vector<6x4xf32>
    %644 = arith.subf %640, %643 : vector<6x4xf32>
    %645 = math.exp %644 : vector<6x4xf32>
    %cst_252 = arith.constant dense<0.000000e+00> : vector<6xf32>
    %646 = vector.multi_reduction <add>, %645, %cst_252 [1] : vector<6x4xf32> to vector<6xf32>
    %647 = vector.shape_cast %646 : vector<6xf32> to vector<6x1xf32>
    %648 = vector.broadcast %647 : vector<6x1xf32> to vector<6x4xf32>
    %649 = arith.divf %645, %648 : vector<6x4xf32>
    %650 = vector.shape_cast %649 : vector<6x4xf32> to vector<6x4x1xf32>
    %651 = vector.broadcast %650 : vector<6x4x1xf32> to vector<6x4x8xf32>
    %652 = arith.mulf %651, %631 : vector<6x4x8xf32>
    %cst_253 = arith.constant dense<0.000000e+00> : vector<6x8xf32>
    %653 = vector.multi_reduction <add>, %652, %cst_253 [1] : vector<6x4x8xf32> to vector<6x8xf32>
    %654 = vector.extract_strided_slice %553 {offsets = [0, 8], sizes = [6, 8], strides = [1, 1]} : vector<6x32xf32> to vector<6x8xf32>
    %655 = vector.extract_strided_slice %613 {offsets = [0, 0, 8], sizes = [6, 4, 8], strides = [1, 1, 1]} : vector<6x4x32xf32> to vector<6x4x8xf32>
    %656 = vector.extract_strided_slice %620 {offsets = [0, 0, 8], sizes = [6, 4, 8], strides = [1, 1, 1]} : vector<6x4x32xf32> to vector<6x4x8xf32>
    %657 = vector.shape_cast %654 : vector<6x8xf32> to vector<6x1x8xf32>
    %658 = vector.broadcast %657 : vector<6x1x8xf32> to vector<6x4x8xf32>
    %659 = arith.mulf %658, %655 : vector<6x4x8xf32>
    %cst_254 = arith.constant dense<0.000000e+00> : vector<6x4xf32>
    %660 = vector.multi_reduction <add>, %659, %cst_254 [2] : vector<6x4x8xf32> to vector<6x4xf32>
    %661 = arith.addf %660, %53 : vector<6x4xf32>
    %662 = vector.extract_strided_slice %56 {offsets = [0, 1, 0], sizes = [1, 1, 4], strides = [1, 1, 1]} : vector<1x4x4xf32> to vector<1x1x4xf32>
    %663 = vector.shape_cast %662 : vector<1x1x4xf32> to vector<1x4xf32>
    %664 = vector.broadcast %663 : vector<1x4xf32> to vector<6x4xf32>
    %665 = arith.addf %661, %664 : vector<6x4xf32>
    %cst_255 = arith.constant dense<0xFF800000> : vector<6xf32>
    %666 = vector.multi_reduction <maximumf>, %665, %cst_255 [1] : vector<6x4xf32> to vector<6xf32>
    %667 = vector.shape_cast %666 : vector<6xf32> to vector<6x1xf32>
    %668 = vector.broadcast %667 : vector<6x1xf32> to vector<6x4xf32>
    %669 = arith.subf %665, %668 : vector<6x4xf32>
    %670 = math.exp %669 : vector<6x4xf32>
    %cst_256 = arith.constant dense<0.000000e+00> : vector<6xf32>
    %671 = vector.multi_reduction <add>, %670, %cst_256 [1] : vector<6x4xf32> to vector<6xf32>
    %672 = vector.shape_cast %671 : vector<6xf32> to vector<6x1xf32>
    %673 = vector.broadcast %672 : vector<6x1xf32> to vector<6x4xf32>
    %674 = arith.divf %670, %673 : vector<6x4xf32>
    %675 = vector.shape_cast %674 : vector<6x4xf32> to vector<6x4x1xf32>
    %676 = vector.broadcast %675 : vector<6x4x1xf32> to vector<6x4x8xf32>
    %677 = arith.mulf %676, %656 : vector<6x4x8xf32>
    %cst_257 = arith.constant dense<0.000000e+00> : vector<6x8xf32>
    %678 = vector.multi_reduction <add>, %677, %cst_257 [1] : vector<6x4x8xf32> to vector<6x8xf32>
    %679 = vector.extract_strided_slice %553 {offsets = [0, 16], sizes = [6, 8], strides = [1, 1]} : vector<6x32xf32> to vector<6x8xf32>
    %680 = vector.extract_strided_slice %613 {offsets = [0, 0, 16], sizes = [6, 4, 8], strides = [1, 1, 1]} : vector<6x4x32xf32> to vector<6x4x8xf32>
    %681 = vector.extract_strided_slice %620 {offsets = [0, 0, 16], sizes = [6, 4, 8], strides = [1, 1, 1]} : vector<6x4x32xf32> to vector<6x4x8xf32>
    %682 = vector.shape_cast %679 : vector<6x8xf32> to vector<6x1x8xf32>
    %683 = vector.broadcast %682 : vector<6x1x8xf32> to vector<6x4x8xf32>
    %684 = arith.mulf %683, %680 : vector<6x4x8xf32>
    %cst_258 = arith.constant dense<0.000000e+00> : vector<6x4xf32>
    %685 = vector.multi_reduction <add>, %684, %cst_258 [2] : vector<6x4x8xf32> to vector<6x4xf32>
    %686 = arith.addf %685, %53 : vector<6x4xf32>
    %687 = vector.extract_strided_slice %56 {offsets = [0, 2, 0], sizes = [1, 1, 4], strides = [1, 1, 1]} : vector<1x4x4xf32> to vector<1x1x4xf32>
    %688 = vector.shape_cast %687 : vector<1x1x4xf32> to vector<1x4xf32>
    %689 = vector.broadcast %688 : vector<1x4xf32> to vector<6x4xf32>
    %690 = arith.addf %686, %689 : vector<6x4xf32>
    %cst_259 = arith.constant dense<0xFF800000> : vector<6xf32>
    %691 = vector.multi_reduction <maximumf>, %690, %cst_259 [1] : vector<6x4xf32> to vector<6xf32>
    %692 = vector.shape_cast %691 : vector<6xf32> to vector<6x1xf32>
    %693 = vector.broadcast %692 : vector<6x1xf32> to vector<6x4xf32>
    %694 = arith.subf %690, %693 : vector<6x4xf32>
    %695 = math.exp %694 : vector<6x4xf32>
    %cst_260 = arith.constant dense<0.000000e+00> : vector<6xf32>
    %696 = vector.multi_reduction <add>, %695, %cst_260 [1] : vector<6x4xf32> to vector<6xf32>
    %697 = vector.shape_cast %696 : vector<6xf32> to vector<6x1xf32>
    %698 = vector.broadcast %697 : vector<6x1xf32> to vector<6x4xf32>
    %699 = arith.divf %695, %698 : vector<6x4xf32>
    %700 = vector.shape_cast %699 : vector<6x4xf32> to vector<6x4x1xf32>
    %701 = vector.broadcast %700 : vector<6x4x1xf32> to vector<6x4x8xf32>
    %702 = arith.mulf %701, %681 : vector<6x4x8xf32>
    %cst_261 = arith.constant dense<0.000000e+00> : vector<6x8xf32>
    %703 = vector.multi_reduction <add>, %702, %cst_261 [1] : vector<6x4x8xf32> to vector<6x8xf32>
    %704 = vector.extract_strided_slice %553 {offsets = [0, 24], sizes = [6, 8], strides = [1, 1]} : vector<6x32xf32> to vector<6x8xf32>
    %705 = vector.extract_strided_slice %613 {offsets = [0, 0, 24], sizes = [6, 4, 8], strides = [1, 1, 1]} : vector<6x4x32xf32> to vector<6x4x8xf32>
    %706 = vector.extract_strided_slice %620 {offsets = [0, 0, 24], sizes = [6, 4, 8], strides = [1, 1, 1]} : vector<6x4x32xf32> to vector<6x4x8xf32>
    %707 = vector.shape_cast %704 : vector<6x8xf32> to vector<6x1x8xf32>
    %708 = vector.broadcast %707 : vector<6x1x8xf32> to vector<6x4x8xf32>
    %709 = arith.mulf %708, %705 : vector<6x4x8xf32>
    %cst_262 = arith.constant dense<0.000000e+00> : vector<6x4xf32>
    %710 = vector.multi_reduction <add>, %709, %cst_262 [2] : vector<6x4x8xf32> to vector<6x4xf32>
    %711 = arith.addf %710, %53 : vector<6x4xf32>
    %712 = vector.extract_strided_slice %56 {offsets = [0, 3, 0], sizes = [1, 1, 4], strides = [1, 1, 1]} : vector<1x4x4xf32> to vector<1x1x4xf32>
    %713 = vector.shape_cast %712 : vector<1x1x4xf32> to vector<1x4xf32>
    %714 = vector.broadcast %713 : vector<1x4xf32> to vector<6x4xf32>
    %715 = arith.addf %711, %714 : vector<6x4xf32>
    %cst_263 = arith.constant dense<0xFF800000> : vector<6xf32>
    %716 = vector.multi_reduction <maximumf>, %715, %cst_263 [1] : vector<6x4xf32> to vector<6xf32>
    %717 = vector.shape_cast %716 : vector<6xf32> to vector<6x1xf32>
    %718 = vector.broadcast %717 : vector<6x1xf32> to vector<6x4xf32>
    %719 = arith.subf %715, %718 : vector<6x4xf32>
    %720 = math.exp %719 : vector<6x4xf32>
    %cst_264 = arith.constant dense<0.000000e+00> : vector<6xf32>
    %721 = vector.multi_reduction <add>, %720, %cst_264 [1] : vector<6x4xf32> to vector<6xf32>
    %722 = vector.shape_cast %721 : vector<6xf32> to vector<6x1xf32>
    %723 = vector.broadcast %722 : vector<6x1xf32> to vector<6x4xf32>
    %724 = arith.divf %720, %723 : vector<6x4xf32>
    %725 = vector.shape_cast %724 : vector<6x4xf32> to vector<6x4x1xf32>
    %726 = vector.broadcast %725 : vector<6x4x1xf32> to vector<6x4x8xf32>
    %727 = arith.mulf %726, %706 : vector<6x4x8xf32>
    %cst_265 = arith.constant dense<0.000000e+00> : vector<6x8xf32>
    %728 = vector.multi_reduction <add>, %727, %cst_265 [1] : vector<6x4x8xf32> to vector<6x8xf32>
    %729 = tpu.concatenate %653, %678, %703, %728 in 1 : vector<6x8xf32>, vector<6x8xf32>, vector<6x8xf32>, vector<6x8xf32> -> vector<6x32xf32>
    %730 = arith.truncf %729 : vector<6x32xf32> to vector<6x32xbf16>
    %c1_266 = arith.constant 1 : index
    %c0_267 = arith.constant 0 : index
    %c0_268 = arith.constant 0 : index
    %731 = vector.load %arg14[%c1_266, %c0_267, %c0_268] : memref<2x32x32xbf16, #tpu.memory_space<vmem>>, vector<1x32x32xbf16>
    %732 = vector.shape_cast %731 : vector<1x32x32xbf16> to vector<32x32xbf16>
    %cst_269 = arith.constant dense<0.000000e+00> : vector<6x32xf32>
    %733 = tpu.matmul %730, %732, %cst_269 {dimension_numbers = #tpu.dot_dimension_numbers<[1], [0], [0], [1], [0, 0, 1, 1], [], []>} : vector<6x32xbf16>, vector<32x32xbf16>, vector<6x32xf32> -> vector<6x32xf32>
    %734 = arith.addf %534, %733 : vector<6x32xf32>
    %c1_270 = arith.constant 1 : index
    %c0_271 = arith.constant 0 : index
    %c0_272 = arith.constant 0 : index
    %735 = vector.load %arg15[%c1_270, %c0_271, %c0_272] : memref<2x1x32xf32, #tpu.memory_space<vmem>>, vector<1x1x32xf32>
    %736 = vector.shape_cast %735 : vector<1x1x32xf32> to vector<1x32xf32>
    %737 = arith.mulf %734, %734 : vector<6x32xf32>
    %cst_273 = arith.constant dense<0.000000e+00> : vector<6xf32>
    %738 = vector.multi_reduction <add>, %737, %cst_273 [1] : vector<6x32xf32> to vector<6xf32>
    %739 = vector.shape_cast %738 : vector<6xf32> to vector<6x1xf32>
    %cst_274 = arith.constant 3.200000e+01 : f32
    %740 = vector.broadcast %cst_274 : f32 to vector<6x1xf32>
    %741 = arith.divf %739, %740 : vector<6x1xf32>
    %cst_275 = arith.constant 9.99999997E-7 : f32
    %742 = vector.broadcast %cst_275 : f32 to vector<6x1xf32>
    %743 = arith.addf %741, %742 : vector<6x1xf32>
    %744 = math.rsqrt %743 : vector<6x1xf32>
    %745 = vector.broadcast %744 : vector<6x1xf32> to vector<6x32xf32>
    %746 = arith.mulf %734, %745 : vector<6x32xf32>
    %747 = vector.broadcast %736 : vector<1x32xf32> to vector<6x32xf32>
    %748 = arith.mulf %746, %747 : vector<6x32xf32>
    %749 = arith.truncf %748 : vector<6x32xf32> to vector<6x32xbf16>
    %c1_276 = arith.constant 1 : index
    %c0_277 = arith.constant 0 : index
    %c0_278 = arith.constant 0 : index
    %750 = vector.load %arg16[%c1_276, %c0_277, %c0_278] : memref<2x32x32xbf16, #tpu.memory_space<vmem>>, vector<1x32x32xbf16>
    %751 = vector.shape_cast %750 : vector<1x32x32xbf16> to vector<32x32xbf16>
    %cst_279 = arith.constant dense<0.000000e+00> : vector<6x32xf32>
    %752 = tpu.matmul %749, %751, %cst_279 {dimension_numbers = #tpu.dot_dimension_numbers<[1], [0], [0], [1], [0, 0, 1, 1], [], []>} : vector<6x32xbf16>, vector<32x32xbf16>, vector<6x32xf32> -> vector<6x32xf32>
    %c1_280 = arith.constant 1 : index
    %c0_281 = arith.constant 0 : index
    %c0_282 = arith.constant 0 : index
    %c0_283 = arith.constant 0 : index
    %753 = vector.load %arg8[%c1_280, %c0_281, %c0_282, %c0_283] : memref<2x2x8x32xbf16, #tpu.memory_space<vmem>>, vector<1x2x8x32xbf16>
    %754 = vector.shape_cast %753 : vector<1x2x8x32xbf16> to vector<2x8x32xbf16>
    %755 = arith.extf %754 : vector<2x8x32xbf16> to vector<2x8x32xf32>
    %c1_284 = arith.constant 1 : index
    %c0_285 = arith.constant 0 : index
    %c0_286 = arith.constant 0 : index
    %c0_287 = arith.constant 0 : index
    %756 = vector.load %arg9[%c1_284, %c0_285, %c0_286, %c0_287] : memref<2x2x8x32xbf16, #tpu.memory_space<vmem>>, vector<1x2x8x32xbf16>
    %757 = vector.shape_cast %756 : vector<1x2x8x32xbf16> to vector<2x8x32xbf16>
    %758 = arith.extf %757 : vector<2x8x32xbf16> to vector<2x8x32xf32>
    %c0_288 = arith.constant 0 : index
    %c0_289 = arith.constant 0 : index
    %759 = vector.load %arg10[%c0_288, %c0_289] : memref<2x8xf32, #tpu.memory_space<vmem>>, vector<2x8xf32>
    %760 = vector.extract_strided_slice %752 {offsets = [0, 0], sizes = [3, 32], strides = [1, 1]} : vector<6x32xf32> to vector<3x32xf32>
    %761 = vector.extract_strided_slice %755 {offsets = [0, 0, 0], sizes = [1, 8, 32], strides = [1, 1, 1]} : vector<2x8x32xf32> to vector<1x8x32xf32>
    %762 = vector.shape_cast %761 : vector<1x8x32xf32> to vector<8x32xf32>
    %763 = vector.extract_strided_slice %758 {offsets = [0, 0, 0], sizes = [1, 8, 32], strides = [1, 1, 1]} : vector<2x8x32xf32> to vector<1x8x32xf32>
    %764 = vector.shape_cast %763 : vector<1x8x32xf32> to vector<8x32xf32>
    %765 = vector.extract_strided_slice %759 {offsets = [0, 0], sizes = [1, 8], strides = [1, 1]} : vector<2x8xf32> to vector<1x8xf32>
    %766 = vector.extract_strided_slice %760 {offsets = [0, 0], sizes = [3, 8], strides = [1, 1]} : vector<3x32xf32> to vector<3x8xf32>
    %767 = vector.extract_strided_slice %762 {offsets = [0, 0], sizes = [8, 8], strides = [1, 1]} : vector<8x32xf32> to vector<8x8xf32>
    %768 = vector.extract_strided_slice %764 {offsets = [0, 0], sizes = [8, 8], strides = [1, 1]} : vector<8x32xf32> to vector<8x8xf32>
    %769 = vector.shape_cast %766 : vector<3x8xf32> to vector<3x1x8xf32>
    %770 = vector.shape_cast %767 : vector<8x8xf32> to vector<1x8x8xf32>
    %771 = vector.broadcast %769 : vector<3x1x8xf32> to vector<3x8x8xf32>
    %772 = vector.broadcast %770 : vector<1x8x8xf32> to vector<3x8x8xf32>
    %773 = arith.mulf %771, %772 : vector<3x8x8xf32>
    %cst_290 = arith.constant dense<0.000000e+00> : vector<3x8xf32>
    %774 = vector.multi_reduction <add>, %773, %cst_290 [2] : vector<3x8x8xf32> to vector<3x8xf32>
    %775 = vector.broadcast %765 : vector<1x8xf32> to vector<3x8xf32>
    %776 = arith.addf %774, %775 : vector<3x8xf32>
    %cst_291 = arith.constant dense<0xFF800000> : vector<3xf32>
    %777 = vector.multi_reduction <maximumf>, %776, %cst_291 [1] : vector<3x8xf32> to vector<3xf32>
    %778 = vector.shape_cast %777 : vector<3xf32> to vector<3x1xf32>
    %779 = vector.broadcast %778 : vector<3x1xf32> to vector<3x8xf32>
    %780 = arith.subf %776, %779 : vector<3x8xf32>
    %781 = math.exp %780 : vector<3x8xf32>
    %cst_292 = arith.constant dense<0.000000e+00> : vector<3xf32>
    %782 = vector.multi_reduction <add>, %781, %cst_292 [1] : vector<3x8xf32> to vector<3xf32>
    %783 = vector.shape_cast %782 : vector<3xf32> to vector<3x1xf32>
    %784 = vector.broadcast %783 : vector<3x1xf32> to vector<3x8xf32>
    %785 = arith.divf %781, %784 : vector<3x8xf32>
    %786 = vector.shape_cast %785 : vector<3x8xf32> to vector<3x8x1xf32>
    %787 = vector.shape_cast %768 : vector<8x8xf32> to vector<1x8x8xf32>
    %788 = vector.broadcast %786 : vector<3x8x1xf32> to vector<3x8x8xf32>
    %789 = vector.broadcast %787 : vector<1x8x8xf32> to vector<3x8x8xf32>
    %790 = arith.mulf %788, %789 : vector<3x8x8xf32>
    %cst_293 = arith.constant dense<0.000000e+00> : vector<3x8xf32>
    %791 = vector.multi_reduction <add>, %790, %cst_293 [1] : vector<3x8x8xf32> to vector<3x8xf32>
    %792 = vector.extract_strided_slice %760 {offsets = [0, 8], sizes = [3, 8], strides = [1, 1]} : vector<3x32xf32> to vector<3x8xf32>
    %793 = vector.extract_strided_slice %762 {offsets = [0, 8], sizes = [8, 8], strides = [1, 1]} : vector<8x32xf32> to vector<8x8xf32>
    %794 = vector.extract_strided_slice %764 {offsets = [0, 8], sizes = [8, 8], strides = [1, 1]} : vector<8x32xf32> to vector<8x8xf32>
    %795 = vector.shape_cast %792 : vector<3x8xf32> to vector<3x1x8xf32>
    %796 = vector.shape_cast %793 : vector<8x8xf32> to vector<1x8x8xf32>
    %797 = vector.broadcast %795 : vector<3x1x8xf32> to vector<3x8x8xf32>
    %798 = vector.broadcast %796 : vector<1x8x8xf32> to vector<3x8x8xf32>
    %799 = arith.mulf %797, %798 : vector<3x8x8xf32>
    %cst_294 = arith.constant dense<0.000000e+00> : vector<3x8xf32>
    %800 = vector.multi_reduction <add>, %799, %cst_294 [2] : vector<3x8x8xf32> to vector<3x8xf32>
    %801 = vector.broadcast %765 : vector<1x8xf32> to vector<3x8xf32>
    %802 = arith.addf %800, %801 : vector<3x8xf32>
    %cst_295 = arith.constant dense<0xFF800000> : vector<3xf32>
    %803 = vector.multi_reduction <maximumf>, %802, %cst_295 [1] : vector<3x8xf32> to vector<3xf32>
    %804 = vector.shape_cast %803 : vector<3xf32> to vector<3x1xf32>
    %805 = vector.broadcast %804 : vector<3x1xf32> to vector<3x8xf32>
    %806 = arith.subf %802, %805 : vector<3x8xf32>
    %807 = math.exp %806 : vector<3x8xf32>
    %cst_296 = arith.constant dense<0.000000e+00> : vector<3xf32>
    %808 = vector.multi_reduction <add>, %807, %cst_296 [1] : vector<3x8xf32> to vector<3xf32>
    %809 = vector.shape_cast %808 : vector<3xf32> to vector<3x1xf32>
    %810 = vector.broadcast %809 : vector<3x1xf32> to vector<3x8xf32>
    %811 = arith.divf %807, %810 : vector<3x8xf32>
    %812 = vector.shape_cast %811 : vector<3x8xf32> to vector<3x8x1xf32>
    %813 = vector.shape_cast %794 : vector<8x8xf32> to vector<1x8x8xf32>
    %814 = vector.broadcast %812 : vector<3x8x1xf32> to vector<3x8x8xf32>
    %815 = vector.broadcast %813 : vector<1x8x8xf32> to vector<3x8x8xf32>
    %816 = arith.mulf %814, %815 : vector<3x8x8xf32>
    %cst_297 = arith.constant dense<0.000000e+00> : vector<3x8xf32>
    %817 = vector.multi_reduction <add>, %816, %cst_297 [1] : vector<3x8x8xf32> to vector<3x8xf32>
    %818 = vector.extract_strided_slice %760 {offsets = [0, 16], sizes = [3, 8], strides = [1, 1]} : vector<3x32xf32> to vector<3x8xf32>
    %819 = vector.extract_strided_slice %762 {offsets = [0, 16], sizes = [8, 8], strides = [1, 1]} : vector<8x32xf32> to vector<8x8xf32>
    %820 = vector.extract_strided_slice %764 {offsets = [0, 16], sizes = [8, 8], strides = [1, 1]} : vector<8x32xf32> to vector<8x8xf32>
    %821 = vector.shape_cast %818 : vector<3x8xf32> to vector<3x1x8xf32>
    %822 = vector.shape_cast %819 : vector<8x8xf32> to vector<1x8x8xf32>
    %823 = vector.broadcast %821 : vector<3x1x8xf32> to vector<3x8x8xf32>
    %824 = vector.broadcast %822 : vector<1x8x8xf32> to vector<3x8x8xf32>
    %825 = arith.mulf %823, %824 : vector<3x8x8xf32>
    %cst_298 = arith.constant dense<0.000000e+00> : vector<3x8xf32>
    %826 = vector.multi_reduction <add>, %825, %cst_298 [2] : vector<3x8x8xf32> to vector<3x8xf32>
    %827 = vector.broadcast %765 : vector<1x8xf32> to vector<3x8xf32>
    %828 = arith.addf %826, %827 : vector<3x8xf32>
    %cst_299 = arith.constant dense<0xFF800000> : vector<3xf32>
    %829 = vector.multi_reduction <maximumf>, %828, %cst_299 [1] : vector<3x8xf32> to vector<3xf32>
    %830 = vector.shape_cast %829 : vector<3xf32> to vector<3x1xf32>
    %831 = vector.broadcast %830 : vector<3x1xf32> to vector<3x8xf32>
    %832 = arith.subf %828, %831 : vector<3x8xf32>
    %833 = math.exp %832 : vector<3x8xf32>
    %cst_300 = arith.constant dense<0.000000e+00> : vector<3xf32>
    %834 = vector.multi_reduction <add>, %833, %cst_300 [1] : vector<3x8xf32> to vector<3xf32>
    %835 = vector.shape_cast %834 : vector<3xf32> to vector<3x1xf32>
    %836 = vector.broadcast %835 : vector<3x1xf32> to vector<3x8xf32>
    %837 = arith.divf %833, %836 : vector<3x8xf32>
    %838 = vector.shape_cast %837 : vector<3x8xf32> to vector<3x8x1xf32>
    %839 = vector.shape_cast %820 : vector<8x8xf32> to vector<1x8x8xf32>
    %840 = vector.broadcast %838 : vector<3x8x1xf32> to vector<3x8x8xf32>
    %841 = vector.broadcast %839 : vector<1x8x8xf32> to vector<3x8x8xf32>
    %842 = arith.mulf %840, %841 : vector<3x8x8xf32>
    %cst_301 = arith.constant dense<0.000000e+00> : vector<3x8xf32>
    %843 = vector.multi_reduction <add>, %842, %cst_301 [1] : vector<3x8x8xf32> to vector<3x8xf32>
    %844 = vector.extract_strided_slice %760 {offsets = [0, 24], sizes = [3, 8], strides = [1, 1]} : vector<3x32xf32> to vector<3x8xf32>
    %845 = vector.extract_strided_slice %762 {offsets = [0, 24], sizes = [8, 8], strides = [1, 1]} : vector<8x32xf32> to vector<8x8xf32>
    %846 = vector.extract_strided_slice %764 {offsets = [0, 24], sizes = [8, 8], strides = [1, 1]} : vector<8x32xf32> to vector<8x8xf32>
    %847 = vector.shape_cast %844 : vector<3x8xf32> to vector<3x1x8xf32>
    %848 = vector.shape_cast %845 : vector<8x8xf32> to vector<1x8x8xf32>
    %849 = vector.broadcast %847 : vector<3x1x8xf32> to vector<3x8x8xf32>
    %850 = vector.broadcast %848 : vector<1x8x8xf32> to vector<3x8x8xf32>
    %851 = arith.mulf %849, %850 : vector<3x8x8xf32>
    %cst_302 = arith.constant dense<0.000000e+00> : vector<3x8xf32>
    %852 = vector.multi_reduction <add>, %851, %cst_302 [2] : vector<3x8x8xf32> to vector<3x8xf32>
    %853 = vector.broadcast %765 : vector<1x8xf32> to vector<3x8xf32>
    %854 = arith.addf %852, %853 : vector<3x8xf32>
    %cst_303 = arith.constant dense<0xFF800000> : vector<3xf32>
    %855 = vector.multi_reduction <maximumf>, %854, %cst_303 [1] : vector<3x8xf32> to vector<3xf32>
    %856 = vector.shape_cast %855 : vector<3xf32> to vector<3x1xf32>
    %857 = vector.broadcast %856 : vector<3x1xf32> to vector<3x8xf32>
    %858 = arith.subf %854, %857 : vector<3x8xf32>
    %859 = math.exp %858 : vector<3x8xf32>
    %cst_304 = arith.constant dense<0.000000e+00> : vector<3xf32>
    %860 = vector.multi_reduction <add>, %859, %cst_304 [1] : vector<3x8xf32> to vector<3xf32>
    %861 = vector.shape_cast %860 : vector<3xf32> to vector<3x1xf32>
    %862 = vector.broadcast %861 : vector<3x1xf32> to vector<3x8xf32>
    %863 = arith.divf %859, %862 : vector<3x8xf32>
    %864 = vector.shape_cast %863 : vector<3x8xf32> to vector<3x8x1xf32>
    %865 = vector.shape_cast %846 : vector<8x8xf32> to vector<1x8x8xf32>
    %866 = vector.broadcast %864 : vector<3x8x1xf32> to vector<3x8x8xf32>
    %867 = vector.broadcast %865 : vector<1x8x8xf32> to vector<3x8x8xf32>
    %868 = arith.mulf %866, %867 : vector<3x8x8xf32>
    %cst_305 = arith.constant dense<0.000000e+00> : vector<3x8xf32>
    %869 = vector.multi_reduction <add>, %868, %cst_305 [1] : vector<3x8x8xf32> to vector<3x8xf32>
    %870 = tpu.concatenate %791, %817, %843, %869 in 1 : vector<3x8xf32>, vector<3x8xf32>, vector<3x8xf32>, vector<3x8xf32> -> vector<3x32xf32>
    %871 = vector.extract_strided_slice %752 {offsets = [3, 0], sizes = [3, 32], strides = [1, 1]} : vector<6x32xf32> to vector<3x32xf32>
    %872 = vector.extract_strided_slice %755 {offsets = [1, 0, 0], sizes = [1, 8, 32], strides = [1, 1, 1]} : vector<2x8x32xf32> to vector<1x8x32xf32>
    %873 = vector.shape_cast %872 : vector<1x8x32xf32> to vector<8x32xf32>
    %874 = vector.extract_strided_slice %758 {offsets = [1, 0, 0], sizes = [1, 8, 32], strides = [1, 1, 1]} : vector<2x8x32xf32> to vector<1x8x32xf32>
    %875 = vector.shape_cast %874 : vector<1x8x32xf32> to vector<8x32xf32>
    %876 = vector.extract_strided_slice %759 {offsets = [1, 0], sizes = [1, 8], strides = [1, 1]} : vector<2x8xf32> to vector<1x8xf32>
    %877 = vector.extract_strided_slice %871 {offsets = [0, 0], sizes = [3, 8], strides = [1, 1]} : vector<3x32xf32> to vector<3x8xf32>
    %878 = vector.extract_strided_slice %873 {offsets = [0, 0], sizes = [8, 8], strides = [1, 1]} : vector<8x32xf32> to vector<8x8xf32>
    %879 = vector.extract_strided_slice %875 {offsets = [0, 0], sizes = [8, 8], strides = [1, 1]} : vector<8x32xf32> to vector<8x8xf32>
    %880 = vector.shape_cast %877 : vector<3x8xf32> to vector<3x1x8xf32>
    %881 = vector.shape_cast %878 : vector<8x8xf32> to vector<1x8x8xf32>
    %882 = vector.broadcast %880 : vector<3x1x8xf32> to vector<3x8x8xf32>
    %883 = vector.broadcast %881 : vector<1x8x8xf32> to vector<3x8x8xf32>
    %884 = arith.mulf %882, %883 : vector<3x8x8xf32>
    %cst_306 = arith.constant dense<0.000000e+00> : vector<3x8xf32>
    %885 = vector.multi_reduction <add>, %884, %cst_306 [2] : vector<3x8x8xf32> to vector<3x8xf32>
    %886 = vector.broadcast %876 : vector<1x8xf32> to vector<3x8xf32>
    %887 = arith.addf %885, %886 : vector<3x8xf32>
    %cst_307 = arith.constant dense<0xFF800000> : vector<3xf32>
    %888 = vector.multi_reduction <maximumf>, %887, %cst_307 [1] : vector<3x8xf32> to vector<3xf32>
    %889 = vector.shape_cast %888 : vector<3xf32> to vector<3x1xf32>
    %890 = vector.broadcast %889 : vector<3x1xf32> to vector<3x8xf32>
    %891 = arith.subf %887, %890 : vector<3x8xf32>
    %892 = math.exp %891 : vector<3x8xf32>
    %cst_308 = arith.constant dense<0.000000e+00> : vector<3xf32>
    %893 = vector.multi_reduction <add>, %892, %cst_308 [1] : vector<3x8xf32> to vector<3xf32>
    %894 = vector.shape_cast %893 : vector<3xf32> to vector<3x1xf32>
    %895 = vector.broadcast %894 : vector<3x1xf32> to vector<3x8xf32>
    %896 = arith.divf %892, %895 : vector<3x8xf32>
    %897 = vector.shape_cast %896 : vector<3x8xf32> to vector<3x8x1xf32>
    %898 = vector.shape_cast %879 : vector<8x8xf32> to vector<1x8x8xf32>
    %899 = vector.broadcast %897 : vector<3x8x1xf32> to vector<3x8x8xf32>
    %900 = vector.broadcast %898 : vector<1x8x8xf32> to vector<3x8x8xf32>
    %901 = arith.mulf %899, %900 : vector<3x8x8xf32>
    %cst_309 = arith.constant dense<0.000000e+00> : vector<3x8xf32>
    %902 = vector.multi_reduction <add>, %901, %cst_309 [1] : vector<3x8x8xf32> to vector<3x8xf32>
    %903 = vector.extract_strided_slice %871 {offsets = [0, 8], sizes = [3, 8], strides = [1, 1]} : vector<3x32xf32> to vector<3x8xf32>
    %904 = vector.extract_strided_slice %873 {offsets = [0, 8], sizes = [8, 8], strides = [1, 1]} : vector<8x32xf32> to vector<8x8xf32>
    %905 = vector.extract_strided_slice %875 {offsets = [0, 8], sizes = [8, 8], strides = [1, 1]} : vector<8x32xf32> to vector<8x8xf32>
    %906 = vector.shape_cast %903 : vector<3x8xf32> to vector<3x1x8xf32>
    %907 = vector.shape_cast %904 : vector<8x8xf32> to vector<1x8x8xf32>
    %908 = vector.broadcast %906 : vector<3x1x8xf32> to vector<3x8x8xf32>
    %909 = vector.broadcast %907 : vector<1x8x8xf32> to vector<3x8x8xf32>
    %910 = arith.mulf %908, %909 : vector<3x8x8xf32>
    %cst_310 = arith.constant dense<0.000000e+00> : vector<3x8xf32>
    %911 = vector.multi_reduction <add>, %910, %cst_310 [2] : vector<3x8x8xf32> to vector<3x8xf32>
    %912 = vector.broadcast %876 : vector<1x8xf32> to vector<3x8xf32>
    %913 = arith.addf %911, %912 : vector<3x8xf32>
    %cst_311 = arith.constant dense<0xFF800000> : vector<3xf32>
    %914 = vector.multi_reduction <maximumf>, %913, %cst_311 [1] : vector<3x8xf32> to vector<3xf32>
    %915 = vector.shape_cast %914 : vector<3xf32> to vector<3x1xf32>
    %916 = vector.broadcast %915 : vector<3x1xf32> to vector<3x8xf32>
    %917 = arith.subf %913, %916 : vector<3x8xf32>
    %918 = math.exp %917 : vector<3x8xf32>
    %cst_312 = arith.constant dense<0.000000e+00> : vector<3xf32>
    %919 = vector.multi_reduction <add>, %918, %cst_312 [1] : vector<3x8xf32> to vector<3xf32>
    %920 = vector.shape_cast %919 : vector<3xf32> to vector<3x1xf32>
    %921 = vector.broadcast %920 : vector<3x1xf32> to vector<3x8xf32>
    %922 = arith.divf %918, %921 : vector<3x8xf32>
    %923 = vector.shape_cast %922 : vector<3x8xf32> to vector<3x8x1xf32>
    %924 = vector.shape_cast %905 : vector<8x8xf32> to vector<1x8x8xf32>
    %925 = vector.broadcast %923 : vector<3x8x1xf32> to vector<3x8x8xf32>
    %926 = vector.broadcast %924 : vector<1x8x8xf32> to vector<3x8x8xf32>
    %927 = arith.mulf %925, %926 : vector<3x8x8xf32>
    %cst_313 = arith.constant dense<0.000000e+00> : vector<3x8xf32>
    %928 = vector.multi_reduction <add>, %927, %cst_313 [1] : vector<3x8x8xf32> to vector<3x8xf32>
    %929 = vector.extract_strided_slice %871 {offsets = [0, 16], sizes = [3, 8], strides = [1, 1]} : vector<3x32xf32> to vector<3x8xf32>
    %930 = vector.extract_strided_slice %873 {offsets = [0, 16], sizes = [8, 8], strides = [1, 1]} : vector<8x32xf32> to vector<8x8xf32>
    %931 = vector.extract_strided_slice %875 {offsets = [0, 16], sizes = [8, 8], strides = [1, 1]} : vector<8x32xf32> to vector<8x8xf32>
    %932 = vector.shape_cast %929 : vector<3x8xf32> to vector<3x1x8xf32>
    %933 = vector.shape_cast %930 : vector<8x8xf32> to vector<1x8x8xf32>
    %934 = vector.broadcast %932 : vector<3x1x8xf32> to vector<3x8x8xf32>
    %935 = vector.broadcast %933 : vector<1x8x8xf32> to vector<3x8x8xf32>
    %936 = arith.mulf %934, %935 : vector<3x8x8xf32>
    %cst_314 = arith.constant dense<0.000000e+00> : vector<3x8xf32>
    %937 = vector.multi_reduction <add>, %936, %cst_314 [2] : vector<3x8x8xf32> to vector<3x8xf32>
    %938 = vector.broadcast %876 : vector<1x8xf32> to vector<3x8xf32>
    %939 = arith.addf %937, %938 : vector<3x8xf32>
    %cst_315 = arith.constant dense<0xFF800000> : vector<3xf32>
    %940 = vector.multi_reduction <maximumf>, %939, %cst_315 [1] : vector<3x8xf32> to vector<3xf32>
    %941 = vector.shape_cast %940 : vector<3xf32> to vector<3x1xf32>
    %942 = vector.broadcast %941 : vector<3x1xf32> to vector<3x8xf32>
    %943 = arith.subf %939, %942 : vector<3x8xf32>
    %944 = math.exp %943 : vector<3x8xf32>
    %cst_316 = arith.constant dense<0.000000e+00> : vector<3xf32>
    %945 = vector.multi_reduction <add>, %944, %cst_316 [1] : vector<3x8xf32> to vector<3xf32>
    %946 = vector.shape_cast %945 : vector<3xf32> to vector<3x1xf32>
    %947 = vector.broadcast %946 : vector<3x1xf32> to vector<3x8xf32>
    %948 = arith.divf %944, %947 : vector<3x8xf32>
    %949 = vector.shape_cast %948 : vector<3x8xf32> to vector<3x8x1xf32>
    %950 = vector.shape_cast %931 : vector<8x8xf32> to vector<1x8x8xf32>
    %951 = vector.broadcast %949 : vector<3x8x1xf32> to vector<3x8x8xf32>
    %952 = vector.broadcast %950 : vector<1x8x8xf32> to vector<3x8x8xf32>
    %953 = arith.mulf %951, %952 : vector<3x8x8xf32>
    %cst_317 = arith.constant dense<0.000000e+00> : vector<3x8xf32>
    %954 = vector.multi_reduction <add>, %953, %cst_317 [1] : vector<3x8x8xf32> to vector<3x8xf32>
    %955 = vector.extract_strided_slice %871 {offsets = [0, 24], sizes = [3, 8], strides = [1, 1]} : vector<3x32xf32> to vector<3x8xf32>
    %956 = vector.extract_strided_slice %873 {offsets = [0, 24], sizes = [8, 8], strides = [1, 1]} : vector<8x32xf32> to vector<8x8xf32>
    %957 = vector.extract_strided_slice %875 {offsets = [0, 24], sizes = [8, 8], strides = [1, 1]} : vector<8x32xf32> to vector<8x8xf32>
    %958 = vector.shape_cast %955 : vector<3x8xf32> to vector<3x1x8xf32>
    %959 = vector.shape_cast %956 : vector<8x8xf32> to vector<1x8x8xf32>
    %960 = vector.broadcast %958 : vector<3x1x8xf32> to vector<3x8x8xf32>
    %961 = vector.broadcast %959 : vector<1x8x8xf32> to vector<3x8x8xf32>
    %962 = arith.mulf %960, %961 : vector<3x8x8xf32>
    %cst_318 = arith.constant dense<0.000000e+00> : vector<3x8xf32>
    %963 = vector.multi_reduction <add>, %962, %cst_318 [2] : vector<3x8x8xf32> to vector<3x8xf32>
    %964 = vector.broadcast %876 : vector<1x8xf32> to vector<3x8xf32>
    %965 = arith.addf %963, %964 : vector<3x8xf32>
    %cst_319 = arith.constant dense<0xFF800000> : vector<3xf32>
    %966 = vector.multi_reduction <maximumf>, %965, %cst_319 [1] : vector<3x8xf32> to vector<3xf32>
    %967 = vector.shape_cast %966 : vector<3xf32> to vector<3x1xf32>
    %968 = vector.broadcast %967 : vector<3x1xf32> to vector<3x8xf32>
    %969 = arith.subf %965, %968 : vector<3x8xf32>
    %970 = math.exp %969 : vector<3x8xf32>
    %cst_320 = arith.constant dense<0.000000e+00> : vector<3xf32>
    %971 = vector.multi_reduction <add>, %970, %cst_320 [1] : vector<3x8xf32> to vector<3xf32>
    %972 = vector.shape_cast %971 : vector<3xf32> to vector<3x1xf32>
    %973 = vector.broadcast %972 : vector<3x1xf32> to vector<3x8xf32>
    %974 = arith.divf %970, %973 : vector<3x8xf32>
    %975 = vector.shape_cast %974 : vector<3x8xf32> to vector<3x8x1xf32>
    %976 = vector.shape_cast %957 : vector<8x8xf32> to vector<1x8x8xf32>
    %977 = vector.broadcast %975 : vector<3x8x1xf32> to vector<3x8x8xf32>
    %978 = vector.broadcast %976 : vector<1x8x8xf32> to vector<3x8x8xf32>
    %979 = arith.mulf %977, %978 : vector<3x8x8xf32>
    %cst_321 = arith.constant dense<0.000000e+00> : vector<3x8xf32>
    %980 = vector.multi_reduction <add>, %979, %cst_321 [1] : vector<3x8x8xf32> to vector<3x8xf32>
    %981 = tpu.concatenate %902, %928, %954, %980 in 1 : vector<3x8xf32>, vector<3x8xf32>, vector<3x8xf32>, vector<3x8xf32> -> vector<3x32xf32>
    %982 = tpu.concatenate %870, %981 in 0 : vector<3x32xf32>, vector<3x32xf32> -> vector<6x32xf32>
    %983 = arith.truncf %982 : vector<6x32xf32> to vector<6x32xbf16>
    %c1_322 = arith.constant 1 : index
    %c0_323 = arith.constant 0 : index
    %c0_324 = arith.constant 0 : index
    %984 = vector.load %arg17[%c1_322, %c0_323, %c0_324] : memref<2x32x32xbf16, #tpu.memory_space<vmem>>, vector<1x32x32xbf16>
    %985 = vector.shape_cast %984 : vector<1x32x32xbf16> to vector<32x32xbf16>
    %cst_325 = arith.constant dense<0.000000e+00> : vector<6x32xf32>
    %986 = tpu.matmul %983, %985, %cst_325 {dimension_numbers = #tpu.dot_dimension_numbers<[1], [0], [0], [1], [0, 0, 1, 1], [], []>} : vector<6x32xbf16>, vector<32x32xbf16>, vector<6x32xf32> -> vector<6x32xf32>
    %987 = arith.addf %734, %986 : vector<6x32xf32>
    %c1_326 = arith.constant 1 : index
    %c0_327 = arith.constant 0 : index
    %c0_328 = arith.constant 0 : index
    %988 = vector.load %arg18[%c1_326, %c0_327, %c0_328] : memref<2x1x32xf32, #tpu.memory_space<vmem>>, vector<1x1x32xf32>
    %989 = vector.shape_cast %988 : vector<1x1x32xf32> to vector<1x32xf32>
    %990 = arith.mulf %987, %987 : vector<6x32xf32>
    %cst_329 = arith.constant dense<0.000000e+00> : vector<6xf32>
    %991 = vector.multi_reduction <add>, %990, %cst_329 [1] : vector<6x32xf32> to vector<6xf32>
    %992 = vector.shape_cast %991 : vector<6xf32> to vector<6x1xf32>
    %cst_330 = arith.constant 3.200000e+01 : f32
    %993 = vector.broadcast %cst_330 : f32 to vector<6x1xf32>
    %994 = arith.divf %992, %993 : vector<6x1xf32>
    %cst_331 = arith.constant 9.99999997E-7 : f32
    %995 = vector.broadcast %cst_331 : f32 to vector<6x1xf32>
    %996 = arith.addf %994, %995 : vector<6x1xf32>
    %997 = math.rsqrt %996 : vector<6x1xf32>
    %998 = vector.broadcast %997 : vector<6x1xf32> to vector<6x32xf32>
    %999 = arith.mulf %987, %998 : vector<6x32xf32>
    %1000 = vector.broadcast %989 : vector<1x32xf32> to vector<6x32xf32>
    %1001 = arith.mulf %999, %1000 : vector<6x32xf32>
    %1002 = arith.truncf %1001 : vector<6x32xf32> to vector<6x32xbf16>
    %c1_332 = arith.constant 1 : index
    %c0_333 = arith.constant 0 : index
    %c0_334 = arith.constant 0 : index
    %1003 = vector.load %arg19[%c1_332, %c0_333, %c0_334] : memref<2x32x64xbf16, #tpu.memory_space<vmem>>, vector<1x32x64xbf16>
    %1004 = vector.shape_cast %1003 : vector<1x32x64xbf16> to vector<32x64xbf16>
    %cst_335 = arith.constant dense<0.000000e+00> : vector<6x64xf32>
    %1005 = tpu.matmul %1002, %1004, %cst_335 {dimension_numbers = #tpu.dot_dimension_numbers<[1], [0], [0], [1], [0, 0, 1, 1], [], []>} : vector<6x32xbf16>, vector<32x64xbf16>, vector<6x64xf32> -> vector<6x64xf32>
    %cst_336 = arith.constant 0.000000e+00 : f32
    %1006 = vector.broadcast %cst_336 : f32 to vector<6x64xf32>
    %1007 = arith.maximumf %1005, %1006 : vector<6x64xf32>
    %1008 = arith.truncf %1007 : vector<6x64xf32> to vector<6x64xbf16>
    %c1_337 = arith.constant 1 : index
    %c0_338 = arith.constant 0 : index
    %c0_339 = arith.constant 0 : index
    %1009 = vector.load %arg20[%c1_337, %c0_338, %c0_339] : memref<2x64x32xbf16, #tpu.memory_space<vmem>>, vector<1x64x32xbf16>
    %1010 = vector.shape_cast %1009 : vector<1x64x32xbf16> to vector<64x32xbf16>
    %cst_340 = arith.constant dense<0.000000e+00> : vector<6x32xf32>
    %1011 = tpu.matmul %1008, %1010, %cst_340 {dimension_numbers = #tpu.dot_dimension_numbers<[1], [0], [0], [1], [0, 0, 1, 1], [], []>} : vector<6x64xbf16>, vector<64x32xbf16>, vector<6x32xf32> -> vector<6x32xf32>
    %1012 = arith.addf %987, %1011 : vector<6x32xf32>
    %c0_341 = arith.constant 0 : index
    %c0_342 = arith.constant 0 : index
    %1013 = vector.load %arg21[%c0_341, %c0_342] : memref<1x32xf32, #tpu.memory_space<vmem>>, vector<1x32xf32>
    %1014 = arith.mulf %1012, %1012 : vector<6x32xf32>
    %cst_343 = arith.constant dense<0.000000e+00> : vector<6xf32>
    %1015 = vector.multi_reduction <add>, %1014, %cst_343 [1] : vector<6x32xf32> to vector<6xf32>
    %1016 = vector.shape_cast %1015 : vector<6xf32> to vector<6x1xf32>
    %cst_344 = arith.constant 3.200000e+01 : f32
    %1017 = vector.broadcast %cst_344 : f32 to vector<6x1xf32>
    %1018 = arith.divf %1016, %1017 : vector<6x1xf32>
    %cst_345 = arith.constant 9.99999997E-7 : f32
    %1019 = vector.broadcast %cst_345 : f32 to vector<6x1xf32>
    %1020 = arith.addf %1018, %1019 : vector<6x1xf32>
    %1021 = math.rsqrt %1020 : vector<6x1xf32>
    %1022 = vector.broadcast %1021 : vector<6x1xf32> to vector<6x32xf32>
    %1023 = arith.mulf %1012, %1022 : vector<6x32xf32>
    %1024 = vector.broadcast %1013 : vector<1x32xf32> to vector<6x32xf32>
    %1025 = arith.mulf %1023, %1024 : vector<6x32xf32>
    %cst_346 = arith.constant 0.176776692 : f32
    %1026 = vector.broadcast %cst_346 : f32 to vector<6x32xf32>
    %1027 = arith.mulf %1025, %1026 : vector<6x32xf32>
    %1028 = arith.truncf %1027 : vector<6x32xf32> to vector<6x32xbf16>
    %c0_347 = arith.constant 0 : index
    %c0_348 = arith.constant 0 : index
    %1029 = vector.load %arg22[%c0_347, %c0_348] : memref<32x64xbf16, #tpu.memory_space<vmem>>, vector<32x64xbf16>
    %cst_349 = arith.constant dense<0.000000e+00> : vector<6x64xf32>
    %1030 = tpu.matmul %1028, %1029, %cst_349 {dimension_numbers = #tpu.dot_dimension_numbers<[1], [0], [0], [1], [0, 0, 1, 1], [], []>} : vector<6x32xbf16>, vector<32x64xbf16>, vector<6x64xf32> -> vector<6x64xf32>
    %cst_350 = arith.constant dense<0xFF800000> : vector<6xf32>
    %1031 = vector.multi_reduction <maximumf>, %1030, %cst_350 [1] : vector<6x64xf32> to vector<6xf32>
    %1032 = vector.shape_cast %1031 : vector<6xf32> to vector<6x1xf32>
    %1033 = vector.broadcast %1032 : vector<6x1xf32> to vector<6x64xf32>
    %1034 = arith.subf %1030, %1033 : vector<6x64xf32>
    %1035 = math.exp %1034 : vector<6x64xf32>
    %cst_351 = arith.constant dense<0.000000e+00> : vector<6xf32>
    %1036 = vector.multi_reduction <add>, %1035, %cst_351 [1] : vector<6x64xf32> to vector<6xf32>
    %1037 = vector.shape_cast %1036 : vector<6xf32> to vector<6x1xf32>
    %1038 = math.log %1037 : vector<6x1xf32>
    %1039 = vector.broadcast %1038 : vector<6x1xf32> to vector<6x64xf32>
    %1040 = arith.subf %1034, %1039 : vector<6x64xf32>
    %c0_352 = arith.constant 0 : index
    %c0_353 = arith.constant 0 : index
    %1041 = vector.load %arg23[%c0_352, %c0_353] : memref<6x64xf32, #tpu.memory_space<vmem>>, vector<6x64xf32>
    tpu.vector_store %arg23[%c0_352, %c0_353], %1040 {strides = array<i32>} : memref<6x64xf32, #tpu.memory_space<vmem>>, vector<6x64xf32>,
    return
  }
}

</mosaic_0001>

<llo_original>
// kernel: generate.7
$region0: #{generate.7}
  #allocation0 [shape = 'u32[]', space=smem, size = 0x4, offset = 0x4, fixed_abs, tag = 'smem constant byte address 0x4 - core index']
  #allocation1 [shape = 'u32[144,128]{1,0:T(1,128)}', space=vmem, size = 0x12000, scoped, tag = 'internal scratch']
  %s0 = inlined_call_operand.vmem [shape: f32[16,32], index: 0, kind: input, shape index: {}]
  %s1 = inlined_call_operand.vmem [shape: f32[1,32], index: 1, kind: input, shape index: {}]
  %s2 = inlined_call_operand.vmem [shape: bf16[32,64], index: 2, kind: input, shape index: {}]
  %s3 = inlined_call_operand.vmem [shape: f32[16,64], index: 3, kind: output, shape index: {}]
  %s4 = sld [smem:[#allocation0]]
  $region22: #{generate.7} parent=0
    _
  %s6 = ssub.s32 1, %s4
  %s7 = scalar_select 0, %s6, %s4
  // Predicated region
  $region2: #{generate.7} parent=0 // pred_check
    _
  $region3: #{generate.7} parent=0 // pred_check_branch
    %9 = sbr.rel (0) target = $region5
  $region4: #{generate.7} parent=0 // pred_region
    _
  $region5: #{generate.7} parent=0 // pred_fallthru
    _
  // Predicated region
  $region6: #{generate.7} parent=0 // pred_check
    _
  $region7: #{generate.7} parent=0 // pred_check_branch
    %11 = sbr.rel (0) target = $region9
  $region8: #{generate.7} parent=0 // pred_region
    _
  $region9: #{generate.7} parent=0 // pred_fallthru
    _
  // Predicated region
  $region10: #{generate.7} parent=0 // pred_check
    _
  $region11: #{generate.7} parent=0 // pred_check_branch
    %13 = sbr.rel (0) target = $region13
  $region12: #{generate.7} parent=0 // pred_region
    _
  $region13: #{generate.7} parent=0 // pred_fallthru
    _
  %v15 = vld [vmem:[%s0] sm:$0xff]
  %v16 = vld [vmem:[%s0 + $0x8] sm:$0xff]
  %v17 = vld [vmem:[%s1] sm:$0x1]
  %v18 = vmul.f32 %v15, %v15
  %v19 = vmul.f32 %v16, %v16
  %vm20 = vcmask 261120
  %v21 = vsel %vm20, %v18, 0.0
  %22 = vadd.xlane.f32.xlu0 %v21
  %v23 = vpop.xlane.xlu0 %22
  %v24 = vsel %vm20, %v19, 0.0
  %25 = vadd.xlane.f32.xlu0 %v24
  %v26 = vpop.xlane.xlu0 %25
  %v27 = vrcp.pop 32.0
  %v28 = vmul.f32 %v23, %v27
  %v29 = vmul.f32 %v26, %v27
  %v30 = vadd.f32 %v28, 1e-06
  %v31 = vadd.f32 %v29, 1e-06
  %v32 = vrsqrt.pop %v30
  %v33 = vrsqrt.pop %v31
  %v34 = vmul.f32 %v15, %v32
  %v35 = vmul.f32 %v16, %v33
  %v37 = vlaneseq
  %v38 = vshrl.u32 %v37, 7
  %v39 = vsub.s32 0, %v38
  %v40 = vrot.slane %v17, %v39
  %v42 = vmul.f32 %v34, %v40
  %v43 = vmul.f32 %v35, %v40
  %v44 = vpack.c.bf16 %v43, %v42
  %v45 = vld [vmem:[%s2] sm:$0xf]
  %v46 = vld [vmem:[%s2 + $0x4] sm:$0xf]
  %v47 = vld [vmem:[%s2 + $0x8] sm:$0xf]
  %v48 = vld [vmem:[%s2 + $0xc] sm:$0xf]
  %v53 = vunpack.c.l.b16 %v45
  %v54 = vunpack.c.l.b16 %v46
  %v55 = vunpack.c.l.b16 %v47
  %v56 = vunpack.c.l.b16 %v48
  %v57 = vpack.c.b16 %v54, %v53
  %v58 = vpack.c.b16 %v56, %v55
  %v62 = vsel %vm20, %v44, 0
  %64 = vmatprep.subr.bf16.mxu0 0
  %65 = vmatpush1.bf16.msra.mxu0 %v57
  %66 = vmatprep.subr.bf16.mxu0 0
  %67 = vmatpush1.bf16.msra.mxu0 %v58
  %68 = vmatprep.subr.bf16.mxu0 0
  %69 = vmatpush1.bf16.msra.mxu0 0
  %70 = vmatprep.subr.bf16.mxu0 0
  %71 = vmatpush1.bf16.msra.mxu0 0
  %72 = vmatprep.subr.bf16.mxu0 0
  %73 = vmatpush1.bf16.msra.mxu0 0
  %74 = vmatprep.subr.bf16.mxu0 0
  %75 = vmatpush1.bf16.msra.mxu0 0
  %76 = vmatprep.subr.bf16.mxu0 0
  %77 = vmatpush1.bf16.msra.mxu0 0
  %78 = vmatprep.subr.bf16.mxu0 0
  %79 = vmatpush1.bf16.msra.mxu0 0
  %80 = vmatprep.subr.bf16.mxu0 0
  %81 = vmatpush1.bf16.msra.mxu0 0
  %82 = vmatprep.subr.bf16.mxu0 0
  %83 = vmatpush1.bf16.msra.mxu0 0
  %84 = vmatprep.subr.bf16.mxu0 0
  %85 = vmatpush1.bf16.msra.mxu0 0
  %86 = vmatprep.subr.bf16.mxu0 0
  %87 = vmatpush1.bf16.msra.mxu0 0
  %88 = vmatprep.subr.bf16.mxu0 0
  %89 = vmatpush1.bf16.msra.mxu0 0
  %90 = vmatprep.subr.bf16.mxu0 0
  %91 = vmatpush1.bf16.msra.mxu0 0
  %92 = vmatprep.subr.bf16.mxu0 0
  %93 = vmatpush1.bf16.msra.mxu0 0
  %94 = vmatprep.subr.bf16.mxu0 0
  %95 = vmatpush1.bf16.msra.mxu0 0
  %96 = vmatprep.mubr.bf16.mxu0 0
  %97 = vmatmul.mubr.bf16.gmra.mrb[0].mxu0 %v62
  %v98 = vpop.f32.mrb[0].mxu0
  %v99 = vadd.f32 0.0, %v98
  %v100 = vpop.f32.mrb[0].mxu0
  %v101 = vpop.f32.mrb[0].mxu0
  %v102 = vadd.f32 0.0, %v101
  %v103 = vpop.f32.mrb[0].mxu0
  %104 = vdwg.mxu0
  %vm105 = vcmask 523264
  %106 = vst.msk [vmem:[%s3] sm:$0xff] %vm105, %v99
  %107 = vst.msk [vmem:[%s3 + $0x8] sm:$0xff] %vm105, %v102
  // Predicated region
  $region14: #{generate.7} parent=0 // pred_check
    _
  $region15: #{generate.7} parent=0 // pred_check_branch
    %109 = sbr.rel (0) target = $region17
  $region16: #{generate.7} parent=0 // pred_region
    _
  $region17: #{generate.7} parent=0 // pred_fallthru
    _
  // Predicated region
  $region18: #{generate.7} parent=0 // pred_check
    _
  $region19: #{generate.7} parent=0 // pred_check_branch
    %111 = sbr.rel (0) target = $region21
  $region20: #{generate.7} parent=0 // pred_region
    _
  $region21: #{generate.7} parent=0 // pred_fallthru
    _

// kernel: generate.5
$region0: #{generate.5}
  #allocation0 [shape = 'u32[]', space=smem, size = 0x4, offset = 0x4, fixed_abs, tag = 'smem constant byte address 0x4 - core index']
  #allocation1 [shape = 'u32[144,128]{1,0:T(1,128)}', space=vmem, size = 0x12000, scoped, tag = 'internal scratch']
  %s0 = inlined_call_operand.vmem [shape: f32[16,32], index: 0, kind: input, shape index: {}]
  %s1 = inlined_call_operand.vmem [shape: f32[2,8], index: 1, kind: input, shape index: {}]
  %s2 = inlined_call_operand.vmem [shape: f32[4,8,8], index: 2, kind: input, shape index: {}]
  %s3 = inlined_call_operand.vmem [shape: f32[1,32], index: 3, kind: input, shape index: {}]
  %s4 = inlined_call_operand.vmem [shape: bf16[32,96], index: 4, kind: input, shape index: {}]
  %s5 = inlined_call_operand.vmem [shape: bf16[32,32], index: 5, kind: input, shape index: {}]
  %s6 = inlined_call_operand.vmem [shape: f32[1,32], index: 6, kind: input, shape index: {}]
  %s7 = inlined_call_operand.vmem [shape: bf16[32,64], index: 7, kind: input, shape index: {}]
  %s8 = inlined_call_operand.vmem [shape: bf16[64,32], index: 8, kind: input, shape index: {}]
  %s9 = inlined_call_operand.vmem [shape: f32[16,32], index: 9, kind: output, shape index: {}]
  %s10 = sld [smem:[#allocation0]]
  $region46: #{generate.5} parent=0
    _
  %s12 = ssub.s32 1, %s10
  %s13 = scalar_select 0, %s12, %s10
  // Predicated region
  $region2: #{generate.5} parent=0 // pred_check
    _
  $region3: #{generate.5} parent=0 // pred_check_branch
    %15 = sbr.rel (0) target = $region5
  $region4: #{generate.5} parent=0 // pred_region
    _
  $region5: #{generate.5} parent=0 // pred_fallthru
    _
  // Predicated region
  $region6: #{generate.5} parent=0 // pred_check
    _
  $region7: #{generate.5} parent=0 // pred_check_branch
    %17 = sbr.rel (0) target = $region9
  $region8: #{generate.5} parent=0 // pred_region
    _
  $region9: #{generate.5} parent=0 // pred_fallthru
    _
  // Predicated region
  $region10: #{generate.5} parent=0 // pred_check
    _
  $region11: #{generate.5} parent=0 // pred_check_branch
    %19 = sbr.rel (0) target = $region13
  $region12: #{generate.5} parent=0 // pred_region
    _
  $region13: #{generate.5} parent=0 // pred_fallthru
    _
  // Predicated region
  $region14: #{generate.5} parent=0 // pred_check
    _
  $region15: #{generate.5} parent=0 // pred_check_branch
    %21 = sbr.rel (0) target = $region17
  $region16: #{generate.5} parent=0 // pred_region
    _
  $region17: #{generate.5} parent=0 // pred_fallthru
    _
  // Predicated region
  $region18: #{generate.5} parent=0 // pred_check
    _
  $region19: #{generate.5} parent=0 // pred_check_branch
    %23 = sbr.rel (0) target = $region21
  $region20: #{generate.5} parent=0 // pred_region
    _
  $region21: #{generate.5} parent=0 // pred_fallthru
    _
  // Predicated region
  $region22: #{generate.5} parent=0 // pred_check
    _
  $region23: #{generate.5} parent=0 // pred_check_branch
    %25 = sbr.rel (0) target = $region25
  $region24: #{generate.5} parent=0 // pred_region
    _
  $region25: #{generate.5} parent=0 // pred_fallthru
    _
  // Predicated region
  $region26: #{generate.5} parent=0 // pred_check
    _
  $region27: #{generate.5} parent=0 // pred_check_branch
    %27 = sbr.rel (0) target = $region29
  $region28: #{generate.5} parent=0 // pred_region
    _
  $region29: #{generate.5} parent=0 // pred_fallthru
    _
  // Predicated region
  $region30: #{generate.5} parent=0 // pred_check
    _
  $region31: #{generate.5} parent=0 // pred_check_branch
    %29 = sbr.rel (0) target = $region33
  $region32: #{generate.5} parent=0 // pred_region
    _
  $region33: #{generate.5} parent=0 // pred_fallthru
    _
  // Predicated region
  $region34: #{generate.5} parent=0 // pred_check
    _
  $region35: #{generate.5} parent=0 // pred_check_branch
    %31 = sbr.rel (0) target = $region37
  $region36: #{generate.5} parent=0 // pred_region
    _
  $region37: #{generate.5} parent=0 // pred_fallthru
    _
  %v33 = vld [vmem:[%s0] sm:$0xff]
  %v34 = vld [vmem:[%s0 + $0x8] sm:$0xff]
  %v35 = vld [vmem:[%s3] sm:$0x1]
  %v36 = vmul.f32 %v33, %v33
  %v37 = vmul.f32 %v34, %v34
  %vm38 = vcmask 261120
  %v39 = vsel %vm38, %v36, 0.0
  %40 = vadd.xlane.f32.xlu0 %v39
  %v41 = vpop.xlane.xlu0 %40
  %v42 = vsel %vm38, %v37, 0.0
  %43 = vadd.xlane.f32.xlu0 %v42
  %v44 = vpop.xlane.xlu0 %43
  %v45 = vrcp.pop 32.0
  %v46 = vmul.f32 %v41, %v45
  %v47 = vmul.f32 %v44, %v45
  %v48 = vadd.f32 %v46, 1e-06
  %v49 = vadd.f32 %v47, 1e-06
  %v50 = vrsqrt.pop %v48
  %v51 = vrsqrt.pop %v49
  %v52 = vmul.f32 %v33, %v50
  %v53 = vmul.f32 %v34, %v51
  %v55 = vlaneseq
  %v56 = vshrl.u32 %v55, 7
  %v57 = vsub.s32 0, %v56
  %v58 = vrot.slane %v35, %v57
  %v60 = vmul.f32 %v52, %v58
  %v61 = vmul.f32 %v53, %v58
  %v62 = vpack.c.bf16 %v61, %v60
  %v63 = vld [vmem:[%s4] sm:$0xf]
  %v64 = vld [vmem:[%s4 + $0x4] sm:$0xf]
  %v65 = vld [vmem:[%s4 + $0x8] sm:$0xf]
  %v66 = vld [vmem:[%s4 + $0xc] sm:$0xf]
  %v71 = vunpack.c.l.b16 %v63
  %v72 = vunpack.c.l.b16 %v64
  %v73 = vunpack.c.l.b16 %v65
  %v74 = vunpack.c.l.b16 %v66
  %v75 = vpack.c.b16 %v72, %v71
  %v76 = vpack.c.b16 %v74, %v73
  %v80 = vsel %vm38, %v62, 0
  %82 = vmatprep.subr.bf16.mxu0 0
  %83 = vmatpush1.bf16.msra.mxu0 %v75
  %84 = vmatprep.subr.bf16.mxu0 0
  %85 = vmatpush1.bf16.msra.mxu0 %v76
  %86 = vmatprep.subr.bf16.mxu0 0
  %87 = vmatpush1.bf16.msra.mxu0 0
  %88 = vmatprep.subr.bf16.mxu0 0
  %89 = vmatpush1.bf16.msra.mxu0 0
  %90 = vmatprep.subr.bf16.mxu0 0
  %91 = vmatpush1.bf16.msra.mxu0 0
  %92 = vmatprep.subr.bf16.mxu0 0
  %93 = vmatpush1.bf16.msra.mxu0 0
  %94 = vmatprep.subr.bf16.mxu0 0
  %95 = vmatpush1.bf16.msra.mxu0 0
  %96 = vmatprep.subr.bf16.mxu0 0
  %97 = vmatpush1.bf16.msra.mxu0 0
  %98 = vmatprep.subr.bf16.mxu0 0
  %99 = vmatpush1.bf16.msra.mxu0 0
  %100 = vmatprep.subr.bf16.mxu0 0
  %101 = vmatpush1.bf16.msra.mxu0 0
  %102 = vmatprep.subr.bf16.mxu0 0
  %103 = vmatpush1.bf16.msra.mxu0 0
  %104 = vmatprep.subr.bf16.mxu0 0
  %105 = vmatpush1.bf16.msra.mxu0 0
  %106 = vmatprep.subr.bf16.mxu0 0
  %107 = vmatpush1.bf16.msra.mxu0 0
  %108 = vmatprep.subr.bf16.mxu0 0
  %109 = vmatpush1.bf16.msra.mxu0 0
  %110 = vmatprep.subr.bf16.mxu0 0
  %111 = vmatpush1.bf16.msra.mxu0 0
  %112 = vmatprep.subr.bf16.mxu0 0
  %113 = vmatpush1.bf16.msra.mxu0 0
  %114 = vmatprep.mubr.bf16.mxu0 0
  %115 = vmatmul.mubr.bf16.gmra.mrb[0].mxu0 %v80
  %v116 = vpop.f32.mrb[0].mxu0
  %v117 = vadd.f32 0.0, %v116
  %v118 = vpop.f32.mrb[0].mxu0
  %v119 = vpop.f32.mrb[0].mxu0
  %v120 = vadd.f32 0.0, %v119
  %v121 = vpop.f32.mrb[0].mxu0
  %122 = vdwg.mxu0
  %125 = vrot.lane.b32.xlu0 %v117, 120
  %v126 = vpop.permute.xlu0 %125
  %127 = vrot.lane.b32.xlu0 %v120, 120
  %v128 = vpop.permute.xlu0 %127
  %131 = vrot.lane.b32.xlu0 %v117, 112
  %v132 = vpop.permute.xlu0 %131
  %133 = vrot.lane.b32.xlu0 %v120, 112
  %v134 = vpop.permute.xlu0 %133
  %137 = vrot.lane.b32.xlu0 %v117, 104
  %v138 = vpop.permute.xlu0 %137
  %139 = vrot.lane.b32.xlu0 %v120, 104
  %v140 = vpop.permute.xlu0 %139
  %v143 = vpack.c.bf16 %v117, %v117
  %v144 = vpack.c.bf16 %v126, %v126
  %v145 = vpack.c.bf16 %v132, %v132
  %v146 = vpack.c.bf16 %v138, %v138
  %v147 = vpack.c.bf16 %v120, %v120
  %v148 = vpack.c.bf16 %v128, %v128
  %v149 = vpack.c.bf16 %v134, %v134
  %v150 = vpack.c.bf16 %v140, %v140
  %152 = vrot.lane.b32.xlu0 %v143, 96
  %v153 = vpop.permute.xlu0 %152
  %vm154 = vcmask 64512
  %v156 = vsel %vm154, %v143, 0
  %v159 = vsel %vm154, %v153, 0
  %161 = vmatprep.subr.bf16.mxu0 0
  %162 = vmatpush1.bf16.xpose.msra.mxu0 %v159
  %163 = vmatprep.subr.bf16.mxu0 0
  %164 = vmatpush1.bf16.xpose.msra.mxu0 0
  %165 = vmatprep.subr.bf16.mxu0 0
  %166 = vmatpush1.bf16.xpose.msra.mxu0 0
  %167 = vmatprep.subr.bf16.mxu0 0
  %168 = vmatpush1.bf16.xpose.msra.mxu0 0
  %169 = vmatprep.subr.bf16.mxu0 0
  %170 = vmatpush1.bf16.xpose.msra.mxu0 0
  %171 = vmatprep.subr.bf16.mxu0 0
  %172 = vmatpush1.bf16.xpose.msra.mxu0 0
  %173 = vmatprep.subr.bf16.mxu0 0
  %174 = vmatpush1.bf16.xpose.msra.mxu0 0
  %175 = vmatprep.subr.bf16.mxu0 0
  %176 = vmatpush1.bf16.xpose.msra.mxu0 0
  %177 = vmatprep.subr.bf16.mxu0 0
  %178 = vmatpush1.bf16.xpose.msra.mxu0 0
  %179 = vmatprep.subr.bf16.mxu0 0
  %180 = vmatpush1.bf16.xpose.msra.mxu0 0
  %181 = vmatprep.subr.bf16.mxu0 0
  %182 = vmatpush1.bf16.xpose.msra.mxu0 0
  %183 = vmatprep.subr.bf16.mxu0 0
  %184 = vmatpush1.bf16.xpose.msra.mxu0 0
  %185 = vmatprep.subr.bf16.mxu0 0
  %186 = vmatpush1.bf16.xpose.msra.mxu0 0
  %187 = vmatprep.subr.bf16.mxu0 0
  %188 = vmatpush1.bf16.xpose.msra.mxu0 0
  %189 = vmatprep.subr.bf16.mxu0 0
  %190 = vmatpush1.bf16.xpose.msra.mxu0 0
  %191 = vmatprep.subr.bf16.mxu0 0
  %192 = vmatpush1.bf16.xpose.msra.mxu0 0
  %193 = vmatprep.mubr.bf16.mxu0 0
  %194 = vmatmul.mubr.bf16.gmra.mrb[0].mxu0 %v156
  %v195 = vpop.f32.mrb[0].mxu0
  %v196 = vadd.f32 0.0, %v195
  %v197 = vpop.f32.mrb[0].mxu0
  %v198 = vpop.f32.mrb[0].mxu0
  %v199 = vpop.f32.mrb[0].mxu0
  %200 = vdwg.mxu0
  %202 = vrot.lane.b32.xlu0 %v144, 96
  %v203 = vpop.permute.xlu0 %202
  %v205 = vsel %vm154, %v144, 0
  %v208 = vsel %vm154, %v203, 0
  %210 = vmatprep.subr.bf16.mxu0 0
  %211 = vmatpush1.bf16.xpose.msra.mxu0 %v208
  %212 = vmatprep.subr.bf16.mxu0 0
  %213 = vmatpush1.bf16.xpose.msra.mxu0 0
  %214 = vmatprep.subr.bf16.mxu0 0
  %215 = vmatpush1.bf16.xpose.msra.mxu0 0
  %216 = vmatprep.subr.bf16.mxu0 0
  %217 = vmatpush1.bf16.xpose.msra.mxu0 0
  %218 = vmatprep.subr.bf16.mxu0 0
  %219 = vmatpush1.bf16.xpose.msra.mxu0 0
  %220 = vmatprep.subr.bf16.mxu0 0
  %221 = vmatpush1.bf16.xpose.msra.mxu0 0
  %222 = vmatprep.subr.bf16.mxu0 0
  %223 = vmatpush1.bf16.xpose.msra.mxu0 0
  %224 = vmatprep.subr.bf16.mxu0 0
  %225 = vmatpush1.bf16.xpose.msra.mxu0 0
  %226 = vmatprep.subr.bf16.mxu0 0
  %227 = vmatpush1.bf16.xpose.msra.mxu0 0
  %228 = vmatprep.subr.bf16.mxu0 0
  %229 = vmatpush1.bf16.xpose.msra.mxu0 0
  %230 = vmatprep.subr.bf16.mxu0 0
  %231 = vmatpush1.bf16.xpose.msra.mxu0 0
  %232 = vmatprep.subr.bf16.mxu0 0
  %233 = vmatpush1.bf16.xpose.msra.mxu0 0
  %234 = vmatprep.subr.bf16.mxu0 0
  %235 = vmatpush1.bf16.xpose.msra.mxu0 0
  %236 = vmatprep.subr.bf16.mxu0 0
  %237 = vmatpush1.bf16.xpose.msra.mxu0 0
  %238 = vmatprep.subr.bf16.mxu0 0
  %239 = vmatpush1.bf16.xpose.msra.mxu0 0
  %240 = vmatprep.subr.bf16.mxu0 0
  %241 = vmatpush1.bf16.xpose.msra.mxu0 0
  %242 = vmatprep.mubr.bf16.mxu0 0
  %243 = vmatmul.mubr.bf16.gmra.mrb[0].mxu0 %v205
  %v244 = vpop.f32.mrb[0].mxu0
  %v245 = vadd.f32 0.0, %v244
  %v246 = vpop.f32.mrb[0].mxu0
  %v247 = vpop.f32.mrb[0].mxu0
  %v248 = vpop.f32.mrb[0].mxu0
  %249 = vdwg.mxu0
  %251 = vrot.lane.b32.xlu0 %v145, 96
  %v252 = vpop.permute.xlu0 %251
  %v254 = vsel %vm154, %v145, 0
  %v257 = vsel %vm154, %v252, 0
  %259 = vmatprep.subr.bf16.mxu0 0
  %260 = vmatpush1.bf16.xpose.msra.mxu0 %v257
  %261 = vmatprep.subr.bf16.mxu0 0
  %262 = vmatpush1.bf16.xpose.msra.mxu0 0
  %263 = vmatprep.subr.bf16.mxu0 0
  %264 = vmatpush1.bf16.xpose.msra.mxu0 0
  %265 = vmatprep.subr.bf16.mxu0 0
  %266 = vmatpush1.bf16.xpose.msra.mxu0 0
  %267 = vmatprep.subr.bf16.mxu0 0
  %268 = vmatpush1.bf16.xpose.msra.mxu0 0
  %269 = vmatprep.subr.bf16.mxu0 0
  %270 = vmatpush1.bf16.xpose.msra.mxu0 0
  %271 = vmatprep.subr.bf16.mxu0 0
  %272 = vmatpush1.bf16.xpose.msra.mxu0 0
  %273 = vmatprep.subr.bf16.mxu0 0
  %274 = vmatpush1.bf16.xpose.msra.mxu0 0
  %275 = vmatprep.subr.bf16.mxu0 0
  %276 = vmatpush1.bf16.xpose.msra.mxu0 0
  %277 = vmatprep.subr.bf16.mxu0 0
  %278 = vmatpush1.bf16.xpose.msra.mxu0 0
  %279 = vmatprep.subr.bf16.mxu0 0
  %280 = vmatpush1.bf16.xpose.msra.mxu0 0
  %281 = vmatprep.subr.bf16.mxu0 0
  %282 = vmatpush1.bf16.xpose.msra.mxu0 0
  %283 = vmatprep.subr.bf16.mxu0 0
  %284 = vmatpush1.bf16.xpose.msra.mxu0 0
  %285 = vmatprep.subr.bf16.mxu0 0
  %286 = vmatpush1.bf16.xpose.msra.mxu0 0
  %287 = vmatprep.subr.bf16.mxu0 0
  %288 = vmatpush1.bf16.xpose.msra.mxu0 0
  %289 = vmatprep.subr.bf16.mxu0 0
  %290 = vmatpush1.bf16.xpose.msra.mxu0 0
  %291 = vmatprep.mubr.bf16.mxu0 0
  %292 = vmatmul.mubr.bf16.gmra.mrb[0].mxu0 %v254
  %v293 = vpop.f32.mrb[0].mxu0
  %v294 = vadd.f32 0.0, %v293
  %v295 = vpop.f32.mrb[0].mxu0
  %v296 = vpop.f32.mrb[0].mxu0
  %v297 = vpop.f32.mrb[0].mxu0
  %298 = vdwg.mxu0
  %300 = vrot.lane.b32.xlu0 %v146, 96
  %v301 = vpop.permute.xlu0 %300
  %v303 = vsel %vm154, %v146, 0
  %v306 = vsel %vm154, %v301, 0
  %308 = vmatprep.subr.bf16.mxu0 0
  %309 = vmatpush1.bf16.xpose.msra.mxu0 %v306
  %310 = vmatprep.subr.bf16.mxu0 0
  %311 = vmatpush1.bf16.xpose.msra.mxu0 0
  %312 = vmatprep.subr.bf16.mxu0 0
  %313 = vmatpush1.bf16.xpose.msra.mxu0 0
  %314 = vmatprep.subr.bf16.mxu0 0
  %315 = vmatpush1.bf16.xpose.msra.mxu0 0
  %316 = vmatprep.subr.bf16.mxu0 0
  %317 = vmatpush1.bf16.xpose.msra.mxu0 0
  %318 = vmatprep.subr.bf16.mxu0 0
  %319 = vmatpush1.bf16.xpose.msra.mxu0 0
  %320 = vmatprep.subr.bf16.mxu0 0
  %321 = vmatpush1.bf16.xpose.msra.mxu0 0
  %322 = vmatprep.subr.bf16.mxu0 0
  %323 = vmatpush1.bf16.xpose.msra.mxu0 0
  %324 = vmatprep.subr.bf16.mxu0 0
  %325 = vmatpush1.bf16.xpose.msra.mxu0 0
  %326 = vmatprep.subr.bf16.mxu0 0
  %327 = vmatpush1.bf16.xpose.msra.mxu0 0
  %328 = vmatprep.subr.bf16.mxu0 0
  %329 = vmatpush1.bf16.xpose.msra.mxu0 0
  %330 = vmatprep.subr.bf16.mxu0 0
  %331 = vmatpush1.bf16.xpose.msra.mxu0 0
  %332 = vmatprep.subr.bf16.mxu0 0
  %333 = vmatpush1.bf16.xpose.msra.mxu0 0
  %334 = vmatprep.subr.bf16.mxu0 0
  %335 = vmatpush1.bf16.xpose.msra.mxu0 0
  %336 = vmatprep.subr.bf16.mxu0 0
  %337 = vmatpush1.bf16.xpose.msra.mxu0 0
  %338 = vmatprep.subr.bf16.mxu0 0
  %339 = vmatpush1.bf16.xpose.msra.mxu0 0
  %340 = vmatprep.mubr.bf16.mxu0 0
  %341 = vmatmul.mubr.bf16.gmra.mrb[0].mxu0 %v303
  %v342 = vpop.f32.mrb[0].mxu0
  %v343 = vadd.f32 0.0, %v342
  %v344 = vpop.f32.mrb[0].mxu0
  %v345 = vpop.f32.mrb[0].mxu0
  %v346 = vpop.f32.mrb[0].mxu0
  %347 = vdwg.mxu0
  %349 = vrot.lane.b32.xlu0 %v147, 96
  %v350 = vpop.permute.xlu0 %349
  %v352 = vsel %vm154, %v147, 0
  %v355 = vsel %vm154, %v350, 0
  %357 = vmatprep.subr.bf16.mxu0 0
  %358 = vmatpush1.bf16.xpose.msra.mxu0 %v355
  %359 = vmatprep.subr.bf16.mxu0 0
  %360 = vmatpush1.bf16.xpose.msra.mxu0 0
  %361 = vmatprep.subr.bf16.mxu0 0
  %362 = vmatpush1.bf16.xpose.msra.mxu0 0
  %363 = vmatprep.subr.bf16.mxu0 0
  %364 = vmatpush1.bf16.xpose.msra.mxu0 0
  %365 = vmatprep.subr.bf16.mxu0 0
  %366 = vmatpush1.bf16.xpose.msra.mxu0 0
  %367 = vmatprep.subr.bf16.mxu0 0
  %368 = vmatpush1.bf16.xpose.msra.mxu0 0
  %369 = vmatprep.subr.bf16.mxu0 0
  %370 = vmatpush1.bf16.xpose.msra.mxu0 0
  %371 = vmatprep.subr.bf16.mxu0 0
  %372 = vmatpush1.bf16.xpose.msra.mxu0 0
  %373 = vmatprep.subr.bf16.mxu0 0
  %374 = vmatpush1.bf16.xpose.msra.mxu0 0
  %375 = vmatprep.subr.bf16.mxu0 0
  %376 = vmatpush1.bf16.xpose.msra.mxu0 0
  %377 = vmatprep.subr.bf16.mxu0 0
  %378 = vmatpush1.bf16.xpose.msra.mxu0 0
  %379 = vmatprep.subr.bf16.mxu0 0
  %380 = vmatpush1.bf16.xpose.msra.mxu0 0
  %381 = vmatprep.subr.bf16.mxu0 0
  %382 = vmatpush1.bf16.xpose.msra.mxu0 0
  %383 = vmatprep.subr.bf16.mxu0 0
  %384 = vmatpush1.bf16.xpose.msra.mxu0 0
  %385 = vmatprep.subr.bf16.mxu0 0
  %386 = vmatpush1.bf16.xpose.msra.mxu0 0
  %387 = vmatprep.subr.bf16.mxu0 0
  %388 = vmatpush1.bf16.xpose.msra.mxu0 0
  %389 = vmatprep.mubr.bf16.mxu0 0
  %390 = vmatmul.mubr.bf16.gmra.mrb[0].mxu0 %v352
  %v391 = vpop.f32.mrb[0].mxu0
  %v392 = vadd.f32 0.0, %v391
  %v393 = vpop.f32.mrb[0].mxu0
  %v394 = vpop.f32.mrb[0].mxu0
  %v395 = vpop.f32.mrb[0].mxu0
  %396 = vdwg.mxu0
  %398 = vrot.lane.b32.xlu0 %v148, 96
  %v399 = vpop.permute.xlu0 %398
  %v401 = vsel %vm154, %v148, 0
  %v404 = vsel %vm154, %v399, 0
  %406 = vmatprep.subr.bf16.mxu0 0
  %407 = vmatpush1.bf16.xpose.msra.mxu0 %v404
  %408 = vmatprep.subr.bf16.mxu0 0
  %409 = vmatpush1.bf16.xpose.msra.mxu0 0
  %410 = vmatprep.subr.bf16.mxu0 0
  %411 = vmatpush1.bf16.xpose.msra.mxu0 0
  %412 = vmatprep.subr.bf16.mxu0 0
  %413 = vmatpush1.bf16.xpose.msra.mxu0 0
  %414 = vmatprep.subr.bf16.mxu0 0
  %415 = vmatpush1.bf16.xpose.msra.mxu0 0
  %416 = vmatprep.subr.bf16.mxu0 0
  %417 = vmatpush1.bf16.xpose.msra.mxu0 0
  %418 = vmatprep.subr.bf16.mxu0 0
  %419 = vmatpush1.bf16.xpose.msra.mxu0 0
  %420 = vmatprep.subr.bf16.mxu0 0
  %421 = vmatpush1.bf16.xpose.msra.mxu0 0
  %422 = vmatprep.subr.bf16.mxu0 0
  %423 = vmatpush1.bf16.xpose.msra.mxu0 0
  %424 = vmatprep.subr.bf16.mxu0 0
  %425 = vmatpush1.bf16.xpose.msra.mxu0 0
  %426 = vmatprep.subr.bf16.mxu0 0
  %427 = vmatpush1.bf16.xpose.msra.mxu0 0
  %428 = vmatprep.subr.bf16.mxu0 0
  %429 = vmatpush1.bf16.xpose.msra.mxu0 0
  %430 = vmatprep.subr.bf16.mxu0 0
  %431 = vmatpush1.bf16.xpose.msra.mxu0 0
  %432 = vmatprep.subr.bf16.mxu0 0
  %433 = vmatpush1.bf16.xpose.msra.mxu0 0
  %434 = vmatprep.subr.bf16.mxu0 0
  %435 = vmatpush1.bf16.xpose.msra.mxu0 0
  %436 = vmatprep.subr.bf16.mxu0 0
  %437 = vmatpush1.bf16.xpose.msra.mxu0 0
  %438 = vmatprep.mubr.bf16.mxu0 0
  %439 = vmatmul.mubr.bf16.gmra.mrb[0].mxu0 %v401
  %v440 = vpop.f32.mrb[0].mxu0
  %v441 = vadd.f32 0.0, %v440
  %v442 = vpop.f32.mrb[0].mxu0
  %v443 = vpop.f32.mrb[0].mxu0
  %v444 = vpop.f32.mrb[0].mxu0
  %445 = vdwg.mxu0
  %447 = vrot.lane.b32.xlu0 %v149, 96
  %v448 = vpop.permute.xlu0 %447
  %v450 = vsel %vm154, %v149, 0
  %v453 = vsel %vm154, %v448, 0
  %455 = vmatprep.subr.bf16.mxu0 0
  %456 = vmatpush1.bf16.xpose.msra.mxu0 %v453
  %457 = vmatprep.subr.bf16.mxu0 0
  %458 = vmatpush1.bf16.xpose.msra.mxu0 0
  %459 = vmatprep.subr.bf16.mxu0 0
  %460 = vmatpush1.bf16.xpose.msra.mxu0 0
  %461 = vmatprep.subr.bf16.mxu0 0
  %462 = vmatpush1.bf16.xpose.msra.mxu0 0
  %463 = vmatprep.subr.bf16.mxu0 0
  %464 = vmatpush1.bf16.xpose.msra.mxu0 0
  %465 = vmatprep.subr.bf16.mxu0 0
  %466 = vmatpush1.bf16.xpose.msra.mxu0 0
  %467 = vmatprep.subr.bf16.mxu0 0
  %468 = vmatpush1.bf16.xpose.msra.mxu0 0
  %469 = vmatprep.subr.bf16.mxu0 0
  %470 = vmatpush1.bf16.xpose.msra.mxu0 0
  %471 = vmatprep.subr.bf16.mxu0 0
  %472 = vmatpush1.bf16.xpose.msra.mxu0 0
  %473 = vmatprep.subr.bf16.mxu0 0
  %474 = vmatpush1.bf16.xpose.msra.mxu0 0
  %475 = vmatprep.subr.bf16.mxu0 0
  %476 = vmatpush1.bf16.xpose.msra.mxu0 0
  %477 = vmatprep.subr.bf16.mxu0 0
  %478 = vmatpush1.bf16.xpose.msra.mxu0 0
  %479 = vmatprep.subr.bf16.mxu0 0
  %480 = vmatpush1.bf16.xpose.msra.mxu0 0
  %481 = vmatprep.subr.bf16.mxu0 0
  %482 = vmatpush1.bf16.xpose.msra.mxu0 0
  %483 = vmatprep.subr.bf16.mxu0 0
  %484 = vmatpush1.bf16.xpose.msra.mxu0 0
  %485 = vmatprep.subr.bf16.mxu0 0
  %486 = vmatpush1.bf16.xpose.msra.mxu0 0
  %487 = vmatprep.mubr.bf16.mxu0 0
  %488 = vmatmul.mubr.bf16.gmra.mrb[0].mxu0 %v450
  %v489 = vpop.f32.mrb[0].mxu0
  %v490 = vadd.f32 0.0, %v489
  %v491 = vpop.f32.mrb[0].mxu0
  %v492 = vpop.f32.mrb[0].mxu0
  %v493 = vpop.f32.mrb[0].mxu0
  %494 = vdwg.mxu0
  %496 = vrot.lane.b32.xlu0 %v150, 96
  %v497 = vpop.permute.xlu0 %496
  %v499 = vsel %vm154, %v150, 0
  %v502 = vsel %vm154, %v497, 0
  %504 = vmatprep.subr.bf16.mxu0 0
  %505 = vmatpush1.bf16.xpose.msra.mxu0 %v502
  %506 = vmatprep.subr.bf16.mxu0 0
  %507 = vmatpush1.bf16.xpose.msra.mxu0 0
  %508 = vmatprep.subr.bf16.mxu0 0
  %509 = vmatpush1.bf16.xpose.msra.mxu0 0
  %510 = vmatprep.subr.bf16.mxu0 0
  %511 = vmatpush1.bf16.xpose.msra.mxu0 0
  %512 = vmatprep.subr.bf16.mxu0 0
  %513 = vmatpush1.bf16.xpose.msra.mxu0 0
  %514 = vmatprep.subr.bf16.mxu0 0
  %515 = vmatpush1.bf16.xpose.msra.mxu0 0
  %516 = vmatprep.subr.bf16.mxu0 0
  %517 = vmatpush1.bf16.xpose.msra.mxu0 0
  %518 = vmatprep.subr.bf16.mxu0 0
  %519 = vmatpush1.bf16.xpose.msra.mxu0 0
  %520 = vmatprep.subr.bf16.mxu0 0
  %521 = vmatpush1.bf16.xpose.msra.mxu0 0
  %522 = vmatprep.subr.bf16.mxu0 0
  %523 = vmatpush1.bf16.xpose.msra.mxu0 0
  %524 = vmatprep.subr.bf16.mxu0 0
  %525 = vmatpush1.bf16.xpose.msra.mxu0 0
  %526 = vmatprep.subr.bf16.mxu0 0
  %527 = vmatpush1.bf16.xpose.msra.mxu0 0
  %528 = vmatprep.subr.bf16.mxu0 0
  %529 = vmatpush1.bf16.xpose.msra.mxu0 0
  %530 = vmatprep.subr.bf16.mxu0 0
  %531 = vmatpush1.bf16.xpose.msra.mxu0 0
  %532 = vmatprep.subr.bf16.mxu0 0
  %533 = vmatpush1.bf16.xpose.msra.mxu0 0
  %534 = vmatprep.subr.bf16.mxu0 0
  %535 = vmatpush1.bf16.xpose.msra.mxu0 0
  %536 = vmatprep.mubr.bf16.mxu0 0
  %537 = vmatmul.mubr.bf16.gmra.mrb[0].mxu0 %v499
  %v538 = vpop.f32.mrb[0].mxu0
  %v539 = vadd.f32 0.0, %v538
  %v540 = vpop.f32.mrb[0].mxu0
  %v541 = vpop.f32.mrb[0].mxu0
  %v542 = vpop.f32.mrb[0].mxu0
  %543 = vdwg.mxu0
  %v544 = vld [vmem:[%s1] sm:$0x3]
  %v547 = vunpack.c.l.s4 1966171168
  %v548 = vunpack.c.0.s8 %v547
  %v549 = vlaneseq
  %v550 = vshrl.u32 %v549, 7
  %v551 = vsub.s32 %v548, %v550
  %v552 = vrot.slane %v544, %v551
  %v553 = vcombine.high %v552, %v552
  %v555 = vunpack.c.l.s4 1966171168
  %v556 = vunpack.c.0.s8 %v555
  %v557 = vlaneseq
  %v558 = vshrl.u32 %v557, 7
  %v559 = vsub.s32 %v556, %v558
  %v560 = vrot.slane %v552, %v559
  %v562 = vunpack.c.l.s4 1966171168
  %v563 = vunpack.c.0.s8 %v562
  %v564 = vlaneseq
  %v565 = vshrl.u32 %v564, 7
  %v566 = vsub.s32 %v563, %v565
  %v567 = vrot.slane %v553, %v566
  %v568 = vlaneseq
  %v569 = vshrl.u32 %v568, 7
  %v570 = vsub.s32 0, %v569
  %v571 = vrot.slane %v560, %v570
  %v572 = vlaneseq
  %v573 = vshrl.u32 %v572, 7
  %v574 = vsub.s32 0, %v573
  %v575 = vrot.slane %v567, %v574
  %v578 = vadd.f32 %v196, %v571
  %v579 = vadd.f32 %v245, %v571
  %v580 = vadd.f32 %v294, %v571
  %v581 = vadd.f32 %v343, %v571
  %v582 = vadd.f32 %v392, %v575
  %v583 = vadd.f32 %v441, %v575
  %v584 = vadd.f32 %v490, %v575
  %v585 = vadd.f32 %v539, %v575
  %v586 = vld [vmem:[%s2] sm:$0xff]
  %v587 = vld [vmem:[%s2 + $0x8] sm:$0xff]
  %v588 = vld [vmem:[%s2 + $0x10] sm:$0xff]
  %v589 = vld [vmem:[%s2 + $0x18] sm:$0xff]
  %v590 = vadd.f32 %v578, %v586
  %v591 = vadd.f32 %v579, %v587
  %v592 = vadd.f32 %v580, %v588
  %v593 = vadd.f32 %v581, %v589
  %v594 = vadd.f32 %v582, %v586
  %v595 = vadd.f32 %v583, %v587
  %v596 = vadd.f32 %v584, %v588
  %v597 = vadd.f32 %v585, %v589
  %v598 = vsel %vm154, %v590, -inf
  %599 = vmax.xlane.f32.xlu0 %v598
  %v600 = vpop.xlane.xlu0 %599
  %v601 = vsel %vm154, %v591, -inf
  %602 = vmax.xlane.f32.xlu0 %v601
  %v603 = vpop.xlane.xlu0 %602
  %v604 = vsel %vm154, %v592, -inf
  %605 = vmax.xlane.f32.xlu0 %v604
  %v606 = vpop.xlane.xlu0 %605
  %v607 = vsel %vm154, %v593, -inf
  %608 = vmax.xlane.f32.xlu0 %v607
  %v609 = vpop.xlane.xlu0 %608
  %v610 = vsel %vm154, %v594, -inf
  %611 = vmax.xlane.f32.xlu0 %v610
  %v612 = vpop.xlane.xlu0 %611
  %v613 = vsel %vm154, %v595, -inf
  %614 = vmax.xlane.f32.xlu0 %v613
  %v615 = vpop.xlane.xlu0 %614
  %v616 = vsel %vm154, %v596, -inf
  %617 = vmax.xlane.f32.xlu0 %v616
  %v618 = vpop.xlane.xlu0 %617
  %v619 = vsel %vm154, %v597, -inf
  %620 = vmax.xlane.f32.xlu0 %v619
  %v621 = vpop.xlane.xlu0 %620
  %v622 = vsub.f32 %v590, %v600
  %v623 = vsub.f32 %v591, %v603
  %v624 = vsub.f32 %v592, %v606
  %v625 = vsub.f32 %v593, %v609
  %v626 = vsub.f32 %v594, %v612
  %v627 = vsub.f32 %v595, %v615
  %v628 = vsub.f32 %v596, %v618
  %v629 = vsub.f32 %v597, %v621
  %v630 = vmul.f32 %v622, 1.442695
  %v631 = vpow.pop %v630
  %v632 = vmul.f32 %v623, 1.442695
  %v633 = vpow.pop %v632
  %v634 = vmul.f32 %v624, 1.442695
  %v635 = vpow.pop %v634
  %v636 = vmul.f32 %v625, 1.442695
  %v637 = vpow.pop %v636
  %v638 = vmul.f32 %v626, 1.442695
  %v639 = vpow.pop %v638
  %v640 = vmul.f32 %v627, 1.442695
  %v641 = vpow.pop %v640
  %v642 = vmul.f32 %v628, 1.442695
  %v643 = vpow.pop %v642
  %v644 = vmul.f32 %v629, 1.442695
  %v645 = vpow.pop %v644
  %v646 = vsel %vm154, %v631, 0.0
  %647 = vadd.xlane.f32.xlu0 %v646
  %v648 = vpop.xlane.xlu0 %647
  %v649 = vsel %vm154, %v633, 0.0
  %650 = vadd.xlane.f32.xlu0 %v649
  %v651 = vpop.xlane.xlu0 %650
  %v652 = vsel %vm154, %v635, 0.0
  %653 = vadd.xlane.f32.xlu0 %v652
  %v654 = vpop.xlane.xlu0 %653
  %v655 = vsel %vm154, %v637, 0.0
  %656 = vadd.xlane.f32.xlu0 %v655
  %v657 = vpop.xlane.xlu0 %656
  %v658 = vsel %vm154, %v639, 0.0
  %659 = vadd.xlane.f32.xlu0 %v658
  %v660 = vpop.xlane.xlu0 %659
  %v661 = vsel %vm154, %v641, 0.0
  %662 = vadd.xlane.f32.xlu0 %v661
  %v663 = vpop.xlane.xlu0 %662
  %v664 = vsel %vm154, %v643, 0.0
  %665 = vadd.xlane.f32.xlu0 %v664
  %v666 = vpop.xlane.xlu0 %665
  %v667 = vsel %vm154, %v645, 0.0
  %668 = vadd.xlane.f32.xlu0 %v667
  %v669 = vpop.xlane.xlu0 %668
  %v670 = vrcp.pop %v648
  %v671 = vmul.f32 %v631, %v670
  %v672 = vrcp.pop %v651
  %v673 = vmul.f32 %v633, %v672
  %v674 = vrcp.pop %v654
  %v675 = vmul.f32 %v635, %v674
  %v676 = vrcp.pop %v657
  %v677 = vmul.f32 %v637, %v676
  %v678 = vrcp.pop %v660
  %v679 = vmul.f32 %v639, %v678
  %v680 = vrcp.pop %v663
  %v681 = vmul.f32 %v641, %v680
  %v682 = vrcp.pop %v666
  %v683 = vmul.f32 %v643, %v682
  %v684 = vrcp.pop %v669
  %v685 = vmul.f32 %v645, %v684
  %v686 = vpack.c.bf16 %v671, %v671
  %v687 = vpack.c.bf16 %v673, %v673
  %v688 = vpack.c.bf16 %v675, %v675
  %v689 = vpack.c.bf16 %v677, %v677
  %v690 = vpack.c.bf16 %v679, %v679
  %v691 = vpack.c.bf16 %v681, %v681
  %v692 = vpack.c.bf16 %v683, %v683
  %v693 = vpack.c.bf16 %v685, %v685
  %694 = vrot.lane.b32.xlu0 %v143, 64
  %v695 = vpop.permute.xlu0 %694
  %v697 = vsel %vm154, %v686, 0
  %vm699 = vcmask 1043456
  %v701 = vsel %vm699, %v695, 0
  %703 = vmatprep.subr.bf16.mxu0 0
  %704 = vmatpush1.bf16.msra.mxu0 %v701
  %705 = vmatprep.subr.bf16.mxu0 0
  %706 = vmatpush1.bf16.msra.mxu0 0
  %707 = vmatprep.subr.bf16.mxu0 0
  %708 = vmatpush1.bf16.msra.mxu0 0
  %709 = vmatprep.subr.bf16.mxu0 0
  %710 = vmatpush1.bf16.msra.mxu0 0
  %711 = vmatprep.subr.bf16.mxu0 0
  %712 = vmatpush1.bf16.msra.mxu0 0
  %713 = vmatprep.subr.bf16.mxu0 0
  %714 = vmatpush1.bf16.msra.mxu0 0
  %715 = vmatprep.subr.bf16.mxu0 0
  %716 = vmatpush1.bf16.msra.mxu0 0
  %717 = vmatprep.subr.bf16.mxu0 0
  %718 = vmatpush1.bf16.msra.mxu0 0
  %719 = vmatprep.subr.bf16.mxu0 0
  %720 = vmatpush1.bf16.msra.mxu0 0
  %721 = vmatprep.subr.bf16.mxu0 0
  %722 = vmatpush1.bf16.msra.mxu0 0
  %723 = vmatprep.subr.bf16.mxu0 0
  %724 = vmatpush1.bf16.msra.mxu0 0
  %725 = vmatprep.subr.bf16.mxu0 0
  %726 = vmatpush1.bf16.msra.mxu0 0
  %727 = vmatprep.subr.bf16.mxu0 0
  %728 = vmatpush1.bf16.msra.mxu0 0
  %729 = vmatprep.subr.bf16.mxu0 0
  %730 = vmatpush1.bf16.msra.mxu0 0
  %731 = vmatprep.subr.bf16.mxu0 0
  %732 = vmatpush1.bf16.msra.mxu0 0
  %733 = vmatprep.subr.bf16.mxu0 0
  %734 = vmatpush1.bf16.msra.mxu0 0
  %735 = vmatprep.mubr.bf16.mxu0 0
  %736 = vmatmul.mubr.bf16.gmra.mrb[0].mxu0 %v697
  %v737 = vpop.f32.mrb[0].mxu0
  %v738 = vadd.f32 0.0, %v737
  %v739 = vpop.f32.mrb[0].mxu0
  %v740 = vpop.f32.mrb[0].mxu0
  %v741 = vpop.f32.mrb[0].mxu0
  %742 = vdwg.mxu0
  %743 = vrot.lane.b32.xlu0 %v144, 64
  %v744 = vpop.permute.xlu0 %743
  %v746 = vsel %vm154, %v687, 0
  %v749 = vsel %vm699, %v744, 0
  %751 = vmatprep.subr.bf16.mxu0 0
  %752 = vmatpush1.bf16.msra.mxu0 %v749
  %753 = vmatprep.subr.bf16.mxu0 0
  %754 = vmatpush1.bf16.msra.mxu0 0
  %755 = vmatprep.subr.bf16.mxu0 0
  %756 = vmatpush1.bf16.msra.mxu0 0
  %757 = vmatprep.subr.bf16.mxu0 0
  %758 = vmatpush1.bf16.msra.mxu0 0
  %759 = vmatprep.subr.bf16.mxu0 0
  %760 = vmatpush1.bf16.msra.mxu0 0
  %761 = vmatprep.subr.bf16.mxu0 0
  %762 = vmatpush1.bf16.msra.mxu0 0
  %763 = vmatprep.subr.bf16.mxu0 0
  %764 = vmatpush1.bf16.msra.mxu0 0
  %765 = vmatprep.subr.bf16.mxu0 0
  %766 = vmatpush1.bf16.msra.mxu0 0
  %767 = vmatprep.subr.bf16.mxu0 0
  %768 = vmatpush1.bf16.msra.mxu0 0
  %769 = vmatprep.subr.bf16.mxu0 0
  %770 = vmatpush1.bf16.msra.mxu0 0
  %771 = vmatprep.subr.bf16.mxu0 0
  %772 = vmatpush1.bf16.msra.mxu0 0
  %773 = vmatprep.subr.bf16.mxu0 0
  %774 = vmatpush1.bf16.msra.mxu0 0
  %775 = vmatprep.subr.bf16.mxu0 0
  %776 = vmatpush1.bf16.msra.mxu0 0
  %777 = vmatprep.subr.bf16.mxu0 0
  %778 = vmatpush1.bf16.msra.mxu0 0
  %779 = vmatprep.subr.bf16.mxu0 0
  %780 = vmatpush1.bf16.msra.mxu0 0
  %781 = vmatprep.subr.bf16.mxu0 0
  %782 = vmatpush1.bf16.msra.mxu0 0
  %783 = vmatprep.mubr.bf16.mxu0 0
  %784 = vmatmul.mubr.bf16.gmra.mrb[0].mxu0 %v746
  %v785 = vpop.f32.mrb[0].mxu0
  %v786 = vadd.f32 0.0, %v785
  %v787 = vpop.f32.mrb[0].mxu0
  %v788 = vpop.f32.mrb[0].mxu0
  %v789 = vpop.f32.mrb[0].mxu0
  %790 = vdwg.mxu0
  %791 = vrot.lane.b32.xlu0 %v145, 64
  %v792 = vpop.permute.xlu0 %791
  %v794 = vsel %vm154, %v688, 0
  %v797 = vsel %vm699, %v792, 0
  %799 = vmatprep.subr.bf16.mxu0 0
  %800 = vmatpush1.bf16.msra.mxu0 %v797
  %801 = vmatprep.subr.bf16.mxu0 0
  %802 = vmatpush1.bf16.msra.mxu0 0
  %803 = vmatprep.subr.bf16.mxu0 0
  %804 = vmatpush1.bf16.msra.mxu0 0
  %805 = vmatprep.subr.bf16.mxu0 0
  %806 = vmatpush1.bf16.msra.mxu0 0
  %807 = vmatprep.subr.bf16.mxu0 0
  %808 = vmatpush1.bf16.msra.mxu0 0
  %809 = vmatprep.subr.bf16.mxu0 0
  %810 = vmatpush1.bf16.msra.mxu0 0
  %811 = vmatprep.subr.bf16.mxu0 0
  %812 = vmatpush1.bf16.msra.mxu0 0
  %813 = vmatprep.subr.bf16.mxu0 0
  %814 = vmatpush1.bf16.msra.mxu0 0
  %815 = vmatprep.subr.bf16.mxu0 0
  %816 = vmatpush1.bf16.msra.mxu0 0
  %817 = vmatprep.subr.bf16.mxu0 0
  %818 = vmatpush1.bf16.msra.mxu0 0
  %819 = vmatprep.subr.bf16.mxu0 0
  %820 = vmatpush1.bf16.msra.mxu0 0
  %821 = vmatprep.subr.bf16.mxu0 0
  %822 = vmatpush1.bf16.msra.mxu0 0
  %823 = vmatprep.subr.bf16.mxu0 0
  %824 = vmatpush1.bf16.msra.mxu0 0
  %825 = vmatprep.subr.bf16.mxu0 0
  %826 = vmatpush1.bf16.msra.mxu0 0
  %827 = vmatprep.subr.bf16.mxu0 0
  %828 = vmatpush1.bf16.msra.mxu0 0
  %829 = vmatprep.subr.bf16.mxu0 0
  %830 = vmatpush1.bf16.msra.mxu0 0
  %831 = vmatprep.mubr.bf16.mxu0 0
  %832 = vmatmul.mubr.bf16.gmra.mrb[0].mxu0 %v794
  %v833 = vpop.f32.mrb[0].mxu0
  %v834 = vadd.f32 0.0, %v833
  %v835 = vpop.f32.mrb[0].mxu0
  %v836 = vpop.f32.mrb[0].mxu0
  %v837 = vpop.f32.mrb[0].mxu0
  %838 = vdwg.mxu0
  %839 = vrot.lane.b32.xlu0 %v146, 64
  %v840 = vpop.permute.xlu0 %839
  %v842 = vsel %vm154, %v689, 0
  %v845 = vsel %vm699, %v840, 0
  %847 = vmatprep.subr.bf16.mxu0 0
  %848 = vmatpush1.bf16.msra.mxu0 %v845
  %849 = vmatprep.subr.bf16.mxu0 0
  %850 = vmatpush1.bf16.msra.mxu0 0
  %851 = vmatprep.subr.bf16.mxu0 0
  %852 = vmatpush1.bf16.msra.mxu0 0
  %853 = vmatprep.subr.bf16.mxu0 0
  %854 = vmatpush1.bf16.msra.mxu0 0
  %855 = vmatprep.subr.bf16.mxu0 0
  %856 = vmatpush1.bf16.msra.mxu0 0
  %857 = vmatprep.subr.bf16.mxu0 0
  %858 = vmatpush1.bf16.msra.mxu0 0
  %859 = vmatprep.subr.bf16.mxu0 0
  %860 = vmatpush1.bf16.msra.mxu0 0
  %861 = vmatprep.subr.bf16.mxu0 0
  %862 = vmatpush1.bf16.msra.mxu0 0
  %863 = vmatprep.subr.bf16.mxu0 0
  %864 = vmatpush1.bf16.msra.mxu0 0
  %865 = vmatprep.subr.bf16.mxu0 0
  %866 = vmatpush1.bf16.msra.mxu0 0
  %867 = vmatprep.subr.bf16.mxu0 0
  %868 = vmatpush1.bf16.msra.mxu0 0
  %869 = vmatprep.subr.bf16.mxu0 0
  %870 = vmatpush1.bf16.msra.mxu0 0
  %871 = vmatprep.subr.bf16.mxu0 0
  %872 = vmatpush1.bf16.msra.mxu0 0
  %873 = vmatprep.subr.bf16.mxu0 0
  %874 = vmatpush1.bf16.msra.mxu0 0
  %875 = vmatprep.subr.bf16.mxu0 0
  %876 = vmatpush1.bf16.msra.mxu0 0
  %877 = vmatprep.subr.bf16.mxu0 0
  %878 = vmatpush1.bf16.msra.mxu0 0
  %879 = vmatprep.mubr.bf16.mxu0 0
  %880 = vmatmul.mubr.bf16.gmra.mrb[0].mxu0 %v842
  %v881 = vpop.f32.mrb[0].mxu0
  %v882 = vadd.f32 0.0, %v881
  %v883 = vpop.f32.mrb[0].mxu0
  %v884 = vpop.f32.mrb[0].mxu0
  %v885 = vpop.f32.mrb[0].mxu0
  %886 = vdwg.mxu0
  %887 = vrot.lane.b32.xlu0 %v147, 64
  %v888 = vpop.permute.xlu0 %887
  %v890 = vsel %vm154, %v690, 0
  %v893 = vsel %vm699, %v888, 0
  %895 = vmatprep.subr.bf16.mxu0 0
  %896 = vmatpush1.bf16.msra.mxu0 %v893
  %897 = vmatprep.subr.bf16.mxu0 0
  %898 = vmatpush1.bf16.msra.mxu0 0
  %899 = vmatprep.subr.bf16.mxu0 0
  %900 = vmatpush1.bf16.msra.mxu0 0
  %901 = vmatprep.subr.bf16.mxu0 0
  %902 = vmatpush1.bf16.msra.mxu0 0
  %903 = vmatprep.subr.bf16.mxu0 0
  %904 = vmatpush1.bf16.msra.mxu0 0
  %905 = vmatprep.subr.bf16.mxu0 0
  %906 = vmatpush1.bf16.msra.mxu0 0
  %907 = vmatprep.subr.bf16.mxu0 0
  %908 = vmatpush1.bf16.msra.mxu0 0
  %909 = vmatprep.subr.bf16.mxu0 0
  %910 = vmatpush1.bf16.msra.mxu0 0
  %911 = vmatprep.subr.bf16.mxu0 0
  %912 = vmatpush1.bf16.msra.mxu0 0
  %913 = vmatprep.subr.bf16.mxu0 0
  %914 = vmatpush1.bf16.msra.mxu0 0
  %915 = vmatprep.subr.bf16.mxu0 0
  %916 = vmatpush1.bf16.msra.mxu0 0
  %917 = vmatprep.subr.bf16.mxu0 0
  %918 = vmatpush1.bf16.msra.mxu0 0
  %919 = vmatprep.subr.bf16.mxu0 0
  %920 = vmatpush1.bf16.msra.mxu0 0
  %921 = vmatprep.subr.bf16.mxu0 0
  %922 = vmatpush1.bf16.msra.mxu0 0
  %923 = vmatprep.subr.bf16.mxu0 0
  %924 = vmatpush1.bf16.msra.mxu0 0
  %925 = vmatprep.subr.bf16.mxu0 0
  %926 = vmatpush1.bf16.msra.mxu0 0
  %927 = vmatprep.mubr.bf16.mxu0 0
  %928 = vmatmul.mubr.bf16.gmra.mrb[0].mxu0 %v890
  %v929 = vpop.f32.mrb[0].mxu0
  %v930 = vadd.f32 0.0, %v929
  %v931 = vpop.f32.mrb[0].mxu0
  %v932 = vpop.f32.mrb[0].mxu0
  %v933 = vpop.f32.mrb[0].mxu0
  %934 = vdwg.mxu0
  %935 = vrot.lane.b32.xlu0 %v148, 64
  %v936 = vpop.permute.xlu0 %935
  %v938 = vsel %vm154, %v691, 0
  %v941 = vsel %vm699, %v936, 0
  %943 = vmatprep.subr.bf16.mxu0 0
  %944 = vmatpush1.bf16.msra.mxu0 %v941
  %945 = vmatprep.subr.bf16.mxu0 0
  %946 = vmatpush1.bf16.msra.mxu0 0
  %947 = vmatprep.subr.bf16.mxu0 0
  %948 = vmatpush1.bf16.msra.mxu0 0
  %949 = vmatprep.subr.bf16.mxu0 0
  %950 = vmatpush1.bf16.msra.mxu0 0
  %951 = vmatprep.subr.bf16.mxu0 0
  %952 = vmatpush1.bf16.msra.mxu0 0
  %953 = vmatprep.subr.bf16.mxu0 0
  %954 = vmatpush1.bf16.msra.mxu0 0
  %955 = vmatprep.subr.bf16.mxu0 0
  %956 = vmatpush1.bf16.msra.mxu0 0
  %957 = vmatprep.subr.bf16.mxu0 0
  %958 = vmatpush1.bf16.msra.mxu0 0
  %959 = vmatprep.subr.bf16.mxu0 0
  %960 = vmatpush1.bf16.msra.mxu0 0
  %961 = vmatprep.subr.bf16.mxu0 0
  %962 = vmatpush1.bf16.msra.mxu0 0
  %963 = vmatprep.subr.bf16.mxu0 0
  %964 = vmatpush1.bf16.msra.mxu0 0
  %965 = vmatprep.subr.bf16.mxu0 0
  %966 = vmatpush1.bf16.msra.mxu0 0
  %967 = vmatprep.subr.bf16.mxu0 0
  %968 = vmatpush1.bf16.msra.mxu0 0
  %969 = vmatprep.subr.bf16.mxu0 0
  %970 = vmatpush1.bf16.msra.mxu0 0
  %971 = vmatprep.subr.bf16.mxu0 0
  %972 = vmatpush1.bf16.msra.mxu0 0
  %973 = vmatprep.subr.bf16.mxu0 0
  %974 = vmatpush1.bf16.msra.mxu0 0
  %975 = vmatprep.mubr.bf16.mxu0 0
  %976 = vmatmul.mubr.bf16.gmra.mrb[0].mxu0 %v938
  %v977 = vpop.f32.mrb[0].mxu0
  %v978 = vadd.f32 0.0, %v977
  %v979 = vpop.f32.mrb[0].mxu0
  %v980 = vpop.f32.mrb[0].mxu0
  %v981 = vpop.f32.mrb[0].mxu0
  %982 = vdwg.mxu0
  %983 = vrot.lane.b32.xlu0 %v149, 64
  %v984 = vpop.permute.xlu0 %983
  %v986 = vsel %vm154, %v692, 0
  %v989 = vsel %vm699, %v984, 0
  %991 = vmatprep.subr.bf16.mxu0 0
  %992 = vmatpush1.bf16.msra.mxu0 %v989
  %993 = vmatprep.subr.bf16.mxu0 0
  %994 = vmatpush1.bf16.msra.mxu0 0
  %995 = vmatprep.subr.bf16.mxu0 0
  %996 = vmatpush1.bf16.msra.mxu0 0
  %997 = vmatprep.subr.bf16.mxu0 0
  %998 = vmatpush1.bf16.msra.mxu0 0
  %999 = vmatprep.subr.bf16.mxu0 0
  %1000 = vmatpush1.bf16.msra.mxu0 0
  %1001 = vmatprep.subr.bf16.mxu0 0
  %1002 = vmatpush1.bf16.msra.mxu0 0
  %1003 = vmatprep.subr.bf16.mxu0 0
  %1004 = vmatpush1.bf16.msra.mxu0 0
  %1005 = vmatprep.subr.bf16.mxu0 0
  %1006 = vmatpush1.bf16.msra.mxu0 0
  %1007 = vmatprep.subr.bf16.mxu0 0
  %1008 = vmatpush1.bf16.msra.mxu0 0
  %1009 = vmatprep.subr.bf16.mxu0 0
  %1010 = vmatpush1.bf16.msra.mxu0 0
  %1011 = vmatprep.subr.bf16.mxu0 0
  %1012 = vmatpush1.bf16.msra.mxu0 0
  %1013 = vmatprep.subr.bf16.mxu0 0
  %1014 = vmatpush1.bf16.msra.mxu0 0
  %1015 = vmatprep.subr.bf16.mxu0 0
  %1016 = vmatpush1.bf16.msra.mxu0 0
  %1017 = vmatprep.subr.bf16.mxu0 0
  %1018 = vmatpush1.bf16.msra.mxu0 0
  %1019 = vmatprep.subr.bf16.mxu0 0
  %1020 = vmatpush1.bf16.msra.mxu0 0
  %1021 = vmatprep.subr.bf16.mxu0 0
  %1022 = vmatpush1.bf16.msra.mxu0 0
  %1023 = vmatprep.mubr.bf16.mxu0 0
  %1024 = vmatmul.mubr.bf16.gmra.mrb[0].mxu0 %v986
  %v1025 = vpop.f32.mrb[0].mxu0
  %v1026 = vadd.f32 0.0, %v1025
  %v1027 = vpop.f32.mrb[0].mxu0
  %v1028 = vpop.f32.mrb[0].mxu0
  %v1029 = vpop.f32.mrb[0].mxu0
  %1030 = vdwg.mxu0
  %1031 = vrot.lane.b32.xlu0 %v150, 64
  %v1032 = vpop.permute.xlu0 %1031
  %v1034 = vsel %vm154, %v693, 0
  %v1037 = vsel %vm699, %v1032, 0
  %1039 = vmatprep.subr.bf16.mxu0 0
  %1040 = vmatpush1.bf16.msra.mxu0 %v1037
  %1041 = vmatprep.subr.bf16.mxu0 0
  %1042 = vmatpush1.bf16.msra.mxu0 0
  %1043 = vmatprep.subr.bf16.mxu0 0
  %1044 = vmatpush1.bf16.msra.mxu0 0
  %1045 = vmatprep.subr.bf16.mxu0 0
  %1046 = vmatpush1.bf16.msra.mxu0 0
  %1047 = vmatprep.subr.bf16.mxu0 0
  %1048 = vmatpush1.bf16.msra.mxu0 0
  %1049 = vmatprep.subr.bf16.mxu0 0
  %1050 = vmatpush1.bf16.msra.mxu0 0
  %1051 = vmatprep.subr.bf16.mxu0 0
  %1052 = vmatpush1.bf16.msra.mxu0 0
  %1053 = vmatprep.subr.bf16.mxu0 0
  %1054 = vmatpush1.bf16.msra.mxu0 0
  %1055 = vmatprep.subr.bf16.mxu0 0
  %1056 = vmatpush1.bf16.msra.mxu0 0
  %1057 = vmatprep.subr.bf16.mxu0 0
  %1058 = vmatpush1.bf16.msra.mxu0 0
  %1059 = vmatprep.subr.bf16.mxu0 0
  %1060 = vmatpush1.bf16.msra.mxu0 0
  %1061 = vmatprep.subr.bf16.mxu0 0
  %1062 = vmatpush1.bf16.msra.mxu0 0
  %1063 = vmatprep.subr.bf16.mxu0 0
  %1064 = vmatpush1.bf16.msra.mxu0 0
  %1065 = vmatprep.subr.bf16.mxu0 0
  %1066 = vmatpush1.bf16.msra.mxu0 0
  %1067 = vmatprep.subr.bf16.mxu0 0
  %1068 = vmatpush1.bf16.msra.mxu0 0
  %1069 = vmatprep.subr.bf16.mxu0 0
  %1070 = vmatpush1.bf16.msra.mxu0 0
  %1071 = vmatprep.mubr.bf16.mxu0 0
  %1072 = vmatmul.mubr.bf16.gmra.mrb[0].mxu0 %v1034
  %v1073 = vpop.f32.mrb[0].mxu0
  %v1074 = vadd.f32 0.0, %v1073
  %v1075 = vpop.f32.mrb[0].mxu0
  %v1076 = vpop.f32.mrb[0].mxu0
  %v1077 = vpop.f32.mrb[0].mxu0
  %1078 = vdwg.mxu0
  %1081 = vrot.lane.b32.xlu0 %v786, 8
  %v1082 = vpop.permute.xlu0 %1081
  %1083 = vrot.lane.b32.xlu0 %v978, 8
  %v1084 = vpop.permute.xlu0 %1083
  %1089 = vrot.lane.b32.xlu0 %v834, 16
  %v1090 = vpop.permute.xlu0 %1089
  %1091 = vrot.lane.b32.xlu0 %v1026, 16
  %v1092 = vpop.permute.xlu0 %1091
  %1097 = vrot.lane.b32.xlu0 %v882, 24
  %v1098 = vpop.permute.xlu0 %1097
  %1099 = vrot.lane.b32.xlu0 %v1074, 24
  %v1100 = vpop.permute.xlu0 %1099
  %v1103 = vsel %vm154, %v738, %v1082
  %v1104 = vsel %vm154, %v930, %v1084
  %vm1105 = vcmask 130048
  %v1106 = vsel %vm1105, %v1103, %v1090
  %v1107 = vsel %vm1105, %v1104, %v1092
  %vm1108 = vcmask 195584
  %v1109 = vsel %vm1108, %v1106, %v1098
  %v1110 = vsel %vm1108, %v1107, %v1100
  %v1111 = vpack.c.bf16 %v1110, %v1109
  %v1112 = vld [vmem:[%s5] sm:$0xf]
  %v1113 = vld [vmem:[%s5 + $0x4] sm:$0xf]
  %v1114 = vld [vmem:[%s5 + $0x8] sm:$0xf]
  %v1115 = vld [vmem:[%s5 + $0xc] sm:$0xf]
  %v1120 = vunpack.c.l.b16 %v1112
  %v1121 = vunpack.c.l.b16 %v1113
  %v1122 = vunpack.c.l.b16 %v1114
  %v1123 = vunpack.c.l.b16 %v1115
  %v1124 = vpack.c.b16 %v1121, %v1120
  %v1125 = vpack.c.b16 %v1123, %v1122
  %v1129 = vsel %vm38, %v1111, 0
  %1131 = vmatprep.subr.bf16.mxu0 0
  %1132 = vmatpush1.bf16.msra.mxu0 %v1124
  %1133 = vmatprep.subr.bf16.mxu0 0
  %1134 = vmatpush1.bf16.msra.mxu0 %v1125
  %1135 = vmatprep.subr.bf16.mxu0 0
  %1136 = vmatpush1.bf16.msra.mxu0 0
  %1137 = vmatprep.subr.bf16.mxu0 0
  %1138 = vmatpush1.bf16.msra.mxu0 0
  %1139 = vmatprep.subr.bf16.mxu0 0
  %1140 = vmatpush1.bf16.msra.mxu0 0
  %1141 = vmatprep.subr.bf16.mxu0 0
  %1142 = vmatpush1.bf16.msra.mxu0 0
  %1143 = vmatprep.subr.bf16.mxu0 0
  %1144 = vmatpush1.bf16.msra.mxu0 0
  %1145 = vmatprep.subr.bf16.mxu0 0
  %1146 = vmatpush1.bf16.msra.mxu0 0
  %1147 = vmatprep.subr.bf16.mxu0 0
  %1148 = vmatpush1.bf16.msra.mxu0 0
  %1149 = vmatprep.subr.bf16.mxu0 0
  %1150 = vmatpush1.bf16.msra.mxu0 0
  %1151 = vmatprep.subr.bf16.mxu0 0
  %1152 = vmatpush1.bf16.msra.mxu0 0
  %1153 = vmatprep.subr.bf16.mxu0 0
  %1154 = vmatpush1.bf16.msra.mxu0 0
  %1155 = vmatprep.subr.bf16.mxu0 0
  %1156 = vmatpush1.bf16.msra.mxu0 0
  %1157 = vmatprep.subr.bf16.mxu0 0
  %1158 = vmatpush1.bf16.msra.mxu0 0
  %1159 = vmatprep.subr.bf16.mxu0 0
  %1160 = vmatpush1.bf16.msra.mxu0 0
  %1161 = vmatprep.subr.bf16.mxu0 0
  %1162 = vmatpush1.bf16.msra.mxu0 0
  %1163 = vmatprep.mubr.bf16.mxu0 0
  %1164 = vmatmul.mubr.bf16.gmra.mrb[0].mxu0 %v1129
  %v1165 = vpop.f32.mrb[0].mxu0
  %v1166 = vadd.f32 0.0, %v1165
  %v1167 = vpop.f32.mrb[0].mxu0
  %v1168 = vpop.f32.mrb[0].mxu0
  %v1169 = vadd.f32 0.0, %v1168
  %v1170 = vpop.f32.mrb[0].mxu0
  %1171 = vdwg.mxu0
  %v1172 = vadd.f32 %v33, %v1166
  %v1173 = vadd.f32 %v34, %v1169
  %v1174 = vld [vmem:[%s6] sm:$0x1]
  %v1175 = vmul.f32 %v1172, %v1172
  %v1176 = vmul.f32 %v1173, %v1173
  %v1177 = vsel %vm38, %v1175, 0.0
  %1178 = vadd.xlane.f32.xlu0 %v1177
  %v1179 = vpop.xlane.xlu0 %1178
  %v1180 = vsel %vm38, %v1176, 0.0
  %1181 = vadd.xlane.f32.xlu0 %v1180
  %v1182 = vpop.xlane.xlu0 %1181
  %v1183 = vmul.f32 %v1179, %v45
  %v1184 = vmul.f32 %v1182, %v45
  %v1185 = vadd.f32 %v1183, 1e-06
  %v1186 = vadd.f32 %v1184, 1e-06
  %v1187 = vrsqrt.pop %v1185
  %v1188 = vrsqrt.pop %v1186
  %v1189 = vmul.f32 %v1172, %v1187
  %v1190 = vmul.f32 %v1173, %v1188
  %v1192 = vlaneseq
  %v1193 = vshrl.u32 %v1192, 7
  %v1194 = vsub.s32 0, %v1193
  %v1195 = vrot.slane %v1174, %v1194
  %v1197 = vmul.f32 %v1189, %v1195
  %v1198 = vmul.f32 %v1190, %v1195
  %v1199 = vpack.c.bf16 %v1198, %v1197
  %v1200 = vld [vmem:[%s7] sm:$0xf]
  %v1201 = vld [vmem:[%s7 + $0x4] sm:$0xf]
  %v1202 = vld [vmem:[%s7 + $0x8] sm:$0xf]
  %v1203 = vld [vmem:[%s7 + $0xc] sm:$0xf]
  %v1208 = vunpack.c.l.b16 %v1200
  %v1209 = vunpack.c.l.b16 %v1201
  %v1210 = vunpack.c.l.b16 %v1202
  %v1211 = vunpack.c.l.b16 %v1203
  %v1212 = vpack.c.b16 %v1209, %v1208
  %v1213 = vpack.c.b16 %v1211, %v1210
  %v1217 = vsel %vm38, %v1199, 0
  %1219 = vmatprep.subr.bf16.mxu0 0
  %1220 = vmatpush1.bf16.msra.mxu0 %v1212
  %1221 = vmatprep.subr.bf16.mxu0 0
  %1222 = vmatpush1.bf16.msra.mxu0 %v1213
  %1223 = vmatprep.subr.bf16.mxu0 0
  %1224 = vmatpush1.bf16.msra.mxu0 0
  %1225 = vmatprep.subr.bf16.mxu0 0
  %1226 = vmatpush1.bf16.msra.mxu0 0
  %1227 = vmatprep.subr.bf16.mxu0 0
  %1228 = vmatpush1.bf16.msra.mxu0 0
  %1229 = vmatprep.subr.bf16.mxu0 0
  %1230 = vmatpush1.bf16.msra.mxu0 0
  %1231 = vmatprep.subr.bf16.mxu0 0
  %1232 = vmatpush1.bf16.msra.mxu0 0
  %1233 = vmatprep.subr.bf16.mxu0 0
  %1234 = vmatpush1.bf16.msra.mxu0 0
  %1235 = vmatprep.subr.bf16.mxu0 0
  %1236 = vmatpush1.bf16.msra.mxu0 0
  %1237 = vmatprep.subr.bf16.mxu0 0
  %1238 = vmatpush1.bf16.msra.mxu0 0
  %1239 = vmatprep.subr.bf16.mxu0 0
  %1240 = vmatpush1.bf16.msra.mxu0 0
  %1241 = vmatprep.subr.bf16.mxu0 0
  %1242 = vmatpush1.bf16.msra.mxu0 0
  %1243 = vmatprep.subr.bf16.mxu0 0
  %1244 = vmatpush1.bf16.msra.mxu0 0
  %1245 = vmatprep.subr.bf16.mxu0 0
  %1246 = vmatpush1.bf16.msra.mxu0 0
  %1247 = vmatprep.subr.bf16.mxu0 0
  %1248 = vmatpush1.bf16.msra.mxu0 0
  %1249 = vmatprep.subr.bf16.mxu0 0
  %1250 = vmatpush1.bf16.msra.mxu0 0
  %1251 = vmatprep.mubr.bf16.mxu0 0
  %1252 = vmatmul.mubr.bf16.gmra.mrb[0].mxu0 %v1217
  %v1253 = vpop.f32.mrb[0].mxu0
  %v1254 = vadd.f32 0.0, %v1253
  %v1255 = vpop.f32.mrb[0].mxu0
  %v1256 = vpop.f32.mrb[0].mxu0
  %v1257 = vadd.f32 0.0, %v1256
  %v1258 = vpop.f32.mrb[0].mxu0
  %1259 = vdwg.mxu0
  %v1260 = vmax.f32 %v1254, 0.0
  %v1261 = vmax.f32 %v1257, 0.0
  %v1262 = vpack.c.bf16 %v1261, %v1260
  %v1263 = vld [vmem:[%s8] sm:$0xf]
  %v1264 = vld [vmem:[%s8 + $0x4] sm:$0xf]
  %v1265 = vld [vmem:[%s8 + $0x8] sm:$0xf]
  %v1266 = vld [vmem:[%s8 + $0xc] sm:$0xf]
  %v1267 = vld [vmem:[%s8 + $0x10] sm:$0xf]
  %v1268 = vld [vmem:[%s8 + $0x14] sm:$0xf]
  %v1269 = vld [vmem:[%s8 + $0x18] sm:$0xf]
  %v1270 = vld [vmem:[%s8 + $0x1c] sm:$0xf]
  %v1279 = vunpack.c.l.b16 %v1263
  %v1280 = vunpack.c.l.b16 %v1264
  %v1281 = vunpack.c.l.b16 %v1265
  %v1282 = vunpack.c.l.b16 %v1266
  %v1283 = vunpack.c.l.b16 %v1267
  %v1284 = vunpack.c.l.b16 %v1268
  %v1285 = vunpack.c.l.b16 %v1269
  %v1286 = vunpack.c.l.b16 %v1270
  %v1287 = vpack.c.b16 %v1280, %v1279
  %v1288 = vpack.c.b16 %v1282, %v1281
  %v1289 = vpack.c.b16 %v1284, %v1283
  %v1290 = vpack.c.b16 %v1286, %v1285
  %vm1295 = vcmask 523264
  %v1297 = vsel %vm1295, %v1262, 0
  %1299 = vmatprep.subr.bf16.mxu0 0
  %1300 = vmatpush1.bf16.msra.mxu0 %v1287
  %1301 = vmatprep.subr.bf16.mxu0 0
  %1302 = vmatpush1.bf16.msra.mxu0 %v1288
  %1303 = vmatprep.subr.bf16.mxu0 0
  %1304 = vmatpush1.bf16.msra.mxu0 %v1289
  %1305 = vmatprep.subr.bf16.mxu0 0
  %1306 = vmatpush1.bf16.msra.mxu0 %v1290
  %1307 = vmatprep.subr.bf16.mxu0 0
  %1308 = vmatpush1.bf16.msra.mxu0 0
  %1309 = vmatprep.subr.bf16.mxu0 0
  %1310 = vmatpush1.bf16.msra.mxu0 0
  %1311 = vmatprep.subr.bf16.mxu0 0
  %1312 = vmatpush1.bf16.msra.mxu0 0
  %1313 = vmatprep.subr.bf16.mxu0 0
  %1314 = vmatpush1.bf16.msra.mxu0 0
  %1315 = vmatprep.subr.bf16.mxu0 0
  %1316 = vmatpush1.bf16.msra.mxu0 0
  %1317 = vmatprep.subr.bf16.mxu0 0
  %1318 = vmatpush1.bf16.msra.mxu0 0
  %1319 = vmatprep.subr.bf16.mxu0 0
  %1320 = vmatpush1.bf16.msra.mxu0 0
  %1321 = vmatprep.subr.bf16.mxu0 0
  %1322 = vmatpush1.bf16.msra.mxu0 0
  %1323 = vmatprep.subr.bf16.mxu0 0
  %1324 = vmatpush1.bf16.msra.mxu0 0
  %1325 = vmatprep.subr.bf16.mxu0 0
  %1326 = vmatpush1.bf16.msra.mxu0 0
  %1327 = vmatprep.subr.bf16.mxu0 0
  %1328 = vmatpush1.bf16.msra.mxu0 0
  %1329 = vmatprep.subr.bf16.mxu0 0
  %1330 = vmatpush1.bf16.msra.mxu0 0
  %1331 = vmatprep.mubr.bf16.mxu0 0
  %1332 = vmatmul.mubr.bf16.gmra.mrb[0].mxu0 %v1297
  %v1333 = vpop.f32.mrb[0].mxu0
  %v1334 = vadd.f32 0.0, %v1333
  %v1335 = vpop.f32.mrb[0].mxu0
  %v1336 = vpop.f32.mrb[0].mxu0
  %v1337 = vadd.f32 0.0, %v1336
  %v1338 = vpop.f32.mrb[0].mxu0
  %1339 = vdwg.mxu0
  %v1340 = vadd.f32 %v1172, %v1334
  %v1341 = vadd.f32 %v1173, %v1337
  %1342 = vst.msk [vmem:[%s9] sm:$0xff] %vm38, %v1340
  %1343 = vst.msk [vmem:[%s9 + $0x8] sm:$0xff] %vm38, %v1341
  // Predicated region
  $region38: #{generate.5} parent=0 // pred_check
    _
  $region39: #{generate.5} parent=0 // pred_check_branch
    %1345 = sbr.rel (0) target = $region41
  $region40: #{generate.5} parent=0 // pred_region
    _
  $region41: #{generate.5} parent=0 // pred_fallthru
    _
  // Predicated region
  $region42: #{generate.5} parent=0 // pred_check
    _
  $region43: #{generate.5} parent=0 // pred_check_branch
    %1347 = sbr.rel (0) target = $region45
  $region44: #{generate.5} parent=0 // pred_region
    _
  $region45: #{generate.5} parent=0 // pred_fallthru
    _

// kernel: mul.50
$region0: #{mul.50}
  #allocation0 [shape = 's32[1]{0}', space=sflag, size = 0x4, scoped, tag = 'scoped memory for mul.50']
  %s0 = inlined_call_operand.vmem [shape: s32[6,1], index: 0, kind: input, shape index: {}]
  %s1 = inlined_call_operand.vmem [shape: s32[6,1], index: 1, kind: input, shape index: {}]
  %s2 = inlined_call_operand.vmem [shape: s32[6,1], index: 2, kind: output, shape index: {}]
  %v3 = vld [vmem:[%s0] sm:$0x3f]
  %v4 = vld [vmem:[%s1] sm:$0x3f]
  %5 = xla_tuple %v3, %v4
  %6 = xla_tuple %5
  %v7 = vmul.u32 %v3, %v4
  %8 = xla_tuple %v7
  %9 = vst [vmem:[%s2] sm:$0xff] %v7

// kernel: generate.9
$region0: #{generate.9}
  #allocation0 [shape = 'u32[]', space=smem, size = 0x4, offset = 0x4, fixed_abs, tag = 'smem constant byte address 0x4 - core index']
  #allocation1 [shape = 'u32[144,128]{1,0:T(1,128)}', space=vmem, size = 0x12000, scoped, tag = 'internal scratch']
  #allocation2 [shape = 's32[1]{0:T(128)S(6)}', space=smem, size = 0x200, scoped, tag = 'scoped memory for generate.9']
  %s0 = inlined_call_operand.<no memory space> [shape: s32[1], index: 0, kind: input, shape index: {}]
  %s1 = inlined_call_operand.vmem [shape: s32[6], index: 1, kind: input, shape index: {}]
  %s2 = inlined_call_operand.vmem [shape: s32[6], index: 2, kind: input, shape index: {}]
  %s3 = inlined_call_operand.vmem [shape: s32[6,1], index: 3, kind: input, shape index: {}]
  %s4 = inlined_call_operand.vmem [shape: f32[64,32], index: 4, kind: input, shape index: {}]
  %s5 = inlined_call_operand.vmem [shape: f32[6,4], index: 5, kind: input, shape index: {}]
  %s6 = inlined_call_operand.vmem [shape: bf16[2,6,4,32], index: 6, kind: input, shape index: {}, may-alias: {6,7}]
  %s7 = inlined_call_operand.vmem [shape: bf16[2,6,4,32], index: 7, kind: input, shape index: {}, may-alias: {6,7}]
  %s8 = inlined_call_operand.vmem [shape: bf16[2,2,8,32], index: 8, kind: input, shape index: {}]
  %s9 = inlined_call_operand.vmem [shape: bf16[2,2,8,32], index: 9, kind: input, shape index: {}]
  %s10 = inlined_call_operand.vmem [shape: f32[2,8], index: 10, kind: input, shape index: {}]
  %s11 = inlined_call_operand.vmem [shape: f32[4,4,4], index: 11, kind: input, shape index: {}]
  %s12 = inlined_call_operand.vmem [shape: f32[2,1,32], index: 12, kind: input, shape index: {}]
  %s13 = inlined_call_operand.vmem [shape: bf16[2,32,96], index: 13, kind: input, shape index: {}]
  %s14 = inlined_call_operand.vmem [shape: bf16[2,32,32], index: 14, kind: input, shape index: {}]
  %s15 = inlined_call_operand.vmem [shape: f32[2,1,32], index: 15, kind: input, shape index: {}]
  %s16 = inlined_call_operand.vmem [shape: bf16[2,32,32], index: 16, kind: input, shape index: {}]
  %s17 = inlined_call_operand.vmem [shape: bf16[2,32,32], index: 17, kind: input, shape index: {}]
  %s18 = inlined_call_operand.vmem [shape: f32[2,1,32], index: 18, kind: input, shape index: {}]
  %s19 = inlined_call_operand.vmem [shape: bf16[2,32,64], index: 19, kind: input, shape index: {}]
  %s20 = inlined_call_operand.vmem [shape: bf16[2,64,32], index: 20, kind: input, shape index: {}]
  %s21 = inlined_call_operand.vmem [shape: f32[1,32], index: 21, kind: input, shape index: {}]
  %s22 = inlined_call_operand.vmem [shape: bf16[32,64], index: 22, kind: input, shape index: {}]
  %s23 = inlined_call_operand.vmem [shape: f32[6,64], index: 23, kind: output, shape index: {0}]
  %s24 = inlined_call_operand.vmem [shape: f32[6,4], index: 24, kind: output, shape index: {1}]
  %s25 = inlined_call_operand.vmem [shape: bf16[2,6,4,32], index: 25, kind: output, shape index: {2}]
  %s26 = inlined_call_operand.vmem [shape: bf16[2,6,4,32], index: 26, kind: output, shape index: {3}]
  %27 = xla_tuple %s23, %s24, %s25, %s26
  %s28 = sld [smem:[#allocation0]]
  $region134: #{generate.9} parent=0
    _
  %s30 = ssub.s32 1, %s28
  %s31 = scalar_select 0, %s30, %s28
  %32 = sst [smem:[#allocation2]] %s0
  $region1: #{generate.9} parent=0
    #allocation3 [shape = 'u8[512]{0}', space=smem, size = 0x200, scoped, tag = 'input window, operand 1, single buffered']
    #allocation4 [shape = 's32[1]{0}', space=sflag, size = 0x4, scoped, tag = 'scoped memory for generate.9']
    #allocation5 [shape = 'u8[512]{0}', space=smem, size = 0x200, scoped, tag = 'input window, operand 2, single buffered']
    #allocation6 [shape = 's32[1]{0}', space=sflag, size = 0x4, scoped, tag = 'scoped memory for generate.9']
    %33 = vsyncpa [#allocation4], 0
    %34 = vsyncpa [#allocation6], 0
    // Predicated region
    $region2: #{generate.9} parent=1 // pred_check
      _
    $region3: #{generate.9} parent=1 // pred_check_branch
      %36 = sbr.rel (0) target = $region5
    $region4: #{generate.9} parent=1 // pred_region
      _
    $region5: #{generate.9} parent=1 // pred_fallthru
      _
    // Predicated region
    $region6: #{generate.9} parent=1 // pred_check
      _
    $region7: #{generate.9} parent=1 // pred_check_branch
      %38 = sbr.rel (0) target = $region9
    $region8: #{generate.9} parent=1 // pred_region
      %s40 = ssub.s32 16, 16
      %41 = vsyncadd [#allocation4], %s40
      %s43 = sshll.u32 %s1, 4
      %s44 = int_to_ptr.vmem [resolvable:$true] %s43
      %46 = dma.vmem_to_smem %s44, 16, [#allocation3], [#allocation4]
    $region9: #{generate.9} parent=1 // pred_fallthru
      _
    // Predicated region
    $region10: #{generate.9} parent=1 // pred_check
      _
    $region11: #{generate.9} parent=1 // pred_check_branch
      %48 = sbr.rel (0) target = $region13
    $region12: #{generate.9} parent=1 // pred_region
      %s50 = ssub.s32 16, 16
      %51 = vsyncadd [#allocation6], %s50
      %s53 = sshll.u32 %s2, 4
      %s54 = int_to_ptr.vmem [resolvable:$true] %s53
      %56 = dma.vmem_to_smem %s54, 16, [#allocation5], [#allocation6]
    $region13: #{generate.9} parent=1 // pred_fallthru
      _
    // Predicated region
    $region14: #{generate.9} parent=1 // pred_check
      _
    $region15: #{generate.9} parent=1 // pred_check_branch
      %58 = sbr.rel (0) target = $region17
    $region16: #{generate.9} parent=1 // pred_region
      _
    $region17: #{generate.9} parent=1 // pred_fallthru
      _
    // Predicated region
    $region18: #{generate.9} parent=1 // pred_check
      _
    $region19: #{generate.9} parent=1 // pred_check_branch
      %60 = sbr.rel (0) target = $region21
    $region20: #{generate.9} parent=1 // pred_region
      _
    $region21: #{generate.9} parent=1 // pred_fallthru
      _
    // Predicated region
    $region22: #{generate.9} parent=1 // pred_check
      _
    $region23: #{generate.9} parent=1 // pred_check_branch
      %62 = sbr.rel (0) target = $region25
    $region24: #{generate.9} parent=1 // pred_region
      _
    $region25: #{generate.9} parent=1 // pred_fallthru
      _
    // Predicated region
    $region26: #{generate.9} parent=1 // pred_check
      _
    $region27: #{generate.9} parent=1 // pred_check_branch
      %64 = sbr.rel (0) target = $region29
    $region28: #{generate.9} parent=1 // pred_region
      _
    $region29: #{generate.9} parent=1 // pred_fallthru
      _
    // Predicated region
    $region30: #{generate.9} parent=1 // pred_check
      _
    $region31: #{generate.9} parent=1 // pred_check_branch
      %66 = sbr.rel (0) target = $region33
    $region32: #{generate.9} parent=1 // pred_region
      _
    $region33: #{generate.9} parent=1 // pred_fallthru
      _
    // Predicated region
    $region34: #{generate.9} parent=1 // pred_check
      _
    $region35: #{generate.9} parent=1 // pred_check_branch
      %68 = sbr.rel (0) target = $region37
    $region36: #{generate.9} parent=1 // pred_region
      _
    $region37: #{generate.9} parent=1 // pred_fallthru
      _
    // Predicated region
    $region38: #{generate.9} parent=1 // pred_check
      _
    $region39: #{generate.9} parent=1 // pred_check_branch
      %70 = sbr.rel (0) target = $region41
    $region40: #{generate.9} parent=1 // pred_region
      _
    $region41: #{generate.9} parent=1 // pred_fallthru
      _
    // Predicated region
    $region42: #{generate.9} parent=1 // pred_check
      _
    $region43: #{generate.9} parent=1 // pred_check_branch
      %72 = sbr.rel (0) target = $region45
    $region44: #{generate.9} parent=1 // pred_region
      _
    $region45: #{generate.9} parent=1 // pred_fallthru
      _
    // Predicated region
    $region46: #{generate.9} parent=1 // pred_check
      _
    $region47: #{generate.9} parent=1 // pred_check_branch
      %74 = sbr.rel (0) target = $region49
    $region48: #{generate.9} parent=1 // pred_region
      _
    $region49: #{generate.9} parent=1 // pred_fallthru
      _
    // Predicated region
    $region50: #{generate.9} parent=1 // pred_check
      _
    $region51: #{generate.9} parent=1 // pred_check_branch
      %76 = sbr.rel (0) target = $region53
    $region52: #{generate.9} parent=1 // pred_region
      _
    $region53: #{generate.9} parent=1 // pred_fallthru
      _
    // Predicated region
    $region54: #{generate.9} parent=1 // pred_check
      _
    $region55: #{generate.9} parent=1 // pred_check_branch
      %78 = sbr.rel (0) target = $region57
    $region56: #{generate.9} parent=1 // pred_region
      _
    $region57: #{generate.9} parent=1 // pred_fallthru
      _
    // Predicated region
    $region58: #{generate.9} parent=1 // pred_check
      _
    $region59: #{generate.9} parent=1 // pred_check_branch
      %80 = sbr.rel (0) target = $region61
    $region60: #{generate.9} parent=1 // pred_region
      _
    $region61: #{generate.9} parent=1 // pred_fallthru
      _
    // Predicated region
    $region62: #{generate.9} parent=1 // pred_check
      _
    $region63: #{generate.9} parent=1 // pred_check_branch
      %82 = sbr.rel (0) target = $region65
    $region64: #{generate.9} parent=1 // pred_region
      _
    $region65: #{generate.9} parent=1 // pred_fallthru
      _
    // Predicated region
    $region66: #{generate.9} parent=1 // pred_check
      _
    $region67: #{generate.9} parent=1 // pred_check_branch
      %84 = sbr.rel (0) target = $region69
    $region68: #{generate.9} parent=1 // pred_region
      _
    $region69: #{generate.9} parent=1 // pred_fallthru
      _
    // Predicated region
    $region70: #{generate.9} parent=1 // pred_check
      _
    $region71: #{generate.9} parent=1 // pred_check_branch
      %86 = sbr.rel (0) target = $region73
    $region72: #{generate.9} parent=1 // pred_region
      _
    $region73: #{generate.9} parent=1 // pred_fallthru
      _
    // Predicated region
    $region74: #{generate.9} parent=1 // pred_check
      _
    $region75: #{generate.9} parent=1 // pred_check_branch
      %88 = sbr.rel (0) target = $region77
    $region76: #{generate.9} parent=1 // pred_region
      _
    $region77: #{generate.9} parent=1 // pred_fallthru
      _
    // Predicated region
    $region78: #{generate.9} parent=1 // pred_check
      _
    $region79: #{generate.9} parent=1 // pred_check_branch
      %90 = sbr.rel (0) target = $region81
    $region80: #{generate.9} parent=1 // pred_region
      _
    $region81: #{generate.9} parent=1 // pred_fallthru
      _
    // Predicated region
    $region82: #{generate.9} parent=1 // pred_check
      _
    $region83: #{generate.9} parent=1 // pred_check_branch
      %92 = sbr.rel (0) target = $region85
    $region84: #{generate.9} parent=1 // pred_region
      _
    $region85: #{generate.9} parent=1 // pred_fallthru
      _
    // Predicated region
    $region86: #{generate.9} parent=1 // pred_check
      _
    $region87: #{generate.9} parent=1 // pred_check_branch
      %94 = sbr.rel (0) target = $region89
    $region88: #{generate.9} parent=1 // pred_region
      _
    $region89: #{generate.9} parent=1 // pred_fallthru
      _
    // Predicated region
    $region90: #{generate.9} parent=1 // pred_check
      _
    $region91: #{generate.9} parent=1 // pred_check_branch
      %96 = sbr.rel (0) target = $region93
    $region92: #{generate.9} parent=1 // pred_region
      _
    $region93: #{generate.9} parent=1 // pred_fallthru
      _
    // Predicated region
    $region94: #{generate.9} parent=1 // pred_check
      _
    $region95: #{generate.9} parent=1 // pred_check_branch
      %98 = sbr.rel (0) target = $region97
    $region96: #{generate.9} parent=1 // pred_region
      %99 = dma.done [#allocation4], 16
    $region97: #{generate.9} parent=1 // pred_fallthru
      _
    // Predicated region
    $region98: #{generate.9} parent=1 // pred_check
      _
    $region99: #{generate.9} parent=1 // pred_check_branch
      %101 = sbr.rel (0) target = $region101
    $region100: #{generate.9} parent=1 // pred_region
      %102 = dma.done [#allocation6], 16
    $region101: #{generate.9} parent=1 // pred_fallthru
      _
    %103 = sfence
    %s105 = sld [smem:[#allocation2]]
    %s106 = sld [smem:[#allocation3]]
    %s107 = scalar_lea.vmem %s4, %s106
    %v108 = vld [vmem:[%s107] sm:$0x1]
    %s109 = sld [smem:[#allocation3 + $0x1]]
    %s110 = scalar_lea.vmem %s4, %s109
    %v111 = vld [vmem:[%s110] sm:$0x1]
    %s112 = sld [smem:[#allocation3 + $0x2]]
    %s113 = scalar_lea.vmem %s4, %s112
    %v114 = vld [vmem:[%s113] sm:$0x1]
    %s115 = sld [smem:[#allocation3 + $0x3]]
    %s116 = scalar_lea.vmem %s4, %s115
    %v117 = vld [vmem:[%s116] sm:$0x1]
    %s118 = sld [smem:[#allocation3 + $0x4]]
    %s119 = scalar_lea.vmem %s4, %s118
    %v120 = vld [vmem:[%s119] sm:$0x1]
    %s121 = sld [smem:[#allocation3 + $0x5]]
    %s122 = scalar_lea.vmem %s4, %s121
    %v123 = vld [vmem:[%s122] sm:$0x1]
    %v125 = vrot.slane %v111, 7
    %v128 = vrot.slane %v114, 6
    %v131 = vrot.slane %v117, 5
    %v134 = vrot.slane %v120, 4
    %v137 = vrot.slane %v123, 3
    %vm139 = vcmask 1040384
    %v140 = vsel %vm139, %v108, %v125
    %vm141 = vcmask 1041408
    %v142 = vsel %vm141, %v140, %v128
    %vm143 = vcmask 1042432
    %v144 = vsel %vm143, %v142, %v131
    %vm145 = vcmask 1043456
    %v146 = vsel %vm145, %v144, %v134
    %vm147 = vcmask 1044480
    %v148 = vsel %vm147, %v146, %v137
    %s149 = sld [smem:[#allocation5]]
    %s150 = scalar_lea.vmem %s5, %s149
    %v151 = vld [vmem:[%s150] sm:$0x1]
    %s152 = sld [smem:[#allocation5 + $0x1]]
    %s153 = scalar_lea.vmem %s5, %s152
    %v154 = vld [vmem:[%s153] sm:$0x1]
    %s155 = sld [smem:[#allocation5 + $0x2]]
    %s156 = scalar_lea.vmem %s5, %s155
    %v157 = vld [vmem:[%s156] sm:$0x1]
    %s158 = sld [smem:[#allocation5 + $0x3]]
    %s159 = scalar_lea.vmem %s5, %s158
    %v160 = vld [vmem:[%s159] sm:$0x1]
    %s161 = sld [smem:[#allocation5 + $0x4]]
    %s162 = scalar_lea.vmem %s5, %s161
    %v163 = vld [vmem:[%s162] sm:$0x1]
    %s164 = sld [smem:[#allocation5 + $0x5]]
    %s165 = scalar_lea.vmem %s5, %s164
    %v166 = vld [vmem:[%s165] sm:$0x1]
    %v168 = vrot.slane %v154, 7
    %v171 = vrot.slane %v157, 6
    %v174 = vrot.slane %v160, 5
    %v177 = vrot.slane %v163, 4
    %v180 = vrot.slane %v166, 3
    %v182 = vsel %vm139, %v151, %v168
    %v183 = vsel %vm141, %v182, %v171
    %v184 = vsel %vm143, %v183, %v174
    %v185 = vsel %vm145, %v184, %v177
    %v186 = vsel %vm147, %v185, %v180
    %p187 = scmp.gt.s32.totalorder %s105, 0
    %v188 = vld [vmem:[%s3] sm:$0x3f]
    %vm189 = vcmp.eq.s32.totalorder %v188, 0
    %s190 = scalar_select %p187, 1, 0
    %v191 = vstv %s190
    %vm192 = vcmp.eq.s32.totalorder %v191, 1
    %vm193 = vmand %vm192, %vm189
    %v194 = vsel %vm193, -1e+09, 0.0
    %v195 = vlaneseq
    %v196 = vand.u32 %v195, 127
    %v197 = vstv %s105
    %vm198 = vcmp.eq.s32.totalorder %v196, %v197
    %200 = vset.pattern.permute.xlu0 0
    %201 = vperm.xlu0 %200, %v194
    %v202 = vpop.permute.xlu0 %201
    %v204 = vsel %vm198, %v202, %v186
    %vm205 = vcmask 29696
    %206 = vst.msk [vmem:[%s24] sm:$0x3f] %vm205, %v204
    %s207 = smul.u32 %s105, 4
    %s208 = scalar_lea.vmem %s11, %s207
    %v209 = vld [vmem:[%s208] sm:$0xf]
    %v210 = vld [vmem:[%s12] sm:$0x1]
    %v211 = vmul.f32 %v148, %v148
    %vm212 = vcmask 259072
    %v213 = vsel %vm212, %v211, 0.0
    %214 = vadd.xlane.f32.xlu0 %v213
    %v215 = vpop.xlane.xlu0 %214
    %v216 = vrcp.pop 32.0
    %v217 = vmul.f32 %v215, %v216
    %v218 = vadd.f32 %v217, 1e-06
    %v219 = vrsqrt.pop %v218
    %v220 = vmul.f32 %v148, %v219
    %v222 = vlaneseq
    %v223 = vshrl.u32 %v222, 7
    %v224 = vsub.s32 0, %v223
    %v225 = vrot.slane %v210, %v224
    %v227 = vmul.f32 %v220, %v225
    %v228 = vpack.c.bf16 %v227, %v227
    %v229 = vld [vmem:[%s13] sm:$0xf]
    %v230 = vld [vmem:[%s13 + $0x4] sm:$0xf]
    %v231 = vld [vmem:[%s13 + $0x8] sm:$0xf]
    %v232 = vld [vmem:[%s13 + $0xc] sm:$0xf]
    %v237 = vunpack.c.l.b16 %v229
    %v238 = vunpack.c.l.b16 %v230
    %v239 = vunpack.c.l.b16 %v231
    %v240 = vunpack.c.l.b16 %v232
    %v241 = vpack.c.b16 %v238, %v237
    %v242 = vpack.c.b16 %v240, %v239
    %vm245 = vcmask 261120
    %v247 = vsel %vm245, %v228, 0
    %249 = vmatprep.subr.bf16.mxu0 0
    %250 = vmatpush1.bf16.msra.mxu0 %v241
    %251 = vmatprep.subr.bf16.mxu0 0
    %252 = vmatpush1.bf16.msra.mxu0 %v242
    %253 = vmatprep.subr.bf16.mxu0 0
    %254 = vmatpush1.bf16.msra.mxu0 0
    %255 = vmatprep.subr.bf16.mxu0 0
    %256 = vmatpush1.bf16.msra.mxu0 0
    %257 = vmatprep.subr.bf16.mxu0 0
    %258 = vmatpush1.bf16.msra.mxu0 0
    %259 = vmatprep.subr.bf16.mxu0 0
    %260 = vmatpush1.bf16.msra.mxu0 0
    %261 = vmatprep.subr.bf16.mxu0 0
    %262 = vmatpush1.bf16.msra.mxu0 0
    %263 = vmatprep.subr.bf16.mxu0 0
    %264 = vmatpush1.bf16.msra.mxu0 0
    %265 = vmatprep.subr.bf16.mxu0 0
    %266 = vmatpush1.bf16.msra.mxu0 0
    %267 = vmatprep.subr.bf16.mxu0 0
    %268 = vmatpush1.bf16.msra.mxu0 0
    %269 = vmatprep.subr.bf16.mxu0 0
    %270 = vmatpush1.bf16.msra.mxu0 0
    %271 = vmatprep.subr.bf16.mxu0 0
    %272 = vmatpush1.bf16.msra.mxu0 0
    %273 = vmatprep.subr.bf16.mxu0 0
    %274 = vmatpush1.bf16.msra.mxu0 0
    %275 = vmatprep.subr.bf16.mxu0 0
    %276 = vmatpush1.bf16.msra.mxu0 0
    %277 = vmatprep.subr.bf16.mxu0 0
    %278 = vmatpush1.bf16.msra.mxu0 0
    %279 = vmatprep.subr.bf16.mxu0 0
    %280 = vmatpush1.bf16.msra.mxu0 0
    %281 = vmatprep.mubr.bf16.mxu0 0
    %282 = vmatmul.mubr.bf16.gmra.mrb[0].mxu0 %v247
    %v283 = vpop.f32.mrb[0].mxu0
    %v284 = vadd.f32 0.0, %v283
    %v285 = vpop.f32.mrb[0].mxu0
    %v286 = vpop.f32.mrb[0].mxu0
    %v287 = vpop.f32.mrb[0].mxu0
    %288 = vdwg.mxu0
    %s289 = sld [smem:[#allocation5]]
    %s290 = smul.addr %s289, 2
    %s291 = scalar_lea.vmem %s6, %s290
    %v292 = vld [vmem:[%s291] sm:$0x3]
    %s293 = sld [smem:[#allocation5 + $0x1]]
    %s294 = smul.addr %s293, 2
    %s295 = scalar_lea.vmem %s6, %s294
    %v296 = vld [vmem:[%s295] sm:$0x3]
    %s297 = sld [smem:[#allocation5 + $0x2]]
    %s298 = smul.addr %s297, 2
    %s299 = scalar_lea.vmem %s6, %s298
    %v300 = vld [vmem:[%s299] sm:$0x3]
    %s301 = sld [smem:[#allocation5 + $0x3]]
    %s302 = smul.addr %s301, 2
    %s303 = scalar_lea.vmem %s6, %s302
    %v304 = vld [vmem:[%s303] sm:$0x3]
    %s305 = sld [smem:[#allocation5 + $0x4]]
    %s306 = smul.addr %s305, 2
    %s307 = scalar_lea.vmem %s6, %s306
    %v308 = vld [vmem:[%s307] sm:$0x3]
    %s309 = sld [smem:[#allocation5 + $0x5]]
    %s310 = smul.addr %s309, 2
    %s311 = scalar_lea.vmem %s6, %s310
    %v312 = vld [vmem:[%s311] sm:$0x3]
    %s313 = smul.addr %s289, 2
    %s314 = scalar_lea.vmem %s7, %s313
    %v315 = vld [vmem:[%s314] sm:$0x3]
    %s316 = smul.addr %s293, 2
    %s317 = scalar_lea.vmem %s7, %s316
    %v318 = vld [vmem:[%s317] sm:$0x3]
    %s319 = smul.addr %s297, 2
    %s320 = scalar_lea.vmem %s7, %s319
    %v321 = vld [vmem:[%s320] sm:$0x3]
    %s322 = smul.addr %s301, 2
    %s323 = scalar_lea.vmem %s7, %s322
    %v324 = vld [vmem:[%s323] sm:$0x3]
    %s325 = smul.addr %s305, 2
    %s326 = scalar_lea.vmem %s7, %s325
    %v327 = vld [vmem:[%s326] sm:$0x3]
    %s328 = smul.addr %s309, 2
    %s329 = scalar_lea.vmem %s7, %s328
    %v330 = vld [vmem:[%s329] sm:$0x3]
    %v331 = vlaneseq
    %v332 = vshrl.u32 %v331, 7
    %vm333 = vcmp.eq.s32.totalorder %v332, %v197
    %v335 = vcombine.high %v284, %v284
    %v337 = vunpack.c.l.s4 1966171168
    %v338 = vunpack.c.0.s8 %v337
    %v339 = vlaneseq
    %v340 = vshrl.u32 %v339, 7
    %v341 = vsub.s32 %v338, %v340
    %v342 = vrot.slane %v284, %v341
    %v344 = vunpack.c.l.s4 1966171168
    %v345 = vunpack.c.0.s8 %v344
    %v346 = vlaneseq
    %v347 = vshrl.u32 %v346, 7
    %v348 = vsub.s32 %v345, %v347
    %v349 = vrot.slane %v335, %v348
    %v350 = vcombine.high %v342, %v342
    %v351 = vcombine.high %v349, %v349
    %v353 = vunpack.c.l.s4 1966171168
    %v354 = vunpack.c.0.s8 %v353
    %v355 = vlaneseq
    %v356 = vshrl.u32 %v355, 7
    %v357 = vsub.s32 %v354, %v356
    %v358 = vrot.slane %v342, %v357
    %v360 = vunpack.c.l.s4 1966171168
    %v361 = vunpack.c.0.s8 %v360
    %v362 = vlaneseq
    %v363 = vshrl.u32 %v362, 7
    %v364 = vsub.s32 %v361, %v363
    %v365 = vrot.slane %v349, %v364
    %v367 = vunpack.c.l.s4 1966171168
    %v368 = vunpack.c.0.s8 %v367
    %v369 = vlaneseq
    %v370 = vshrl.u32 %v369, 7
    %v371 = vsub.s32 %v368, %v370
    %v372 = vrot.slane %v350, %v371
    %v374 = vunpack.c.l.s4 1966171168
    %v375 = vunpack.c.0.s8 %v374
    %v376 = vlaneseq
    %v377 = vshrl.u32 %v376, 7
    %v378 = vsub.s32 %v375, %v377
    %v379 = vrot.slane %v351, %v378
    %v380 = vcombine.high %v358, %v358
    %v381 = vcombine.high %v372, %v372
    %v382 = vunpack.c.l.bf16 %v292
    %v383 = vunpack.c.l.bf16 %v296
    %v384 = vunpack.c.l.bf16 %v300
    %v385 = vunpack.c.l.bf16 %v304
    %v386 = vunpack.c.l.bf16 %v308
    %v387 = vunpack.c.l.bf16 %v312
    %v388 = vlaneseq
    %v389 = vshrl.u32 %v388, 7
    %v390 = vsub.s32 0, %v389
    %v391 = vrot.slane %v358, %v390
    %v392 = vlaneseq
    %v393 = vshrl.u32 %v392, 7
    %v394 = vsub.s32 0, %v393
    %v395 = vrot.slane %v372, %v394
    %v396 = vlaneseq
    %v397 = vshrl.u32 %v396, 7
    %v398 = vsub.s32 0, %v397
    %v399 = vrot.slane %v380, %v398
    %v400 = vlaneseq
    %v401 = vshrl.u32 %v400, 7
    %v402 = vsub.s32 0, %v401
    %v403 = vrot.slane %v381, %v402
    %v404 = vlaneseq
    %v405 = vshrl.u32 %v404, 7
    %v406 = vsub.s32 0, %v405
    %v407 = vrot.slane %v365, %v406
    %v408 = vlaneseq
    %v409 = vshrl.u32 %v408, 7
    %v410 = vsub.s32 0, %v409
    %v411 = vrot.slane %v379, %v410
    %424 = vrot.lane.b32.xlu0 %v382, 32
    %v425 = vpop.permute.xlu0 %424
    %426 = vrot.lane.b32.xlu0 %v383, 32
    %v427 = vpop.permute.xlu0 %426
    %428 = vrot.lane.b32.xlu0 %v384, 32
    %v429 = vpop.permute.xlu0 %428
    %430 = vrot.lane.b32.xlu0 %v385, 32
    %v431 = vpop.permute.xlu0 %430
    %432 = vrot.lane.b32.xlu0 %v386, 32
    %v433 = vpop.permute.xlu0 %432
    %434 = vrot.lane.b32.xlu0 %v387, 32
    %v435 = vpop.permute.xlu0 %434
    %v442 = vsel %vm333, %v391, %v425
    %v443 = vsel %vm333, %v395, %v427
    %v444 = vsel %vm333, %v399, %v429
    %v445 = vsel %vm333, %v403, %v431
    %v446 = vsel %vm333, %v407, %v433
    %v447 = vsel %vm333, %v411, %v435
    %v448 = vunpack.c.l.bf16 %v315
    %v449 = vunpack.c.l.bf16 %v318
    %v450 = vunpack.c.l.bf16 %v321
    %v451 = vunpack.c.l.bf16 %v324
    %v452 = vunpack.c.l.bf16 %v327
    %v453 = vunpack.c.l.bf16 %v330
    %460 = vrot.lane.b32.xlu0 %v448, 64
    %v461 = vpop.permute.xlu0 %460
    %462 = vrot.lane.b32.xlu0 %v449, 64
    %v463 = vpop.permute.xlu0 %462
    %464 = vrot.lane.b32.xlu0 %v450, 64
    %v465 = vpop.permute.xlu0 %464
    %466 = vrot.lane.b32.xlu0 %v451, 64
    %v467 = vpop.permute.xlu0 %466
    %468 = vrot.lane.b32.xlu0 %v452, 64
    %v469 = vpop.permute.xlu0 %468
    %470 = vrot.lane.b32.xlu0 %v453, 64
    %v471 = vpop.permute.xlu0 %470
    %v478 = vsel %vm333, %v391, %v461
    %v479 = vsel %vm333, %v395, %v463
    %v480 = vsel %vm333, %v399, %v465
    %v481 = vsel %vm333, %v403, %v467
    %v482 = vsel %vm333, %v407, %v469
    %v483 = vsel %vm333, %v411, %v471
    %v484 = vpack.c.bf16 %v442, %v442
    %v485 = vpack.c.bf16 %v443, %v443
    %v486 = vpack.c.bf16 %v444, %v444
    %v487 = vpack.c.bf16 %v445, %v445
    %v488 = vpack.c.bf16 %v446, %v446
    %v489 = vpack.c.bf16 %v447, %v447
    %v497 = vunpack.c.l.s4 1983009808
    %v498 = vunpack.c.0.s8 %v497
    %v499 = vlaneseq
    %v500 = vshrl.u32 %v499, 7
    %v501 = vsub.s32 %v498, %v500
    %v502 = vrot.slane %v484, %v501
    %v504 = vunpack.c.l.s4 1983009808
    %v505 = vunpack.c.0.s8 %v504
    %v506 = vlaneseq
    %v507 = vshrl.u32 %v506, 7
    %v508 = vsub.s32 %v505, %v507
    %v509 = vrot.slane %v485, %v508
    %v511 = vunpack.c.l.s4 1983009808
    %v512 = vunpack.c.0.s8 %v511
    %v513 = vlaneseq
    %v514 = vshrl.u32 %v513, 7
    %v515 = vsub.s32 %v512, %v514
    %v516 = vrot.slane %v486, %v515
    %v518 = vunpack.c.l.s4 1983009808
    %v519 = vunpack.c.0.s8 %v518
    %v520 = vlaneseq
    %v521 = vshrl.u32 %v520, 7
    %v522 = vsub.s32 %v519, %v521
    %v523 = vrot.slane %v487, %v522
    %v525 = vunpack.c.l.s4 1983009808
    %v526 = vunpack.c.0.s8 %v525
    %v527 = vlaneseq
    %v528 = vshrl.u32 %v527, 7
    %v529 = vsub.s32 %v526, %v528
    %v530 = vrot.slane %v488, %v529
    %v532 = vunpack.c.l.s4 1983009808
    %v533 = vunpack.c.0.s8 %v532
    %v534 = vlaneseq
    %v535 = vshrl.u32 %v534, 7
    %v536 = vsub.s32 %v533, %v535
    %v537 = vrot.slane %v489, %v536
    %538 = vrot.lane.b32.xlu0 %v502, 96
    %v539 = vpop.permute.xlu0 %538
    %540 = vrot.lane.b32.xlu0 %v509, 96
    %v541 = vpop.permute.xlu0 %540
    %542 = vrot.lane.b32.xlu0 %v516, 96
    %v543 = vpop.permute.xlu0 %542
    %544 = vrot.lane.b32.xlu0 %v523, 96
    %v545 = vpop.permute.xlu0 %544
    %546 = vrot.lane.b32.xlu0 %v530, 96
    %v547 = vpop.permute.xlu0 %546
    %548 = vrot.lane.b32.xlu0 %v537, 96
    %v549 = vpop.permute.xlu0 %548
    %vm556 = vcmask 254976
    %557 = vst.msk [vmem:[%s25] sm:$0x3] %vm556, %v539
    %558 = vst.msk [vmem:[%s25 + $0x2] sm:$0x3] %vm556, %v541
    %559 = vst.msk [vmem:[%s25 + $0x4] sm:$0x3] %vm556, %v543
    %560 = vst.msk [vmem:[%s25 + $0x6] sm:$0x3] %vm556, %v545
    %561 = vst.msk [vmem:[%s25 + $0x8] sm:$0x3] %vm556, %v547
    %562 = vst.msk [vmem:[%s25 + $0xa] sm:$0x3] %vm556, %v549
    %v563 = vpack.c.bf16 %v478, %v478
    %v564 = vpack.c.bf16 %v479, %v479
    %v565 = vpack.c.bf16 %v480, %v480
    %v566 = vpack.c.bf16 %v481, %v481
    %v567 = vpack.c.bf16 %v482, %v482
    %v568 = vpack.c.bf16 %v483, %v483
    %v576 = vunpack.c.l.s4 1983009808
    %v577 = vunpack.c.0.s8 %v576
    %v578 = vlaneseq
    %v579 = vshrl.u32 %v578, 7
    %v580 = vsub.s32 %v577, %v579
    %v581 = vrot.slane %v563, %v580
    %v583 = vunpack.c.l.s4 1983009808
    %v584 = vunpack.c.0.s8 %v583
    %v585 = vlaneseq
    %v586 = vshrl.u32 %v585, 7
    %v587 = vsub.s32 %v584, %v586
    %v588 = vrot.slane %v564, %v587
    %v590 = vunpack.c.l.s4 1983009808
    %v591 = vunpack.c.0.s8 %v590
    %v592 = vlaneseq
    %v593 = vshrl.u32 %v592, 7
    %v594 = vsub.s32 %v591, %v593
    %v595 = vrot.slane %v565, %v594
    %v597 = vunpack.c.l.s4 1983009808
    %v598 = vunpack.c.0.s8 %v597
    %v599 = vlaneseq
    %v600 = vshrl.u32 %v599, 7
    %v601 = vsub.s32 %v598, %v600
    %v602 = vrot.slane %v566, %v601
    %v604 = vunpack.c.l.s4 1983009808
    %v605 = vunpack.c.0.s8 %v604
    %v606 = vlaneseq
    %v607 = vshrl.u32 %v606, 7
    %v608 = vsub.s32 %v605, %v607
    %v609 = vrot.slane %v567, %v608
    %v611 = vunpack.c.l.s4 1983009808
    %v612 = vunpack.c.0.s8 %v611
    %v613 = vlaneseq
    %v614 = vshrl.u32 %v613, 7
    %v615 = vsub.s32 %v612, %v614
    %v616 = vrot.slane %v568, %v615
    %617 = vrot.lane.b32.xlu0 %v581, 64
    %v618 = vpop.permute.xlu0 %617
    %619 = vrot.lane.b32.xlu0 %v588, 64
    %v620 = vpop.permute.xlu0 %619
    %621 = vrot.lane.b32.xlu0 %v595, 64
    %v622 = vpop.permute.xlu0 %621
    %623 = vrot.lane.b32.xlu0 %v602, 64
    %v624 = vpop.permute.xlu0 %623
    %625 = vrot.lane.b32.xlu0 %v609, 64
    %v626 = vpop.permute.xlu0 %625
    %627 = vrot.lane.b32.xlu0 %v616, 64
    %v628 = vpop.permute.xlu0 %627
    %635 = vst.msk [vmem:[%s26] sm:$0x3] %vm556, %v618
    %636 = vst.msk [vmem:[%s26 + $0x2] sm:$0x3] %vm556, %v620
    %637 = vst.msk [vmem:[%s26 + $0x4] sm:$0x3] %vm556, %v622
    %638 = vst.msk [vmem:[%s26 + $0x6] sm:$0x3] %vm556, %v624
    %639 = vst.msk [vmem:[%s26 + $0x8] sm:$0x3] %vm556, %v626
    %640 = vst.msk [vmem:[%s26 + $0xa] sm:$0x3] %vm556, %v628
    %647 = vrot.lane.b32.xlu0 %v442, 96
    %v648 = vpop.permute.xlu0 %647
    %649 = vrot.lane.b32.xlu0 %v443, 96
    %v650 = vpop.permute.xlu0 %649
    %651 = vrot.lane.b32.xlu0 %v444, 96
    %v652 = vpop.permute.xlu0 %651
    %653 = vrot.lane.b32.xlu0 %v445, 96
    %v654 = vpop.permute.xlu0 %653
    %655 = vrot.lane.b32.xlu0 %v446, 96
    %v656 = vpop.permute.xlu0 %655
    %657 = vrot.lane.b32.xlu0 %v447, 96
    %v658 = vpop.permute.xlu0 %657
    %v665 = vmul.f32 %v391, %v648
    %v666 = vmul.f32 %v395, %v650
    %v667 = vmul.f32 %v399, %v652
    %v668 = vmul.f32 %v403, %v654
    %v669 = vmul.f32 %v407, %v656
    %v670 = vmul.f32 %v411, %v658
    %vm671 = vcmask 60416
    %v672 = vsel %vm671, %v665, 0.0
    %673 = vadd.xlane.f32.xlu0 %v672
    %v674 = vpop.xlane.xlu0 %673
    %v675 = vsel %vm671, %v666, 0.0
    %676 = vadd.xlane.f32.xlu0 %v675
    %v677 = vpop.xlane.xlu0 %676
    %v678 = vsel %vm671, %v667, 0.0
    %679 = vadd.xlane.f32.xlu0 %v678
    %v680 = vpop.xlane.xlu0 %679
    %v681 = vsel %vm671, %v668, 0.0
    %682 = vadd.xlane.f32.xlu0 %v681
    %v683 = vpop.xlane.xlu0 %682
    %v684 = vsel %vm671, %v669, 0.0
    %685 = vadd.xlane.f32.xlu0 %v684
    %v686 = vpop.xlane.xlu0 %685
    %v687 = vsel %vm671, %v670, 0.0
    %688 = vadd.xlane.f32.xlu0 %v687
    %v689 = vpop.xlane.xlu0 %688
    %v691 = vlaneseq
    %v692 = vshrl.u32 %v691, 7
    %v693 = vsub.s32 0, %v692
    %v694 = vrot.slane %v204, %v693
    %696 = vbcast.lane.b32.xlu0 %v694, 256
    %v697 = vpop.permute.xlu0 %696
    %v698 = vlaneseq
    %v699 = vshrl.u32 %v698, 7
    %v700 = vsub.s32 1, %v699
    %v701 = vrot.slane %v204, %v700
    %703 = vbcast.lane.b32.xlu0 %v701, 256
    %v704 = vpop.permute.xlu0 %703
    %v705 = vlaneseq
    %v706 = vshrl.u32 %v705, 7
    %v707 = vsub.s32 2, %v706
    %v708 = vrot.slane %v204, %v707
    %710 = vbcast.lane.b32.xlu0 %v708, 256
    %v711 = vpop.permute.xlu0 %710
    %v712 = vlaneseq
    %v713 = vshrl.u32 %v712, 7
    %v714 = vsub.s32 3, %v713
    %v715 = vrot.slane %v204, %v714
    %717 = vbcast.lane.b32.xlu0 %v715, 256
    %v718 = vpop.permute.xlu0 %717
    %v719 = vlaneseq
    %v720 = vshrl.u32 %v719, 7
    %v721 = vsub.s32 4, %v720
    %v722 = vrot.slane %v204, %v721
    %724 = vbcast.lane.b32.xlu0 %v722, 256
    %v725 = vpop.permute.xlu0 %724
    %v726 = vlaneseq
    %v727 = vshrl.u32 %v726, 7
    %v728 = vsub.s32 5, %v727
    %v729 = vrot.slane %v204, %v728
    %731 = vbcast.lane.b32.xlu0 %v729, 256
    %v732 = vpop.permute.xlu0 %731
    %v739 = vadd.f32 %v674, %v697
    %v740 = vadd.f32 %v677, %v704
    %v741 = vadd.f32 %v680, %v711
    %v742 = vadd.f32 %v683, %v718
    %v743 = vadd.f32 %v686, %v725
    %v744 = vadd.f32 %v689, %v732
    %v745 = vlaneseq
    %v746 = vshrl.u32 %v745, 7
    %v747 = vsub.s32 0, %v746
    %v748 = vrot.slane %v209, %v747
    %751 = vbcast.lane.b32.xlu0 %v748, 256
    %v752 = vpop.permute.xlu0 %751
    %v754 = vadd.f32 %v739, %v752
    %v755 = vadd.f32 %v740, %v752
    %v756 = vadd.f32 %v741, %v752
    %v757 = vadd.f32 %v742, %v752
    %v758 = vadd.f32 %v743, %v752
    %v759 = vadd.f32 %v744, %v752
    %766 = vset.pattern.permute.xlu0 0
    %767 = vperm.xlu0 %766, %v754
    %v768 = vpop.permute.xlu0 %767
    %769 = vset.pattern.permute.xlu0 0
    %770 = vperm.xlu0 %769, %v755
    %v771 = vpop.permute.xlu0 %770
    %772 = vset.pattern.permute.xlu0 0
    %773 = vperm.xlu0 %772, %v756
    %v774 = vpop.permute.xlu0 %773
    %775 = vset.pattern.permute.xlu0 0
    %776 = vperm.xlu0 %775, %v757
    %v777 = vpop.permute.xlu0 %776
    %778 = vset.pattern.permute.xlu0 0
    %779 = vperm.xlu0 %778, %v758
    %v780 = vpop.permute.xlu0 %779
    %781 = vset.pattern.permute.xlu0 0
    %782 = vperm.xlu0 %781, %v759
    %v783 = vpop.permute.xlu0 %782
    %v784 = vlaneseq
    %v785 = vshrl.u32 %v784, 7
    %v786 = vsub.s32 %v196, %v785
    %v787 = vrot.slane %v768, %v786
    %v788 = vlaneseq
    %v789 = vshrl.u32 %v788, 7
    %v790 = vsub.s32 %v196, %v789
    %v791 = vrot.slane %v771, %v790
    %v792 = vlaneseq
    %v793 = vshrl.u32 %v792, 7
    %v794 = vsub.s32 %v196, %v793
    %v795 = vrot.slane %v774, %v794
    %v796 = vlaneseq
    %v797 = vshrl.u32 %v796, 7
    %v798 = vsub.s32 %v196, %v797
    %v799 = vrot.slane %v777, %v798
    %v800 = vlaneseq
    %v801 = vshrl.u32 %v800, 7
    %v802 = vsub.s32 %v196, %v801
    %v803 = vrot.slane %v780, %v802
    %v804 = vlaneseq
    %v805 = vshrl.u32 %v804, 7
    %v806 = vsub.s32 %v196, %v805
    %v807 = vrot.slane %v783, %v806
    %vm808 = vcmask 1041409
    %v809 = vsel %vm808, %v791, %v787
    %vm810 = vcmask 1042434
    %v811 = vsel %vm810, %v795, %v809
    %vm812 = vcmask 1043459
    %v813 = vsel %vm812, %v799, %v811
    %vm814 = vcmask 1044484
    %v815 = vsel %vm814, %v803, %v813
    %vm816 = vcmask 1045509
    %v817 = vsel %vm816, %v807, %v815
    %v819 = vsel %vm205, %v817, -inf
    %820 = vmax.xlane.f32.xlu0 %v819
    %v821 = vpop.xlane.xlu0 %820
    %v823 = vlaneseq
    %v824 = vshrl.u32 %v823, 7
    %v825 = vsub.s32 0, %v824
    %v826 = vrot.slane %v821, %v825
    %v827 = vlaneseq
    %v828 = vshrl.u32 %v827, 7
    %v829 = vsub.s32 1, %v828
    %v830 = vrot.slane %v821, %v829
    %v831 = vlaneseq
    %v832 = vshrl.u32 %v831, 7
    %v833 = vsub.s32 2, %v832
    %v834 = vrot.slane %v821, %v833
    %v835 = vlaneseq
    %v836 = vshrl.u32 %v835, 7
    %v837 = vsub.s32 3, %v836
    %v838 = vrot.slane %v821, %v837
    %v839 = vlaneseq
    %v840 = vshrl.u32 %v839, 7
    %v841 = vsub.s32 4, %v840
    %v842 = vrot.slane %v821, %v841
    %v843 = vlaneseq
    %v844 = vshrl.u32 %v843, 7
    %v845 = vsub.s32 5, %v844
    %v846 = vrot.slane %v821, %v845
    %v853 = vsub.f32 %v754, %v826
    %v854 = vsub.f32 %v755, %v830
    %v855 = vsub.f32 %v756, %v834
    %v856 = vsub.f32 %v757, %v838
    %v857 = vsub.f32 %v758, %v842
    %v858 = vsub.f32 %v759, %v846
    %v859 = vmul.f32 %v853, 1.442695
    %v860 = vpow.pop %v859
    %v861 = vmul.f32 %v854, 1.442695
    %v862 = vpow.pop %v861
    %v863 = vmul.f32 %v855, 1.442695
    %v864 = vpow.pop %v863
    %v865 = vmul.f32 %v856, 1.442695
    %v866 = vpow.pop %v865
    %v867 = vmul.f32 %v857, 1.442695
    %v868 = vpow.pop %v867
    %v869 = vmul.f32 %v858, 1.442695
    %v870 = vpow.pop %v869
    %877 = vset.pattern.permute.xlu0 0
    %878 = vperm.xlu0 %877, %v860
    %v879 = vpop.permute.xlu0 %878
    %880 = vset.pattern.permute.xlu0 0
    %881 = vperm.xlu0 %880, %v862
    %v882 = vpop.permute.xlu0 %881
    %883 = vset.pattern.permute.xlu0 0
    %884 = vperm.xlu0 %883, %v864
    %v885 = vpop.permute.xlu0 %884
    %886 = vset.pattern.permute.xlu0 0
    %887 = vperm.xlu0 %886, %v866
    %v888 = vpop.permute.xlu0 %887
    %889 = vset.pattern.permute.xlu0 0
    %890 = vperm.xlu0 %889, %v868
    %v891 = vpop.permute.xlu0 %890
    %892 = vset.pattern.permute.xlu0 0
    %893 = vperm.xlu0 %892, %v870
    %v894 = vpop.permute.xlu0 %893
    %v895 = vlaneseq
    %v896 = vshrl.u32 %v895, 7
    %v897 = vsub.s32 %v196, %v896
    %v898 = vrot.slane %v879, %v897
    %v899 = vlaneseq
    %v900 = vshrl.u32 %v899, 7
    %v901 = vsub.s32 %v196, %v900
    %v902 = vrot.slane %v882, %v901
    %v903 = vlaneseq
    %v904 = vshrl.u32 %v903, 7
    %v905 = vsub.s32 %v196, %v904
    %v906 = vrot.slane %v885, %v905
    %v907 = vlaneseq
    %v908 = vshrl.u32 %v907, 7
    %v909 = vsub.s32 %v196, %v908
    %v910 = vrot.slane %v888, %v909
    %v911 = vlaneseq
    %v912 = vshrl.u32 %v911, 7
    %v913 = vsub.s32 %v196, %v912
    %v914 = vrot.slane %v891, %v913
    %v915 = vlaneseq
    %v916 = vshrl.u32 %v915, 7
    %v917 = vsub.s32 %v196, %v916
    %v918 = vrot.slane %v894, %v917
    %v919 = vsel %vm808, %v902, %v898
    %v920 = vsel %vm810, %v906, %v919
    %v921 = vsel %vm812, %v910, %v920
    %v922 = vsel %vm814, %v914, %v921
    %v923 = vsel %vm816, %v918, %v922
    %v925 = vsel %vm205, %v923, 0.0
    %926 = vadd.xlane.f32.xlu0 %v925
    %v927 = vpop.xlane.xlu0 %926
    %v929 = vlaneseq
    %v930 = vshrl.u32 %v929, 7
    %v931 = vsub.s32 0, %v930
    %v932 = vrot.slane %v927, %v931
    %v933 = vlaneseq
    %v934 = vshrl.u32 %v933, 7
    %v935 = vsub.s32 1, %v934
    %v936 = vrot.slane %v927, %v935
    %v937 = vlaneseq
    %v938 = vshrl.u32 %v937, 7
    %v939 = vsub.s32 2, %v938
    %v940 = vrot.slane %v927, %v939
    %v941 = vlaneseq
    %v942 = vshrl.u32 %v941, 7
    %v943 = vsub.s32 3, %v942
    %v944 = vrot.slane %v927, %v943
    %v945 = vlaneseq
    %v946 = vshrl.u32 %v945, 7
    %v947 = vsub.s32 4, %v946
    %v948 = vrot.slane %v927, %v947
    %v949 = vlaneseq
    %v950 = vshrl.u32 %v949, 7
    %v951 = vsub.s32 5, %v950
    %v952 = vrot.slane %v927, %v951
    %v959 = vrcp.pop %v932
    %v960 = vmul.f32 %v860, %v959
    %v961 = vrcp.pop %v936
    %v962 = vmul.f32 %v862, %v961
    %v963 = vrcp.pop %v940
    %v964 = vmul.f32 %v864, %v963
    %v965 = vrcp.pop %v944
    %v966 = vmul.f32 %v866, %v965
    %v967 = vrcp.pop %v948
    %v968 = vmul.f32 %v868, %v967
    %v969 = vrcp.pop %v952
    %v970 = vmul.f32 %v870, %v969
    %972 = vset.pattern.permute.xlu0 0
    %973 = vperm.xlu0 %972, %v960
    %v974 = vpop.permute.xlu0 %973
    %977 = vset.pattern.permute.xlu0 0
    %978 = vperm.xlu0 %977, %v962
    %v979 = vpop.permute.xlu0 %978
    %982 = vset.pattern.permute.xlu0 0
    %983 = vperm.xlu0 %982, %v964
    %v984 = vpop.permute.xlu0 %983
    %987 = vset.pattern.permute.xlu0 0
    %988 = vperm.xlu0 %987, %v966
    %v989 = vpop.permute.xlu0 %988
    %992 = vset.pattern.permute.xlu0 0
    %993 = vperm.xlu0 %992, %v968
    %v994 = vpop.permute.xlu0 %993
    %997 = vset.pattern.permute.xlu0 0
    %998 = vperm.xlu0 %997, %v970
    %v999 = vpop.permute.xlu0 %998
    %v1001 = vmul.f32 %v974, %v478
    %v1002 = vmul.f32 %v979, %v479
    %v1003 = vmul.f32 %v984, %v480
    %v1004 = vmul.f32 %v989, %v481
    %v1005 = vmul.f32 %v994, %v482
    %v1006 = vmul.f32 %v999, %v483
    %vm1007 = vcmask 585216
    %v1008 = vsel %vm1007, %v1001, 0.0
    %v1009 = vrot.slane %v1008, 4
    %v1010 = vadd.f32 %v1008, %v1009
    %v1011 = vrot.slane %v1010, 2
    %v1012 = vadd.f32 %v1010, %v1011
    %v1013 = vrot.slane %v1012, 1
    %v1014 = vadd.f32 %v1012, %v1013
    %v1015 = vsel %vm1007, %v1002, 0.0
    %v1016 = vrot.slane %v1015, 4
    %v1017 = vadd.f32 %v1015, %v1016
    %v1018 = vrot.slane %v1017, 2
    %v1019 = vadd.f32 %v1017, %v1018
    %v1020 = vrot.slane %v1019, 1
    %v1021 = vadd.f32 %v1019, %v1020
    %v1022 = vsel %vm1007, %v1003, 0.0
    %v1023 = vrot.slane %v1022, 4
    %v1024 = vadd.f32 %v1022, %v1023
    %v1025 = vrot.slane %v1024, 2
    %v1026 = vadd.f32 %v1024, %v1025
    %v1027 = vrot.slane %v1026, 1
    %v1028 = vadd.f32 %v1026, %v1027
    %v1029 = vsel %vm1007, %v1004, 0.0
    %v1030 = vrot.slane %v1029, 4
    %v1031 = vadd.f32 %v1029, %v1030
    %v1032 = vrot.slane %v1031, 2
    %v1033 = vadd.f32 %v1031, %v1032
    %v1034 = vrot.slane %v1033, 1
    %v1035 = vadd.f32 %v1033, %v1034
    %v1036 = vsel %vm1007, %v1005, 0.0
    %v1037 = vrot.slane %v1036, 4
    %v1038 = vadd.f32 %v1036, %v1037
    %v1039 = vrot.slane %v1038, 2
    %v1040 = vadd.f32 %v1038, %v1039
    %v1041 = vrot.slane %v1040, 1
    %v1042 = vadd.f32 %v1040, %v1041
    %v1043 = vsel %vm1007, %v1006, 0.0
    %v1044 = vrot.slane %v1043, 4
    %v1045 = vadd.f32 %v1043, %v1044
    %v1046 = vrot.slane %v1045, 2
    %v1047 = vadd.f32 %v1045, %v1046
    %v1048 = vrot.slane %v1047, 1
    %v1049 = vadd.f32 %v1047, %v1048
    %1056 = vrot.lane.b32.xlu0 %v665, 120
    %v1057 = vpop.permute.xlu0 %1056
    %1058 = vrot.lane.b32.xlu0 %v666, 120
    %v1059 = vpop.permute.xlu0 %1058
    %1060 = vrot.lane.b32.xlu0 %v667, 120
    %v1061 = vpop.permute.xlu0 %1060
    %1062 = vrot.lane.b32.xlu0 %v668, 120
    %v1063 = vpop.permute.xlu0 %1062
    %1064 = vrot.lane.b32.xlu0 %v669, 120
    %v1065 = vpop.permute.xlu0 %1064
    %1066 = vrot.lane.b32.xlu0 %v670, 120
    %v1067 = vpop.permute.xlu0 %1066
    %v1074 = vsel %vm671, %v1057, 0.0
    %1075 = vadd.xlane.f32.xlu0 %v1074
    %v1076 = vpop.xlane.xlu0 %1075
    %v1077 = vsel %vm671, %v1059, 0.0
    %1078 = vadd.xlane.f32.xlu0 %v1077
    %v1079 = vpop.xlane.xlu0 %1078
    %v1080 = vsel %vm671, %v1061, 0.0
    %1081 = vadd.xlane.f32.xlu0 %v1080
    %v1082 = vpop.xlane.xlu0 %1081
    %v1083 = vsel %vm671, %v1063, 0.0
    %1084 = vadd.xlane.f32.xlu0 %v1083
    %v1085 = vpop.xlane.xlu0 %1084
    %v1086 = vsel %vm671, %v1065, 0.0
    %1087 = vadd.xlane.f32.xlu0 %v1086
    %v1088 = vpop.xlane.xlu0 %1087
    %v1089 = vsel %vm671, %v1067, 0.0
    %1090 = vadd.xlane.f32.xlu0 %v1089
    %v1091 = vpop.xlane.xlu0 %1090
    %v1092 = vadd.f32 %v1076, %v697
    %v1093 = vadd.f32 %v1079, %v704
    %v1094 = vadd.f32 %v1082, %v711
    %v1095 = vadd.f32 %v1085, %v718
    %v1096 = vadd.f32 %v1088, %v725
    %v1097 = vadd.f32 %v1091, %v732
    %v1098 = vlaneseq
    %v1099 = vshrl.u32 %v1098, 7
    %v1100 = vsub.s32 1, %v1099
    %v1101 = vrot.slane %v209, %v1100
    %1104 = vbcast.lane.b32.xlu0 %v1101, 256
    %v1105 = vpop.permute.xlu0 %1104
    %v1107 = vadd.f32 %v1092, %v1105
    %v1108 = vadd.f32 %v1093, %v1105
    %v1109 = vadd.f32 %v1094, %v1105
    %v1110 = vadd.f32 %v1095, %v1105
    %v1111 = vadd.f32 %v1096, %v1105
    %v1112 = vadd.f32 %v1097, %v1105
    %1119 = vset.pattern.permute.xlu0 0
    %1120 = vperm.xlu0 %1119, %v1107
    %v1121 = vpop.permute.xlu0 %1120
    %1122 = vset.pattern.permute.xlu0 0
    %1123 = vperm.xlu0 %1122, %v1108
    %v1124 = vpop.permute.xlu0 %1123
    %1125 = vset.pattern.permute.xlu0 0
    %1126 = vperm.xlu0 %1125, %v1109
    %v1127 = vpop.permute.xlu0 %1126
    %1128 = vset.pattern.permute.xlu0 0
    %1129 = vperm.xlu0 %1128, %v1110
    %v1130 = vpop.permute.xlu0 %1129
    %1131 = vset.pattern.permute.xlu0 0
    %1132 = vperm.xlu0 %1131, %v1111
    %v1133 = vpop.permute.xlu0 %1132
    %1134 = vset.pattern.permute.xlu0 0
    %1135 = vperm.xlu0 %1134, %v1112
    %v1136 = vpop.permute.xlu0 %1135
    %v1137 = vlaneseq
    %v1138 = vshrl.u32 %v1137, 7
    %v1139 = vsub.s32 %v196, %v1138
    %v1140 = vrot.slane %v1121, %v1139
    %v1141 = vlaneseq
    %v1142 = vshrl.u32 %v1141, 7
    %v1143 = vsub.s32 %v196, %v1142
    %v1144 = vrot.slane %v1124, %v1143
    %v1145 = vlaneseq
    %v1146 = vshrl.u32 %v1145, 7
    %v1147 = vsub.s32 %v196, %v1146
    %v1148 = vrot.slane %v1127, %v1147
    %v1149 = vlaneseq
    %v1150 = vshrl.u32 %v1149, 7
    %v1151 = vsub.s32 %v196, %v1150
    %v1152 = vrot.slane %v1130, %v1151
    %v1153 = vlaneseq
    %v1154 = vshrl.u32 %v1153, 7
    %v1155 = vsub.s32 %v196, %v1154
    %v1156 = vrot.slane %v1133, %v1155
    %v1157 = vlaneseq
    %v1158 = vshrl.u32 %v1157, 7
    %v1159 = vsub.s32 %v196, %v1158
    %v1160 = vrot.slane %v1136, %v1159
    %v1161 = vsel %vm808, %v1144, %v1140
    %v1162 = vsel %vm810, %v1148, %v1161
    %v1163 = vsel %vm812, %v1152, %v1162
    %v1164 = vsel %vm814, %v1156, %v1163
    %v1165 = vsel %vm816, %v1160, %v1164
    %v1167 = vsel %vm205, %v1165, -inf
    %1168 = vmax.xlane.f32.xlu0 %v1167
    %v1169 = vpop.xlane.xlu0 %1168
    %v1171 = vlaneseq
    %v1172 = vshrl.u32 %v1171, 7
    %v1173 = vsub.s32 0, %v1172
    %v1174 = vrot.slane %v1169, %v1173
    %v1175 = vlaneseq
    %v1176 = vshrl.u32 %v1175, 7
    %v1177 = vsub.s32 1, %v1176
    %v1178 = vrot.slane %v1169, %v1177
    %v1179 = vlaneseq
    %v1180 = vshrl.u32 %v1179, 7
    %v1181 = vsub.s32 2, %v1180
    %v1182 = vrot.slane %v1169, %v1181
    %v1183 = vlaneseq
    %v1184 = vshrl.u32 %v1183, 7
    %v1185 = vsub.s32 3, %v1184
    %v1186 = vrot.slane %v1169, %v1185
    %v1187 = vlaneseq
    %v1188 = vshrl.u32 %v1187, 7
    %v1189 = vsub.s32 4, %v1188
    %v1190 = vrot.slane %v1169, %v1189
    %v1191 = vlaneseq
    %v1192 = vshrl.u32 %v1191, 7
    %v1193 = vsub.s32 5, %v1192
    %v1194 = vrot.slane %v1169, %v1193
    %v1201 = vsub.f32 %v1107, %v1174
    %v1202 = vsub.f32 %v1108, %v1178
    %v1203 = vsub.f32 %v1109, %v1182
    %v1204 = vsub.f32 %v1110, %v1186
    %v1205 = vsub.f32 %v1111, %v1190
    %v1206 = vsub.f32 %v1112, %v1194
    %v1207 = vmul.f32 %v1201, 1.442695
    %v1208 = vpow.pop %v1207
    %v1209 = vmul.f32 %v1202, 1.442695
    %v1210 = vpow.pop %v1209
    %v1211 = vmul.f32 %v1203, 1.442695
    %v1212 = vpow.pop %v1211
    %v1213 = vmul.f32 %v1204, 1.442695
    %v1214 = vpow.pop %v1213
    %v1215 = vmul.f32 %v1205, 1.442695
    %v1216 = vpow.pop %v1215
    %v1217 = vmul.f32 %v1206, 1.442695
    %v1218 = vpow.pop %v1217
    %1225 = vset.pattern.permute.xlu0 0
    %1226 = vperm.xlu0 %1225, %v1208
    %v1227 = vpop.permute.xlu0 %1226
    %1228 = vset.pattern.permute.xlu0 0
    %1229 = vperm.xlu0 %1228, %v1210
    %v1230 = vpop.permute.xlu0 %1229
    %1231 = vset.pattern.permute.xlu0 0
    %1232 = vperm.xlu0 %1231, %v1212
    %v1233 = vpop.permute.xlu0 %1232
    %1234 = vset.pattern.permute.xlu0 0
    %1235 = vperm.xlu0 %1234, %v1214
    %v1236 = vpop.permute.xlu0 %1235
    %1237 = vset.pattern.permute.xlu0 0
    %1238 = vperm.xlu0 %1237, %v1216
    %v1239 = vpop.permute.xlu0 %1238
    %1240 = vset.pattern.permute.xlu0 0
    %1241 = vperm.xlu0 %1240, %v1218
    %v1242 = vpop.permute.xlu0 %1241
    %v1243 = vlaneseq
    %v1244 = vshrl.u32 %v1243, 7
    %v1245 = vsub.s32 %v196, %v1244
    %v1246 = vrot.slane %v1227, %v1245
    %v1247 = vlaneseq
    %v1248 = vshrl.u32 %v1247, 7
    %v1249 = vsub.s32 %v196, %v1248
    %v1250 = vrot.slane %v1230, %v1249
    %v1251 = vlaneseq
    %v1252 = vshrl.u32 %v1251, 7
    %v1253 = vsub.s32 %v196, %v1252
    %v1254 = vrot.slane %v1233, %v1253
    %v1255 = vlaneseq
    %v1256 = vshrl.u32 %v1255, 7
    %v1257 = vsub.s32 %v196, %v1256
    %v1258 = vrot.slane %v1236, %v1257
    %v1259 = vlaneseq
    %v1260 = vshrl.u32 %v1259, 7
    %v1261 = vsub.s32 %v196, %v1260
    %v1262 = vrot.slane %v1239, %v1261
    %v1263 = vlaneseq
    %v1264 = vshrl.u32 %v1263, 7
    %v1265 = vsub.s32 %v196, %v1264
    %v1266 = vrot.slane %v1242, %v1265
    %v1267 = vsel %vm808, %v1250, %v1246
    %v1268 = vsel %vm810, %v1254, %v1267
    %v1269 = vsel %vm812, %v1258, %v1268
    %v1270 = vsel %vm814, %v1262, %v1269
    %v1271 = vsel %vm816, %v1266, %v1270
    %v1273 = vsel %vm205, %v1271, 0.0
    %1274 = vadd.xlane.f32.xlu0 %v1273
    %v1275 = vpop.xlane.xlu0 %1274
    %v1277 = vlaneseq
    %v1278 = vshrl.u32 %v1277, 7
    %v1279 = vsub.s32 0, %v1278
    %v1280 = vrot.slane %v1275, %v1279
    %v1281 = vlaneseq
    %v1282 = vshrl.u32 %v1281, 7
    %v1283 = vsub.s32 1, %v1282
    %v1284 = vrot.slane %v1275, %v1283
    %v1285 = vlaneseq
    %v1286 = vshrl.u32 %v1285, 7
    %v1287 = vsub.s32 2, %v1286
    %v1288 = vrot.slane %v1275, %v1287
    %v1289 = vlaneseq
    %v1290 = vshrl.u32 %v1289, 7
    %v1291 = vsub.s32 3, %v1290
    %v1292 = vrot.slane %v1275, %v1291
    %v1293 = vlaneseq
    %v1294 = vshrl.u32 %v1293, 7
    %v1295 = vsub.s32 4, %v1294
    %v1296 = vrot.slane %v1275, %v1295
    %v1297 = vlaneseq
    %v1298 = vshrl.u32 %v1297, 7
    %v1299 = vsub.s32 5, %v1298
    %v1300 = vrot.slane %v1275, %v1299
    %v1307 = vrcp.pop %v1280
    %v1308 = vmul.f32 %v1208, %v1307
    %v1309 = vrcp.pop %v1284
    %v1310 = vmul.f32 %v1210, %v1309
    %v1311 = vrcp.pop %v1288
    %v1312 = vmul.f32 %v1212, %v1311
    %v1313 = vrcp.pop %v1292
    %v1314 = vmul.f32 %v1214, %v1313
    %v1315 = vrcp.pop %v1296
    %v1316 = vmul.f32 %v1216, %v1315
    %v1317 = vrcp.pop %v1300
    %v1318 = vmul.f32 %v1218, %v1317
    %1320 = vset.pattern.permute.xlu0 0
    %1321 = vperm.xlu0 %1320, %v1308
    %v1322 = vpop.permute.xlu0 %1321
    %1325 = vset.pattern.permute.xlu0 0
    %1326 = vperm.xlu0 %1325, %v1310
    %v1327 = vpop.permute.xlu0 %1326
    %1330 = vset.pattern.permute.xlu0 0
    %1331 = vperm.xlu0 %1330, %v1312
    %v1332 = vpop.permute.xlu0 %1331
    %1335 = vset.pattern.permute.xlu0 0
    %1336 = vperm.xlu0 %1335, %v1314
    %v1337 = vpop.permute.xlu0 %1336
    %1340 = vset.pattern.permute.xlu0 0
    %1341 = vperm.xlu0 %1340, %v1316
    %v1342 = vpop.permute.xlu0 %1341
    %1345 = vset.pattern.permute.xlu0 0
    %1346 = vperm.xlu0 %1345, %v1318
    %v1347 = vpop.permute.xlu0 %1346
    %v1349 = vmul.f32 %v1322, %v478
    %v1350 = vmul.f32 %v1327, %v479
    %v1351 = vmul.f32 %v1332, %v480
    %v1352 = vmul.f32 %v1337, %v481
    %v1353 = vmul.f32 %v1342, %v482
    %v1354 = vmul.f32 %v1347, %v483
    %vm1355 = vcmask 650816
    %v1356 = vsel %vm1355, %v1349, 0.0
    %v1357 = vrot.slane %v1356, 4
    %v1358 = vadd.f32 %v1356, %v1357
    %v1359 = vrot.slane %v1358, 2
    %v1360 = vadd.f32 %v1358, %v1359
    %v1361 = vrot.slane %v1360, 1
    %v1362 = vadd.f32 %v1360, %v1361
    %v1363 = vsel %vm1355, %v1350, 0.0
    %v1364 = vrot.slane %v1363, 4
    %v1365 = vadd.f32 %v1363, %v1364
    %v1366 = vrot.slane %v1365, 2
    %v1367 = vadd.f32 %v1365, %v1366
    %v1368 = vrot.slane %v1367, 1
    %v1369 = vadd.f32 %v1367, %v1368
    %v1370 = vsel %vm1355, %v1351, 0.0
    %v1371 = vrot.slane %v1370, 4
    %v1372 = vadd.f32 %v1370, %v1371
    %v1373 = vrot.slane %v1372, 2
    %v1374 = vadd.f32 %v1372, %v1373
    %v1375 = vrot.slane %v1374, 1
    %v1376 = vadd.f32 %v1374, %v1375
    %v1377 = vsel %vm1355, %v1352, 0.0
    %v1378 = vrot.slane %v1377, 4
    %v1379 = vadd.f32 %v1377, %v1378
    %v1380 = vrot.slane %v1379, 2
    %v1381 = vadd.f32 %v1379, %v1380
    %v1382 = vrot.slane %v1381, 1
    %v1383 = vadd.f32 %v1381, %v1382
    %v1384 = vsel %vm1355, %v1353, 0.0
    %v1385 = vrot.slane %v1384, 4
    %v1386 = vadd.f32 %v1384, %v1385
    %v1387 = vrot.slane %v1386, 2
    %v1388 = vadd.f32 %v1386, %v1387
    %v1389 = vrot.slane %v1388, 1
    %v1390 = vadd.f32 %v1388, %v1389
    %v1391 = vsel %vm1355, %v1354, 0.0
    %v1392 = vrot.slane %v1391, 4
    %v1393 = vadd.f32 %v1391, %v1392
    %v1394 = vrot.slane %v1393, 2
    %v1395 = vadd.f32 %v1393, %v1394
    %v1396 = vrot.slane %v1395, 1
    %v1397 = vadd.f32 %v1395, %v1396
    %1398 = vrot.lane.b32.xlu0 %v665, 112
    %v1399 = vpop.permute.xlu0 %1398
    %1400 = vrot.lane.b32.xlu0 %v666, 112
    %v1401 = vpop.permute.xlu0 %1400
    %1402 = vrot.lane.b32.xlu0 %v667, 112
    %v1403 = vpop.permute.xlu0 %1402
    %1404 = vrot.lane.b32.xlu0 %v668, 112
    %v1405 = vpop.permute.xlu0 %1404
    %1406 = vrot.lane.b32.xlu0 %v669, 112
    %v1407 = vpop.permute.xlu0 %1406
    %1408 = vrot.lane.b32.xlu0 %v670, 112
    %v1409 = vpop.permute.xlu0 %1408
    %v1416 = vsel %vm671, %v1399, 0.0
    %1417 = vadd.xlane.f32.xlu0 %v1416
    %v1418 = vpop.xlane.xlu0 %1417
    %v1419 = vsel %vm671, %v1401, 0.0
    %1420 = vadd.xlane.f32.xlu0 %v1419
    %v1421 = vpop.xlane.xlu0 %1420
    %v1422 = vsel %vm671, %v1403, 0.0
    %1423 = vadd.xlane.f32.xlu0 %v1422
    %v1424 = vpop.xlane.xlu0 %1423
    %v1425 = vsel %vm671, %v1405, 0.0
    %1426 = vadd.xlane.f32.xlu0 %v1425
    %v1427 = vpop.xlane.xlu0 %1426
    %v1428 = vsel %vm671, %v1407, 0.0
    %1429 = vadd.xlane.f32.xlu0 %v1428
    %v1430 = vpop.xlane.xlu0 %1429
    %v1431 = vsel %vm671, %v1409, 0.0
    %1432 = vadd.xlane.f32.xlu0 %v1431
    %v1433 = vpop.xlane.xlu0 %1432
    %v1434 = vadd.f32 %v1418, %v697
    %v1435 = vadd.f32 %v1421, %v704
    %v1436 = vadd.f32 %v1424, %v711
    %v1437 = vadd.f32 %v1427, %v718
    %v1438 = vadd.f32 %v1430, %v725
    %v1439 = vadd.f32 %v1433, %v732
    %v1440 = vlaneseq
    %v1441 = vshrl.u32 %v1440, 7
    %v1442 = vsub.s32 2, %v1441
    %v1443 = vrot.slane %v209, %v1442
    %1446 = vbcast.lane.b32.xlu0 %v1443, 256
    %v1447 = vpop.permute.xlu0 %1446
    %v1449 = vadd.f32 %v1434, %v1447
    %v1450 = vadd.f32 %v1435, %v1447
    %v1451 = vadd.f32 %v1436, %v1447
    %v1452 = vadd.f32 %v1437, %v1447
    %v1453 = vadd.f32 %v1438, %v1447
    %v1454 = vadd.f32 %v1439, %v1447
    %1461 = vset.pattern.permute.xlu0 0
    %1462 = vperm.xlu0 %1461, %v1449
    %v1463 = vpop.permute.xlu0 %1462
    %1464 = vset.pattern.permute.xlu0 0
    %1465 = vperm.xlu0 %1464, %v1450
    %v1466 = vpop.permute.xlu0 %1465
    %1467 = vset.pattern.permute.xlu0 0
    %1468 = vperm.xlu0 %1467, %v1451
    %v1469 = vpop.permute.xlu0 %1468
    %1470 = vset.pattern.permute.xlu0 0
    %1471 = vperm.xlu0 %1470, %v1452
    %v1472 = vpop.permute.xlu0 %1471
    %1473 = vset.pattern.permute.xlu0 0
    %1474 = vperm.xlu0 %1473, %v1453
    %v1475 = vpop.permute.xlu0 %1474
    %1476 = vset.pattern.permute.xlu0 0
    %1477 = vperm.xlu0 %1476, %v1454
    %v1478 = vpop.permute.xlu0 %1477
    %v1479 = vlaneseq
    %v1480 = vshrl.u32 %v1479, 7
    %v1481 = vsub.s32 %v196, %v1480
    %v1482 = vrot.slane %v1463, %v1481
    %v1483 = vlaneseq
    %v1484 = vshrl.u32 %v1483, 7
    %v1485 = vsub.s32 %v196, %v1484
    %v1486 = vrot.slane %v1466, %v1485
    %v1487 = vlaneseq
    %v1488 = vshrl.u32 %v1487, 7
    %v1489 = vsub.s32 %v196, %v1488
    %v1490 = vrot.slane %v1469, %v1489
    %v1491 = vlaneseq
    %v1492 = vshrl.u32 %v1491, 7
    %v1493 = vsub.s32 %v196, %v1492
    %v1494 = vrot.slane %v1472, %v1493
    %v1495 = vlaneseq
    %v1496 = vshrl.u32 %v1495, 7
    %v1497 = vsub.s32 %v196, %v1496
    %v1498 = vrot.slane %v1475, %v1497
    %v1499 = vlaneseq
    %v1500 = vshrl.u32 %v1499, 7
    %v1501 = vsub.s32 %v196, %v1500
    %v1502 = vrot.slane %v1478, %v1501
    %v1503 = vsel %vm808, %v1486, %v1482
    %v1504 = vsel %vm810, %v1490, %v1503
    %v1505 = vsel %vm812, %v1494, %v1504
    %v1506 = vsel %vm814, %v1498, %v1505
    %v1507 = vsel %vm816, %v1502, %v1506
    %v1509 = vsel %vm205, %v1507, -inf
    %1510 = vmax.xlane.f32.xlu0 %v1509
    %v1511 = vpop.xlane.xlu0 %1510
    %v1513 = vlaneseq
    %v1514 = vshrl.u32 %v1513, 7
    %v1515 = vsub.s32 0, %v1514
    %v1516 = vrot.slane %v1511, %v1515
    %v1517 = vlaneseq
    %v1518 = vshrl.u32 %v1517, 7
    %v1519 = vsub.s32 1, %v1518
    %v1520 = vrot.slane %v1511, %v1519
    %v1521 = vlaneseq
    %v1522 = vshrl.u32 %v1521, 7
    %v1523 = vsub.s32 2, %v1522
    %v1524 = vrot.slane %v1511, %v1523
    %v1525 = vlaneseq
    %v1526 = vshrl.u32 %v1525, 7
    %v1527 = vsub.s32 3, %v1526
    %v1528 = vrot.slane %v1511, %v1527
    %v1529 = vlaneseq
    %v1530 = vshrl.u32 %v1529, 7
    %v1531 = vsub.s32 4, %v1530
    %v1532 = vrot.slane %v1511, %v1531
    %v1533 = vlaneseq
    %v1534 = vshrl.u32 %v1533, 7
    %v1535 = vsub.s32 5, %v1534
    %v1536 = vrot.slane %v1511, %v1535
    %v1543 = vsub.f32 %v1449, %v1516
    %v1544 = vsub.f32 %v1450, %v1520
    %v1545 = vsub.f32 %v1451, %v1524
    %v1546 = vsub.f32 %v1452, %v1528
    %v1547 = vsub.f32 %v1453, %v1532
    %v1548 = vsub.f32 %v1454, %v1536
    %v1549 = vmul.f32 %v1543, 1.442695
    %v1550 = vpow.pop %v1549
    %v1551 = vmul.f32 %v1544, 1.442695
    %v1552 = vpow.pop %v1551
    %v1553 = vmul.f32 %v1545, 1.442695
    %v1554 = vpow.pop %v1553
    %v1555 = vmul.f32 %v1546, 1.442695
    %v1556 = vpow.pop %v1555
    %v1557 = vmul.f32 %v1547, 1.442695
    %v1558 = vpow.pop %v1557
    %v1559 = vmul.f32 %v1548, 1.442695
    %v1560 = vpow.pop %v1559
    %1567 = vset.pattern.permute.xlu0 0
    %1568 = vperm.xlu0 %1567, %v1550
    %v1569 = vpop.permute.xlu0 %1568
    %1570 = vset.pattern.permute.xlu0 0
    %1571 = vperm.xlu0 %1570, %v1552
    %v1572 = vpop.permute.xlu0 %1571
    %1573 = vset.pattern.permute.xlu0 0
    %1574 = vperm.xlu0 %1573, %v1554
    %v1575 = vpop.permute.xlu0 %1574
    %1576 = vset.pattern.permute.xlu0 0
    %1577 = vperm.xlu0 %1576, %v1556
    %v1578 = vpop.permute.xlu0 %1577
    %1579 = vset.pattern.permute.xlu0 0
    %1580 = vperm.xlu0 %1579, %v1558
    %v1581 = vpop.permute.xlu0 %1580
    %1582 = vset.pattern.permute.xlu0 0
    %1583 = vperm.xlu0 %1582, %v1560
    %v1584 = vpop.permute.xlu0 %1583
    %v1585 = vlaneseq
    %v1586 = vshrl.u32 %v1585, 7
    %v1587 = vsub.s32 %v196, %v1586
    %v1588 = vrot.slane %v1569, %v1587
    %v1589 = vlaneseq
    %v1590 = vshrl.u32 %v1589, 7
    %v1591 = vsub.s32 %v196, %v1590
    %v1592 = vrot.slane %v1572, %v1591
    %v1593 = vlaneseq
    %v1594 = vshrl.u32 %v1593, 7
    %v1595 = vsub.s32 %v196, %v1594
    %v1596 = vrot.slane %v1575, %v1595
    %v1597 = vlaneseq
    %v1598 = vshrl.u32 %v1597, 7
    %v1599 = vsub.s32 %v196, %v1598
    %v1600 = vrot.slane %v1578, %v1599
    %v1601 = vlaneseq
    %v1602 = vshrl.u32 %v1601, 7
    %v1603 = vsub.s32 %v196, %v1602
    %v1604 = vrot.slane %v1581, %v1603
    %v1605 = vlaneseq
    %v1606 = vshrl.u32 %v1605, 7
    %v1607 = vsub.s32 %v196, %v1606
    %v1608 = vrot.slane %v1584, %v1607
    %v1609 = vsel %vm808, %v1592, %v1588
    %v1610 = vsel %vm810, %v1596, %v1609
    %v1611 = vsel %vm812, %v1600, %v1610
    %v1612 = vsel %vm814, %v1604, %v1611
    %v1613 = vsel %vm816, %v1608, %v1612
    %v1615 = vsel %vm205, %v1613, 0.0
    %1616 = vadd.xlane.f32.xlu0 %v1615
    %v1617 = vpop.xlane.xlu0 %1616
    %v1619 = vlaneseq
    %v1620 = vshrl.u32 %v1619, 7
    %v1621 = vsub.s32 0, %v1620
    %v1622 = vrot.slane %v1617, %v1621
    %v1623 = vlaneseq
    %v1624 = vshrl.u32 %v1623, 7
    %v1625 = vsub.s32 1, %v1624
    %v1626 = vrot.slane %v1617, %v1625
    %v1627 = vlaneseq
    %v1628 = vshrl.u32 %v1627, 7
    %v1629 = vsub.s32 2, %v1628
    %v1630 = vrot.slane %v1617, %v1629
    %v1631 = vlaneseq
    %v1632 = vshrl.u32 %v1631, 7
    %v1633 = vsub.s32 3, %v1632
    %v1634 = vrot.slane %v1617, %v1633
    %v1635 = vlaneseq
    %v1636 = vshrl.u32 %v1635, 7
    %v1637 = vsub.s32 4, %v1636
    %v1638 = vrot.slane %v1617, %v1637
    %v1639 = vlaneseq
    %v1640 = vshrl.u32 %v1639, 7
    %v1641 = vsub.s32 5, %v1640
    %v1642 = vrot.slane %v1617, %v1641
    %v1649 = vrcp.pop %v1622
    %v1650 = vmul.f32 %v1550, %v1649
    %v1651 = vrcp.pop %v1626
    %v1652 = vmul.f32 %v1552, %v1651
    %v1653 = vrcp.pop %v1630
    %v1654 = vmul.f32 %v1554, %v1653
    %v1655 = vrcp.pop %v1634
    %v1656 = vmul.f32 %v1556, %v1655
    %v1657 = vrcp.pop %v1638
    %v1658 = vmul.f32 %v1558, %v1657
    %v1659 = vrcp.pop %v1642
    %v1660 = vmul.f32 %v1560, %v1659
    %1662 = vset.pattern.permute.xlu0 0
    %1663 = vperm.xlu0 %1662, %v1650
    %v1664 = vpop.permute.xlu0 %1663
    %1667 = vset.pattern.permute.xlu0 0
    %1668 = vperm.xlu0 %1667, %v1652
    %v1669 = vpop.permute.xlu0 %1668
    %1672 = vset.pattern.permute.xlu0 0
    %1673 = vperm.xlu0 %1672, %v1654
    %v1674 = vpop.permute.xlu0 %1673
    %1677 = vset.pattern.permute.xlu0 0
    %1678 = vperm.xlu0 %1677, %v1656
    %v1679 = vpop.permute.xlu0 %1678
    %1682 = vset.pattern.permute.xlu0 0
    %1683 = vperm.xlu0 %1682, %v1658
    %v1684 = vpop.permute.xlu0 %1683
    %1687 = vset.pattern.permute.xlu0 0
    %1688 = vperm.xlu0 %1687, %v1660
    %v1689 = vpop.permute.xlu0 %1688
    %v1691 = vmul.f32 %v1664, %v478
    %v1692 = vmul.f32 %v1669, %v479
    %v1693 = vmul.f32 %v1674, %v480
    %v1694 = vmul.f32 %v1679, %v481
    %v1695 = vmul.f32 %v1684, %v482
    %v1696 = vmul.f32 %v1689, %v483
    %vm1697 = vcmask 716416
    %v1698 = vsel %vm1697, %v1691, 0.0
    %v1699 = vrot.slane %v1698, 4
    %v1700 = vadd.f32 %v1698, %v1699
    %v1701 = vrot.slane %v1700, 2
    %v1702 = vadd.f32 %v1700, %v1701
    %v1703 = vrot.slane %v1702, 1
    %v1704 = vadd.f32 %v1702, %v1703
    %v1705 = vsel %vm1697, %v1692, 0.0
    %v1706 = vrot.slane %v1705, 4
    %v1707 = vadd.f32 %v1705, %v1706
    %v1708 = vrot.slane %v1707, 2
    %v1709 = vadd.f32 %v1707, %v1708
    %v1710 = vrot.slane %v1709, 1
    %v1711 = vadd.f32 %v1709, %v1710
    %v1712 = vsel %vm1697, %v1693, 0.0
    %v1713 = vrot.slane %v1712, 4
    %v1714 = vadd.f32 %v1712, %v1713
    %v1715 = vrot.slane %v1714, 2
    %v1716 = vadd.f32 %v1714, %v1715
    %v1717 = vrot.slane %v1716, 1
    %v1718 = vadd.f32 %v1716, %v1717
    %v1719 = vsel %vm1697, %v1694, 0.0
    %v1720 = vrot.slane %v1719, 4
    %v1721 = vadd.f32 %v1719, %v1720
    %v1722 = vrot.slane %v1721, 2
    %v1723 = vadd.f32 %v1721, %v1722
    %v1724 = vrot.slane %v1723, 1
    %v1725 = vadd.f32 %v1723, %v1724
    %v1726 = vsel %vm1697, %v1695, 0.0
    %v1727 = vrot.slane %v1726, 4
    %v1728 = vadd.f32 %v1726, %v1727
    %v1729 = vrot.slane %v1728, 2
    %v1730 = vadd.f32 %v1728, %v1729
    %v1731 = vrot.slane %v1730, 1
    %v1732 = vadd.f32 %v1730, %v1731
    %v1733 = vsel %vm1697, %v1696, 0.0
    %v1734 = vrot.slane %v1733, 4
    %v1735 = vadd.f32 %v1733, %v1734
    %v1736 = vrot.slane %v1735, 2
    %v1737 = vadd.f32 %v1735, %v1736
    %v1738 = vrot.slane %v1737, 1
    %v1739 = vadd.f32 %v1737, %v1738
    %1740 = vrot.lane.b32.xlu0 %v665, 104
    %v1741 = vpop.permute.xlu0 %1740
    %1742 = vrot.lane.b32.xlu0 %v666, 104
    %v1743 = vpop.permute.xlu0 %1742
    %1744 = vrot.lane.b32.xlu0 %v667, 104
    %v1745 = vpop.permute.xlu0 %1744
    %1746 = vrot.lane.b32.xlu0 %v668, 104
    %v1747 = vpop.permute.xlu0 %1746
    %1748 = vrot.lane.b32.xlu0 %v669, 104
    %v1749 = vpop.permute.xlu0 %1748
    %1750 = vrot.lane.b32.xlu0 %v670, 104
    %v1751 = vpop.permute.xlu0 %1750
    %v1758 = vsel %vm671, %v1741, 0.0
    %1759 = vadd.xlane.f32.xlu0 %v1758
    %v1760 = vpop.xlane.xlu0 %1759
    %v1761 = vsel %vm671, %v1743, 0.0
    %1762 = vadd.xlane.f32.xlu0 %v1761
    %v1763 = vpop.xlane.xlu0 %1762
    %v1764 = vsel %vm671, %v1745, 0.0
    %1765 = vadd.xlane.f32.xlu0 %v1764
    %v1766 = vpop.xlane.xlu0 %1765
    %v1767 = vsel %vm671, %v1747, 0.0
    %1768 = vadd.xlane.f32.xlu0 %v1767
    %v1769 = vpop.xlane.xlu0 %1768
    %v1770 = vsel %vm671, %v1749, 0.0
    %1771 = vadd.xlane.f32.xlu0 %v1770
    %v1772 = vpop.xlane.xlu0 %1771
    %v1773 = vsel %vm671, %v1751, 0.0
    %1774 = vadd.xlane.f32.xlu0 %v1773
    %v1775 = vpop.xlane.xlu0 %1774
    %v1776 = vadd.f32 %v1760, %v697
    %v1777 = vadd.f32 %v1763, %v704
    %v1778 = vadd.f32 %v1766, %v711
    %v1779 = vadd.f32 %v1769, %v718
    %v1780 = vadd.f32 %v1772, %v725
    %v1781 = vadd.f32 %v1775, %v732
    %v1782 = vlaneseq
    %v1783 = vshrl.u32 %v1782, 7
    %v1784 = vsub.s32 3, %v1783
    %v1785 = vrot.slane %v209, %v1784
    %1788 = vbcast.lane.b32.xlu0 %v1785, 256
    %v1789 = vpop.permute.xlu0 %1788
    %v1791 = vadd.f32 %v1776, %v1789
    %v1792 = vadd.f32 %v1777, %v1789
    %v1793 = vadd.f32 %v1778, %v1789
    %v1794 = vadd.f32 %v1779, %v1789
    %v1795 = vadd.f32 %v1780, %v1789
    %v1796 = vadd.f32 %v1781, %v1789
    %1803 = vset.pattern.permute.xlu0 0
    %1804 = vperm.xlu0 %1803, %v1791
    %v1805 = vpop.permute.xlu0 %1804
    %1806 = vset.pattern.permute.xlu0 0
    %1807 = vperm.xlu0 %1806, %v1792
    %v1808 = vpop.permute.xlu0 %1807
    %1809 = vset.pattern.permute.xlu0 0
    %1810 = vperm.xlu0 %1809, %v1793
    %v1811 = vpop.permute.xlu0 %1810
    %1812 = vset.pattern.permute.xlu0 0
    %1813 = vperm.xlu0 %1812, %v1794
    %v1814 = vpop.permute.xlu0 %1813
    %1815 = vset.pattern.permute.xlu0 0
    %1816 = vperm.xlu0 %1815, %v1795
    %v1817 = vpop.permute.xlu0 %1816
    %1818 = vset.pattern.permute.xlu0 0
    %1819 = vperm.xlu0 %1818, %v1796
    %v1820 = vpop.permute.xlu0 %1819
    %v1821 = vlaneseq
    %v1822 = vshrl.u32 %v1821, 7
    %v1823 = vsub.s32 %v196, %v1822
    %v1824 = vrot.slane %v1805, %v1823
    %v1825 = vlaneseq
    %v1826 = vshrl.u32 %v1825, 7
    %v1827 = vsub.s32 %v196, %v1826
    %v1828 = vrot.slane %v1808, %v1827
    %v1829 = vlaneseq
    %v1830 = vshrl.u32 %v1829, 7
    %v1831 = vsub.s32 %v196, %v1830
    %v1832 = vrot.slane %v1811, %v1831
    %v1833 = vlaneseq
    %v1834 = vshrl.u32 %v1833, 7
    %v1835 = vsub.s32 %v196, %v1834
    %v1836 = vrot.slane %v1814, %v1835
    %v1837 = vlaneseq
    %v1838 = vshrl.u32 %v1837, 7
    %v1839 = vsub.s32 %v196, %v1838
    %v1840 = vrot.slane %v1817, %v1839
    %v1841 = vlaneseq
    %v1842 = vshrl.u32 %v1841, 7
    %v1843 = vsub.s32 %v196, %v1842
    %v1844 = vrot.slane %v1820, %v1843
    %v1845 = vsel %vm808, %v1828, %v1824
    %v1846 = vsel %vm810, %v1832, %v1845
    %v1847 = vsel %vm812, %v1836, %v1846
    %v1848 = vsel %vm814, %v1840, %v1847
    %v1849 = vsel %vm816, %v1844, %v1848
    %v1851 = vsel %vm205, %v1849, -inf
    %1852 = vmax.xlane.f32.xlu0 %v1851
    %v1853 = vpop.xlane.xlu0 %1852
    %v1855 = vlaneseq
    %v1856 = vshrl.u32 %v1855, 7
    %v1857 = vsub.s32 0, %v1856
    %v1858 = vrot.slane %v1853, %v1857
    %v1859 = vlaneseq
    %v1860 = vshrl.u32 %v1859, 7
    %v1861 = vsub.s32 1, %v1860
    %v1862 = vrot.slane %v1853, %v1861
    %v1863 = vlaneseq
    %v1864 = vshrl.u32 %v1863, 7
    %v1865 = vsub.s32 2, %v1864
    %v1866 = vrot.slane %v1853, %v1865
    %v1867 = vlaneseq
    %v1868 = vshrl.u32 %v1867, 7
    %v1869 = vsub.s32 3, %v1868
    %v1870 = vrot.slane %v1853, %v1869
    %v1871 = vlaneseq
    %v1872 = vshrl.u32 %v1871, 7
    %v1873 = vsub.s32 4, %v1872
    %v1874 = vrot.slane %v1853, %v1873
    %v1875 = vlaneseq
    %v1876 = vshrl.u32 %v1875, 7
    %v1877 = vsub.s32 5, %v1876
    %v1878 = vrot.slane %v1853, %v1877
    %v1885 = vsub.f32 %v1791, %v1858
    %v1886 = vsub.f32 %v1792, %v1862
    %v1887 = vsub.f32 %v1793, %v1866
    %v1888 = vsub.f32 %v1794, %v1870
    %v1889 = vsub.f32 %v1795, %v1874
    %v1890 = vsub.f32 %v1796, %v1878
    %v1891 = vmul.f32 %v1885, 1.442695
    %v1892 = vpow.pop %v1891
    %v1893 = vmul.f32 %v1886, 1.442695
    %v1894 = vpow.pop %v1893
    %v1895 = vmul.f32 %v1887, 1.442695
    %v1896 = vpow.pop %v1895
    %v1897 = vmul.f32 %v1888, 1.442695
    %v1898 = vpow.pop %v1897
    %v1899 = vmul.f32 %v1889, 1.442695
    %v1900 = vpow.pop %v1899
    %v1901 = vmul.f32 %v1890, 1.442695
    %v1902 = vpow.pop %v1901
    %1909 = vset.pattern.permute.xlu0 0
    %1910 = vperm.xlu0 %1909, %v1892
    %v1911 = vpop.permute.xlu0 %1910
    %1912 = vset.pattern.permute.xlu0 0
    %1913 = vperm.xlu0 %1912, %v1894
    %v1914 = vpop.permute.xlu0 %1913
    %1915 = vset.pattern.permute.xlu0 0
    %1916 = vperm.xlu0 %1915, %v1896
    %v1917 = vpop.permute.xlu0 %1916
    %1918 = vset.pattern.permute.xlu0 0
    %1919 = vperm.xlu0 %1918, %v1898
    %v1920 = vpop.permute.xlu0 %1919
    %1921 = vset.pattern.permute.xlu0 0
    %1922 = vperm.xlu0 %1921, %v1900
    %v1923 = vpop.permute.xlu0 %1922
    %1924 = vset.pattern.permute.xlu0 0
    %1925 = vperm.xlu0 %1924, %v1902
    %v1926 = vpop.permute.xlu0 %1925
    %v1927 = vlaneseq
    %v1928 = vshrl.u32 %v1927, 7
    %v1929 = vsub.s32 %v196, %v1928
    %v1930 = vrot.slane %v1911, %v1929
    %v1931 = vlaneseq
    %v1932 = vshrl.u32 %v1931, 7
    %v1933 = vsub.s32 %v196, %v1932
    %v1934 = vrot.slane %v1914, %v1933
    %v1935 = vlaneseq
    %v1936 = vshrl.u32 %v1935, 7
    %v1937 = vsub.s32 %v196, %v1936
    %v1938 = vrot.slane %v1917, %v1937
    %v1939 = vlaneseq
    %v1940 = vshrl.u32 %v1939, 7
    %v1941 = vsub.s32 %v196, %v1940
    %v1942 = vrot.slane %v1920, %v1941
    %v1943 = vlaneseq
    %v1944 = vshrl.u32 %v1943, 7
    %v1945 = vsub.s32 %v196, %v1944
    %v1946 = vrot.slane %v1923, %v1945
    %v1947 = vlaneseq
    %v1948 = vshrl.u32 %v1947, 7
    %v1949 = vsub.s32 %v196, %v1948
    %v1950 = vrot.slane %v1926, %v1949
    %v1951 = vsel %vm808, %v1934, %v1930
    %v1952 = vsel %vm810, %v1938, %v1951
    %v1953 = vsel %vm812, %v1942, %v1952
    %v1954 = vsel %vm814, %v1946, %v1953
    %v1955 = vsel %vm816, %v1950, %v1954
    %v1957 = vsel %vm205, %v1955, 0.0
    %1958 = vadd.xlane.f32.xlu0 %v1957
    %v1959 = vpop.xlane.xlu0 %1958
    %v1961 = vlaneseq
    %v1962 = vshrl.u32 %v1961, 7
    %v1963 = vsub.s32 0, %v1962
    %v1964 = vrot.slane %v1959, %v1963
    %v1965 = vlaneseq
    %v1966 = vshrl.u32 %v1965, 7
    %v1967 = vsub.s32 1, %v1966
    %v1968 = vrot.slane %v1959, %v1967
    %v1969 = vlaneseq
    %v1970 = vshrl.u32 %v1969, 7
    %v1971 = vsub.s32 2, %v1970
    %v1972 = vrot.slane %v1959, %v1971
    %v1973 = vlaneseq
    %v1974 = vshrl.u32 %v1973, 7
    %v1975 = vsub.s32 3, %v1974
    %v1976 = vrot.slane %v1959, %v1975
    %v1977 = vlaneseq
    %v1978 = vshrl.u32 %v1977, 7
    %v1979 = vsub.s32 4, %v1978
    %v1980 = vrot.slane %v1959, %v1979
    %v1981 = vlaneseq
    %v1982 = vshrl.u32 %v1981, 7
    %v1983 = vsub.s32 5, %v1982
    %v1984 = vrot.slane %v1959, %v1983
    %v1991 = vrcp.pop %v1964
    %v1992 = vmul.f32 %v1892, %v1991
    %v1993 = vrcp.pop %v1968
    %v1994 = vmul.f32 %v1894, %v1993
    %v1995 = vrcp.pop %v1972
    %v1996 = vmul.f32 %v1896, %v1995
    %v1997 = vrcp.pop %v1976
    %v1998 = vmul.f32 %v1898, %v1997
    %v1999 = vrcp.pop %v1980
    %v2000 = vmul.f32 %v1900, %v1999
    %v2001 = vrcp.pop %v1984
    %v2002 = vmul.f32 %v1902, %v2001
    %2004 = vset.pattern.permute.xlu0 0
    %2005 = vperm.xlu0 %2004, %v1992
    %v2006 = vpop.permute.xlu0 %2005
    %2009 = vset.pattern.permute.xlu0 0
    %2010 = vperm.xlu0 %2009, %v1994
    %v2011 = vpop.permute.xlu0 %2010
    %2014 = vset.pattern.permute.xlu0 0
    %2015 = vperm.xlu0 %2014, %v1996
    %v2016 = vpop.permute.xlu0 %2015
    %2019 = vset.pattern.permute.xlu0 0
    %2020 = vperm.xlu0 %2019, %v1998
    %v2021 = vpop.permute.xlu0 %2020
    %2024 = vset.pattern.permute.xlu0 0
    %2025 = vperm.xlu0 %2024, %v2000
    %v2026 = vpop.permute.xlu0 %2025
    %2029 = vset.pattern.permute.xlu0 0
    %2030 = vperm.xlu0 %2029, %v2002
    %v2031 = vpop.permute.xlu0 %2030
    %v2033 = vmul.f32 %v2006, %v478
    %v2034 = vmul.f32 %v2011, %v479
    %v2035 = vmul.f32 %v2016, %v480
    %v2036 = vmul.f32 %v2021, %v481
    %v2037 = vmul.f32 %v2026, %v482
    %v2038 = vmul.f32 %v2031, %v483
    %vm2039 = vcmask 782016
    %v2040 = vsel %vm2039, %v2033, 0.0
    %v2041 = vrot.slane %v2040, 4
    %v2042 = vadd.f32 %v2040, %v2041
    %v2043 = vrot.slane %v2042, 2
    %v2044 = vadd.f32 %v2042, %v2043
    %v2045 = vrot.slane %v2044, 1
    %v2046 = vadd.f32 %v2044, %v2045
    %v2047 = vsel %vm2039, %v2034, 0.0
    %v2048 = vrot.slane %v2047, 4
    %v2049 = vadd.f32 %v2047, %v2048
    %v2050 = vrot.slane %v2049, 2
    %v2051 = vadd.f32 %v2049, %v2050
    %v2052 = vrot.slane %v2051, 1
    %v2053 = vadd.f32 %v2051, %v2052
    %v2054 = vsel %vm2039, %v2035, 0.0
    %v2055 = vrot.slane %v2054, 4
    %v2056 = vadd.f32 %v2054, %v2055
    %v2057 = vrot.slane %v2056, 2
    %v2058 = vadd.f32 %v2056, %v2057
    %v2059 = vrot.slane %v2058, 1
    %v2060 = vadd.f32 %v2058, %v2059
    %v2061 = vsel %vm2039, %v2036, 0.0
    %v2062 = vrot.slane %v2061, 4
    %v2063 = vadd.f32 %v2061, %v2062
    %v2064 = vrot.slane %v2063, 2
    %v2065 = vadd.f32 %v2063, %v2064
    %v2066 = vrot.slane %v2065, 1
    %v2067 = vadd.f32 %v2065, %v2066
    %v2068 = vsel %vm2039, %v2037, 0.0
    %v2069 = vrot.slane %v2068, 4
    %v2070 = vadd.f32 %v2068, %v2069
    %v2071 = vrot.slane %v2070, 2
    %v2072 = vadd.f32 %v2070, %v2071
    %v2073 = vrot.slane %v2072, 1
    %v2074 = vadd.f32 %v2072, %v2073
    %v2075 = vsel %vm2039, %v2038, 0.0
    %v2076 = vrot.slane %v2075, 4
    %v2077 = vadd.f32 %v2075, %v2076
    %v2078 = vrot.slane %v2077, 2
    %v2079 = vadd.f32 %v2077, %v2078
    %v2080 = vrot.slane %v2079, 1
    %v2081 = vadd.f32 %v2079, %v2080
    %v2088 = vsel %vm808, %v1021, %v1014
    %v2089 = vsel %vm810, %v1028, %v2088
    %v2090 = vsel %vm812, %v1035, %v2089
    %v2091 = vsel %vm814, %v1042, %v2090
    %v2092 = vsel %vm816, %v1049, %v2091
    %2093 = vrot.lane.b32.xlu0 %v2092, 64
    %v2094 = vpop.permute.xlu0 %2093
    %v2102 = vsel %vm808, %v1369, %v1362
    %v2103 = vsel %vm810, %v1376, %v2102
    %v2104 = vsel %vm812, %v1383, %v2103
    %v2105 = vsel %vm814, %v1390, %v2104
    %v2106 = vsel %vm816, %v1397, %v2105
    %2107 = vrot.lane.b32.xlu0 %v2106, 64
    %v2108 = vpop.permute.xlu0 %2107
    %v2116 = vsel %vm808, %v1711, %v1704
    %v2117 = vsel %vm810, %v1718, %v2116
    %v2118 = vsel %vm812, %v1725, %v2117
    %v2119 = vsel %vm814, %v1732, %v2118
    %v2120 = vsel %vm816, %v1739, %v2119
    %2121 = vrot.lane.b32.xlu0 %v2120, 64
    %v2122 = vpop.permute.xlu0 %2121
    %v2130 = vsel %vm808, %v2053, %v2046
    %v2131 = vsel %vm810, %v2060, %v2130
    %v2132 = vsel %vm812, %v2067, %v2131
    %v2133 = vsel %vm814, %v2074, %v2132
    %v2134 = vsel %vm816, %v2081, %v2133
    %2135 = vrot.lane.b32.xlu0 %v2134, 64
    %v2136 = vpop.permute.xlu0 %2135
    %vm2138 = vcmask 64512
    %v2139 = vsel %vm2138, %v2094, %v2108
    %vm2140 = vcmask 130048
    %v2141 = vsel %vm2140, %v2139, %v2122
    %vm2142 = vcmask 195584
    %v2143 = vsel %vm2142, %v2141, %v2136
    %v2144 = vpack.c.bf16 %v2143, %v2143
    %v2145 = vld [vmem:[%s14] sm:$0xf]
    %v2146 = vld [vmem:[%s14 + $0x4] sm:$0xf]
    %v2147 = vld [vmem:[%s14 + $0x8] sm:$0xf]
    %v2148 = vld [vmem:[%s14 + $0xc] sm:$0xf]
    %v2153 = vunpack.c.l.b16 %v2145
    %v2154 = vunpack.c.l.b16 %v2146
    %v2155 = vunpack.c.l.b16 %v2147
    %v2156 = vunpack.c.l.b16 %v2148
    %v2157 = vpack.c.b16 %v2154, %v2153
    %v2158 = vpack.c.b16 %v2156, %v2155
    %v2162 = vsel %vm245, %v2144, 0
    %2164 = vmatprep.subr.bf16.mxu0 0
    %2165 = vmatpush1.bf16.msra.mxu0 %v2157
    %2166 = vmatprep.subr.bf16.mxu0 0
    %2167 = vmatpush1.bf16.msra.mxu0 %v2158
    %2168 = vmatprep.subr.bf16.mxu0 0
    %2169 = vmatpush1.bf16.msra.mxu0 0
    %2170 = vmatprep.subr.bf16.mxu0 0
    %2171 = vmatpush1.bf16.msra.mxu0 0
    %2172 = vmatprep.subr.bf16.mxu0 0
    %2173 = vmatpush1.bf16.msra.mxu0 0
    %2174 = vmatprep.subr.bf16.mxu0 0
    %2175 = vmatpush1.bf16.msra.mxu0 0
    %2176 = vmatprep.subr.bf16.mxu0 0
    %2177 = vmatpush1.bf16.msra.mxu0 0
    %2178 = vmatprep.subr.bf16.mxu0 0
    %2179 = vmatpush1.bf16.msra.mxu0 0
    %2180 = vmatprep.subr.bf16.mxu0 0
    %2181 = vmatpush1.bf16.msra.mxu0 0
    %2182 = vmatprep.subr.bf16.mxu0 0
    %2183 = vmatpush1.bf16.msra.mxu0 0
    %2184 = vmatprep.subr.bf16.mxu0 0
    %2185 = vmatpush1.bf16.msra.mxu0 0
    %2186 = vmatprep.subr.bf16.mxu0 0
    %2187 = vmatpush1.bf16.msra.mxu0 0
    %2188 = vmatprep.subr.bf16.mxu0 0
    %2189 = vmatpush1.bf16.msra.mxu0 0
    %2190 = vmatprep.subr.bf16.mxu0 0
    %2191 = vmatpush1.bf16.msra.mxu0 0
    %2192 = vmatprep.subr.bf16.mxu0 0
    %2193 = vmatpush1.bf16.msra.mxu0 0
    %2194 = vmatprep.subr.bf16.mxu0 0
    %2195 = vmatpush1.bf16.msra.mxu0 0
    %2196 = vmatprep.mubr.bf16.mxu0 0
    %2197 = vmatmul.mubr.bf16.gmra.mrb[0].mxu0 %v2162
    %v2198 = vpop.f32.mrb[0].mxu0
    %v2199 = vadd.f32 0.0, %v2198
    %v2200 = vpop.f32.mrb[0].mxu0
    %v2201 = vpop.f32.mrb[0].mxu0
    %v2202 = vpop.f32.mrb[0].mxu0
    %2203 = vdwg.mxu0
    %v2204 = vadd.f32 %v148, %v2199
    %v2205 = vld [vmem:[%s15] sm:$0x1]
    %v2206 = vmul.f32 %v2204, %v2204
    %v2207 = vsel %vm212, %v2206, 0.0
    %2208 = vadd.xlane.f32.xlu0 %v2207
    %v2209 = vpop.xlane.xlu0 %2208
    %v2210 = vmul.f32 %v2209, %v216
    %v2211 = vadd.f32 %v2210, 1e-06
    %v2212 = vrsqrt.pop %v2211
    %v2213 = vmul.f32 %v2204, %v2212
    %v2215 = vlaneseq
    %v2216 = vshrl.u32 %v2215, 7
    %v2217 = vsub.s32 0, %v2216
    %v2218 = vrot.slane %v2205, %v2217
    %v2220 = vmul.f32 %v2213, %v2218
    %v2221 = vpack.c.bf16 %v2220, %v2220
    %v2222 = vld [vmem:[%s16] sm:$0xf]
    %v2223 = vld [vmem:[%s16 + $0x4] sm:$0xf]
    %v2224 = vld [vmem:[%s16 + $0x8] sm:$0xf]
    %v2225 = vld [vmem:[%s16 + $0xc] sm:$0xf]
    %v2230 = vunpack.c.l.b16 %v2222
    %v2231 = vunpack.c.l.b16 %v2223
    %v2232 = vunpack.c.l.b16 %v2224
    %v2233 = vunpack.c.l.b16 %v2225
    %v2234 = vpack.c.b16 %v2231, %v2230
    %v2235 = vpack.c.b16 %v2233, %v2232
    %v2239 = vsel %vm245, %v2221, 0
    %2241 = vmatprep.subr.bf16.mxu0 0
    %2242 = vmatpush1.bf16.msra.mxu0 %v2234
    %2243 = vmatprep.subr.bf16.mxu0 0
    %2244 = vmatpush1.bf16.msra.mxu0 %v2235
    %2245 = vmatprep.subr.bf16.mxu0 0
    %2246 = vmatpush1.bf16.msra.mxu0 0
    %2247 = vmatprep.subr.bf16.mxu0 0
    %2248 = vmatpush1.bf16.msra.mxu0 0
    %2249 = vmatprep.subr.bf16.mxu0 0
    %2250 = vmatpush1.bf16.msra.mxu0 0
    %2251 = vmatprep.subr.bf16.mxu0 0
    %2252 = vmatpush1.bf16.msra.mxu0 0
    %2253 = vmatprep.subr.bf16.mxu0 0
    %2254 = vmatpush1.bf16.msra.mxu0 0
    %2255 = vmatprep.subr.bf16.mxu0 0
    %2256 = vmatpush1.bf16.msra.mxu0 0
    %2257 = vmatprep.subr.bf16.mxu0 0
    %2258 = vmatpush1.bf16.msra.mxu0 0
    %2259 = vmatprep.subr.bf16.mxu0 0
    %2260 = vmatpush1.bf16.msra.mxu0 0
    %2261 = vmatprep.subr.bf16.mxu0 0
    %2262 = vmatpush1.bf16.msra.mxu0 0
    %2263 = vmatprep.subr.bf16.mxu0 0
    %2264 = vmatpush1.bf16.msra.mxu0 0
    %2265 = vmatprep.subr.bf16.mxu0 0
    %2266 = vmatpush1.bf16.msra.mxu0 0
    %2267 = vmatprep.subr.bf16.mxu0 0
    %2268 = vmatpush1.bf16.msra.mxu0 0
    %2269 = vmatprep.subr.bf16.mxu0 0
    %2270 = vmatpush1.bf16.msra.mxu0 0
    %2271 = vmatprep.subr.bf16.mxu0 0
    %2272 = vmatpush1.bf16.msra.mxu0 0
    %2273 = vmatprep.mubr.bf16.mxu0 0
    %2274 = vmatmul.mubr.bf16.gmra.mrb[0].mxu0 %v2239
    %v2275 = vpop.f32.mrb[0].mxu0
    %v2276 = vadd.f32 0.0, %v2275
    %v2277 = vpop.f32.mrb[0].mxu0
    %v2278 = vpop.f32.mrb[0].mxu0
    %v2279 = vpop.f32.mrb[0].mxu0
    %2280 = vdwg.mxu0
    %v2281 = vld [vmem:[%s8] sm:$0xf]
    %v2282 = vld [vmem:[%s8 + $0x4] sm:$0xf]
    %v2283 = vunpack.c.l.bf16 %v2281
    %v2284 = vunpack.c.l.bf16 %v2282
    %v2285 = vld [vmem:[%s9] sm:$0xf]
    %v2286 = vld [vmem:[%s9 + $0x4] sm:$0xf]
    %v2287 = vunpack.c.l.bf16 %v2285
    %v2288 = vunpack.c.l.bf16 %v2286
    %v2289 = vld [vmem:[%s10] sm:$0x3]
    %v2292 = vunpack.c.l.s4 1966171168
    %v2293 = vunpack.c.0.s8 %v2292
    %v2294 = vlaneseq
    %v2295 = vshrl.u32 %v2294, 7
    %v2296 = vsub.s32 %v2293, %v2295
    %v2297 = vrot.slane %v2276, %v2296
    %v2298 = vcombine.high %v2297, %v2297
    %v2300 = vunpack.c.l.s4 1966171168
    %v2301 = vunpack.c.0.s8 %v2300
    %v2302 = vlaneseq
    %v2303 = vshrl.u32 %v2302, 7
    %v2304 = vsub.s32 %v2301, %v2303
    %v2305 = vrot.slane %v2297, %v2304
    %v2307 = vunpack.c.l.s4 1966171168
    %v2308 = vunpack.c.0.s8 %v2307
    %v2309 = vlaneseq
    %v2310 = vshrl.u32 %v2309, 7
    %v2311 = vsub.s32 %v2308, %v2310
    %v2312 = vrot.slane %v2298, %v2311
    %v2313 = vcombine.high %v2305, %v2305
    %v2314 = vlaneseq
    %v2315 = vshrl.u32 %v2314, 7
    %v2316 = vsub.s32 0, %v2315
    %v2317 = vrot.slane %v2305, %v2316
    %v2318 = vlaneseq
    %v2319 = vshrl.u32 %v2318, 7
    %v2320 = vsub.s32 0, %v2319
    %v2321 = vrot.slane %v2312, %v2320
    %v2322 = vlaneseq
    %v2323 = vshrl.u32 %v2322, 7
    %v2324 = vsub.s32 0, %v2323
    %v2325 = vrot.slane %v2313, %v2324
    %v2329 = vmul.f32 %v2317, %v2283
    %v2330 = vmul.f32 %v2321, %v2283
    %v2331 = vmul.f32 %v2325, %v2283
    %v2332 = vsel %vm2138, %v2329, 0.0
    %2333 = vadd.xlane.f32.xlu0 %v2332
    %v2334 = vpop.xlane.xlu0 %2333
    %v2335 = vsel %vm2138, %v2330, 0.0
    %2336 = vadd.xlane.f32.xlu0 %v2335
    %v2337 = vpop.xlane.xlu0 %2336
    %v2338 = vsel %vm2138, %v2331, 0.0
    %2339 = vadd.xlane.f32.xlu0 %v2338
    %v2340 = vpop.xlane.xlu0 %2339
    %v2341 = vlaneseq
    %v2342 = vshrl.u32 %v2341, 7
    %v2343 = vsub.s32 0, %v2342
    %v2344 = vrot.slane %v2289, %v2343
    %2347 = vbcast.lane.b32.xlu0 %v2344, 256
    %v2348 = vpop.permute.xlu0 %2347
    %v2350 = vadd.f32 %v2334, %v2348
    %v2351 = vadd.f32 %v2337, %v2348
    %v2352 = vadd.f32 %v2340, %v2348
    %2356 = vset.pattern.permute.xlu0 0
    %2357 = vperm.xlu0 %2356, %v2350
    %v2358 = vpop.permute.xlu0 %2357
    %2359 = vset.pattern.permute.xlu0 0
    %2360 = vperm.xlu0 %2359, %v2351
    %v2361 = vpop.permute.xlu0 %2360
    %2362 = vset.pattern.permute.xlu0 0
    %2363 = vperm.xlu0 %2362, %v2352
    %v2364 = vpop.permute.xlu0 %2363
    %v2365 = vlaneseq
    %v2366 = vshrl.u32 %v2365, 7
    %v2367 = vsub.s32 %v196, %v2366
    %v2368 = vrot.slane %v2358, %v2367
    %v2369 = vlaneseq
    %v2370 = vshrl.u32 %v2369, 7
    %v2371 = vsub.s32 %v196, %v2370
    %v2372 = vrot.slane %v2361, %v2371
    %v2373 = vlaneseq
    %v2374 = vshrl.u32 %v2373, 7
    %v2375 = vsub.s32 %v196, %v2374
    %v2376 = vrot.slane %v2364, %v2375
    %v2377 = vsel %vm808, %v2372, %v2368
    %v2378 = vsel %vm810, %v2376, %v2377
    %vm2380 = vcmask 59392
    %v2381 = vsel %vm2380, %v2378, -inf
    %2382 = vmax.xlane.f32.xlu0 %v2381
    %v2383 = vpop.xlane.xlu0 %2382
    %v2385 = vlaneseq
    %v2386 = vshrl.u32 %v2385, 7
    %v2387 = vsub.s32 0, %v2386
    %v2388 = vrot.slane %v2383, %v2387
    %v2389 = vlaneseq
    %v2390 = vshrl.u32 %v2389, 7
    %v2391 = vsub.s32 1, %v2390
    %v2392 = vrot.slane %v2383, %v2391
    %v2393 = vlaneseq
    %v2394 = vshrl.u32 %v2393, 7
    %v2395 = vsub.s32 2, %v2394
    %v2396 = vrot.slane %v2383, %v2395
    %v2400 = vsub.f32 %v2350, %v2388
    %v2401 = vsub.f32 %v2351, %v2392
    %v2402 = vsub.f32 %v2352, %v2396
    %v2403 = vmul.f32 %v2400, 1.442695
    %v2404 = vpow.pop %v2403
    %v2405 = vmul.f32 %v2401, 1.442695
    %v2406 = vpow.pop %v2405
    %v2407 = vmul.f32 %v2402, 1.442695
    %v2408 = vpow.pop %v2407
    %2412 = vset.pattern.permute.xlu0 0
    %2413 = vperm.xlu0 %2412, %v2404
    %v2414 = vpop.permute.xlu0 %2413
    %2415 = vset.pattern.permute.xlu0 0
    %2416 = vperm.xlu0 %2415, %v2406
    %v2417 = vpop.permute.xlu0 %2416
    %2418 = vset.pattern.permute.xlu0 0
    %2419 = vperm.xlu0 %2418, %v2408
    %v2420 = vpop.permute.xlu0 %2419
    %v2421 = vlaneseq
    %v2422 = vshrl.u32 %v2421, 7
    %v2423 = vsub.s32 %v196, %v2422
    %v2424 = vrot.slane %v2414, %v2423
    %v2425 = vlaneseq
    %v2426 = vshrl.u32 %v2425, 7
    %v2427 = vsub.s32 %v196, %v2426
    %v2428 = vrot.slane %v2417, %v2427
    %v2429 = vlaneseq
    %v2430 = vshrl.u32 %v2429, 7
    %v2431 = vsub.s32 %v196, %v2430
    %v2432 = vrot.slane %v2420, %v2431
    %v2433 = vsel %vm808, %v2428, %v2424
    %v2434 = vsel %vm810, %v2432, %v2433
    %v2436 = vsel %vm2380, %v2434, 0.0
    %2437 = vadd.xlane.f32.xlu0 %v2436
    %v2438 = vpop.xlane.xlu0 %2437
    %v2440 = vlaneseq
    %v2441 = vshrl.u32 %v2440, 7
    %v2442 = vsub.s32 0, %v2441
    %v2443 = vrot.slane %v2438, %v2442
    %v2444 = vlaneseq
    %v2445 = vshrl.u32 %v2444, 7
    %v2446 = vsub.s32 1, %v2445
    %v2447 = vrot.slane %v2438, %v2446
    %v2448 = vlaneseq
    %v2449 = vshrl.u32 %v2448, 7
    %v2450 = vsub.s32 2, %v2449
    %v2451 = vrot.slane %v2438, %v2450
    %v2455 = vrcp.pop %v2443
    %v2456 = vmul.f32 %v2404, %v2455
    %v2457 = vrcp.pop %v2447
    %v2458 = vmul.f32 %v2406, %v2457
    %v2459 = vrcp.pop %v2451
    %v2460 = vmul.f32 %v2408, %v2459
    %2462 = vset.pattern.permute.xlu0 0
    %2463 = vperm.xlu0 %2462, %v2456
    %v2464 = vpop.permute.xlu0 %2463
    %2467 = vset.pattern.permute.xlu0 0
    %2468 = vperm.xlu0 %2467, %v2458
    %v2469 = vpop.permute.xlu0 %2468
    %2472 = vset.pattern.permute.xlu0 0
    %2473 = vperm.xlu0 %2472, %v2460
    %v2474 = vpop.permute.xlu0 %2473
    %v2476 = vmul.f32 %v2464, %v2287
    %v2477 = vmul.f32 %v2469, %v2287
    %v2478 = vmul.f32 %v2474, %v2287
    %v2479 = vsel %vm2138, %v2476, 0.0
    %v2480 = vrot.slane %v2479, 4
    %v2481 = vadd.f32 %v2479, %v2480
    %v2482 = vrot.slane %v2481, 2
    %v2483 = vadd.f32 %v2481, %v2482
    %v2484 = vrot.slane %v2483, 1
    %v2485 = vadd.f32 %v2483, %v2484
    %v2486 = vsel %vm2138, %v2477, 0.0
    %v2487 = vrot.slane %v2486, 4
    %v2488 = vadd.f32 %v2486, %v2487
    %v2489 = vrot.slane %v2488, 2
    %v2490 = vadd.f32 %v2488, %v2489
    %v2491 = vrot.slane %v2490, 1
    %v2492 = vadd.f32 %v2490, %v2491
    %v2493 = vsel %vm2138, %v2478, 0.0
    %v2494 = vrot.slane %v2493, 4
    %v2495 = vadd.f32 %v2493, %v2494
    %v2496 = vrot.slane %v2495, 2
    %v2497 = vadd.f32 %v2495, %v2496
    %v2498 = vrot.slane %v2497, 1
    %v2499 = vadd.f32 %v2497, %v2498
    %2503 = vrot.lane.b32.xlu0 %v2329, 120
    %v2504 = vpop.permute.xlu0 %2503
    %2505 = vrot.lane.b32.xlu0 %v2330, 120
    %v2506 = vpop.permute.xlu0 %2505
    %2507 = vrot.lane.b32.xlu0 %v2331, 120
    %v2508 = vpop.permute.xlu0 %2507
    %v2512 = vsel %vm2138, %v2504, 0.0
    %2513 = vadd.xlane.f32.xlu0 %v2512
    %v2514 = vpop.xlane.xlu0 %2513
    %v2515 = vsel %vm2138, %v2506, 0.0
    %2516 = vadd.xlane.f32.xlu0 %v2515
    %v2517 = vpop.xlane.xlu0 %2516
    %v2518 = vsel %vm2138, %v2508, 0.0
    %2519 = vadd.xlane.f32.xlu0 %v2518
    %v2520 = vpop.xlane.xlu0 %2519
    %v2521 = vadd.f32 %v2514, %v2348
    %v2522 = vadd.f32 %v2517, %v2348
    %v2523 = vadd.f32 %v2520, %v2348
    %2527 = vset.pattern.permute.xlu0 0
    %2528 = vperm.xlu0 %2527, %v2521
    %v2529 = vpop.permute.xlu0 %2528
    %2530 = vset.pattern.permute.xlu0 0
    %2531 = vperm.xlu0 %2530, %v2522
    %v2532 = vpop.permute.xlu0 %2531
    %2533 = vset.pattern.permute.xlu0 0
    %2534 = vperm.xlu0 %2533, %v2523
    %v2535 = vpop.permute.xlu0 %2534
    %v2536 = vlaneseq
    %v2537 = vshrl.u32 %v2536, 7
    %v2538 = vsub.s32 %v196, %v2537
    %v2539 = vrot.slane %v2529, %v2538
    %v2540 = vlaneseq
    %v2541 = vshrl.u32 %v2540, 7
    %v2542 = vsub.s32 %v196, %v2541
    %v2543 = vrot.slane %v2532, %v2542
    %v2544 = vlaneseq
    %v2545 = vshrl.u32 %v2544, 7
    %v2546 = vsub.s32 %v196, %v2545
    %v2547 = vrot.slane %v2535, %v2546
    %v2548 = vsel %vm808, %v2543, %v2539
    %v2549 = vsel %vm810, %v2547, %v2548
    %v2551 = vsel %vm2380, %v2549, -inf
    %2552 = vmax.xlane.f32.xlu0 %v2551
    %v2553 = vpop.xlane.xlu0 %2552
    %v2555 = vlaneseq
    %v2556 = vshrl.u32 %v2555, 7
    %v2557 = vsub.s32 0, %v2556
    %v2558 = vrot.slane %v2553, %v2557
    %v2559 = vlaneseq
    %v2560 = vshrl.u32 %v2559, 7
    %v2561 = vsub.s32 1, %v2560
    %v2562 = vrot.slane %v2553, %v2561
    %v2563 = vlaneseq
    %v2564 = vshrl.u32 %v2563, 7
    %v2565 = vsub.s32 2, %v2564
    %v2566 = vrot.slane %v2553, %v2565
    %v2570 = vsub.f32 %v2521, %v2558
    %v2571 = vsub.f32 %v2522, %v2562
    %v2572 = vsub.f32 %v2523, %v2566
    %v2573 = vmul.f32 %v2570, 1.442695
    %v2574 = vpow.pop %v2573
    %v2575 = vmul.f32 %v2571, 1.442695
    %v2576 = vpow.pop %v2575
    %v2577 = vmul.f32 %v2572, 1.442695
    %v2578 = vpow.pop %v2577
    %2582 = vset.pattern.permute.xlu0 0
    %2583 = vperm.xlu0 %2582, %v2574
    %v2584 = vpop.permute.xlu0 %2583
    %2585 = vset.pattern.permute.xlu0 0
    %2586 = vperm.xlu0 %2585, %v2576
    %v2587 = vpop.permute.xlu0 %2586
    %2588 = vset.pattern.permute.xlu0 0
    %2589 = vperm.xlu0 %2588, %v2578
    %v2590 = vpop.permute.xlu0 %2589
    %v2591 = vlaneseq
    %v2592 = vshrl.u32 %v2591, 7
    %v2593 = vsub.s32 %v196, %v2592
    %v2594 = vrot.slane %v2584, %v2593
    %v2595 = vlaneseq
    %v2596 = vshrl.u32 %v2595, 7
    %v2597 = vsub.s32 %v196, %v2596
    %v2598 = vrot.slane %v2587, %v2597
    %v2599 = vlaneseq
    %v2600 = vshrl.u32 %v2599, 7
    %v2601 = vsub.s32 %v196, %v2600
    %v2602 = vrot.slane %v2590, %v2601
    %v2603 = vsel %vm808, %v2598, %v2594
    %v2604 = vsel %vm810, %v2602, %v2603
    %v2606 = vsel %vm2380, %v2604, 0.0
    %2607 = vadd.xlane.f32.xlu0 %v2606
    %v2608 = vpop.xlane.xlu0 %2607
    %v2610 = vlaneseq
    %v2611 = vshrl.u32 %v2610, 7
    %v2612 = vsub.s32 0, %v2611
    %v2613 = vrot.slane %v2608, %v2612
    %v2614 = vlaneseq
    %v2615 = vshrl.u32 %v2614, 7
    %v2616 = vsub.s32 1, %v2615
    %v2617 = vrot.slane %v2608, %v2616
    %v2618 = vlaneseq
    %v2619 = vshrl.u32 %v2618, 7
    %v2620 = vsub.s32 2, %v2619
    %v2621 = vrot.slane %v2608, %v2620
    %v2625 = vrcp.pop %v2613
    %v2626 = vmul.f32 %v2574, %v2625
    %v2627 = vrcp.pop %v2617
    %v2628 = vmul.f32 %v2576, %v2627
    %v2629 = vrcp.pop %v2621
    %v2630 = vmul.f32 %v2578, %v2629
    %2632 = vset.pattern.permute.xlu0 0
    %2633 = vperm.xlu0 %2632, %v2626
    %v2634 = vpop.permute.xlu0 %2633
    %2637 = vset.pattern.permute.xlu0 0
    %2638 = vperm.xlu0 %2637, %v2628
    %v2639 = vpop.permute.xlu0 %2638
    %2642 = vset.pattern.permute.xlu0 0
    %2643 = vperm.xlu0 %2642, %v2630
    %v2644 = vpop.permute.xlu0 %2643
    %v2646 = vmul.f32 %v2634, %v2287
    %v2647 = vmul.f32 %v2639, %v2287
    %v2648 = vmul.f32 %v2644, %v2287
    %vm2649 = vcmask 130112
    %v2650 = vsel %vm2649, %v2646, 0.0
    %v2651 = vrot.slane %v2650, 4
    %v2652 = vadd.f32 %v2650, %v2651
    %v2653 = vrot.slane %v2652, 2
    %v2654 = vadd.f32 %v2652, %v2653
    %v2655 = vrot.slane %v2654, 1
    %v2656 = vadd.f32 %v2654, %v2655
    %v2657 = vsel %vm2649, %v2647, 0.0
    %v2658 = vrot.slane %v2657, 4
    %v2659 = vadd.f32 %v2657, %v2658
    %v2660 = vrot.slane %v2659, 2
    %v2661 = vadd.f32 %v2659, %v2660
    %v2662 = vrot.slane %v2661, 1
    %v2663 = vadd.f32 %v2661, %v2662
    %v2664 = vsel %vm2649, %v2648, 0.0
    %v2665 = vrot.slane %v2664, 4
    %v2666 = vadd.f32 %v2664, %v2665
    %v2667 = vrot.slane %v2666, 2
    %v2668 = vadd.f32 %v2666, %v2667
    %v2669 = vrot.slane %v2668, 1
    %v2670 = vadd.f32 %v2668, %v2669
    %2671 = vrot.lane.b32.xlu0 %v2329, 112
    %v2672 = vpop.permute.xlu0 %2671
    %2673 = vrot.lane.b32.xlu0 %v2330, 112
    %v2674 = vpop.permute.xlu0 %2673
    %2675 = vrot.lane.b32.xlu0 %v2331, 112
    %v2676 = vpop.permute.xlu0 %2675
    %v2680 = vsel %vm2138, %v2672, 0.0
    %2681 = vadd.xlane.f32.xlu0 %v2680
    %v2682 = vpop.xlane.xlu0 %2681
    %v2683 = vsel %vm2138, %v2674, 0.0
    %2684 = vadd.xlane.f32.xlu0 %v2683
    %v2685 = vpop.xlane.xlu0 %2684
    %v2686 = vsel %vm2138, %v2676, 0.0
    %2687 = vadd.xlane.f32.xlu0 %v2686
    %v2688 = vpop.xlane.xlu0 %2687
    %v2689 = vadd.f32 %v2682, %v2348
    %v2690 = vadd.f32 %v2685, %v2348
    %v2691 = vadd.f32 %v2688, %v2348
    %2695 = vset.pattern.permute.xlu0 0
    %2696 = vperm.xlu0 %2695, %v2689
    %v2697 = vpop.permute.xlu0 %2696
    %2698 = vset.pattern.permute.xlu0 0
    %2699 = vperm.xlu0 %2698, %v2690
    %v2700 = vpop.permute.xlu0 %2699
    %2701 = vset.pattern.permute.xlu0 0
    %2702 = vperm.xlu0 %2701, %v2691
    %v2703 = vpop.permute.xlu0 %2702
    %v2704 = vlaneseq
    %v2705 = vshrl.u32 %v2704, 7
    %v2706 = vsub.s32 %v196, %v2705
    %v2707 = vrot.slane %v2697, %v2706
    %v2708 = vlaneseq
    %v2709 = vshrl.u32 %v2708, 7
    %v2710 = vsub.s32 %v196, %v2709
    %v2711 = vrot.slane %v2700, %v2710
    %v2712 = vlaneseq
    %v2713 = vshrl.u32 %v2712, 7
    %v2714 = vsub.s32 %v196, %v2713
    %v2715 = vrot.slane %v2703, %v2714
    %v2716 = vsel %vm808, %v2711, %v2707
    %v2717 = vsel %vm810, %v2715, %v2716
    %v2719 = vsel %vm2380, %v2717, -inf
    %2720 = vmax.xlane.f32.xlu0 %v2719
    %v2721 = vpop.xlane.xlu0 %2720
    %v2723 = vlaneseq
    %v2724 = vshrl.u32 %v2723, 7
    %v2725 = vsub.s32 0, %v2724
    %v2726 = vrot.slane %v2721, %v2725
    %v2727 = vlaneseq
    %v2728 = vshrl.u32 %v2727, 7
    %v2729 = vsub.s32 1, %v2728
    %v2730 = vrot.slane %v2721, %v2729
    %v2731 = vlaneseq
    %v2732 = vshrl.u32 %v2731, 7
    %v2733 = vsub.s32 2, %v2732
    %v2734 = vrot.slane %v2721, %v2733
    %v2738 = vsub.f32 %v2689, %v2726
    %v2739 = vsub.f32 %v2690, %v2730
    %v2740 = vsub.f32 %v2691, %v2734
    %v2741 = vmul.f32 %v2738, 1.442695
    %v2742 = vpow.pop %v2741
    %v2743 = vmul.f32 %v2739, 1.442695
    %v2744 = vpow.pop %v2743
    %v2745 = vmul.f32 %v2740, 1.442695
    %v2746 = vpow.pop %v2745
    %2750 = vset.pattern.permute.xlu0 0
    %2751 = vperm.xlu0 %2750, %v2742
    %v2752 = vpop.permute.xlu0 %2751
    %2753 = vset.pattern.permute.xlu0 0
    %2754 = vperm.xlu0 %2753, %v2744
    %v2755 = vpop.permute.xlu0 %2754
    %2756 = vset.pattern.permute.xlu0 0
    %2757 = vperm.xlu0 %2756, %v2746
    %v2758 = vpop.permute.xlu0 %2757
    %v2759 = vlaneseq
    %v2760 = vshrl.u32 %v2759, 7
    %v2761 = vsub.s32 %v196, %v2760
    %v2762 = vrot.slane %v2752, %v2761
    %v2763 = vlaneseq
    %v2764 = vshrl.u32 %v2763, 7
    %v2765 = vsub.s32 %v196, %v2764
    %v2766 = vrot.slane %v2755, %v2765
    %v2767 = vlaneseq
    %v2768 = vshrl.u32 %v2767, 7
    %v2769 = vsub.s32 %v196, %v2768
    %v2770 = vrot.slane %v2758, %v2769
    %v2771 = vsel %vm808, %v2766, %v2762
    %v2772 = vsel %vm810, %v2770, %v2771
    %v2774 = vsel %vm2380, %v2772, 0.0
    %2775 = vadd.xlane.f32.xlu0 %v2774
    %v2776 = vpop.xlane.xlu0 %2775
    %v2778 = vlaneseq
    %v2779 = vshrl.u32 %v2778, 7
    %v2780 = vsub.s32 0, %v2779
    %v2781 = vrot.slane %v2776, %v2780
    %v2782 = vlaneseq
    %v2783 = vshrl.u32 %v2782, 7
    %v2784 = vsub.s32 1, %v2783
    %v2785 = vrot.slane %v2776, %v2784
    %v2786 = vlaneseq
    %v2787 = vshrl.u32 %v2786, 7
    %v2788 = vsub.s32 2, %v2787
    %v2789 = vrot.slane %v2776, %v2788
    %v2793 = vrcp.pop %v2781
    %v2794 = vmul.f32 %v2742, %v2793
    %v2795 = vrcp.pop %v2785
    %v2796 = vmul.f32 %v2744, %v2795
    %v2797 = vrcp.pop %v2789
    %v2798 = vmul.f32 %v2746, %v2797
    %2800 = vset.pattern.permute.xlu0 0
    %2801 = vperm.xlu0 %2800, %v2794
    %v2802 = vpop.permute.xlu0 %2801
    %2805 = vset.pattern.permute.xlu0 0
    %2806 = vperm.xlu0 %2805, %v2796
    %v2807 = vpop.permute.xlu0 %2806
    %2810 = vset.pattern.permute.xlu0 0
    %2811 = vperm.xlu0 %2810, %v2798
    %v2812 = vpop.permute.xlu0 %2811
    %v2814 = vmul.f32 %v2802, %v2287
    %v2815 = vmul.f32 %v2807, %v2287
    %v2816 = vmul.f32 %v2812, %v2287
    %vm2817 = vcmask 195712
    %v2818 = vsel %vm2817, %v2814, 0.0
    %v2819 = vrot.slane %v2818, 4
    %v2820 = vadd.f32 %v2818, %v2819
    %v2821 = vrot.slane %v2820, 2
    %v2822 = vadd.f32 %v2820, %v2821
    %v2823 = vrot.slane %v2822, 1
    %v2824 = vadd.f32 %v2822, %v2823
    %v2825 = vsel %vm2817, %v2815, 0.0
    %v2826 = vrot.slane %v2825, 4
    %v2827 = vadd.f32 %v2825, %v2826
    %v2828 = vrot.slane %v2827, 2
    %v2829 = vadd.f32 %v2827, %v2828
    %v2830 = vrot.slane %v2829, 1
    %v2831 = vadd.f32 %v2829, %v2830
    %v2832 = vsel %vm2817, %v2816, 0.0
    %v2833 = vrot.slane %v2832, 4
    %v2834 = vadd.f32 %v2832, %v2833
    %v2835 = vrot.slane %v2834, 2
    %v2836 = vadd.f32 %v2834, %v2835
    %v2837 = vrot.slane %v2836, 1
    %v2838 = vadd.f32 %v2836, %v2837
    %2839 = vrot.lane.b32.xlu0 %v2329, 104
    %v2840 = vpop.permute.xlu0 %2839
    %2841 = vrot.lane.b32.xlu0 %v2330, 104
    %v2842 = vpop.permute.xlu0 %2841
    %2843 = vrot.lane.b32.xlu0 %v2331, 104
    %v2844 = vpop.permute.xlu0 %2843
    %v2848 = vsel %vm2138, %v2840, 0.0
    %2849 = vadd.xlane.f32.xlu0 %v2848
    %v2850 = vpop.xlane.xlu0 %2849
    %v2851 = vsel %vm2138, %v2842, 0.0
    %2852 = vadd.xlane.f32.xlu0 %v2851
    %v2853 = vpop.xlane.xlu0 %2852
    %v2854 = vsel %vm2138, %v2844, 0.0
    %2855 = vadd.xlane.f32.xlu0 %v2854
    %v2856 = vpop.xlane.xlu0 %2855
    %v2857 = vadd.f32 %v2850, %v2348
    %v2858 = vadd.f32 %v2853, %v2348
    %v2859 = vadd.f32 %v2856, %v2348
    %2863 = vset.pattern.permute.xlu0 0
    %2864 = vperm.xlu0 %2863, %v2857
    %v2865 = vpop.permute.xlu0 %2864
    %2866 = vset.pattern.permute.xlu0 0
    %2867 = vperm.xlu0 %2866, %v2858
    %v2868 = vpop.permute.xlu0 %2867
    %2869 = vset.pattern.permute.xlu0 0
    %2870 = vperm.xlu0 %2869, %v2859
    %v2871 = vpop.permute.xlu0 %2870
    %v2872 = vlaneseq
    %v2873 = vshrl.u32 %v2872, 7
    %v2874 = vsub.s32 %v196, %v2873
    %v2875 = vrot.slane %v2865, %v2874
    %v2876 = vlaneseq
    %v2877 = vshrl.u32 %v2876, 7
    %v2878 = vsub.s32 %v196, %v2877
    %v2879 = vrot.slane %v2868, %v2878
    %v2880 = vlaneseq
    %v2881 = vshrl.u32 %v2880, 7
    %v2882 = vsub.s32 %v196, %v2881
    %v2883 = vrot.slane %v2871, %v2882
    %v2884 = vsel %vm808, %v2879, %v2875
    %v2885 = vsel %vm810, %v2883, %v2884
    %v2887 = vsel %vm2380, %v2885, -inf
    %2888 = vmax.xlane.f32.xlu0 %v2887
    %v2889 = vpop.xlane.xlu0 %2888
    %v2891 = vlaneseq
    %v2892 = vshrl.u32 %v2891, 7
    %v2893 = vsub.s32 0, %v2892
    %v2894 = vrot.slane %v2889, %v2893
    %v2895 = vlaneseq
    %v2896 = vshrl.u32 %v2895, 7
    %v2897 = vsub.s32 1, %v2896
    %v2898 = vrot.slane %v2889, %v2897
    %v2899 = vlaneseq
    %v2900 = vshrl.u32 %v2899, 7
    %v2901 = vsub.s32 2, %v2900
    %v2902 = vrot.slane %v2889, %v2901
    %v2906 = vsub.f32 %v2857, %v2894
    %v2907 = vsub.f32 %v2858, %v2898
    %v2908 = vsub.f32 %v2859, %v2902
    %v2909 = vmul.f32 %v2906, 1.442695
    %v2910 = vpow.pop %v2909
    %v2911 = vmul.f32 %v2907, 1.442695
    %v2912 = vpow.pop %v2911
    %v2913 = vmul.f32 %v2908, 1.442695
    %v2914 = vpow.pop %v2913
    %2918 = vset.pattern.permute.xlu0 0
    %2919 = vperm.xlu0 %2918, %v2910
    %v2920 = vpop.permute.xlu0 %2919
    %2921 = vset.pattern.permute.xlu0 0
    %2922 = vperm.xlu0 %2921, %v2912
    %v2923 = vpop.permute.xlu0 %2922
    %2924 = vset.pattern.permute.xlu0 0
    %2925 = vperm.xlu0 %2924, %v2914
    %v2926 = vpop.permute.xlu0 %2925
    %v2927 = vlaneseq
    %v2928 = vshrl.u32 %v2927, 7
    %v2929 = vsub.s32 %v196, %v2928
    %v2930 = vrot.slane %v2920, %v2929
    %v2931 = vlaneseq
    %v2932 = vshrl.u32 %v2931, 7
    %v2933 = vsub.s32 %v196, %v2932
    %v2934 = vrot.slane %v2923, %v2933
    %v2935 = vlaneseq
    %v2936 = vshrl.u32 %v2935, 7
    %v2937 = vsub.s32 %v196, %v2936
    %v2938 = vrot.slane %v2926, %v2937
    %v2939 = vsel %vm808, %v2934, %v2930
    %v2940 = vsel %vm810, %v2938, %v2939
    %v2942 = vsel %vm2380, %v2940, 0.0
    %2943 = vadd.xlane.f32.xlu0 %v2942
    %v2944 = vpop.xlane.xlu0 %2943
    %v2946 = vlaneseq
    %v2947 = vshrl.u32 %v2946, 7
    %v2948 = vsub.s32 0, %v2947
    %v2949 = vrot.slane %v2944, %v2948
    %v2950 = vlaneseq
    %v2951 = vshrl.u32 %v2950, 7
    %v2952 = vsub.s32 1, %v2951
    %v2953 = vrot.slane %v2944, %v2952
    %v2954 = vlaneseq
    %v2955 = vshrl.u32 %v2954, 7
    %v2956 = vsub.s32 2, %v2955
    %v2957 = vrot.slane %v2944, %v2956
    %v2961 = vrcp.pop %v2949
    %v2962 = vmul.f32 %v2910, %v2961
    %v2963 = vrcp.pop %v2953
    %v2964 = vmul.f32 %v2912, %v2963
    %v2965 = vrcp.pop %v2957
    %v2966 = vmul.f32 %v2914, %v2965
    %2968 = vset.pattern.permute.xlu0 0
    %2969 = vperm.xlu0 %2968, %v2962
    %v2970 = vpop.permute.xlu0 %2969
    %2973 = vset.pattern.permute.xlu0 0
    %2974 = vperm.xlu0 %2973, %v2964
    %v2975 = vpop.permute.xlu0 %2974
    %2978 = vset.pattern.permute.xlu0 0
    %2979 = vperm.xlu0 %2978, %v2966
    %v2980 = vpop.permute.xlu0 %2979
    %v2982 = vmul.f32 %v2970, %v2287
    %v2983 = vmul.f32 %v2975, %v2287
    %v2984 = vmul.f32 %v2980, %v2287
    %vm2985 = vcmask 261312
    %v2986 = vsel %vm2985, %v2982, 0.0
    %v2987 = vrot.slane %v2986, 4
    %v2988 = vadd.f32 %v2986, %v2987
    %v2989 = vrot.slane %v2988, 2
    %v2990 = vadd.f32 %v2988, %v2989
    %v2991 = vrot.slane %v2990, 1
    %v2992 = vadd.f32 %v2990, %v2991
    %v2993 = vsel %vm2985, %v2983, 0.0
    %v2994 = vrot.slane %v2993, 4
    %v2995 = vadd.f32 %v2993, %v2994
    %v2996 = vrot.slane %v2995, 2
    %v2997 = vadd.f32 %v2995, %v2996
    %v2998 = vrot.slane %v2997, 1
    %v2999 = vadd.f32 %v2997, %v2998
    %v3000 = vsel %vm2985, %v2984, 0.0
    %v3001 = vrot.slane %v3000, 4
    %v3002 = vadd.f32 %v3000, %v3001
    %v3003 = vrot.slane %v3002, 2
    %v3004 = vadd.f32 %v3002, %v3003
    %v3005 = vrot.slane %v3004, 1
    %v3006 = vadd.f32 %v3004, %v3005
    %v3010 = vsel %vm808, %v2492, %v2485
    %v3011 = vsel %vm810, %v2499, %v3010
    %v3016 = vsel %vm808, %v2663, %v2656
    %v3017 = vsel %vm810, %v2670, %v3016
    %v3022 = vsel %vm808, %v2831, %v2824
    %v3023 = vsel %vm810, %v2838, %v3022
    %v3028 = vsel %vm808, %v2999, %v2992
    %v3029 = vsel %vm810, %v3006, %v3028
    %v3031 = vsel %vm2138, %v3011, %v3017
    %v3032 = vsel %vm2140, %v3031, %v3023
    %v3033 = vsel %vm2142, %v3032, %v3029
    %v3034 = vcombine.high %v2276, %v2276
    %v3036 = vunpack.c.l.s4 1966171168
    %v3037 = vunpack.c.0.s8 %v3036
    %v3038 = vlaneseq
    %v3039 = vshrl.u32 %v3038, 7
    %v3040 = vsub.s32 %v3037, %v3039
    %v3041 = vrot.slane %v3034, %v3040
    %v3042 = vcombine.high %v3041, %v3041
    %v3044 = vunpack.c.l.s4 1966171168
    %v3045 = vunpack.c.0.s8 %v3044
    %v3046 = vlaneseq
    %v3047 = vshrl.u32 %v3046, 7
    %v3048 = vsub.s32 %v3045, %v3047
    %v3049 = vrot.slane %v3041, %v3048
    %v3051 = vunpack.c.l.s4 1966171168
    %v3052 = vunpack.c.0.s8 %v3051
    %v3053 = vlaneseq
    %v3054 = vshrl.u32 %v3053, 7
    %v3055 = vsub.s32 %v3052, %v3054
    %v3056 = vrot.slane %v3042, %v3055
    %v3057 = vcombine.high %v2312, %v2312
    %v3058 = vlaneseq
    %v3059 = vshrl.u32 %v3058, 7
    %v3060 = vsub.s32 0, %v3059
    %v3061 = vrot.slane %v3057, %v3060
    %v3062 = vlaneseq
    %v3063 = vshrl.u32 %v3062, 7
    %v3064 = vsub.s32 0, %v3063
    %v3065 = vrot.slane %v3049, %v3064
    %v3066 = vlaneseq
    %v3067 = vshrl.u32 %v3066, 7
    %v3068 = vsub.s32 0, %v3067
    %v3069 = vrot.slane %v3056, %v3068
    %v3073 = vmul.f32 %v3061, %v2284
    %v3074 = vmul.f32 %v3065, %v2284
    %v3075 = vmul.f32 %v3069, %v2284
    %v3076 = vsel %vm2138, %v3073, 0.0
    %3077 = vadd.xlane.f32.xlu0 %v3076
    %v3078 = vpop.xlane.xlu0 %3077
    %v3079 = vsel %vm2138, %v3074, 0.0
    %3080 = vadd.xlane.f32.xlu0 %v3079
    %v3081 = vpop.xlane.xlu0 %3080
    %v3082 = vsel %vm2138, %v3075, 0.0
    %3083 = vadd.xlane.f32.xlu0 %v3082
    %v3084 = vpop.xlane.xlu0 %3083
    %v3085 = vlaneseq
    %v3086 = vshrl.u32 %v3085, 7
    %v3087 = vsub.s32 1, %v3086
    %v3088 = vrot.slane %v2289, %v3087
    %3091 = vbcast.lane.b32.xlu0 %v3088, 256
    %v3092 = vpop.permute.xlu0 %3091
    %v3094 = vadd.f32 %v3078, %v3092
    %v3095 = vadd.f32 %v3081, %v3092
    %v3096 = vadd.f32 %v3084, %v3092
    %3100 = vset.pattern.permute.xlu0 0
    %3101 = vperm.xlu0 %3100, %v3094
    %v3102 = vpop.permute.xlu0 %3101
    %3103 = vset.pattern.permute.xlu0 0
    %3104 = vperm.xlu0 %3103, %v3095
    %v3105 = vpop.permute.xlu0 %3104
    %3106 = vset.pattern.permute.xlu0 0
    %3107 = vperm.xlu0 %3106, %v3096
    %v3108 = vpop.permute.xlu0 %3107
    %v3109 = vlaneseq
    %v3110 = vshrl.u32 %v3109, 7
    %v3111 = vsub.s32 %v196, %v3110
    %v3112 = vrot.slane %v3102, %v3111
    %v3113 = vlaneseq
    %v3114 = vshrl.u32 %v3113, 7
    %v3115 = vsub.s32 %v196, %v3114
    %v3116 = vrot.slane %v3105, %v3115
    %v3117 = vlaneseq
    %v3118 = vshrl.u32 %v3117, 7
    %v3119 = vsub.s32 %v196, %v3118
    %v3120 = vrot.slane %v3108, %v3119
    %v3121 = vsel %vm808, %v3116, %v3112
    %v3122 = vsel %vm810, %v3120, %v3121
    %v3124 = vsel %vm2380, %v3122, -inf
    %3125 = vmax.xlane.f32.xlu0 %v3124
    %v3126 = vpop.xlane.xlu0 %3125
    %v3128 = vlaneseq
    %v3129 = vshrl.u32 %v3128, 7
    %v3130 = vsub.s32 0, %v3129
    %v3131 = vrot.slane %v3126, %v3130
    %v3132 = vlaneseq
    %v3133 = vshrl.u32 %v3132, 7
    %v3134 = vsub.s32 1, %v3133
    %v3135 = vrot.slane %v3126, %v3134
    %v3136 = vlaneseq
    %v3137 = vshrl.u32 %v3136, 7
    %v3138 = vsub.s32 2, %v3137
    %v3139 = vrot.slane %v3126, %v3138
    %v3143 = vsub.f32 %v3094, %v3131
    %v3144 = vsub.f32 %v3095, %v3135
    %v3145 = vsub.f32 %v3096, %v3139
    %v3146 = vmul.f32 %v3143, 1.442695
    %v3147 = vpow.pop %v3146
    %v3148 = vmul.f32 %v3144, 1.442695
    %v3149 = vpow.pop %v3148
    %v3150 = vmul.f32 %v3145, 1.442695
    %v3151 = vpow.pop %v3150
    %3155 = vset.pattern.permute.xlu0 0
    %3156 = vperm.xlu0 %3155, %v3147
    %v3157 = vpop.permute.xlu0 %3156
    %3158 = vset.pattern.permute.xlu0 0
    %3159 = vperm.xlu0 %3158, %v3149
    %v3160 = vpop.permute.xlu0 %3159
    %3161 = vset.pattern.permute.xlu0 0
    %3162 = vperm.xlu0 %3161, %v3151
    %v3163 = vpop.permute.xlu0 %3162
    %v3164 = vlaneseq
    %v3165 = vshrl.u32 %v3164, 7
    %v3166 = vsub.s32 %v196, %v3165
    %v3167 = vrot.slane %v3157, %v3166
    %v3168 = vlaneseq
    %v3169 = vshrl.u32 %v3168, 7
    %v3170 = vsub.s32 %v196, %v3169
    %v3171 = vrot.slane %v3160, %v3170
    %v3172 = vlaneseq
    %v3173 = vshrl.u32 %v3172, 7
    %v3174 = vsub.s32 %v196, %v3173
    %v3175 = vrot.slane %v3163, %v3174
    %v3176 = vsel %vm808, %v3171, %v3167
    %v3177 = vsel %vm810, %v3175, %v3176
    %v3179 = vsel %vm2380, %v3177, 0.0
    %3180 = vadd.xlane.f32.xlu0 %v3179
    %v3181 = vpop.xlane.xlu0 %3180
    %v3183 = vlaneseq
    %v3184 = vshrl.u32 %v3183, 7
    %v3185 = vsub.s32 0, %v3184
    %v3186 = vrot.slane %v3181, %v3185
    %v3187 = vlaneseq
    %v3188 = vshrl.u32 %v3187, 7
    %v3189 = vsub.s32 1, %v3188
    %v3190 = vrot.slane %v3181, %v3189
    %v3191 = vlaneseq
    %v3192 = vshrl.u32 %v3191, 7
    %v3193 = vsub.s32 2, %v3192
    %v3194 = vrot.slane %v3181, %v3193
    %v3198 = vrcp.pop %v3186
    %v3199 = vmul.f32 %v3147, %v3198
    %v3200 = vrcp.pop %v3190
    %v3201 = vmul.f32 %v3149, %v3200
    %v3202 = vrcp.pop %v3194
    %v3203 = vmul.f32 %v3151, %v3202
    %3205 = vset.pattern.permute.xlu0 0
    %3206 = vperm.xlu0 %3205, %v3199
    %v3207 = vpop.permute.xlu0 %3206
    %3210 = vset.pattern.permute.xlu0 0
    %3211 = vperm.xlu0 %3210, %v3201
    %v3212 = vpop.permute.xlu0 %3211
    %3215 = vset.pattern.permute.xlu0 0
    %3216 = vperm.xlu0 %3215, %v3203
    %v3217 = vpop.permute.xlu0 %3216
    %v3219 = vmul.f32 %v3207, %v2288
    %v3220 = vmul.f32 %v3212, %v2288
    %v3221 = vmul.f32 %v3217, %v2288
    %v3222 = vsel %vm2138, %v3219, 0.0
    %v3223 = vrot.slane %v3222, 4
    %v3224 = vadd.f32 %v3222, %v3223
    %v3225 = vrot.slane %v3224, 2
    %v3226 = vadd.f32 %v3224, %v3225
    %v3227 = vrot.slane %v3226, 1
    %v3228 = vadd.f32 %v3226, %v3227
    %v3229 = vsel %vm2138, %v3220, 0.0
    %v3230 = vrot.slane %v3229, 4
    %v3231 = vadd.f32 %v3229, %v3230
    %v3232 = vrot.slane %v3231, 2
    %v3233 = vadd.f32 %v3231, %v3232
    %v3234 = vrot.slane %v3233, 1
    %v3235 = vadd.f32 %v3233, %v3234
    %v3236 = vsel %vm2138, %v3221, 0.0
    %v3237 = vrot.slane %v3236, 4
    %v3238 = vadd.f32 %v3236, %v3237
    %v3239 = vrot.slane %v3238, 2
    %v3240 = vadd.f32 %v3238, %v3239
    %v3241 = vrot.slane %v3240, 1
    %v3242 = vadd.f32 %v3240, %v3241
    %3246 = vrot.lane.b32.xlu0 %v3073, 120
    %v3247 = vpop.permute.xlu0 %3246
    %3248 = vrot.lane.b32.xlu0 %v3074, 120
    %v3249 = vpop.permute.xlu0 %3248
    %3250 = vrot.lane.b32.xlu0 %v3075, 120
    %v3251 = vpop.permute.xlu0 %3250
    %v3255 = vsel %vm2138, %v3247, 0.0
    %3256 = vadd.xlane.f32.xlu0 %v3255
    %v3257 = vpop.xlane.xlu0 %3256
    %v3258 = vsel %vm2138, %v3249, 0.0
    %3259 = vadd.xlane.f32.xlu0 %v3258
    %v3260 = vpop.xlane.xlu0 %3259
    %v3261 = vsel %vm2138, %v3251, 0.0
    %3262 = vadd.xlane.f32.xlu0 %v3261
    %v3263 = vpop.xlane.xlu0 %3262
    %v3264 = vadd.f32 %v3257, %v3092
    %v3265 = vadd.f32 %v3260, %v3092
    %v3266 = vadd.f32 %v3263, %v3092
    %3270 = vset.pattern.permute.xlu0 0
    %3271 = vperm.xlu0 %3270, %v3264
    %v3272 = vpop.permute.xlu0 %3271
    %3273 = vset.pattern.permute.xlu0 0
    %3274 = vperm.xlu0 %3273, %v3265
    %v3275 = vpop.permute.xlu0 %3274
    %3276 = vset.pattern.permute.xlu0 0
    %3277 = vperm.xlu0 %3276, %v3266
    %v3278 = vpop.permute.xlu0 %3277
    %v3279 = vlaneseq
    %v3280 = vshrl.u32 %v3279, 7
    %v3281 = vsub.s32 %v196, %v3280
    %v3282 = vrot.slane %v3272, %v3281
    %v3283 = vlaneseq
    %v3284 = vshrl.u32 %v3283, 7
    %v3285 = vsub.s32 %v196, %v3284
    %v3286 = vrot.slane %v3275, %v3285
    %v3287 = vlaneseq
    %v3288 = vshrl.u32 %v3287, 7
    %v3289 = vsub.s32 %v196, %v3288
    %v3290 = vrot.slane %v3278, %v3289
    %v3291 = vsel %vm808, %v3286, %v3282
    %v3292 = vsel %vm810, %v3290, %v3291
    %v3294 = vsel %vm2380, %v3292, -inf
    %3295 = vmax.xlane.f32.xlu0 %v3294
    %v3296 = vpop.xlane.xlu0 %3295
    %v3298 = vlaneseq
    %v3299 = vshrl.u32 %v3298, 7
    %v3300 = vsub.s32 0, %v3299
    %v3301 = vrot.slane %v3296, %v3300
    %v3302 = vlaneseq
    %v3303 = vshrl.u32 %v3302, 7
    %v3304 = vsub.s32 1, %v3303
    %v3305 = vrot.slane %v3296, %v3304
    %v3306 = vlaneseq
    %v3307 = vshrl.u32 %v3306, 7
    %v3308 = vsub.s32 2, %v3307
    %v3309 = vrot.slane %v3296, %v3308
    %v3313 = vsub.f32 %v3264, %v3301
    %v3314 = vsub.f32 %v3265, %v3305
    %v3315 = vsub.f32 %v3266, %v3309
    %v3316 = vmul.f32 %v3313, 1.442695
    %v3317 = vpow.pop %v3316
    %v3318 = vmul.f32 %v3314, 1.442695
    %v3319 = vpow.pop %v3318
    %v3320 = vmul.f32 %v3315, 1.442695
    %v3321 = vpow.pop %v3320
    %3325 = vset.pattern.permute.xlu0 0
    %3326 = vperm.xlu0 %3325, %v3317
    %v3327 = vpop.permute.xlu0 %3326
    %3328 = vset.pattern.permute.xlu0 0
    %3329 = vperm.xlu0 %3328, %v3319
    %v3330 = vpop.permute.xlu0 %3329
    %3331 = vset.pattern.permute.xlu0 0
    %3332 = vperm.xlu0 %3331, %v3321
    %v3333 = vpop.permute.xlu0 %3332
    %v3334 = vlaneseq
    %v3335 = vshrl.u32 %v3334, 7
    %v3336 = vsub.s32 %v196, %v3335
    %v3337 = vrot.slane %v3327, %v3336
    %v3338 = vlaneseq
    %v3339 = vshrl.u32 %v3338, 7
    %v3340 = vsub.s32 %v196, %v3339
    %v3341 = vrot.slane %v3330, %v3340
    %v3342 = vlaneseq
    %v3343 = vshrl.u32 %v3342, 7
    %v3344 = vsub.s32 %v196, %v3343
    %v3345 = vrot.slane %v3333, %v3344
    %v3346 = vsel %vm808, %v3341, %v3337
    %v3347 = vsel %vm810, %v3345, %v3346
    %v3349 = vsel %vm2380, %v3347, 0.0
    %3350 = vadd.xlane.f32.xlu0 %v3349
    %v3351 = vpop.xlane.xlu0 %3350
    %v3353 = vlaneseq
    %v3354 = vshrl.u32 %v3353, 7
    %v3355 = vsub.s32 0, %v3354
    %v3356 = vrot.slane %v3351, %v3355
    %v3357 = vlaneseq
    %v3358 = vshrl.u32 %v3357, 7
    %v3359 = vsub.s32 1, %v3358
    %v3360 = vrot.slane %v3351, %v3359
    %v3361 = vlaneseq
    %v3362 = vshrl.u32 %v3361, 7
    %v3363 = vsub.s32 2, %v3362
    %v3364 = vrot.slane %v3351, %v3363
    %v3368 = vrcp.pop %v3356
    %v3369 = vmul.f32 %v3317, %v3368
    %v3370 = vrcp.pop %v3360
    %v3371 = vmul.f32 %v3319, %v3370
    %v3372 = vrcp.pop %v3364
    %v3373 = vmul.f32 %v3321, %v3372
    %3375 = vset.pattern.permute.xlu0 0
    %3376 = vperm.xlu0 %3375, %v3369
    %v3377 = vpop.permute.xlu0 %3376
    %3380 = vset.pattern.permute.xlu0 0
    %3381 = vperm.xlu0 %3380, %v3371
    %v3382 = vpop.permute.xlu0 %3381
    %3385 = vset.pattern.permute.xlu0 0
    %3386 = vperm.xlu0 %3385, %v3373
    %v3387 = vpop.permute.xlu0 %3386
    %v3389 = vmul.f32 %v3377, %v2288
    %v3390 = vmul.f32 %v3382, %v2288
    %v3391 = vmul.f32 %v3387, %v2288
    %v3392 = vsel %vm2649, %v3389, 0.0
    %v3393 = vrot.slane %v3392, 4
    %v3394 = vadd.f32 %v3392, %v3393
    %v3395 = vrot.slane %v3394, 2
    %v3396 = vadd.f32 %v3394, %v3395
    %v3397 = vrot.slane %v3396, 1
    %v3398 = vadd.f32 %v3396, %v3397
    %v3399 = vsel %vm2649, %v3390, 0.0
    %v3400 = vrot.slane %v3399, 4
    %v3401 = vadd.f32 %v3399, %v3400
    %v3402 = vrot.slane %v3401, 2
    %v3403 = vadd.f32 %v3401, %v3402
    %v3404 = vrot.slane %v3403, 1
    %v3405 = vadd.f32 %v3403, %v3404
    %v3406 = vsel %vm2649, %v3391, 0.0
    %v3407 = vrot.slane %v3406, 4
    %v3408 = vadd.f32 %v3406, %v3407
    %v3409 = vrot.slane %v3408, 2
    %v3410 = vadd.f32 %v3408, %v3409
    %v3411 = vrot.slane %v3410, 1
    %v3412 = vadd.f32 %v3410, %v3411
    %3413 = vrot.lane.b32.xlu0 %v3073, 112
    %v3414 = vpop.permute.xlu0 %3413
    %3415 = vrot.lane.b32.xlu0 %v3074, 112
    %v3416 = vpop.permute.xlu0 %3415
    %3417 = vrot.lane.b32.xlu0 %v3075, 112
    %v3418 = vpop.permute.xlu0 %3417
    %v3422 = vsel %vm2138, %v3414, 0.0
    %3423 = vadd.xlane.f32.xlu0 %v3422
    %v3424 = vpop.xlane.xlu0 %3423
    %v3425 = vsel %vm2138, %v3416, 0.0
    %3426 = vadd.xlane.f32.xlu0 %v3425
    %v3427 = vpop.xlane.xlu0 %3426
    %v3428 = vsel %vm2138, %v3418, 0.0
    %3429 = vadd.xlane.f32.xlu0 %v3428
    %v3430 = vpop.xlane.xlu0 %3429
    %v3431 = vadd.f32 %v3424, %v3092
    %v3432 = vadd.f32 %v3427, %v3092
    %v3433 = vadd.f32 %v3430, %v3092
    %3437 = vset.pattern.permute.xlu0 0
    %3438 = vperm.xlu0 %3437, %v3431
    %v3439 = vpop.permute.xlu0 %3438
    %3440 = vset.pattern.permute.xlu0 0
    %3441 = vperm.xlu0 %3440, %v3432
    %v3442 = vpop.permute.xlu0 %3441
    %3443 = vset.pattern.permute.xlu0 0
    %3444 = vperm.xlu0 %3443, %v3433
    %v3445 = vpop.permute.xlu0 %3444
    %v3446 = vlaneseq
    %v3447 = vshrl.u32 %v3446, 7
    %v3448 = vsub.s32 %v196, %v3447
    %v3449 = vrot.slane %v3439, %v3448
    %v3450 = vlaneseq
    %v3451 = vshrl.u32 %v3450, 7
    %v3452 = vsub.s32 %v196, %v3451
    %v3453 = vrot.slane %v3442, %v3452
    %v3454 = vlaneseq
    %v3455 = vshrl.u32 %v3454, 7
    %v3456 = vsub.s32 %v196, %v3455
    %v3457 = vrot.slane %v3445, %v3456
    %v3458 = vsel %vm808, %v3453, %v3449
    %v3459 = vsel %vm810, %v3457, %v3458
    %v3461 = vsel %vm2380, %v3459, -inf
    %3462 = vmax.xlane.f32.xlu0 %v3461
    %v3463 = vpop.xlane.xlu0 %3462
    %v3465 = vlaneseq
    %v3466 = vshrl.u32 %v3465, 7
    %v3467 = vsub.s32 0, %v3466
    %v3468 = vrot.slane %v3463, %v3467
    %v3469 = vlaneseq
    %v3470 = vshrl.u32 %v3469, 7
    %v3471 = vsub.s32 1, %v3470
    %v3472 = vrot.slane %v3463, %v3471
    %v3473 = vlaneseq
    %v3474 = vshrl.u32 %v3473, 7
    %v3475 = vsub.s32 2, %v3474
    %v3476 = vrot.slane %v3463, %v3475
    %v3480 = vsub.f32 %v3431, %v3468
    %v3481 = vsub.f32 %v3432, %v3472
    %v3482 = vsub.f32 %v3433, %v3476
    %v3483 = vmul.f32 %v3480, 1.442695
    %v3484 = vpow.pop %v3483
    %v3485 = vmul.f32 %v3481, 1.442695
    %v3486 = vpow.pop %v3485
    %v3487 = vmul.f32 %v3482, 1.442695
    %v3488 = vpow.pop %v3487
    %3492 = vset.pattern.permute.xlu0 0
    %3493 = vperm.xlu0 %3492, %v3484
    %v3494 = vpop.permute.xlu0 %3493
    %3495 = vset.pattern.permute.xlu0 0
    %3496 = vperm.xlu0 %3495, %v3486
    %v3497 = vpop.permute.xlu0 %3496
    %3498 = vset.pattern.permute.xlu0 0
    %3499 = vperm.xlu0 %3498, %v3488
    %v3500 = vpop.permute.xlu0 %3499
    %v3501 = vlaneseq
    %v3502 = vshrl.u32 %v3501, 7
    %v3503 = vsub.s32 %v196, %v3502
    %v3504 = vrot.slane %v3494, %v3503
    %v3505 = vlaneseq
    %v3506 = vshrl.u32 %v3505, 7
    %v3507 = vsub.s32 %v196, %v3506
    %v3508 = vrot.slane %v3497, %v3507
    %v3509 = vlaneseq
    %v3510 = vshrl.u32 %v3509, 7
    %v3511 = vsub.s32 %v196, %v3510
    %v3512 = vrot.slane %v3500, %v3511
    %v3513 = vsel %vm808, %v3508, %v3504
    %v3514 = vsel %vm810, %v3512, %v3513
    %v3516 = vsel %vm2380, %v3514, 0.0
    %3517 = vadd.xlane.f32.xlu0 %v3516
    %v3518 = vpop.xlane.xlu0 %3517
    %v3520 = vlaneseq
    %v3521 = vshrl.u32 %v3520, 7
    %v3522 = vsub.s32 0, %v3521
    %v3523 = vrot.slane %v3518, %v3522
    %v3524 = vlaneseq
    %v3525 = vshrl.u32 %v3524, 7
    %v3526 = vsub.s32 1, %v3525
    %v3527 = vrot.slane %v3518, %v3526
    %v3528 = vlaneseq
    %v3529 = vshrl.u32 %v3528, 7
    %v3530 = vsub.s32 2, %v3529
    %v3531 = vrot.slane %v3518, %v3530
    %v3535 = vrcp.pop %v3523
    %v3536 = vmul.f32 %v3484, %v3535
    %v3537 = vrcp.pop %v3527
    %v3538 = vmul.f32 %v3486, %v3537
    %v3539 = vrcp.pop %v3531
    %v3540 = vmul.f32 %v3488, %v3539
    %3542 = vset.pattern.permute.xlu0 0
    %3543 = vperm.xlu0 %3542, %v3536
    %v3544 = vpop.permute.xlu0 %3543
    %3547 = vset.pattern.permute.xlu0 0
    %3548 = vperm.xlu0 %3547, %v3538
    %v3549 = vpop.permute.xlu0 %3548
    %3552 = vset.pattern.permute.xlu0 0
    %3553 = vperm.xlu0 %3552, %v3540
    %v3554 = vpop.permute.xlu0 %3553
    %v3556 = vmul.f32 %v3544, %v2288
    %v3557 = vmul.f32 %v3549, %v2288
    %v3558 = vmul.f32 %v3554, %v2288
    %v3559 = vsel %vm2817, %v3556, 0.0
    %v3560 = vrot.slane %v3559, 4
    %v3561 = vadd.f32 %v3559, %v3560
    %v3562 = vrot.slane %v3561, 2
    %v3563 = vadd.f32 %v3561, %v3562
    %v3564 = vrot.slane %v3563, 1
    %v3565 = vadd.f32 %v3563, %v3564
    %v3566 = vsel %vm2817, %v3557, 0.0
    %v3567 = vrot.slane %v3566, 4
    %v3568 = vadd.f32 %v3566, %v3567
    %v3569 = vrot.slane %v3568, 2
    %v3570 = vadd.f32 %v3568, %v3569
    %v3571 = vrot.slane %v3570, 1
    %v3572 = vadd.f32 %v3570, %v3571
    %v3573 = vsel %vm2817, %v3558, 0.0
    %v3574 = vrot.slane %v3573, 4
    %v3575 = vadd.f32 %v3573, %v3574
    %v3576 = vrot.slane %v3575, 2
    %v3577 = vadd.f32 %v3575, %v3576
    %v3578 = vrot.slane %v3577, 1
    %v3579 = vadd.f32 %v3577, %v3578
    %3580 = vrot.lane.b32.xlu0 %v3073, 104
    %v3581 = vpop.permute.xlu0 %3580
    %3582 = vrot.lane.b32.xlu0 %v3074, 104
    %v3583 = vpop.permute.xlu0 %3582
    %3584 = vrot.lane.b32.xlu0 %v3075, 104
    %v3585 = vpop.permute.xlu0 %3584
    %v3589 = vsel %vm2138, %v3581, 0.0
    %3590 = vadd.xlane.f32.xlu0 %v3589
    %v3591 = vpop.xlane.xlu0 %3590
    %v3592 = vsel %vm2138, %v3583, 0.0
    %3593 = vadd.xlane.f32.xlu0 %v3592
    %v3594 = vpop.xlane.xlu0 %3593
    %v3595 = vsel %vm2138, %v3585, 0.0
    %3596 = vadd.xlane.f32.xlu0 %v3595
    %v3597 = vpop.xlane.xlu0 %3596
    %v3598 = vadd.f32 %v3591, %v3092
    %v3599 = vadd.f32 %v3594, %v3092
    %v3600 = vadd.f32 %v3597, %v3092
    %3604 = vset.pattern.permute.xlu0 0
    %3605 = vperm.xlu0 %3604, %v3598
    %v3606 = vpop.permute.xlu0 %3605
    %3607 = vset.pattern.permute.xlu0 0
    %3608 = vperm.xlu0 %3607, %v3599
    %v3609 = vpop.permute.xlu0 %3608
    %3610 = vset.pattern.permute.xlu0 0
    %3611 = vperm.xlu0 %3610, %v3600
    %v3612 = vpop.permute.xlu0 %3611
    %v3613 = vlaneseq
    %v3614 = vshrl.u32 %v3613, 7
    %v3615 = vsub.s32 %v196, %v3614
    %v3616 = vrot.slane %v3606, %v3615
    %v3617 = vlaneseq
    %v3618 = vshrl.u32 %v3617, 7
    %v3619 = vsub.s32 %v196, %v3618
    %v3620 = vrot.slane %v3609, %v3619
    %v3621 = vlaneseq
    %v3622 = vshrl.u32 %v3621, 7
    %v3623 = vsub.s32 %v196, %v3622
    %v3624 = vrot.slane %v3612, %v3623
    %v3625 = vsel %vm808, %v3620, %v3616
    %v3626 = vsel %vm810, %v3624, %v3625
    %v3628 = vsel %vm2380, %v3626, -inf
    %3629 = vmax.xlane.f32.xlu0 %v3628
    %v3630 = vpop.xlane.xlu0 %3629
    %v3632 = vlaneseq
    %v3633 = vshrl.u32 %v3632, 7
    %v3634 = vsub.s32 0, %v3633
    %v3635 = vrot.slane %v3630, %v3634
    %v3636 = vlaneseq
    %v3637 = vshrl.u32 %v3636, 7
    %v3638 = vsub.s32 1, %v3637
    %v3639 = vrot.slane %v3630, %v3638
    %v3640 = vlaneseq
    %v3641 = vshrl.u32 %v3640, 7
    %v3642 = vsub.s32 2, %v3641
    %v3643 = vrot.slane %v3630, %v3642
    %v3647 = vsub.f32 %v3598, %v3635
    %v3648 = vsub.f32 %v3599, %v3639
    %v3649 = vsub.f32 %v3600, %v3643
    %v3650 = vmul.f32 %v3647, 1.442695
    %v3651 = vpow.pop %v3650
    %v3652 = vmul.f32 %v3648, 1.442695
    %v3653 = vpow.pop %v3652
    %v3654 = vmul.f32 %v3649, 1.442695
    %v3655 = vpow.pop %v3654
    %3659 = vset.pattern.permute.xlu0 0
    %3660 = vperm.xlu0 %3659, %v3651
    %v3661 = vpop.permute.xlu0 %3660
    %3662 = vset.pattern.permute.xlu0 0
    %3663 = vperm.xlu0 %3662, %v3653
    %v3664 = vpop.permute.xlu0 %3663
    %3665 = vset.pattern.permute.xlu0 0
    %3666 = vperm.xlu0 %3665, %v3655
    %v3667 = vpop.permute.xlu0 %3666
    %v3668 = vlaneseq
    %v3669 = vshrl.u32 %v3668, 7
    %v3670 = vsub.s32 %v196, %v3669
    %v3671 = vrot.slane %v3661, %v3670
    %v3672 = vlaneseq
    %v3673 = vshrl.u32 %v3672, 7
    %v3674 = vsub.s32 %v196, %v3673
    %v3675 = vrot.slane %v3664, %v3674
    %v3676 = vlaneseq
    %v3677 = vshrl.u32 %v3676, 7
    %v3678 = vsub.s32 %v196, %v3677
    %v3679 = vrot.slane %v3667, %v3678
    %v3680 = vsel %vm808, %v3675, %v3671
    %v3681 = vsel %vm810, %v3679, %v3680
    %v3683 = vsel %vm2380, %v3681, 0.0
    %3684 = vadd.xlane.f32.xlu0 %v3683
    %v3685 = vpop.xlane.xlu0 %3684
    %v3687 = vlaneseq
    %v3688 = vshrl.u32 %v3687, 7
    %v3689 = vsub.s32 0, %v3688
    %v3690 = vrot.slane %v3685, %v3689
    %v3691 = vlaneseq
    %v3692 = vshrl.u32 %v3691, 7
    %v3693 = vsub.s32 1, %v3692
    %v3694 = vrot.slane %v3685, %v3693
    %v3695 = vlaneseq
    %v3696 = vshrl.u32 %v3695, 7
    %v3697 = vsub.s32 2, %v3696
    %v3698 = vrot.slane %v3685, %v3697
    %v3702 = vrcp.pop %v3690
    %v3703 = vmul.f32 %v3651, %v3702
    %v3704 = vrcp.pop %v3694
    %v3705 = vmul.f32 %v3653, %v3704
    %v3706 = vrcp.pop %v3698
    %v3707 = vmul.f32 %v3655, %v3706
    %3709 = vset.pattern.permute.xlu0 0
    %3710 = vperm.xlu0 %3709, %v3703
    %v3711 = vpop.permute.xlu0 %3710
    %3714 = vset.pattern.permute.xlu0 0
    %3715 = vperm.xlu0 %3714, %v3705
    %v3716 = vpop.permute.xlu0 %3715
    %3719 = vset.pattern.permute.xlu0 0
    %3720 = vperm.xlu0 %3719, %v3707
    %v3721 = vpop.permute.xlu0 %3720
    %v3723 = vmul.f32 %v3711, %v2288
    %v3724 = vmul.f32 %v3716, %v2288
    %v3725 = vmul.f32 %v3721, %v2288
    %v3726 = vsel %vm2985, %v3723, 0.0
    %v3727 = vrot.slane %v3726, 4
    %v3728 = vadd.f32 %v3726, %v3727
    %v3729 = vrot.slane %v3728, 2
    %v3730 = vadd.f32 %v3728, %v3729
    %v3731 = vrot.slane %v3730, 1
    %v3732 = vadd.f32 %v3730, %v3731
    %v3733 = vsel %vm2985, %v3724, 0.0
    %v3734 = vrot.slane %v3733, 4
    %v3735 = vadd.f32 %v3733, %v3734
    %v3736 = vrot.slane %v3735, 2
    %v3737 = vadd.f32 %v3735, %v3736
    %v3738 = vrot.slane %v3737, 1
    %v3739 = vadd.f32 %v3737, %v3738
    %v3740 = vsel %vm2985, %v3725, 0.0
    %v3741 = vrot.slane %v3740, 4
    %v3742 = vadd.f32 %v3740, %v3741
    %v3743 = vrot.slane %v3742, 2
    %v3744 = vadd.f32 %v3742, %v3743
    %v3745 = vrot.slane %v3744, 1
    %v3746 = vadd.f32 %v3744, %v3745
    %v3750 = vsel %vm808, %v3235, %v3228
    %v3751 = vsel %vm810, %v3242, %v3750
    %v3756 = vsel %vm808, %v3405, %v3398
    %v3757 = vsel %vm810, %v3412, %v3756
    %v3762 = vsel %vm808, %v3572, %v3565
    %v3763 = vsel %vm810, %v3579, %v3762
    %v3768 = vsel %vm808, %v3739, %v3732
    %v3769 = vsel %vm810, %v3746, %v3768
    %v3771 = vsel %vm2138, %v3751, %v3757
    %v3772 = vsel %vm2140, %v3771, %v3763
    %v3773 = vsel %vm2142, %v3772, %v3769
    %v3775 = vrot.slane %v3773, 5
    %v3777 = vsel %vm143, %v3033, %v3775
    %v3778 = vpack.c.bf16 %v3777, %v3777
    %v3779 = vld [vmem:[%s17] sm:$0xf]
    %v3780 = vld [vmem:[%s17 + $0x4] sm:$0xf]
    %v3781 = vld [vmem:[%s17 + $0x8] sm:$0xf]
    %v3782 = vld [vmem:[%s17 + $0xc] sm:$0xf]
    %v3787 = vunpack.c.l.b16 %v3779
    %v3788 = vunpack.c.l.b16 %v3780
    %v3789 = vunpack.c.l.b16 %v3781
    %v3790 = vunpack.c.l.b16 %v3782
    %v3791 = vpack.c.b16 %v3788, %v3787
    %v3792 = vpack.c.b16 %v3790, %v3789
    %v3796 = vsel %vm245, %v3778, 0
    %3798 = vmatprep.subr.bf16.mxu0 0
    %3799 = vmatpush1.bf16.msra.mxu0 %v3791
    %3800 = vmatprep.subr.bf16.mxu0 0
    %3801 = vmatpush1.bf16.msra.mxu0 %v3792
    %3802 = vmatprep.subr.bf16.mxu0 0
    %3803 = vmatpush1.bf16.msra.mxu0 0
    %3804 = vmatprep.subr.bf16.mxu0 0
    %3805 = vmatpush1.bf16.msra.mxu0 0
    %3806 = vmatprep.subr.bf16.mxu0 0
    %3807 = vmatpush1.bf16.msra.mxu0 0
    %3808 = vmatprep.subr.bf16.mxu0 0
    %3809 = vmatpush1.bf16.msra.mxu0 0
    %3810 = vmatprep.subr.bf16.mxu0 0
    %3811 = vmatpush1.bf16.msra.mxu0 0
    %3812 = vmatprep.subr.bf16.mxu0 0
    %3813 = vmatpush1.bf16.msra.mxu0 0
    %3814 = vmatprep.subr.bf16.mxu0 0
    %3815 = vmatpush1.bf16.msra.mxu0 0
    %3816 = vmatprep.subr.bf16.mxu0 0
    %3817 = vmatpush1.bf16.msra.mxu0 0
    %3818 = vmatprep.subr.bf16.mxu0 0
    %3819 = vmatpush1.bf16.msra.mxu0 0
    %3820 = vmatprep.subr.bf16.mxu0 0
    %3821 = vmatpush1.bf16.msra.mxu0 0
    %3822 = vmatprep.subr.bf16.mxu0 0
    %3823 = vmatpush1.bf16.msra.mxu0 0
    %3824 = vmatprep.subr.bf16.mxu0 0
    %3825 = vmatpush1.bf16.msra.mxu0 0
    %3826 = vmatprep.subr.bf16.mxu0 0
    %3827 = vmatpush1.bf16.msra.mxu0 0
    %3828 = vmatprep.subr.bf16.mxu0 0
    %3829 = vmatpush1.bf16.msra.mxu0 0
    %3830 = vmatprep.mubr.bf16.mxu0 0
    %3831 = vmatmul.mubr.bf16.gmra.mrb[0].mxu0 %v3796
    %v3832 = vpop.f32.mrb[0].mxu0
    %v3833 = vadd.f32 0.0, %v3832
    %v3834 = vpop.f32.mrb[0].mxu0
    %v3835 = vpop.f32.mrb[0].mxu0
    %v3836 = vpop.f32.mrb[0].mxu0
    %3837 = vdwg.mxu0
    %v3838 = vadd.f32 %v2204, %v3833
    %v3839 = vld [vmem:[%s18] sm:$0x1]
    %v3840 = vmul.f32 %v3838, %v3838
    %v3841 = vsel %vm212, %v3840, 0.0
    %3842 = vadd.xlane.f32.xlu0 %v3841
    %v3843 = vpop.xlane.xlu0 %3842
    %v3844 = vmul.f32 %v3843, %v216
    %v3845 = vadd.f32 %v3844, 1e-06
    %v3846 = vrsqrt.pop %v3845
    %v3847 = vmul.f32 %v3838, %v3846
    %v3849 = vlaneseq
    %v3850 = vshrl.u32 %v3849, 7
    %v3851 = vsub.s32 0, %v3850
    %v3852 = vrot.slane %v3839, %v3851
    %v3854 = vmul.f32 %v3847, %v3852
    %v3855 = vpack.c.bf16 %v3854, %v3854
    %v3856 = vld [vmem:[%s19] sm:$0xf]
    %v3857 = vld [vmem:[%s19 + $0x4] sm:$0xf]
    %v3858 = vld [vmem:[%s19 + $0x8] sm:$0xf]
    %v3859 = vld [vmem:[%s19 + $0xc] sm:$0xf]
    %v3864 = vunpack.c.l.b16 %v3856
    %v3865 = vunpack.c.l.b16 %v3857
    %v3866 = vunpack.c.l.b16 %v3858
    %v3867 = vunpack.c.l.b16 %v3859
    %v3868 = vpack.c.b16 %v3865, %v3864
    %v3869 = vpack.c.b16 %v3867, %v3866
    %v3873 = vsel %vm245, %v3855, 0
    %3875 = vmatprep.subr.bf16.mxu0 0
    %3876 = vmatpush1.bf16.msra.mxu0 %v3868
    %3877 = vmatprep.subr.bf16.mxu0 0
    %3878 = vmatpush1.bf16.msra.mxu0 %v3869
    %3879 = vmatprep.subr.bf16.mxu0 0
    %3880 = vmatpush1.bf16.msra.mxu0 0
    %3881 = vmatprep.subr.bf16.mxu0 0
    %3882 = vmatpush1.bf16.msra.mxu0 0
    %3883 = vmatprep.subr.bf16.mxu0 0
    %3884 = vmatpush1.bf16.msra.mxu0 0
    %3885 = vmatprep.subr.bf16.mxu0 0
    %3886 = vmatpush1.bf16.msra.mxu0 0
    %3887 = vmatprep.subr.bf16.mxu0 0
    %3888 = vmatpush1.bf16.msra.mxu0 0
    %3889 = vmatprep.subr.bf16.mxu0 0
    %3890 = vmatpush1.bf16.msra.mxu0 0
    %3891 = vmatprep.subr.bf16.mxu0 0
    %3892 = vmatpush1.bf16.msra.mxu0 0
    %3893 = vmatprep.subr.bf16.mxu0 0
    %3894 = vmatpush1.bf16.msra.mxu0 0
    %3895 = vmatprep.subr.bf16.mxu0 0
    %3896 = vmatpush1.bf16.msra.mxu0 0
    %3897 = vmatprep.subr.bf16.mxu0 0
    %3898 = vmatpush1.bf16.msra.mxu0 0
    %3899 = vmatprep.subr.bf16.mxu0 0
    %3900 = vmatpush1.bf16.msra.mxu0 0
    %3901 = vmatprep.subr.bf16.mxu0 0
    %3902 = vmatpush1.bf16.msra.mxu0 0
    %3903 = vmatprep.subr.bf16.mxu0 0
    %3904 = vmatpush1.bf16.msra.mxu0 0
    %3905 = vmatprep.subr.bf16.mxu0 0
    %3906 = vmatpush1.bf16.msra.mxu0 0
    %3907 = vmatprep.mubr.bf16.mxu0 0
    %3908 = vmatmul.mubr.bf16.gmra.mrb[0].mxu0 %v3873
    %v3909 = vpop.f32.mrb[0].mxu0
    %v3910 = vadd.f32 0.0, %v3909
    %v3911 = vpop.f32.mrb[0].mxu0
    %v3912 = vpop.f32.mrb[0].mxu0
    %v3913 = vpop.f32.mrb[0].mxu0
    %3914 = vdwg.mxu0
    %v3915 = vmax.f32 %v3910, 0.0
    %v3916 = vpack.c.bf16 %v3915, %v3915
    %v3917 = vld [vmem:[%s20] sm:$0xf]
    %v3918 = vld [vmem:[%s20 + $0x4] sm:$0xf]
    %v3919 = vld [vmem:[%s20 + $0x8] sm:$0xf]
    %v3920 = vld [vmem:[%s20 + $0xc] sm:$0xf]
    %v3921 = vld [vmem:[%s20 + $0x10] sm:$0xf]
    %v3922 = vld [vmem:[%s20 + $0x14] sm:$0xf]
    %v3923 = vld [vmem:[%s20 + $0x18] sm:$0xf]
    %v3924 = vld [vmem:[%s20 + $0x1c] sm:$0xf]
    %v3933 = vunpack.c.l.b16 %v3917
    %v3934 = vunpack.c.l.b16 %v3918
    %v3935 = vunpack.c.l.b16 %v3919
    %v3936 = vunpack.c.l.b16 %v3920
    %v3937 = vunpack.c.l.b16 %v3921
    %v3938 = vunpack.c.l.b16 %v3922
    %v3939 = vunpack.c.l.b16 %v3923
    %v3940 = vunpack.c.l.b16 %v3924
    %v3941 = vpack.c.b16 %v3934, %v3933
    %v3942 = vpack.c.b16 %v3936, %v3935
    %v3943 = vpack.c.b16 %v3938, %v3937
    %v3944 = vpack.c.b16 %v3940, %v3939
    %vm3949 = vcmask 523264
    %v3951 = vsel %vm3949, %v3916, 0
    %3953 = vmatprep.subr.bf16.mxu0 0
    %3954 = vmatpush1.bf16.msra.mxu0 %v3941
    %3955 = vmatprep.subr.bf16.mxu0 0
    %3956 = vmatpush1.bf16.msra.mxu0 %v3942
    %3957 = vmatprep.subr.bf16.mxu0 0
    %3958 = vmatpush1.bf16.msra.mxu0 %v3943
    %3959 = vmatprep.subr.bf16.mxu0 0
    %3960 = vmatpush1.bf16.msra.mxu0 %v3944
    %3961 = vmatprep.subr.bf16.mxu0 0
    %3962 = vmatpush1.bf16.msra.mxu0 0
    %3963 = vmatprep.subr.bf16.mxu0 0
    %3964 = vmatpush1.bf16.msra.mxu0 0
    %3965 = vmatprep.subr.bf16.mxu0 0
    %3966 = vmatpush1.bf16.msra.mxu0 0
    %3967 = vmatprep.subr.bf16.mxu0 0
    %3968 = vmatpush1.bf16.msra.mxu0 0
    %3969 = vmatprep.subr.bf16.mxu0 0
    %3970 = vmatpush1.bf16.msra.mxu0 0
    %3971 = vmatprep.subr.bf16.mxu0 0
    %3972 = vmatpush1.bf16.msra.mxu0 0
    %3973 = vmatprep.subr.bf16.mxu0 0
    %3974 = vmatpush1.bf16.msra.mxu0 0
    %3975 = vmatprep.subr.bf16.mxu0 0
    %3976 = vmatpush1.bf16.msra.mxu0 0
    %3977 = vmatprep.subr.bf16.mxu0 0
    %3978 = vmatpush1.bf16.msra.mxu0 0
    %3979 = vmatprep.subr.bf16.mxu0 0
    %3980 = vmatpush1.bf16.msra.mxu0 0
    %3981 = vmatprep.subr.bf16.mxu0 0
    %3982 = vmatpush1.bf16.msra.mxu0 0
    %3983 = vmatprep.subr.bf16.mxu0 0
    %3984 = vmatpush1.bf16.msra.mxu0 0
    %3985 = vmatprep.mubr.bf16.mxu0 0
    %3986 = vmatmul.mubr.bf16.gmra.mrb[0].mxu0 %v3951
    %v3987 = vpop.f32.mrb[0].mxu0
    %v3988 = vadd.f32 0.0, %v3987
    %v3989 = vpop.f32.mrb[0].mxu0
    %v3990 = vpop.f32.mrb[0].mxu0
    %v3991 = vpop.f32.mrb[0].mxu0
    %3992 = vdwg.mxu0
    %v3993 = vadd.f32 %v3838, %v3988
    %s3994 = scalar_lea.vmem %s12, 1
    %v3995 = vld [vmem:[%s3994] sm:$0x1]
    %v3996 = vmul.f32 %v3993, %v3993
    %v3997 = vsel %vm212, %v3996, 0.0
    %3998 = vadd.xlane.f32.xlu0 %v3997
    %v3999 = vpop.xlane.xlu0 %3998
    %v4000 = vmul.f32 %v3999, %v216
    %v4001 = vadd.f32 %v4000, 1e-06
    %v4002 = vrsqrt.pop %v4001
    %v4003 = vmul.f32 %v3993, %v4002
    %v4005 = vlaneseq
    %v4006 = vshrl.u32 %v4005, 7
    %v4007 = vsub.s32 0, %v4006
    %v4008 = vrot.slane %v3995, %v4007
    %v4010 = vmul.f32 %v4003, %v4008
    %v4011 = vpack.c.bf16 %v4010, %v4010
    %s4012 = scalar_lea.vmem %s13, 16
    %v4013 = vld [vmem:[%s4012] sm:$0xf]
    %v4014 = vld [vmem:[%s4012 + $0x4] sm:$0xf]
    %v4015 = vld [vmem:[%s4012 + $0x8] sm:$0xf]
    %v4016 = vld [vmem:[%s4012 + $0xc] sm:$0xf]
    %v4021 = vunpack.c.l.b16 %v4013
    %v4022 = vunpack.c.l.b16 %v4014
    %v4023 = vunpack.c.l.b16 %v4015
    %v4024 = vunpack.c.l.b16 %v4016
    %v4025 = vpack.c.b16 %v4022, %v4021
    %v4026 = vpack.c.b16 %v4024, %v4023
    %v4030 = vsel %vm245, %v4011, 0
    %4032 = vmatprep.subr.bf16.mxu0 0
    %4033 = vmatpush1.bf16.msra.mxu0 %v4025
    %4034 = vmatprep.subr.bf16.mxu0 0
    %4035 = vmatpush1.bf16.msra.mxu0 %v4026
    %4036 = vmatprep.subr.bf16.mxu0 0
    %4037 = vmatpush1.bf16.msra.mxu0 0
    %4038 = vmatprep.subr.bf16.mxu0 0
    %4039 = vmatpush1.bf16.msra.mxu0 0
    %4040 = vmatprep.subr.bf16.mxu0 0
    %4041 = vmatpush1.bf16.msra.mxu0 0
    %4042 = vmatprep.subr.bf16.mxu0 0
    %4043 = vmatpush1.bf16.msra.mxu0 0
    %4044 = vmatprep.subr.bf16.mxu0 0
    %4045 = vmatpush1.bf16.msra.mxu0 0
    %4046 = vmatprep.subr.bf16.mxu0 0
    %4047 = vmatpush1.bf16.msra.mxu0 0
    %4048 = vmatprep.subr.bf16.mxu0 0
    %4049 = vmatpush1.bf16.msra.mxu0 0
    %4050 = vmatprep.subr.bf16.mxu0 0
    %4051 = vmatpush1.bf16.msra.mxu0 0
    %4052 = vmatprep.subr.bf16.mxu0 0
    %4053 = vmatpush1.bf16.msra.mxu0 0
    %4054 = vmatprep.subr.bf16.mxu0 0
    %4055 = vmatpush1.bf16.msra.mxu0 0
    %4056 = vmatprep.subr.bf16.mxu0 0
    %4057 = vmatpush1.bf16.msra.mxu0 0
    %4058 = vmatprep.subr.bf16.mxu0 0
    %4059 = vmatpush1.bf16.msra.mxu0 0
    %4060 = vmatprep.subr.bf16.mxu0 0
    %4061 = vmatpush1.bf16.msra.mxu0 0
    %4062 = vmatprep.subr.bf16.mxu0 0
    %4063 = vmatpush1.bf16.msra.mxu0 0
    %4064 = vmatprep.mubr.bf16.mxu0 0
    %4065 = vmatmul.mubr.bf16.gmra.mrb[0].mxu0 %v4030
    %v4066 = vpop.f32.mrb[0].mxu0
    %v4067 = vadd.f32 0.0, %v4066
    %v4068 = vpop.f32.mrb[0].mxu0
    %v4069 = vpop.f32.mrb[0].mxu0
    %v4070 = vpop.f32.mrb[0].mxu0
    %4071 = vdwg.mxu0
    %s4072 = sld [smem:[#allocation5]]
    %s4073 = sadd.s32 %s4072, 6
    %s4074 = smul.addr %s4073, 2
    %s4075 = scalar_lea.vmem %s6, %s4074
    %v4076 = vld [vmem:[%s4075] sm:$0x3]
    %s4077 = sld [smem:[#allocation5 + $0x1]]
    %s4078 = sadd.s32 %s4077, 6
    %s4079 = smul.addr %s4078, 2
    %s4080 = scalar_lea.vmem %s6, %s4079
    %v4081 = vld [vmem:[%s4080] sm:$0x3]
    %s4082 = sld [smem:[#allocation5 + $0x2]]
    %s4083 = sadd.s32 %s4082, 6
    %s4084 = smul.addr %s4083, 2
    %s4085 = scalar_lea.vmem %s6, %s4084
    %v4086 = vld [vmem:[%s4085] sm:$0x3]
    %s4087 = sld [smem:[#allocation5 + $0x3]]
    %s4088 = sadd.s32 %s4087, 6
    %s4089 = smul.addr %s4088, 2
    %s4090 = scalar_lea.vmem %s6, %s4089
    %v4091 = vld [vmem:[%s4090] sm:$0x3]
    %s4092 = sld [smem:[#allocation5 + $0x4]]
    %s4093 = sadd.s32 %s4092, 6
    %s4094 = smul.addr %s4093, 2
    %s4095 = scalar_lea.vmem %s6, %s4094
    %v4096 = vld [vmem:[%s4095] sm:$0x3]
    %s4097 = sld [smem:[#allocation5 + $0x5]]
    %s4098 = sadd.s32 %s4097, 6
    %s4099 = smul.addr %s4098, 2
    %s4100 = scalar_lea.vmem %s6, %s4099
    %v4101 = vld [vmem:[%s4100] sm:$0x3]
    %s4102 = smul.addr %s4073, 2
    %s4103 = scalar_lea.vmem %s7, %s4102
    %v4104 = vld [vmem:[%s4103] sm:$0x3]
    %s4105 = smul.addr %s4078, 2
    %s4106 = scalar_lea.vmem %s7, %s4105
    %v4107 = vld [vmem:[%s4106] sm:$0x3]
    %s4108 = smul.addr %s4083, 2
    %s4109 = scalar_lea.vmem %s7, %s4108
    %v4110 = vld [vmem:[%s4109] sm:$0x3]
    %s4111 = smul.addr %s4088, 2
    %s4112 = scalar_lea.vmem %s7, %s4111
    %v4113 = vld [vmem:[%s4112] sm:$0x3]
    %s4114 = smul.addr %s4093, 2
    %s4115 = scalar_lea.vmem %s7, %s4114
    %v4116 = vld [vmem:[%s4115] sm:$0x3]
    %s4117 = smul.addr %s4098, 2
    %s4118 = scalar_lea.vmem %s7, %s4117
    %v4119 = vld [vmem:[%s4118] sm:$0x3]
    %v4121 = vcombine.high %v4067, %v4067
    %v4123 = vunpack.c.l.s4 1966171168
    %v4124 = vunpack.c.0.s8 %v4123
    %v4125 = vlaneseq
    %v4126 = vshrl.u32 %v4125, 7
    %v4127 = vsub.s32 %v4124, %v4126
    %v4128 = vrot.slane %v4067, %v4127
    %v4130 = vunpack.c.l.s4 1966171168
    %v4131 = vunpack.c.0.s8 %v4130
    %v4132 = vlaneseq
    %v4133 = vshrl.u32 %v4132, 7
    %v4134 = vsub.s32 %v4131, %v4133
    %v4135 = vrot.slane %v4121, %v4134
    %v4136 = vcombine.high %v4128, %v4128
    %v4137 = vcombine.high %v4135, %v4135
    %v4139 = vunpack.c.l.s4 1966171168
    %v4140 = vunpack.c.0.s8 %v4139
    %v4141 = vlaneseq
    %v4142 = vshrl.u32 %v4141, 7
    %v4143 = vsub.s32 %v4140, %v4142
    %v4144 = vrot.slane %v4128, %v4143
    %v4146 = vunpack.c.l.s4 1966171168
    %v4147 = vunpack.c.0.s8 %v4146
    %v4148 = vlaneseq
    %v4149 = vshrl.u32 %v4148, 7
    %v4150 = vsub.s32 %v4147, %v4149
    %v4151 = vrot.slane %v4135, %v4150
    %v4153 = vunpack.c.l.s4 1966171168
    %v4154 = vunpack.c.0.s8 %v4153
    %v4155 = vlaneseq
    %v4156 = vshrl.u32 %v4155, 7
    %v4157 = vsub.s32 %v4154, %v4156
    %v4158 = vrot.slane %v4136, %v4157
    %v4160 = vunpack.c.l.s4 1966171168
    %v4161 = vunpack.c.0.s8 %v4160
    %v4162 = vlaneseq
    %v4163 = vshrl.u32 %v4162, 7
    %v4164 = vsub.s32 %v4161, %v4163
    %v4165 = vrot.slane %v4137, %v4164
    %v4166 = vcombine.high %v4144, %v4144
    %v4167 = vcombine.high %v4158, %v4158
    %v4168 = vunpack.c.l.bf16 %v4076
    %v4169 = vunpack.c.l.bf16 %v4081
    %v4170 = vunpack.c.l.bf16 %v4086
    %v4171 = vunpack.c.l.bf16 %v4091
    %v4172 = vunpack.c.l.bf16 %v4096
    %v4173 = vunpack.c.l.bf16 %v4101
    %v4174 = vlaneseq
    %v4175 = vshrl.u32 %v4174, 7
    %v4176 = vsub.s32 0, %v4175
    %v4177 = vrot.slane %v4144, %v4176
    %v4178 = vlaneseq
    %v4179 = vshrl.u32 %v4178, 7
    %v4180 = vsub.s32 0, %v4179
    %v4181 = vrot.slane %v4158, %v4180
    %v4182 = vlaneseq
    %v4183 = vshrl.u32 %v4182, 7
    %v4184 = vsub.s32 0, %v4183
    %v4185 = vrot.slane %v4166, %v4184
    %v4186 = vlaneseq
    %v4187 = vshrl.u32 %v4186, 7
    %v4188 = vsub.s32 0, %v4187
    %v4189 = vrot.slane %v4167, %v4188
    %v4190 = vlaneseq
    %v4191 = vshrl.u32 %v4190, 7
    %v4192 = vsub.s32 0, %v4191
    %v4193 = vrot.slane %v4151, %v4192
    %v4194 = vlaneseq
    %v4195 = vshrl.u32 %v4194, 7
    %v4196 = vsub.s32 0, %v4195
    %v4197 = vrot.slane %v4165, %v4196
    %4210 = vrot.lane.b32.xlu0 %v4168, 32
    %v4211 = vpop.permute.xlu0 %4210
    %4212 = vrot.lane.b32.xlu0 %v4169, 32
    %v4213 = vpop.permute.xlu0 %4212
    %4214 = vrot.lane.b32.xlu0 %v4170, 32
    %v4215 = vpop.permute.xlu0 %4214
    %4216 = vrot.lane.b32.xlu0 %v4171, 32
    %v4217 = vpop.permute.xlu0 %4216
    %4218 = vrot.lane.b32.xlu0 %v4172, 32
    %v4219 = vpop.permute.xlu0 %4218
    %4220 = vrot.lane.b32.xlu0 %v4173, 32
    %v4221 = vpop.permute.xlu0 %4220
    %v4228 = vsel %vm333, %v4177, %v4211
    %v4229 = vsel %vm333, %v4181, %v4213
    %v4230 = vsel %vm333, %v4185, %v4215
    %v4231 = vsel %vm333, %v4189, %v4217
    %v4232 = vsel %vm333, %v4193, %v4219
    %v4233 = vsel %vm333, %v4197, %v4221
    %v4234 = vunpack.c.l.bf16 %v4104
    %v4235 = vunpack.c.l.bf16 %v4107
    %v4236 = vunpack.c.l.bf16 %v4110
    %v4237 = vunpack.c.l.bf16 %v4113
    %v4238 = vunpack.c.l.bf16 %v4116
    %v4239 = vunpack.c.l.bf16 %v4119
    %4246 = vrot.lane.b32.xlu0 %v4234, 64
    %v4247 = vpop.permute.xlu0 %4246
    %4248 = vrot.lane.b32.xlu0 %v4235, 64
    %v4249 = vpop.permute.xlu0 %4248
    %4250 = vrot.lane.b32.xlu0 %v4236, 64
    %v4251 = vpop.permute.xlu0 %4250
    %4252 = vrot.lane.b32.xlu0 %v4237, 64
    %v4253 = vpop.permute.xlu0 %4252
    %4254 = vrot.lane.b32.xlu0 %v4238, 64
    %v4255 = vpop.permute.xlu0 %4254
    %4256 = vrot.lane.b32.xlu0 %v4239, 64
    %v4257 = vpop.permute.xlu0 %4256
    %v4264 = vsel %vm333, %v4177, %v4247
    %v4265 = vsel %vm333, %v4181, %v4249
    %v4266 = vsel %vm333, %v4185, %v4251
    %v4267 = vsel %vm333, %v4189, %v4253
    %v4268 = vsel %vm333, %v4193, %v4255
    %v4269 = vsel %vm333, %v4197, %v4257
    %v4270 = vpack.c.bf16 %v4228, %v4228
    %v4271 = vpack.c.bf16 %v4229, %v4229
    %v4272 = vpack.c.bf16 %v4230, %v4230
    %v4273 = vpack.c.bf16 %v4231, %v4231
    %v4274 = vpack.c.bf16 %v4232, %v4232
    %v4275 = vpack.c.bf16 %v4233, %v4233
    %v4283 = vunpack.c.l.s4 1983009808
    %v4284 = vunpack.c.0.s8 %v4283
    %v4285 = vlaneseq
    %v4286 = vshrl.u32 %v4285, 7
    %v4287 = vsub.s32 %v4284, %v4286
    %v4288 = vrot.slane %v4270, %v4287
    %v4290 = vunpack.c.l.s4 1983009808
    %v4291 = vunpack.c.0.s8 %v4290
    %v4292 = vlaneseq
    %v4293 = vshrl.u32 %v4292, 7
    %v4294 = vsub.s32 %v4291, %v4293
    %v4295 = vrot.slane %v4271, %v4294
    %v4297 = vunpack.c.l.s4 1983009808
    %v4298 = vunpack.c.0.s8 %v4297
    %v4299 = vlaneseq
    %v4300 = vshrl.u32 %v4299, 7
    %v4301 = vsub.s32 %v4298, %v4300
    %v4302 = vrot.slane %v4272, %v4301
    %v4304 = vunpack.c.l.s4 1983009808
    %v4305 = vunpack.c.0.s8 %v4304
    %v4306 = vlaneseq
    %v4307 = vshrl.u32 %v4306, 7
    %v4308 = vsub.s32 %v4305, %v4307
    %v4309 = vrot.slane %v4273, %v4308
    %v4311 = vunpack.c.l.s4 1983009808
    %v4312 = vunpack.c.0.s8 %v4311
    %v4313 = vlaneseq
    %v4314 = vshrl.u32 %v4313, 7
    %v4315 = vsub.s32 %v4312, %v4314
    %v4316 = vrot.slane %v4274, %v4315
    %v4318 = vunpack.c.l.s4 1983009808
    %v4319 = vunpack.c.0.s8 %v4318
    %v4320 = vlaneseq
    %v4321 = vshrl.u32 %v4320, 7
    %v4322 = vsub.s32 %v4319, %v4321
    %v4323 = vrot.slane %v4275, %v4322
    %4324 = vrot.lane.b32.xlu0 %v4288, 96
    %v4325 = vpop.permute.xlu0 %4324
    %4326 = vrot.lane.b32.xlu0 %v4295, 96
    %v4327 = vpop.permute.xlu0 %4326
    %4328 = vrot.lane.b32.xlu0 %v4302, 96
    %v4329 = vpop.permute.xlu0 %4328
    %4330 = vrot.lane.b32.xlu0 %v4309, 96
    %v4331 = vpop.permute.xlu0 %4330
    %4332 = vrot.lane.b32.xlu0 %v4316, 96
    %v4333 = vpop.permute.xlu0 %4332
    %4334 = vrot.lane.b32.xlu0 %v4323, 96
    %v4335 = vpop.permute.xlu0 %4334
    %s4342 = scalar_lea.vmem %s25, 12
    %4343 = vst.msk [vmem:[%s4342] sm:$0x3] %vm556, %v4325
    %4344 = vst.msk [vmem:[%s4342 + $0x2] sm:$0x3] %vm556, %v4327
    %4345 = vst.msk [vmem:[%s4342 + $0x4] sm:$0x3] %vm556, %v4329
    %4346 = vst.msk [vmem:[%s4342 + $0x6] sm:$0x3] %vm556, %v4331
    %4347 = vst.msk [vmem:[%s4342 + $0x8] sm:$0x3] %vm556, %v4333
    %4348 = vst.msk [vmem:[%s4342 + $0xa] sm:$0x3] %vm556, %v4335
    %v4349 = vpack.c.bf16 %v4264, %v4264
    %v4350 = vpack.c.bf16 %v4265, %v4265
    %v4351 = vpack.c.bf16 %v4266, %v4266
    %v4352 = vpack.c.bf16 %v4267, %v4267
    %v4353 = vpack.c.bf16 %v4268, %v4268
    %v4354 = vpack.c.bf16 %v4269, %v4269
    %v4362 = vunpack.c.l.s4 1983009808
    %v4363 = vunpack.c.0.s8 %v4362
    %v4364 = vlaneseq
    %v4365 = vshrl.u32 %v4364, 7
    %v4366 = vsub.s32 %v4363, %v4365
    %v4367 = vrot.slane %v4349, %v4366
    %v4369 = vunpack.c.l.s4 1983009808
    %v4370 = vunpack.c.0.s8 %v4369
    %v4371 = vlaneseq
    %v4372 = vshrl.u32 %v4371, 7
    %v4373 = vsub.s32 %v4370, %v4372
    %v4374 = vrot.slane %v4350, %v4373
    %v4376 = vunpack.c.l.s4 1983009808
    %v4377 = vunpack.c.0.s8 %v4376
    %v4378 = vlaneseq
    %v4379 = vshrl.u32 %v4378, 7
    %v4380 = vsub.s32 %v4377, %v4379
    %v4381 = vrot.slane %v4351, %v4380
    %v4383 = vunpack.c.l.s4 1983009808
    %v4384 = vunpack.c.0.s8 %v4383
    %v4385 = vlaneseq
    %v4386 = vshrl.u32 %v4385, 7
    %v4387 = vsub.s32 %v4384, %v4386
    %v4388 = vrot.slane %v4352, %v4387
    %v4390 = vunpack.c.l.s4 1983009808
    %v4391 = vunpack.c.0.s8 %v4390
    %v4392 = vlaneseq
    %v4393 = vshrl.u32 %v4392, 7
    %v4394 = vsub.s32 %v4391, %v4393
    %v4395 = vrot.slane %v4353, %v4394
    %v4397 = vunpack.c.l.s4 1983009808
    %v4398 = vunpack.c.0.s8 %v4397
    %v4399 = vlaneseq
    %v4400 = vshrl.u32 %v4399, 7
    %v4401 = vsub.s32 %v4398, %v4400
    %v4402 = vrot.slane %v4354, %v4401
    %4403 = vrot.lane.b32.xlu0 %v4367, 64
    %v4404 = vpop.permute.xlu0 %4403
    %4405 = vrot.lane.b32.xlu0 %v4374, 64
    %v4406 = vpop.permute.xlu0 %4405
    %4407 = vrot.lane.b32.xlu0 %v4381, 64
    %v4408 = vpop.permute.xlu0 %4407
    %4409 = vrot.lane.b32.xlu0 %v4388, 64
    %v4410 = vpop.permute.xlu0 %4409
    %4411 = vrot.lane.b32.xlu0 %v4395, 64
    %v4412 = vpop.permute.xlu0 %4411
    %4413 = vrot.lane.b32.xlu0 %v4402, 64
    %v4414 = vpop.permute.xlu0 %4413
    %s4421 = scalar_lea.vmem %s26, 12
    %4422 = vst.msk [vmem:[%s4421] sm:$0x3] %vm556, %v4404
    %4423 = vst.msk [vmem:[%s4421 + $0x2] sm:$0x3] %vm556, %v4406
    %4424 = vst.msk [vmem:[%s4421 + $0x4] sm:$0x3] %vm556, %v4408
    %4425 = vst.msk [vmem:[%s4421 + $0x6] sm:$0x3] %vm556, %v4410
    %4426 = vst.msk [vmem:[%s4421 + $0x8] sm:$0x3] %vm556, %v4412
    %4427 = vst.msk [vmem:[%s4421 + $0xa] sm:$0x3] %vm556, %v4414
    %4434 = vrot.lane.b32.xlu0 %v4228, 96
    %v4435 = vpop.permute.xlu0 %4434
    %4436 = vrot.lane.b32.xlu0 %v4229, 96
    %v4437 = vpop.permute.xlu0 %4436
    %4438 = vrot.lane.b32.xlu0 %v4230, 96
    %v4439 = vpop.permute.xlu0 %4438
    %4440 = vrot.lane.b32.xlu0 %v4231, 96
    %v4441 = vpop.permute.xlu0 %4440
    %4442 = vrot.lane.b32.xlu0 %v4232, 96
    %v4443 = vpop.permute.xlu0 %4442
    %4444 = vrot.lane.b32.xlu0 %v4233, 96
    %v4445 = vpop.permute.xlu0 %4444
    %v4452 = vmul.f32 %v4177, %v4435
    %v4453 = vmul.f32 %v4181, %v4437
    %v4454 = vmul.f32 %v4185, %v4439
    %v4455 = vmul.f32 %v4189, %v4441
    %v4456 = vmul.f32 %v4193, %v4443
    %v4457 = vmul.f32 %v4197, %v4445
    %v4458 = vsel %vm671, %v4452, 0.0
    %4459 = vadd.xlane.f32.xlu0 %v4458
    %v4460 = vpop.xlane.xlu0 %4459
    %v4461 = vsel %vm671, %v4453, 0.0
    %4462 = vadd.xlane.f32.xlu0 %v4461
    %v4463 = vpop.xlane.xlu0 %4462
    %v4464 = vsel %vm671, %v4454, 0.0
    %4465 = vadd.xlane.f32.xlu0 %v4464
    %v4466 = vpop.xlane.xlu0 %4465
    %v4467 = vsel %vm671, %v4455, 0.0
    %4468 = vadd.xlane.f32.xlu0 %v4467
    %v4469 = vpop.xlane.xlu0 %4468
    %v4470 = vsel %vm671, %v4456, 0.0
    %4471 = vadd.xlane.f32.xlu0 %v4470
    %v4472 = vpop.xlane.xlu0 %4471
    %v4473 = vsel %vm671, %v4457, 0.0
    %4474 = vadd.xlane.f32.xlu0 %v4473
    %v4475 = vpop.xlane.xlu0 %4474
    %v4476 = vadd.f32 %v4460, %v697
    %v4477 = vadd.f32 %v4463, %v704
    %v4478 = vadd.f32 %v4466, %v711
    %v4479 = vadd.f32 %v4469, %v718
    %v4480 = vadd.f32 %v4472, %v725
    %v4481 = vadd.f32 %v4475, %v732
    %v4482 = vadd.f32 %v4476, %v752
    %v4483 = vadd.f32 %v4477, %v752
    %v4484 = vadd.f32 %v4478, %v752
    %v4485 = vadd.f32 %v4479, %v752
    %v4486 = vadd.f32 %v4480, %v752
    %v4487 = vadd.f32 %v4481, %v752
    %4494 = vset.pattern.permute.xlu0 0
    %4495 = vperm.xlu0 %4494, %v4482
    %v4496 = vpop.permute.xlu0 %4495
    %4497 = vset.pattern.permute.xlu0 0
    %4498 = vperm.xlu0 %4497, %v4483
    %v4499 = vpop.permute.xlu0 %4498
    %4500 = vset.pattern.permute.xlu0 0
    %4501 = vperm.xlu0 %4500, %v4484
    %v4502 = vpop.permute.xlu0 %4501
    %4503 = vset.pattern.permute.xlu0 0
    %4504 = vperm.xlu0 %4503, %v4485
    %v4505 = vpop.permute.xlu0 %4504
    %4506 = vset.pattern.permute.xlu0 0
    %4507 = vperm.xlu0 %4506, %v4486
    %v4508 = vpop.permute.xlu0 %4507
    %4509 = vset.pattern.permute.xlu0 0
    %4510 = vperm.xlu0 %4509, %v4487
    %v4511 = vpop.permute.xlu0 %4510
    %v4512 = vlaneseq
    %v4513 = vshrl.u32 %v4512, 7
    %v4514 = vsub.s32 %v196, %v4513
    %v4515 = vrot.slane %v4496, %v4514
    %v4516 = vlaneseq
    %v4517 = vshrl.u32 %v4516, 7
    %v4518 = vsub.s32 %v196, %v4517
    %v4519 = vrot.slane %v4499, %v4518
    %v4520 = vlaneseq
    %v4521 = vshrl.u32 %v4520, 7
    %v4522 = vsub.s32 %v196, %v4521
    %v4523 = vrot.slane %v4502, %v4522
    %v4524 = vlaneseq
    %v4525 = vshrl.u32 %v4524, 7
    %v4526 = vsub.s32 %v196, %v4525
    %v4527 = vrot.slane %v4505, %v4526
    %v4528 = vlaneseq
    %v4529 = vshrl.u32 %v4528, 7
    %v4530 = vsub.s32 %v196, %v4529
    %v4531 = vrot.slane %v4508, %v4530
    %v4532 = vlaneseq
    %v4533 = vshrl.u32 %v4532, 7
    %v4534 = vsub.s32 %v196, %v4533
    %v4535 = vrot.slane %v4511, %v4534
    %v4536 = vsel %vm808, %v4519, %v4515
    %v4537 = vsel %vm810, %v4523, %v4536
    %v4538 = vsel %vm812, %v4527, %v4537
    %v4539 = vsel %vm814, %v4531, %v4538
    %v4540 = vsel %vm816, %v4535, %v4539
    %v4542 = vsel %vm205, %v4540, -inf
    %4543 = vmax.xlane.f32.xlu0 %v4542
    %v4544 = vpop.xlane.xlu0 %4543
    %v4546 = vlaneseq
    %v4547 = vshrl.u32 %v4546, 7
    %v4548 = vsub.s32 0, %v4547
    %v4549 = vrot.slane %v4544, %v4548
    %v4550 = vlaneseq
    %v4551 = vshrl.u32 %v4550, 7
    %v4552 = vsub.s32 1, %v4551
    %v4553 = vrot.slane %v4544, %v4552
    %v4554 = vlaneseq
    %v4555 = vshrl.u32 %v4554, 7
    %v4556 = vsub.s32 2, %v4555
    %v4557 = vrot.slane %v4544, %v4556
    %v4558 = vlaneseq
    %v4559 = vshrl.u32 %v4558, 7
    %v4560 = vsub.s32 3, %v4559
    %v4561 = vrot.slane %v4544, %v4560
    %v4562 = vlaneseq
    %v4563 = vshrl.u32 %v4562, 7
    %v4564 = vsub.s32 4, %v4563
    %v4565 = vrot.slane %v4544, %v4564
    %v4566 = vlaneseq
    %v4567 = vshrl.u32 %v4566, 7
    %v4568 = vsub.s32 5, %v4567
    %v4569 = vrot.slane %v4544, %v4568
    %v4576 = vsub.f32 %v4482, %v4549
    %v4577 = vsub.f32 %v4483, %v4553
    %v4578 = vsub.f32 %v4484, %v4557
    %v4579 = vsub.f32 %v4485, %v4561
    %v4580 = vsub.f32 %v4486, %v4565
    %v4581 = vsub.f32 %v4487, %v4569
    %v4582 = vmul.f32 %v4576, 1.442695
    %v4583 = vpow.pop %v4582
    %v4584 = vmul.f32 %v4577, 1.442695
    %v4585 = vpow.pop %v4584
    %v4586 = vmul.f32 %v4578, 1.442695
    %v4587 = vpow.pop %v4586
    %v4588 = vmul.f32 %v4579, 1.442695
    %v4589 = vpow.pop %v4588
    %v4590 = vmul.f32 %v4580, 1.442695
    %v4591 = vpow.pop %v4590
    %v4592 = vmul.f32 %v4581, 1.442695
    %v4593 = vpow.pop %v4592
    %4600 = vset.pattern.permute.xlu0 0
    %4601 = vperm.xlu0 %4600, %v4583
    %v4602 = vpop.permute.xlu0 %4601
    %4603 = vset.pattern.permute.xlu0 0
    %4604 = vperm.xlu0 %4603, %v4585
    %v4605 = vpop.permute.xlu0 %4604
    %4606 = vset.pattern.permute.xlu0 0
    %4607 = vperm.xlu0 %4606, %v4587
    %v4608 = vpop.permute.xlu0 %4607
    %4609 = vset.pattern.permute.xlu0 0
    %4610 = vperm.xlu0 %4609, %v4589
    %v4611 = vpop.permute.xlu0 %4610
    %4612 = vset.pattern.permute.xlu0 0
    %4613 = vperm.xlu0 %4612, %v4591
    %v4614 = vpop.permute.xlu0 %4613
    %4615 = vset.pattern.permute.xlu0 0
    %4616 = vperm.xlu0 %4615, %v4593
    %v4617 = vpop.permute.xlu0 %4616
    %v4618 = vlaneseq
    %v4619 = vshrl.u32 %v4618, 7
    %v4620 = vsub.s32 %v196, %v4619
    %v4621 = vrot.slane %v4602, %v4620
    %v4622 = vlaneseq
    %v4623 = vshrl.u32 %v4622, 7
    %v4624 = vsub.s32 %v196, %v4623
    %v4625 = vrot.slane %v4605, %v4624
    %v4626 = vlaneseq
    %v4627 = vshrl.u32 %v4626, 7
    %v4628 = vsub.s32 %v196, %v4627
    %v4629 = vrot.slane %v4608, %v4628
    %v4630 = vlaneseq
    %v4631 = vshrl.u32 %v4630, 7
    %v4632 = vsub.s32 %v196, %v4631
    %v4633 = vrot.slane %v4611, %v4632
    %v4634 = vlaneseq
    %v4635 = vshrl.u32 %v4634, 7
    %v4636 = vsub.s32 %v196, %v4635
    %v4637 = vrot.slane %v4614, %v4636
    %v4638 = vlaneseq
    %v4639 = vshrl.u32 %v4638, 7
    %v4640 = vsub.s32 %v196, %v4639
    %v4641 = vrot.slane %v4617, %v4640
    %v4642 = vsel %vm808, %v4625, %v4621
    %v4643 = vsel %vm810, %v4629, %v4642
    %v4644 = vsel %vm812, %v4633, %v4643
    %v4645 = vsel %vm814, %v4637, %v4644
    %v4646 = vsel %vm816, %v4641, %v4645
    %v4648 = vsel %vm205, %v4646, 0.0
    %4649 = vadd.xlane.f32.xlu0 %v4648
    %v4650 = vpop.xlane.xlu0 %4649
    %v4652 = vlaneseq
    %v4653 = vshrl.u32 %v4652, 7
    %v4654 = vsub.s32 0, %v4653
    %v4655 = vrot.slane %v4650, %v4654
    %v4656 = vlaneseq
    %v4657 = vshrl.u32 %v4656, 7
    %v4658 = vsub.s32 1, %v4657
    %v4659 = vrot.slane %v4650, %v4658
    %v4660 = vlaneseq
    %v4661 = vshrl.u32 %v4660, 7
    %v4662 = vsub.s32 2, %v4661
    %v4663 = vrot.slane %v4650, %v4662
    %v4664 = vlaneseq
    %v4665 = vshrl.u32 %v4664, 7
    %v4666 = vsub.s32 3, %v4665
    %v4667 = vrot.slane %v4650, %v4666
    %v4668 = vlaneseq
    %v4669 = vshrl.u32 %v4668, 7
    %v4670 = vsub.s32 4, %v4669
    %v4671 = vrot.slane %v4650, %v4670
    %v4672 = vlaneseq
    %v4673 = vshrl.u32 %v4672, 7
    %v4674 = vsub.s32 5, %v4673
    %v4675 = vrot.slane %v4650, %v4674
    %v4682 = vrcp.pop %v4655
    %v4683 = vmul.f32 %v4583, %v4682
    %v4684 = vrcp.pop %v4659
    %v4685 = vmul.f32 %v4585, %v4684
    %v4686 = vrcp.pop %v4663
    %v4687 = vmul.f32 %v4587, %v4686
    %v4688 = vrcp.pop %v4667
    %v4689 = vmul.f32 %v4589, %v4688
    %v4690 = vrcp.pop %v4671
    %v4691 = vmul.f32 %v4591, %v4690
    %v4692 = vrcp.pop %v4675
    %v4693 = vmul.f32 %v4593, %v4692
    %4695 = vset.pattern.permute.xlu0 0
    %4696 = vperm.xlu0 %4695, %v4683
    %v4697 = vpop.permute.xlu0 %4696
    %4700 = vset.pattern.permute.xlu0 0
    %4701 = vperm.xlu0 %4700, %v4685
    %v4702 = vpop.permute.xlu0 %4701
    %4705 = vset.pattern.permute.xlu0 0
    %4706 = vperm.xlu0 %4705, %v4687
    %v4707 = vpop.permute.xlu0 %4706
    %4710 = vset.pattern.permute.xlu0 0
    %4711 = vperm.xlu0 %4710, %v4689
    %v4712 = vpop.permute.xlu0 %4711
    %4715 = vset.pattern.permute.xlu0 0
    %4716 = vperm.xlu0 %4715, %v4691
    %v4717 = vpop.permute.xlu0 %4716
    %4720 = vset.pattern.permute.xlu0 0
    %4721 = vperm.xlu0 %4720, %v4693
    %v4722 = vpop.permute.xlu0 %4721
    %v4724 = vmul.f32 %v4697, %v4264
    %v4725 = vmul.f32 %v4702, %v4265
    %v4726 = vmul.f32 %v4707, %v4266
    %v4727 = vmul.f32 %v4712, %v4267
    %v4728 = vmul.f32 %v4717, %v4268
    %v4729 = vmul.f32 %v4722, %v4269
    %v4730 = vsel %vm1007, %v4724, 0.0
    %v4731 = vrot.slane %v4730, 4
    %v4732 = vadd.f32 %v4730, %v4731
    %v4733 = vrot.slane %v4732, 2
    %v4734 = vadd.f32 %v4732, %v4733
    %v4735 = vrot.slane %v4734, 1
    %v4736 = vadd.f32 %v4734, %v4735
    %v4737 = vsel %vm1007, %v4725, 0.0
    %v4738 = vrot.slane %v4737, 4
    %v4739 = vadd.f32 %v4737, %v4738
    %v4740 = vrot.slane %v4739, 2
    %v4741 = vadd.f32 %v4739, %v4740
    %v4742 = vrot.slane %v4741, 1
    %v4743 = vadd.f32 %v4741, %v4742
    %v4744 = vsel %vm1007, %v4726, 0.0
    %v4745 = vrot.slane %v4744, 4
    %v4746 = vadd.f32 %v4744, %v4745
    %v4747 = vrot.slane %v4746, 2
    %v4748 = vadd.f32 %v4746, %v4747
    %v4749 = vrot.slane %v4748, 1
    %v4750 = vadd.f32 %v4748, %v4749
    %v4751 = vsel %vm1007, %v4727, 0.0
    %v4752 = vrot.slane %v4751, 4
    %v4753 = vadd.f32 %v4751, %v4752
    %v4754 = vrot.slane %v4753, 2
    %v4755 = vadd.f32 %v4753, %v4754
    %v4756 = vrot.slane %v4755, 1
    %v4757 = vadd.f32 %v4755, %v4756
    %v4758 = vsel %vm1007, %v4728, 0.0
    %v4759 = vrot.slane %v4758, 4
    %v4760 = vadd.f32 %v4758, %v4759
    %v4761 = vrot.slane %v4760, 2
    %v4762 = vadd.f32 %v4760, %v4761
    %v4763 = vrot.slane %v4762, 1
    %v4764 = vadd.f32 %v4762, %v4763
    %v4765 = vsel %vm1007, %v4729, 0.0
    %v4766 = vrot.slane %v4765, 4
    %v4767 = vadd.f32 %v4765, %v4766
    %v4768 = vrot.slane %v4767, 2
    %v4769 = vadd.f32 %v4767, %v4768
    %v4770 = vrot.slane %v4769, 1
    %v4771 = vadd.f32 %v4769, %v4770
    %4778 = vrot.lane.b32.xlu0 %v4452, 120
    %v4779 = vpop.permute.xlu0 %4778
    %4780 = vrot.lane.b32.xlu0 %v4453, 120
    %v4781 = vpop.permute.xlu0 %4780
    %4782 = vrot.lane.b32.xlu0 %v4454, 120
    %v4783 = vpop.permute.xlu0 %4782
    %4784 = vrot.lane.b32.xlu0 %v4455, 120
    %v4785 = vpop.permute.xlu0 %4784
    %4786 = vrot.lane.b32.xlu0 %v4456, 120
    %v4787 = vpop.permute.xlu0 %4786
    %4788 = vrot.lane.b32.xlu0 %v4457, 120
    %v4789 = vpop.permute.xlu0 %4788
    %v4796 = vsel %vm671, %v4779, 0.0
    %4797 = vadd.xlane.f32.xlu0 %v4796
    %v4798 = vpop.xlane.xlu0 %4797
    %v4799 = vsel %vm671, %v4781, 0.0
    %4800 = vadd.xlane.f32.xlu0 %v4799
    %v4801 = vpop.xlane.xlu0 %4800
    %v4802 = vsel %vm671, %v4783, 0.0
    %4803 = vadd.xlane.f32.xlu0 %v4802
    %v4804 = vpop.xlane.xlu0 %4803
    %v4805 = vsel %vm671, %v4785, 0.0
    %4806 = vadd.xlane.f32.xlu0 %v4805
    %v4807 = vpop.xlane.xlu0 %4806
    %v4808 = vsel %vm671, %v4787, 0.0
    %4809 = vadd.xlane.f32.xlu0 %v4808
    %v4810 = vpop.xlane.xlu0 %4809
    %v4811 = vsel %vm671, %v4789, 0.0
    %4812 = vadd.xlane.f32.xlu0 %v4811
    %v4813 = vpop.xlane.xlu0 %4812
    %v4814 = vadd.f32 %v4798, %v697
    %v4815 = vadd.f32 %v4801, %v704
    %v4816 = vadd.f32 %v4804, %v711
    %v4817 = vadd.f32 %v4807, %v718
    %v4818 = vadd.f32 %v4810, %v725
    %v4819 = vadd.f32 %v4813, %v732
    %v4820 = vadd.f32 %v4814, %v1105
    %v4821 = vadd.f32 %v4815, %v1105
    %v4822 = vadd.f32 %v4816, %v1105
    %v4823 = vadd.f32 %v4817, %v1105
    %v4824 = vadd.f32 %v4818, %v1105
    %v4825 = vadd.f32 %v4819, %v1105
    %4832 = vset.pattern.permute.xlu0 0
    %4833 = vperm.xlu0 %4832, %v4820
    %v4834 = vpop.permute.xlu0 %4833
    %4835 = vset.pattern.permute.xlu0 0
    %4836 = vperm.xlu0 %4835, %v4821
    %v4837 = vpop.permute.xlu0 %4836
    %4838 = vset.pattern.permute.xlu0 0
    %4839 = vperm.xlu0 %4838, %v4822
    %v4840 = vpop.permute.xlu0 %4839
    %4841 = vset.pattern.permute.xlu0 0
    %4842 = vperm.xlu0 %4841, %v4823
    %v4843 = vpop.permute.xlu0 %4842
    %4844 = vset.pattern.permute.xlu0 0
    %4845 = vperm.xlu0 %4844, %v4824
    %v4846 = vpop.permute.xlu0 %4845
    %4847 = vset.pattern.permute.xlu0 0
    %4848 = vperm.xlu0 %4847, %v4825
    %v4849 = vpop.permute.xlu0 %4848
    %v4850 = vlaneseq
    %v4851 = vshrl.u32 %v4850, 7
    %v4852 = vsub.s32 %v196, %v4851
    %v4853 = vrot.slane %v4834, %v4852
    %v4854 = vlaneseq
    %v4855 = vshrl.u32 %v4854, 7
    %v4856 = vsub.s32 %v196, %v4855
    %v4857 = vrot.slane %v4837, %v4856
    %v4858 = vlaneseq
    %v4859 = vshrl.u32 %v4858, 7
    %v4860 = vsub.s32 %v196, %v4859
    %v4861 = vrot.slane %v4840, %v4860
    %v4862 = vlaneseq
    %v4863 = vshrl.u32 %v4862, 7
    %v4864 = vsub.s32 %v196, %v4863
    %v4865 = vrot.slane %v4843, %v4864
    %v4866 = vlaneseq
    %v4867 = vshrl.u32 %v4866, 7
    %v4868 = vsub.s32 %v196, %v4867
    %v4869 = vrot.slane %v4846, %v4868
    %v4870 = vlaneseq
    %v4871 = vshrl.u32 %v4870, 7
    %v4872 = vsub.s32 %v196, %v4871
    %v4873 = vrot.slane %v4849, %v4872
    %v4874 = vsel %vm808, %v4857, %v4853
    %v4875 = vsel %vm810, %v4861, %v4874
    %v4876 = vsel %vm812, %v4865, %v4875
    %v4877 = vsel %vm814, %v4869, %v4876
    %v4878 = vsel %vm816, %v4873, %v4877
    %v4880 = vsel %vm205, %v4878, -inf
    %4881 = vmax.xlane.f32.xlu0 %v4880
    %v4882 = vpop.xlane.xlu0 %4881
    %v4884 = vlaneseq
    %v4885 = vshrl.u32 %v4884, 7
    %v4886 = vsub.s32 0, %v4885
    %v4887 = vrot.slane %v4882, %v4886
    %v4888 = vlaneseq
    %v4889 = vshrl.u32 %v4888, 7
    %v4890 = vsub.s32 1, %v4889
    %v4891 = vrot.slane %v4882, %v4890
    %v4892 = vlaneseq
    %v4893 = vshrl.u32 %v4892, 7
    %v4894 = vsub.s32 2, %v4893
    %v4895 = vrot.slane %v4882, %v4894
    %v4896 = vlaneseq
    %v4897 = vshrl.u32 %v4896, 7
    %v4898 = vsub.s32 3, %v4897
    %v4899 = vrot.slane %v4882, %v4898
    %v4900 = vlaneseq
    %v4901 = vshrl.u32 %v4900, 7
    %v4902 = vsub.s32 4, %v4901
    %v4903 = vrot.slane %v4882, %v4902
    %v4904 = vlaneseq
    %v4905 = vshrl.u32 %v4904, 7
    %v4906 = vsub.s32 5, %v4905
    %v4907 = vrot.slane %v4882, %v4906
    %v4914 = vsub.f32 %v4820, %v4887
    %v4915 = vsub.f32 %v4821, %v4891
    %v4916 = vsub.f32 %v4822, %v4895
    %v4917 = vsub.f32 %v4823, %v4899
    %v4918 = vsub.f32 %v4824, %v4903
    %v4919 = vsub.f32 %v4825, %v4907
    %v4920 = vmul.f32 %v4914, 1.442695
    %v4921 = vpow.pop %v4920
    %v4922 = vmul.f32 %v4915, 1.442695
    %v4923 = vpow.pop %v4922
    %v4924 = vmul.f32 %v4916, 1.442695
    %v4925 = vpow.pop %v4924
    %v4926 = vmul.f32 %v4917, 1.442695
    %v4927 = vpow.pop %v4926
    %v4928 = vmul.f32 %v4918, 1.442695
    %v4929 = vpow.pop %v4928
    %v4930 = vmul.f32 %v4919, 1.442695
    %v4931 = vpow.pop %v4930
    %4938 = vset.pattern.permute.xlu0 0
    %4939 = vperm.xlu0 %4938, %v4921
    %v4940 = vpop.permute.xlu0 %4939
    %4941 = vset.pattern.permute.xlu0 0
    %4942 = vperm.xlu0 %4941, %v4923
    %v4943 = vpop.permute.xlu0 %4942
    %4944 = vset.pattern.permute.xlu0 0
    %4945 = vperm.xlu0 %4944, %v4925
    %v4946 = vpop.permute.xlu0 %4945
    %4947 = vset.pattern.permute.xlu0 0
    %4948 = vperm.xlu0 %4947, %v4927
    %v4949 = vpop.permute.xlu0 %4948
    %4950 = vset.pattern.permute.xlu0 0
    %4951 = vperm.xlu0 %4950, %v4929
    %v4952 = vpop.permute.xlu0 %4951
    %4953 = vset.pattern.permute.xlu0 0
    %4954 = vperm.xlu0 %4953, %v4931
    %v4955 = vpop.permute.xlu0 %4954
    %v4956 = vlaneseq
    %v4957 = vshrl.u32 %v4956, 7
    %v4958 = vsub.s32 %v196, %v4957
    %v4959 = vrot.slane %v4940, %v4958
    %v4960 = vlaneseq
    %v4961 = vshrl.u32 %v4960, 7
    %v4962 = vsub.s32 %v196, %v4961
    %v4963 = vrot.slane %v4943, %v4962
    %v4964 = vlaneseq
    %v4965 = vshrl.u32 %v4964, 7
    %v4966 = vsub.s32 %v196, %v4965
    %v4967 = vrot.slane %v4946, %v4966
    %v4968 = vlaneseq
    %v4969 = vshrl.u32 %v4968, 7
    %v4970 = vsub.s32 %v196, %v4969
    %v4971 = vrot.slane %v4949, %v4970
    %v4972 = vlaneseq
    %v4973 = vshrl.u32 %v4972, 7
    %v4974 = vsub.s32 %v196, %v4973
    %v4975 = vrot.slane %v4952, %v4974
    %v4976 = vlaneseq
    %v4977 = vshrl.u32 %v4976, 7
    %v4978 = vsub.s32 %v196, %v4977
    %v4979 = vrot.slane %v4955, %v4978
    %v4980 = vsel %vm808, %v4963, %v4959
    %v4981 = vsel %vm810, %v4967, %v4980
    %v4982 = vsel %vm812, %v4971, %v4981
    %v4983 = vsel %vm814, %v4975, %v4982
    %v4984 = vsel %vm816, %v4979, %v4983
    %v4986 = vsel %vm205, %v4984, 0.0
    %4987 = vadd.xlane.f32.xlu0 %v4986
    %v4988 = vpop.xlane.xlu0 %4987
    %v4990 = vlaneseq
    %v4991 = vshrl.u32 %v4990, 7
    %v4992 = vsub.s32 0, %v4991
    %v4993 = vrot.slane %v4988, %v4992
    %v4994 = vlaneseq
    %v4995 = vshrl.u32 %v4994, 7
    %v4996 = vsub.s32 1, %v4995
    %v4997 = vrot.slane %v4988, %v4996
    %v4998 = vlaneseq
    %v4999 = vshrl.u32 %v4998, 7
    %v5000 = vsub.s32 2, %v4999
    %v5001 = vrot.slane %v4988, %v5000
    %v5002 = vlaneseq
    %v5003 = vshrl.u32 %v5002, 7
    %v5004 = vsub.s32 3, %v5003
    %v5005 = vrot.slane %v4988, %v5004
    %v5006 = vlaneseq
    %v5007 = vshrl.u32 %v5006, 7
    %v5008 = vsub.s32 4, %v5007
    %v5009 = vrot.slane %v4988, %v5008
    %v5010 = vlaneseq
    %v5011 = vshrl.u32 %v5010, 7
    %v5012 = vsub.s32 5, %v5011
    %v5013 = vrot.slane %v4988, %v5012
    %v5020 = vrcp.pop %v4993
    %v5021 = vmul.f32 %v4921, %v5020
    %v5022 = vrcp.pop %v4997
    %v5023 = vmul.f32 %v4923, %v5022
    %v5024 = vrcp.pop %v5001
    %v5025 = vmul.f32 %v4925, %v5024
    %v5026 = vrcp.pop %v5005
    %v5027 = vmul.f32 %v4927, %v5026
    %v5028 = vrcp.pop %v5009
    %v5029 = vmul.f32 %v4929, %v5028
    %v5030 = vrcp.pop %v5013
    %v5031 = vmul.f32 %v4931, %v5030
    %5033 = vset.pattern.permute.xlu0 0
    %5034 = vperm.xlu0 %5033, %v5021
    %v5035 = vpop.permute.xlu0 %5034
    %5038 = vset.pattern.permute.xlu0 0
    %5039 = vperm.xlu0 %5038, %v5023
    %v5040 = vpop.permute.xlu0 %5039
    %5043 = vset.pattern.permute.xlu0 0
    %5044 = vperm.xlu0 %5043, %v5025
    %v5045 = vpop.permute.xlu0 %5044
    %5048 = vset.pattern.permute.xlu0 0
    %5049 = vperm.xlu0 %5048, %v5027
    %v5050 = vpop.permute.xlu0 %5049
    %5053 = vset.pattern.permute.xlu0 0
    %5054 = vperm.xlu0 %5053, %v5029
    %v5055 = vpop.permute.xlu0 %5054
    %5058 = vset.pattern.permute.xlu0 0
    %5059 = vperm.xlu0 %5058, %v5031
    %v5060 = vpop.permute.xlu0 %5059
    %v5062 = vmul.f32 %v5035, %v4264
    %v5063 = vmul.f32 %v5040, %v4265
    %v5064 = vmul.f32 %v5045, %v4266
    %v5065 = vmul.f32 %v5050, %v4267
    %v5066 = vmul.f32 %v5055, %v4268
    %v5067 = vmul.f32 %v5060, %v4269
    %v5068 = vsel %vm1355, %v5062, 0.0
    %v5069 = vrot.slane %v5068, 4
    %v5070 = vadd.f32 %v5068, %v5069
    %v5071 = vrot.slane %v5070, 2
    %v5072 = vadd.f32 %v5070, %v5071
    %v5073 = vrot.slane %v5072, 1
    %v5074 = vadd.f32 %v5072, %v5073
    %v5075 = vsel %vm1355, %v5063, 0.0
    %v5076 = vrot.slane %v5075, 4
    %v5077 = vadd.f32 %v5075, %v5076
    %v5078 = vrot.slane %v5077, 2
    %v5079 = vadd.f32 %v5077, %v5078
    %v5080 = vrot.slane %v5079, 1
    %v5081 = vadd.f32 %v5079, %v5080
    %v5082 = vsel %vm1355, %v5064, 0.0
    %v5083 = vrot.slane %v5082, 4
    %v5084 = vadd.f32 %v5082, %v5083
    %v5085 = vrot.slane %v5084, 2
    %v5086 = vadd.f32 %v5084, %v5085
    %v5087 = vrot.slane %v5086, 1
    %v5088 = vadd.f32 %v5086, %v5087
    %v5089 = vsel %vm1355, %v5065, 0.0
    %v5090 = vrot.slane %v5089, 4
    %v5091 = vadd.f32 %v5089, %v5090
    %v5092 = vrot.slane %v5091, 2
    %v5093 = vadd.f32 %v5091, %v5092
    %v5094 = vrot.slane %v5093, 1
    %v5095 = vadd.f32 %v5093, %v5094
    %v5096 = vsel %vm1355, %v5066, 0.0
    %v5097 = vrot.slane %v5096, 4
    %v5098 = vadd.f32 %v5096, %v5097
    %v5099 = vrot.slane %v5098, 2
    %v5100 = vadd.f32 %v5098, %v5099
    %v5101 = vrot.slane %v5100, 1
    %v5102 = vadd.f32 %v5100, %v5101
    %v5103 = vsel %vm1355, %v5067, 0.0
    %v5104 = vrot.slane %v5103, 4
    %v5105 = vadd.f32 %v5103, %v5104
    %v5106 = vrot.slane %v5105, 2
    %v5107 = vadd.f32 %v5105, %v5106
    %v5108 = vrot.slane %v5107, 1
    %v5109 = vadd.f32 %v5107, %v5108
    %5110 = vrot.lane.b32.xlu0 %v4452, 112
    %v5111 = vpop.permute.xlu0 %5110
    %5112 = vrot.lane.b32.xlu0 %v4453, 112
    %v5113 = vpop.permute.xlu0 %5112
    %5114 = vrot.lane.b32.xlu0 %v4454, 112
    %v5115 = vpop.permute.xlu0 %5114
    %5116 = vrot.lane.b32.xlu0 %v4455, 112
    %v5117 = vpop.permute.xlu0 %5116
    %5118 = vrot.lane.b32.xlu0 %v4456, 112
    %v5119 = vpop.permute.xlu0 %5118
    %5120 = vrot.lane.b32.xlu0 %v4457, 112
    %v5121 = vpop.permute.xlu0 %5120
    %v5128 = vsel %vm671, %v5111, 0.0
    %5129 = vadd.xlane.f32.xlu0 %v5128
    %v5130 = vpop.xlane.xlu0 %5129
    %v5131 = vsel %vm671, %v5113, 0.0
    %5132 = vadd.xlane.f32.xlu0 %v5131
    %v5133 = vpop.xlane.xlu0 %5132
    %v5134 = vsel %vm671, %v5115, 0.0
    %5135 = vadd.xlane.f32.xlu0 %v5134
    %v5136 = vpop.xlane.xlu0 %5135
    %v5137 = vsel %vm671, %v5117, 0.0
    %5138 = vadd.xlane.f32.xlu0 %v5137
    %v5139 = vpop.xlane.xlu0 %5138
    %v5140 = vsel %vm671, %v5119, 0.0
    %5141 = vadd.xlane.f32.xlu0 %v5140
    %v5142 = vpop.xlane.xlu0 %5141
    %v5143 = vsel %vm671, %v5121, 0.0
    %5144 = vadd.xlane.f32.xlu0 %v5143
    %v5145 = vpop.xlane.xlu0 %5144
    %v5146 = vadd.f32 %v5130, %v697
    %v5147 = vadd.f32 %v5133, %v704
    %v5148 = vadd.f32 %v5136, %v711
    %v5149 = vadd.f32 %v5139, %v718
    %v5150 = vadd.f32 %v5142, %v725
    %v5151 = vadd.f32 %v5145, %v732
    %v5152 = vadd.f32 %v5146, %v1447
    %v5153 = vadd.f32 %v5147, %v1447
    %v5154 = vadd.f32 %v5148, %v1447
    %v5155 = vadd.f32 %v5149, %v1447
    %v5156 = vadd.f32 %v5150, %v1447
    %v5157 = vadd.f32 %v5151, %v1447
    %5164 = vset.pattern.permute.xlu0 0
    %5165 = vperm.xlu0 %5164, %v5152
    %v5166 = vpop.permute.xlu0 %5165
    %5167 = vset.pattern.permute.xlu0 0
    %5168 = vperm.xlu0 %5167, %v5153
    %v5169 = vpop.permute.xlu0 %5168
    %5170 = vset.pattern.permute.xlu0 0
    %5171 = vperm.xlu0 %5170, %v5154
    %v5172 = vpop.permute.xlu0 %5171
    %5173 = vset.pattern.permute.xlu0 0
    %5174 = vperm.xlu0 %5173, %v5155
    %v5175 = vpop.permute.xlu0 %5174
    %5176 = vset.pattern.permute.xlu0 0
    %5177 = vperm.xlu0 %5176, %v5156
    %v5178 = vpop.permute.xlu0 %5177
    %5179 = vset.pattern.permute.xlu0 0
    %5180 = vperm.xlu0 %5179, %v5157
    %v5181 = vpop.permute.xlu0 %5180
    %v5182 = vlaneseq
    %v5183 = vshrl.u32 %v5182, 7
    %v5184 = vsub.s32 %v196, %v5183
    %v5185 = vrot.slane %v5166, %v5184
    %v5186 = vlaneseq
    %v5187 = vshrl.u32 %v5186, 7
    %v5188 = vsub.s32 %v196, %v5187
    %v5189 = vrot.slane %v5169, %v5188
    %v5190 = vlaneseq
    %v5191 = vshrl.u32 %v5190, 7
    %v5192 = vsub.s32 %v196, %v5191
    %v5193 = vrot.slane %v5172, %v5192
    %v5194 = vlaneseq
    %v5195 = vshrl.u32 %v5194, 7
    %v5196 = vsub.s32 %v196, %v5195
    %v5197 = vrot.slane %v5175, %v5196
    %v5198 = vlaneseq
    %v5199 = vshrl.u32 %v5198, 7
    %v5200 = vsub.s32 %v196, %v5199
    %v5201 = vrot.slane %v5178, %v5200
    %v5202 = vlaneseq
    %v5203 = vshrl.u32 %v5202, 7
    %v5204 = vsub.s32 %v196, %v5203
    %v5205 = vrot.slane %v5181, %v5204
    %v5206 = vsel %vm808, %v5189, %v5185
    %v5207 = vsel %vm810, %v5193, %v5206
    %v5208 = vsel %vm812, %v5197, %v5207
    %v5209 = vsel %vm814, %v5201, %v5208
    %v5210 = vsel %vm816, %v5205, %v5209
    %v5212 = vsel %vm205, %v5210, -inf
    %5213 = vmax.xlane.f32.xlu0 %v5212
    %v5214 = vpop.xlane.xlu0 %5213
    %v5216 = vlaneseq
    %v5217 = vshrl.u32 %v5216, 7
    %v5218 = vsub.s32 0, %v5217
    %v5219 = vrot.slane %v5214, %v5218
    %v5220 = vlaneseq
    %v5221 = vshrl.u32 %v5220, 7
    %v5222 = vsub.s32 1, %v5221
    %v5223 = vrot.slane %v5214, %v5222
    %v5224 = vlaneseq
    %v5225 = vshrl.u32 %v5224, 7
    %v5226 = vsub.s32 2, %v5225
    %v5227 = vrot.slane %v5214, %v5226
    %v5228 = vlaneseq
    %v5229 = vshrl.u32 %v5228, 7
    %v5230 = vsub.s32 3, %v5229
    %v5231 = vrot.slane %v5214, %v5230
    %v5232 = vlaneseq
    %v5233 = vshrl.u32 %v5232, 7
    %v5234 = vsub.s32 4, %v5233
    %v5235 = vrot.slane %v5214, %v5234
    %v5236 = vlaneseq
    %v5237 = vshrl.u32 %v5236, 7
    %v5238 = vsub.s32 5, %v5237
    %v5239 = vrot.slane %v5214, %v5238
    %v5246 = vsub.f32 %v5152, %v5219
    %v5247 = vsub.f32 %v5153, %v5223
    %v5248 = vsub.f32 %v5154, %v5227
    %v5249 = vsub.f32 %v5155, %v5231
    %v5250 = vsub.f32 %v5156, %v5235
    %v5251 = vsub.f32 %v5157, %v5239
    %v5252 = vmul.f32 %v5246, 1.442695
    %v5253 = vpow.pop %v5252
    %v5254 = vmul.f32 %v5247, 1.442695
    %v5255 = vpow.pop %v5254
    %v5256 = vmul.f32 %v5248, 1.442695
    %v5257 = vpow.pop %v5256
    %v5258 = vmul.f32 %v5249, 1.442695
    %v5259 = vpow.pop %v5258
    %v5260 = vmul.f32 %v5250, 1.442695
    %v5261 = vpow.pop %v5260
    %v5262 = vmul.f32 %v5251, 1.442695
    %v5263 = vpow.pop %v5262
    %5270 = vset.pattern.permute.xlu0 0
    %5271 = vperm.xlu0 %5270, %v5253
    %v5272 = vpop.permute.xlu0 %5271
    %5273 = vset.pattern.permute.xlu0 0
    %5274 = vperm.xlu0 %5273, %v5255
    %v5275 = vpop.permute.xlu0 %5274
    %5276 = vset.pattern.permute.xlu0 0
    %5277 = vperm.xlu0 %5276, %v5257
    %v5278 = vpop.permute.xlu0 %5277
    %5279 = vset.pattern.permute.xlu0 0
    %5280 = vperm.xlu0 %5279, %v5259
    %v5281 = vpop.permute.xlu0 %5280
    %5282 = vset.pattern.permute.xlu0 0
    %5283 = vperm.xlu0 %5282, %v5261
    %v5284 = vpop.permute.xlu0 %5283
    %5285 = vset.pattern.permute.xlu0 0
    %5286 = vperm.xlu0 %5285, %v5263
    %v5287 = vpop.permute.xlu0 %5286
    %v5288 = vlaneseq
    %v5289 = vshrl.u32 %v5288, 7
    %v5290 = vsub.s32 %v196, %v5289
    %v5291 = vrot.slane %v5272, %v5290
    %v5292 = vlaneseq
    %v5293 = vshrl.u32 %v5292, 7
    %v5294 = vsub.s32 %v196, %v5293
    %v5295 = vrot.slane %v5275, %v5294
    %v5296 = vlaneseq
    %v5297 = vshrl.u32 %v5296, 7
    %v5298 = vsub.s32 %v196, %v5297
    %v5299 = vrot.slane %v5278, %v5298
    %v5300 = vlaneseq
    %v5301 = vshrl.u32 %v5300, 7
    %v5302 = vsub.s32 %v196, %v5301
    %v5303 = vrot.slane %v5281, %v5302
    %v5304 = vlaneseq
    %v5305 = vshrl.u32 %v5304, 7
    %v5306 = vsub.s32 %v196, %v5305
    %v5307 = vrot.slane %v5284, %v5306
    %v5308 = vlaneseq
    %v5309 = vshrl.u32 %v5308, 7
    %v5310 = vsub.s32 %v196, %v5309
    %v5311 = vrot.slane %v5287, %v5310
    %v5312 = vsel %vm808, %v5295, %v5291
    %v5313 = vsel %vm810, %v5299, %v5312
    %v5314 = vsel %vm812, %v5303, %v5313
    %v5315 = vsel %vm814, %v5307, %v5314
    %v5316 = vsel %vm816, %v5311, %v5315
    %v5318 = vsel %vm205, %v5316, 0.0
    %5319 = vadd.xlane.f32.xlu0 %v5318
    %v5320 = vpop.xlane.xlu0 %5319
    %v5322 = vlaneseq
    %v5323 = vshrl.u32 %v5322, 7
    %v5324 = vsub.s32 0, %v5323
    %v5325 = vrot.slane %v5320, %v5324
    %v5326 = vlaneseq
    %v5327 = vshrl.u32 %v5326, 7
    %v5328 = vsub.s32 1, %v5327
    %v5329 = vrot.slane %v5320, %v5328
    %v5330 = vlaneseq
    %v5331 = vshrl.u32 %v5330, 7
    %v5332 = vsub.s32 2, %v5331
    %v5333 = vrot.slane %v5320, %v5332
    %v5334 = vlaneseq
    %v5335 = vshrl.u32 %v5334, 7
    %v5336 = vsub.s32 3, %v5335
    %v5337 = vrot.slane %v5320, %v5336
    %v5338 = vlaneseq
    %v5339 = vshrl.u32 %v5338, 7
    %v5340 = vsub.s32 4, %v5339
    %v5341 = vrot.slane %v5320, %v5340
    %v5342 = vlaneseq
    %v5343 = vshrl.u32 %v5342, 7
    %v5344 = vsub.s32 5, %v5343
    %v5345 = vrot.slane %v5320, %v5344
    %v5352 = vrcp.pop %v5325
    %v5353 = vmul.f32 %v5253, %v5352
    %v5354 = vrcp.pop %v5329
    %v5355 = vmul.f32 %v5255, %v5354
    %v5356 = vrcp.pop %v5333
    %v5357 = vmul.f32 %v5257, %v5356
    %v5358 = vrcp.pop %v5337
    %v5359 = vmul.f32 %v5259, %v5358
    %v5360 = vrcp.pop %v5341
    %v5361 = vmul.f32 %v5261, %v5360
    %v5362 = vrcp.pop %v5345
    %v5363 = vmul.f32 %v5263, %v5362
    %5365 = vset.pattern.permute.xlu0 0
    %5366 = vperm.xlu0 %5365, %v5353
    %v5367 = vpop.permute.xlu0 %5366
    %5370 = vset.pattern.permute.xlu0 0
    %5371 = vperm.xlu0 %5370, %v5355
    %v5372 = vpop.permute.xlu0 %5371
    %5375 = vset.pattern.permute.xlu0 0
    %5376 = vperm.xlu0 %5375, %v5357
    %v5377 = vpop.permute.xlu0 %5376
    %5380 = vset.pattern.permute.xlu0 0
    %5381 = vperm.xlu0 %5380, %v5359
    %v5382 = vpop.permute.xlu0 %5381
    %5385 = vset.pattern.permute.xlu0 0
    %5386 = vperm.xlu0 %5385, %v5361
    %v5387 = vpop.permute.xlu0 %5386
    %5390 = vset.pattern.permute.xlu0 0
    %5391 = vperm.xlu0 %5390, %v5363
    %v5392 = vpop.permute.xlu0 %5391
    %v5394 = vmul.f32 %v5367, %v4264
    %v5395 = vmul.f32 %v5372, %v4265
    %v5396 = vmul.f32 %v5377, %v4266
    %v5397 = vmul.f32 %v5382, %v4267
    %v5398 = vmul.f32 %v5387, %v4268
    %v5399 = vmul.f32 %v5392, %v4269
    %v5400 = vsel %vm1697, %v5394, 0.0
    %v5401 = vrot.slane %v5400, 4
    %v5402 = vadd.f32 %v5400, %v5401
    %v5403 = vrot.slane %v5402, 2
    %v5404 = vadd.f32 %v5402, %v5403
    %v5405 = vrot.slane %v5404, 1
    %v5406 = vadd.f32 %v5404, %v5405
    %v5407 = vsel %vm1697, %v5395, 0.0
    %v5408 = vrot.slane %v5407, 4
    %v5409 = vadd.f32 %v5407, %v5408
    %v5410 = vrot.slane %v5409, 2
    %v5411 = vadd.f32 %v5409, %v5410
    %v5412 = vrot.slane %v5411, 1
    %v5413 = vadd.f32 %v5411, %v5412
    %v5414 = vsel %vm1697, %v5396, 0.0
    %v5415 = vrot.slane %v5414, 4
    %v5416 = vadd.f32 %v5414, %v5415
    %v5417 = vrot.slane %v5416, 2
    %v5418 = vadd.f32 %v5416, %v5417
    %v5419 = vrot.slane %v5418, 1
    %v5420 = vadd.f32 %v5418, %v5419
    %v5421 = vsel %vm1697, %v5397, 0.0
    %v5422 = vrot.slane %v5421, 4
    %v5423 = vadd.f32 %v5421, %v5422
    %v5424 = vrot.slane %v5423, 2
    %v5425 = vadd.f32 %v5423, %v5424
    %v5426 = vrot.slane %v5425, 1
    %v5427 = vadd.f32 %v5425, %v5426
    %v5428 = vsel %vm1697, %v5398, 0.0
    %v5429 = vrot.slane %v5428, 4
    %v5430 = vadd.f32 %v5428, %v5429
    %v5431 = vrot.slane %v5430, 2
    %v5432 = vadd.f32 %v5430, %v5431
    %v5433 = vrot.slane %v5432, 1
    %v5434 = vadd.f32 %v5432, %v5433
    %v5435 = vsel %vm1697, %v5399, 0.0
    %v5436 = vrot.slane %v5435, 4
    %v5437 = vadd.f32 %v5435, %v5436
    %v5438 = vrot.slane %v5437, 2
    %v5439 = vadd.f32 %v5437, %v5438
    %v5440 = vrot.slane %v5439, 1
    %v5441 = vadd.f32 %v5439, %v5440
    %5442 = vrot.lane.b32.xlu0 %v4452, 104
    %v5443 = vpop.permute.xlu0 %5442
    %5444 = vrot.lane.b32.xlu0 %v4453, 104
    %v5445 = vpop.permute.xlu0 %5444
    %5446 = vrot.lane.b32.xlu0 %v4454, 104
    %v5447 = vpop.permute.xlu0 %5446
    %5448 = vrot.lane.b32.xlu0 %v4455, 104
    %v5449 = vpop.permute.xlu0 %5448
    %5450 = vrot.lane.b32.xlu0 %v4456, 104
    %v5451 = vpop.permute.xlu0 %5450
    %5452 = vrot.lane.b32.xlu0 %v4457, 104
    %v5453 = vpop.permute.xlu0 %5452
    %v5460 = vsel %vm671, %v5443, 0.0
    %5461 = vadd.xlane.f32.xlu0 %v5460
    %v5462 = vpop.xlane.xlu0 %5461
    %v5463 = vsel %vm671, %v5445, 0.0
    %5464 = vadd.xlane.f32.xlu0 %v5463
    %v5465 = vpop.xlane.xlu0 %5464
    %v5466 = vsel %vm671, %v5447, 0.0
    %5467 = vadd.xlane.f32.xlu0 %v5466
    %v5468 = vpop.xlane.xlu0 %5467
    %v5469 = vsel %vm671, %v5449, 0.0
    %5470 = vadd.xlane.f32.xlu0 %v5469
    %v5471 = vpop.xlane.xlu0 %5470
    %v5472 = vsel %vm671, %v5451, 0.0
    %5473 = vadd.xlane.f32.xlu0 %v5472
    %v5474 = vpop.xlane.xlu0 %5473
    %v5475 = vsel %vm671, %v5453, 0.0
    %5476 = vadd.xlane.f32.xlu0 %v5475
    %v5477 = vpop.xlane.xlu0 %5476
    %v5478 = vadd.f32 %v5462, %v697
    %v5479 = vadd.f32 %v5465, %v704
    %v5480 = vadd.f32 %v5468, %v711
    %v5481 = vadd.f32 %v5471, %v718
    %v5482 = vadd.f32 %v5474, %v725
    %v5483 = vadd.f32 %v5477, %v732
    %v5484 = vadd.f32 %v5478, %v1789
    %v5485 = vadd.f32 %v5479, %v1789
    %v5486 = vadd.f32 %v5480, %v1789
    %v5487 = vadd.f32 %v5481, %v1789
    %v5488 = vadd.f32 %v5482, %v1789
    %v5489 = vadd.f32 %v5483, %v1789
    %5496 = vset.pattern.permute.xlu0 0
    %5497 = vperm.xlu0 %5496, %v5484
    %v5498 = vpop.permute.xlu0 %5497
    %5499 = vset.pattern.permute.xlu0 0
    %5500 = vperm.xlu0 %5499, %v5485
    %v5501 = vpop.permute.xlu0 %5500
    %5502 = vset.pattern.permute.xlu0 0
    %5503 = vperm.xlu0 %5502, %v5486
    %v5504 = vpop.permute.xlu0 %5503
    %5505 = vset.pattern.permute.xlu0 0
    %5506 = vperm.xlu0 %5505, %v5487
    %v5507 = vpop.permute.xlu0 %5506
    %5508 = vset.pattern.permute.xlu0 0
    %5509 = vperm.xlu0 %5508, %v5488
    %v5510 = vpop.permute.xlu0 %5509
    %5511 = vset.pattern.permute.xlu0 0
    %5512 = vperm.xlu0 %5511, %v5489
    %v5513 = vpop.permute.xlu0 %5512
    %v5514 = vlaneseq
    %v5515 = vshrl.u32 %v5514, 7
    %v5516 = vsub.s32 %v196, %v5515
    %v5517 = vrot.slane %v5498, %v5516
    %v5518 = vlaneseq
    %v5519 = vshrl.u32 %v5518, 7
    %v5520 = vsub.s32 %v196, %v5519
    %v5521 = vrot.slane %v5501, %v5520
    %v5522 = vlaneseq
    %v5523 = vshrl.u32 %v5522, 7
    %v5524 = vsub.s32 %v196, %v5523
    %v5525 = vrot.slane %v5504, %v5524
    %v5526 = vlaneseq
    %v5527 = vshrl.u32 %v5526, 7
    %v5528 = vsub.s32 %v196, %v5527
    %v5529 = vrot.slane %v5507, %v5528
    %v5530 = vlaneseq
    %v5531 = vshrl.u32 %v5530, 7
    %v5532 = vsub.s32 %v196, %v5531
    %v5533 = vrot.slane %v5510, %v5532
    %v5534 = vlaneseq
    %v5535 = vshrl.u32 %v5534, 7
    %v5536 = vsub.s32 %v196, %v5535
    %v5537 = vrot.slane %v5513, %v5536
    %v5538 = vsel %vm808, %v5521, %v5517
    %v5539 = vsel %vm810, %v5525, %v5538
    %v5540 = vsel %vm812, %v5529, %v5539
    %v5541 = vsel %vm814, %v5533, %v5540
    %v5542 = vsel %vm816, %v5537, %v5541
    %v5544 = vsel %vm205, %v5542, -inf
    %5545 = vmax.xlane.f32.xlu0 %v5544
    %v5546 = vpop.xlane.xlu0 %5545
    %v5548 = vlaneseq
    %v5549 = vshrl.u32 %v5548, 7
    %v5550 = vsub.s32 0, %v5549
    %v5551 = vrot.slane %v5546, %v5550
    %v5552 = vlaneseq
    %v5553 = vshrl.u32 %v5552, 7
    %v5554 = vsub.s32 1, %v5553
    %v5555 = vrot.slane %v5546, %v5554
    %v5556 = vlaneseq
    %v5557 = vshrl.u32 %v5556, 7
    %v5558 = vsub.s32 2, %v5557
    %v5559 = vrot.slane %v5546, %v5558
    %v5560 = vlaneseq
    %v5561 = vshrl.u32 %v5560, 7
    %v5562 = vsub.s32 3, %v5561
    %v5563 = vrot.slane %v5546, %v5562
    %v5564 = vlaneseq
    %v5565 = vshrl.u32 %v5564, 7
    %v5566 = vsub.s32 4, %v5565
    %v5567 = vrot.slane %v5546, %v5566
    %v5568 = vlaneseq
    %v5569 = vshrl.u32 %v5568, 7
    %v5570 = vsub.s32 5, %v5569
    %v5571 = vrot.slane %v5546, %v5570
    %v5578 = vsub.f32 %v5484, %v5551
    %v5579 = vsub.f32 %v5485, %v5555
    %v5580 = vsub.f32 %v5486, %v5559
    %v5581 = vsub.f32 %v5487, %v5563
    %v5582 = vsub.f32 %v5488, %v5567
    %v5583 = vsub.f32 %v5489, %v5571
    %v5584 = vmul.f32 %v5578, 1.442695
    %v5585 = vpow.pop %v5584
    %v5586 = vmul.f32 %v5579, 1.442695
    %v5587 = vpow.pop %v5586
    %v5588 = vmul.f32 %v5580, 1.442695
    %v5589 = vpow.pop %v5588
    %v5590 = vmul.f32 %v5581, 1.442695
    %v5591 = vpow.pop %v5590
    %v5592 = vmul.f32 %v5582, 1.442695
    %v5593 = vpow.pop %v5592
    %v5594 = vmul.f32 %v5583, 1.442695
    %v5595 = vpow.pop %v5594
    %5602 = vset.pattern.permute.xlu0 0
    %5603 = vperm.xlu0 %5602, %v5585
    %v5604 = vpop.permute.xlu0 %5603
    %5605 = vset.pattern.permute.xlu0 0
    %5606 = vperm.xlu0 %5605, %v5587
    %v5607 = vpop.permute.xlu0 %5606
    %5608 = vset.pattern.permute.xlu0 0
    %5609 = vperm.xlu0 %5608, %v5589
    %v5610 = vpop.permute.xlu0 %5609
    %5611 = vset.pattern.permute.xlu0 0
    %5612 = vperm.xlu0 %5611, %v5591
    %v5613 = vpop.permute.xlu0 %5612
    %5614 = vset.pattern.permute.xlu0 0
    %5615 = vperm.xlu0 %5614, %v5593
    %v5616 = vpop.permute.xlu0 %5615
    %5617 = vset.pattern.permute.xlu0 0
    %5618 = vperm.xlu0 %5617, %v5595
    %v5619 = vpop.permute.xlu0 %5618
    %v5620 = vlaneseq
    %v5621 = vshrl.u32 %v5620, 7
    %v5622 = vsub.s32 %v196, %v5621
    %v5623 = vrot.slane %v5604, %v5622
    %v5624 = vlaneseq
    %v5625 = vshrl.u32 %v5624, 7
    %v5626 = vsub.s32 %v196, %v5625
    %v5627 = vrot.slane %v5607, %v5626
    %v5628 = vlaneseq
    %v5629 = vshrl.u32 %v5628, 7
    %v5630 = vsub.s32 %v196, %v5629
    %v5631 = vrot.slane %v5610, %v5630
    %v5632 = vlaneseq
    %v5633 = vshrl.u32 %v5632, 7
    %v5634 = vsub.s32 %v196, %v5633
    %v5635 = vrot.slane %v5613, %v5634
    %v5636 = vlaneseq
    %v5637 = vshrl.u32 %v5636, 7
    %v5638 = vsub.s32 %v196, %v5637
    %v5639 = vrot.slane %v5616, %v5638
    %v5640 = vlaneseq
    %v5641 = vshrl.u32 %v5640, 7
    %v5642 = vsub.s32 %v196, %v5641
    %v5643 = vrot.slane %v5619, %v5642
    %v5644 = vsel %vm808, %v5627, %v5623
    %v5645 = vsel %vm810, %v5631, %v5644
    %v5646 = vsel %vm812, %v5635, %v5645
    %v5647 = vsel %vm814, %v5639, %v5646
    %v5648 = vsel %vm816, %v5643, %v5647
    %v5650 = vsel %vm205, %v5648, 0.0
    %5651 = vadd.xlane.f32.xlu0 %v5650
    %v5652 = vpop.xlane.xlu0 %5651
    %v5654 = vlaneseq
    %v5655 = vshrl.u32 %v5654, 7
    %v5656 = vsub.s32 0, %v5655
    %v5657 = vrot.slane %v5652, %v5656
    %v5658 = vlaneseq
    %v5659 = vshrl.u32 %v5658, 7
    %v5660 = vsub.s32 1, %v5659
    %v5661 = vrot.slane %v5652, %v5660
    %v5662 = vlaneseq
    %v5663 = vshrl.u32 %v5662, 7
    %v5664 = vsub.s32 2, %v5663
    %v5665 = vrot.slane %v5652, %v5664
    %v5666 = vlaneseq
    %v5667 = vshrl.u32 %v5666, 7
    %v5668 = vsub.s32 3, %v5667
    %v5669 = vrot.slane %v5652, %v5668
    %v5670 = vlaneseq
    %v5671 = vshrl.u32 %v5670, 7
    %v5672 = vsub.s32 4, %v5671
    %v5673 = vrot.slane %v5652, %v5672
    %v5674 = vlaneseq
    %v5675 = vshrl.u32 %v5674, 7
    %v5676 = vsub.s32 5, %v5675
    %v5677 = vrot.slane %v5652, %v5676
    %v5684 = vrcp.pop %v5657
    %v5685 = vmul.f32 %v5585, %v5684
    %v5686 = vrcp.pop %v5661
    %v5687 = vmul.f32 %v5587, %v5686
    %v5688 = vrcp.pop %v5665
    %v5689 = vmul.f32 %v5589, %v5688
    %v5690 = vrcp.pop %v5669
    %v5691 = vmul.f32 %v5591, %v5690
    %v5692 = vrcp.pop %v5673
    %v5693 = vmul.f32 %v5593, %v5692
    %v5694 = vrcp.pop %v5677
    %v5695 = vmul.f32 %v5595, %v5694
    %5697 = vset.pattern.permute.xlu0 0
    %5698 = vperm.xlu0 %5697, %v5685
    %v5699 = vpop.permute.xlu0 %5698
    %5702 = vset.pattern.permute.xlu0 0
    %5703 = vperm.xlu0 %5702, %v5687
    %v5704 = vpop.permute.xlu0 %5703
    %5707 = vset.pattern.permute.xlu0 0
    %5708 = vperm.xlu0 %5707, %v5689
    %v5709 = vpop.permute.xlu0 %5708
    %5712 = vset.pattern.permute.xlu0 0
    %5713 = vperm.xlu0 %5712, %v5691
    %v5714 = vpop.permute.xlu0 %5713
    %5717 = vset.pattern.permute.xlu0 0
    %5718 = vperm.xlu0 %5717, %v5693
    %v5719 = vpop.permute.xlu0 %5718
    %5722 = vset.pattern.permute.xlu0 0
    %5723 = vperm.xlu0 %5722, %v5695
    %v5724 = vpop.permute.xlu0 %5723
    %v5726 = vmul.f32 %v5699, %v4264
    %v5727 = vmul.f32 %v5704, %v4265
    %v5728 = vmul.f32 %v5709, %v4266
    %v5729 = vmul.f32 %v5714, %v4267
    %v5730 = vmul.f32 %v5719, %v4268
    %v5731 = vmul.f32 %v5724, %v4269
    %v5732 = vsel %vm2039, %v5726, 0.0
    %v5733 = vrot.slane %v5732, 4
    %v5734 = vadd.f32 %v5732, %v5733
    %v5735 = vrot.slane %v5734, 2
    %v5736 = vadd.f32 %v5734, %v5735
    %v5737 = vrot.slane %v5736, 1
    %v5738 = vadd.f32 %v5736, %v5737
    %v5739 = vsel %vm2039, %v5727, 0.0
    %v5740 = vrot.slane %v5739, 4
    %v5741 = vadd.f32 %v5739, %v5740
    %v5742 = vrot.slane %v5741, 2
    %v5743 = vadd.f32 %v5741, %v5742
    %v5744 = vrot.slane %v5743, 1
    %v5745 = vadd.f32 %v5743, %v5744
    %v5746 = vsel %vm2039, %v5728, 0.0
    %v5747 = vrot.slane %v5746, 4
    %v5748 = vadd.f32 %v5746, %v5747
    %v5749 = vrot.slane %v5748, 2
    %v5750 = vadd.f32 %v5748, %v5749
    %v5751 = vrot.slane %v5750, 1
    %v5752 = vadd.f32 %v5750, %v5751
    %v5753 = vsel %vm2039, %v5729, 0.0
    %v5754 = vrot.slane %v5753, 4
    %v5755 = vadd.f32 %v5753, %v5754
    %v5756 = vrot.slane %v5755, 2
    %v5757 = vadd.f32 %v5755, %v5756
    %v5758 = vrot.slane %v5757, 1
    %v5759 = vadd.f32 %v5757, %v5758
    %v5760 = vsel %vm2039, %v5730, 0.0
    %v5761 = vrot.slane %v5760, 4
    %v5762 = vadd.f32 %v5760, %v5761
    %v5763 = vrot.slane %v5762, 2
    %v5764 = vadd.f32 %v5762, %v5763
    %v5765 = vrot.slane %v5764, 1
    %v5766 = vadd.f32 %v5764, %v5765
    %v5767 = vsel %vm2039, %v5731, 0.0
    %v5768 = vrot.slane %v5767, 4
    %v5769 = vadd.f32 %v5767, %v5768
    %v5770 = vrot.slane %v5769, 2
    %v5771 = vadd.f32 %v5769, %v5770
    %v5772 = vrot.slane %v5771, 1
    %v5773 = vadd.f32 %v5771, %v5772
    %v5780 = vsel %vm808, %v4743, %v4736
    %v5781 = vsel %vm810, %v4750, %v5780
    %v5782 = vsel %vm812, %v4757, %v5781
    %v5783 = vsel %vm814, %v4764, %v5782
    %v5784 = vsel %vm816, %v4771, %v5783
    %5785 = vrot.lane.b32.xlu0 %v5784, 64
    %v5786 = vpop.permute.xlu0 %5785
    %v5794 = vsel %vm808, %v5081, %v5074
    %v5795 = vsel %vm810, %v5088, %v5794
    %v5796 = vsel %vm812, %v5095, %v5795
    %v5797 = vsel %vm814, %v5102, %v5796
    %v5798 = vsel %vm816, %v5109, %v5797
    %5799 = vrot.lane.b32.xlu0 %v5798, 64
    %v5800 = vpop.permute.xlu0 %5799
    %v5808 = vsel %vm808, %v5413, %v5406
    %v5809 = vsel %vm810, %v5420, %v5808
    %v5810 = vsel %vm812, %v5427, %v5809
    %v5811 = vsel %vm814, %v5434, %v5810
    %v5812 = vsel %vm816, %v5441, %v5811
    %5813 = vrot.lane.b32.xlu0 %v5812, 64
    %v5814 = vpop.permute.xlu0 %5813
    %v5822 = vsel %vm808, %v5745, %v5738
    %v5823 = vsel %vm810, %v5752, %v5822
    %v5824 = vsel %vm812, %v5759, %v5823
    %v5825 = vsel %vm814, %v5766, %v5824
    %v5826 = vsel %vm816, %v5773, %v5825
    %5827 = vrot.lane.b32.xlu0 %v5826, 64
    %v5828 = vpop.permute.xlu0 %5827
    %v5830 = vsel %vm2138, %v5786, %v5800
    %v5831 = vsel %vm2140, %v5830, %v5814
    %v5832 = vsel %vm2142, %v5831, %v5828
    %v5833 = vpack.c.bf16 %v5832, %v5832
    %s5834 = scalar_lea.vmem %s14, 16
    %v5835 = vld [vmem:[%s5834] sm:$0xf]
    %v5836 = vld [vmem:[%s5834 + $0x4] sm:$0xf]
    %v5837 = vld [vmem:[%s5834 + $0x8] sm:$0xf]
    %v5838 = vld [vmem:[%s5834 + $0xc] sm:$0xf]
    %v5843 = vunpack.c.l.b16 %v5835
    %v5844 = vunpack.c.l.b16 %v5836
    %v5845 = vunpack.c.l.b16 %v5837
    %v5846 = vunpack.c.l.b16 %v5838
    %v5847 = vpack.c.b16 %v5844, %v5843
    %v5848 = vpack.c.b16 %v5846, %v5845
    %v5852 = vsel %vm245, %v5833, 0
    %5854 = vmatprep.subr.bf16.mxu0 0
    %5855 = vmatpush1.bf16.msra.mxu0 %v5847
    %5856 = vmatprep.subr.bf16.mxu0 0
    %5857 = vmatpush1.bf16.msra.mxu0 %v5848
    %5858 = vmatprep.subr.bf16.mxu0 0
    %5859 = vmatpush1.bf16.msra.mxu0 0
    %5860 = vmatprep.subr.bf16.mxu0 0
    %5861 = vmatpush1.bf16.msra.mxu0 0
    %5862 = vmatprep.subr.bf16.mxu0 0
    %5863 = vmatpush1.bf16.msra.mxu0 0
    %5864 = vmatprep.subr.bf16.mxu0 0
    %5865 = vmatpush1.bf16.msra.mxu0 0
    %5866 = vmatprep.subr.bf16.mxu0 0
    %5867 = vmatpush1.bf16.msra.mxu0 0
    %5868 = vmatprep.subr.bf16.mxu0 0
    %5869 = vmatpush1.bf16.msra.mxu0 0
    %5870 = vmatprep.subr.bf16.mxu0 0
    %5871 = vmatpush1.bf16.msra.mxu0 0
    %5872 = vmatprep.subr.bf16.mxu0 0
    %5873 = vmatpush1.bf16.msra.mxu0 0
    %5874 = vmatprep.subr.bf16.mxu0 0
    %5875 = vmatpush1.bf16.msra.mxu0 0
    %5876 = vmatprep.subr.bf16.mxu0 0
    %5877 = vmatpush1.bf16.msra.mxu0 0
    %5878 = vmatprep.subr.bf16.mxu0 0
    %5879 = vmatpush1.bf16.msra.mxu0 0
    %5880 = vmatprep.subr.bf16.mxu0 0
    %5881 = vmatpush1.bf16.msra.mxu0 0
    %5882 = vmatprep.subr.bf16.mxu0 0
    %5883 = vmatpush1.bf16.msra.mxu0 0
    %5884 = vmatprep.subr.bf16.mxu0 0
    %5885 = vmatpush1.bf16.msra.mxu0 0
    %5886 = vmatprep.mubr.bf16.mxu0 0
    %5887 = vmatmul.mubr.bf16.gmra.mrb[0].mxu0 %v5852
    %v5888 = vpop.f32.mrb[0].mxu0
    %v5889 = vadd.f32 0.0, %v5888
    %v5890 = vpop.f32.mrb[0].mxu0
    %v5891 = vpop.f32.mrb[0].mxu0
    %v5892 = vpop.f32.mrb[0].mxu0
    %5893 = vdwg.mxu0
    %v5894 = vadd.f32 %v3993, %v5889
    %s5895 = scalar_lea.vmem %s15, 1
    %v5896 = vld [vmem:[%s5895] sm:$0x1]
    %v5897 = vmul.f32 %v5894, %v5894
    %v5898 = vsel %vm212, %v5897, 0.0
    %5899 = vadd.xlane.f32.xlu0 %v5898
    %v5900 = vpop.xlane.xlu0 %5899
    %v5901 = vmul.f32 %v5900, %v216
    %v5902 = vadd.f32 %v5901, 1e-06
    %v5903 = vrsqrt.pop %v5902
    %v5904 = vmul.f32 %v5894, %v5903
    %v5906 = vlaneseq
    %v5907 = vshrl.u32 %v5906, 7
    %v5908 = vsub.s32 0, %v5907
    %v5909 = vrot.slane %v5896, %v5908
    %v5911 = vmul.f32 %v5904, %v5909
    %v5912 = vpack.c.bf16 %v5911, %v5911
    %s5913 = scalar_lea.vmem %s16, 16
    %v5914 = vld [vmem:[%s5913] sm:$0xf]
    %v5915 = vld [vmem:[%s5913 + $0x4] sm:$0xf]
    %v5916 = vld [vmem:[%s5913 + $0x8] sm:$0xf]
    %v5917 = vld [vmem:[%s5913 + $0xc] sm:$0xf]
    %v5922 = vunpack.c.l.b16 %v5914
    %v5923 = vunpack.c.l.b16 %v5915
    %v5924 = vunpack.c.l.b16 %v5916
    %v5925 = vunpack.c.l.b16 %v5917
    %v5926 = vpack.c.b16 %v5923, %v5922
    %v5927 = vpack.c.b16 %v5925, %v5924
    %v5931 = vsel %vm245, %v5912, 0
    %5933 = vmatprep.subr.bf16.mxu0 0
    %5934 = vmatpush1.bf16.msra.mxu0 %v5926
    %5935 = vmatprep.subr.bf16.mxu0 0
    %5936 = vmatpush1.bf16.msra.mxu0 %v5927
    %5937 = vmatprep.subr.bf16.mxu0 0
    %5938 = vmatpush1.bf16.msra.mxu0 0
    %5939 = vmatprep.subr.bf16.mxu0 0
    %5940 = vmatpush1.bf16.msra.mxu0 0
    %5941 = vmatprep.subr.bf16.mxu0 0
    %5942 = vmatpush1.bf16.msra.mxu0 0
    %5943 = vmatprep.subr.bf16.mxu0 0
    %5944 = vmatpush1.bf16.msra.mxu0 0
    %5945 = vmatprep.subr.bf16.mxu0 0
    %5946 = vmatpush1.bf16.msra.mxu0 0
    %5947 = vmatprep.subr.bf16.mxu0 0
    %5948 = vmatpush1.bf16.msra.mxu0 0
    %5949 = vmatprep.subr.bf16.mxu0 0
    %5950 = vmatpush1.bf16.msra.mxu0 0
    %5951 = vmatprep.subr.bf16.mxu0 0
    %5952 = vmatpush1.bf16.msra.mxu0 0
    %5953 = vmatprep.subr.bf16.mxu0 0
    %5954 = vmatpush1.bf16.msra.mxu0 0
    %5955 = vmatprep.subr.bf16.mxu0 0
    %5956 = vmatpush1.bf16.msra.mxu0 0
    %5957 = vmatprep.subr.bf16.mxu0 0
    %5958 = vmatpush1.bf16.msra.mxu0 0
    %5959 = vmatprep.subr.bf16.mxu0 0
    %5960 = vmatpush1.bf16.msra.mxu0 0
    %5961 = vmatprep.subr.bf16.mxu0 0
    %5962 = vmatpush1.bf16.msra.mxu0 0
    %5963 = vmatprep.subr.bf16.mxu0 0
    %5964 = vmatpush1.bf16.msra.mxu0 0
    %5965 = vmatprep.mubr.bf16.mxu0 0
    %5966 = vmatmul.mubr.bf16.gmra.mrb[0].mxu0 %v5931
    %v5967 = vpop.f32.mrb[0].mxu0
    %v5968 = vadd.f32 0.0, %v5967
    %v5969 = vpop.f32.mrb[0].mxu0
    %v5970 = vpop.f32.mrb[0].mxu0
    %v5971 = vpop.f32.mrb[0].mxu0
    %5972 = vdwg.mxu0
    %s5973 = scalar_lea.vmem %s8, 8
    %v5974 = vld [vmem:[%s5973] sm:$0xf]
    %v5975 = vld [vmem:[%s5973 + $0x4] sm:$0xf]
    %v5976 = vunpack.c.l.bf16 %v5974
    %v5977 = vunpack.c.l.bf16 %v5975
    %s5978 = scalar_lea.vmem %s9, 8
    %v5979 = vld [vmem:[%s5978] sm:$0xf]
    %v5980 = vld [vmem:[%s5978 + $0x4] sm:$0xf]
    %v5981 = vunpack.c.l.bf16 %v5979
    %v5982 = vunpack.c.l.bf16 %v5980
    %v5983 = vld [vmem:[%s10] sm:$0x3]
    %v5986 = vunpack.c.l.s4 1966171168
    %v5987 = vunpack.c.0.s8 %v5986
    %v5988 = vlaneseq
    %v5989 = vshrl.u32 %v5988, 7
    %v5990 = vsub.s32 %v5987, %v5989
    %v5991 = vrot.slane %v5968, %v5990
    %v5992 = vcombine.high %v5991, %v5991
    %v5994 = vunpack.c.l.s4 1966171168
    %v5995 = vunpack.c.0.s8 %v5994
    %v5996 = vlaneseq
    %v5997 = vshrl.u32 %v5996, 7
    %v5998 = vsub.s32 %v5995, %v5997
    %v5999 = vrot.slane %v5991, %v5998
    %v6001 = vunpack.c.l.s4 1966171168
    %v6002 = vunpack.c.0.s8 %v6001
    %v6003 = vlaneseq
    %v6004 = vshrl.u32 %v6003, 7
    %v6005 = vsub.s32 %v6002, %v6004
    %v6006 = vrot.slane %v5992, %v6005
    %v6007 = vcombine.high %v5999, %v5999
    %v6008 = vlaneseq
    %v6009 = vshrl.u32 %v6008, 7
    %v6010 = vsub.s32 0, %v6009
    %v6011 = vrot.slane %v5999, %v6010
    %v6012 = vlaneseq
    %v6013 = vshrl.u32 %v6012, 7
    %v6014 = vsub.s32 0, %v6013
    %v6015 = vrot.slane %v6006, %v6014
    %v6016 = vlaneseq
    %v6017 = vshrl.u32 %v6016, 7
    %v6018 = vsub.s32 0, %v6017
    %v6019 = vrot.slane %v6007, %v6018
    %v6023 = vmul.f32 %v6011, %v5976
    %v6024 = vmul.f32 %v6015, %v5976
    %v6025 = vmul.f32 %v6019, %v5976
    %v6026 = vsel %vm2138, %v6023, 0.0
    %6027 = vadd.xlane.f32.xlu0 %v6026
    %v6028 = vpop.xlane.xlu0 %6027
    %v6029 = vsel %vm2138, %v6024, 0.0
    %6030 = vadd.xlane.f32.xlu0 %v6029
    %v6031 = vpop.xlane.xlu0 %6030
    %v6032 = vsel %vm2138, %v6025, 0.0
    %6033 = vadd.xlane.f32.xlu0 %v6032
    %v6034 = vpop.xlane.xlu0 %6033
    %v6035 = vlaneseq
    %v6036 = vshrl.u32 %v6035, 7
    %v6037 = vsub.s32 0, %v6036
    %v6038 = vrot.slane %v5983, %v6037
    %6041 = vbcast.lane.b32.xlu0 %v6038, 256
    %v6042 = vpop.permute.xlu0 %6041
    %v6044 = vadd.f32 %v6028, %v6042
    %v6045 = vadd.f32 %v6031, %v6042
    %v6046 = vadd.f32 %v6034, %v6042
    %6050 = vset.pattern.permute.xlu0 0
    %6051 = vperm.xlu0 %6050, %v6044
    %v6052 = vpop.permute.xlu0 %6051
    %6053 = vset.pattern.permute.xlu0 0
    %6054 = vperm.xlu0 %6053, %v6045
    %v6055 = vpop.permute.xlu0 %6054
    %6056 = vset.pattern.permute.xlu0 0
    %6057 = vperm.xlu0 %6056, %v6046
    %v6058 = vpop.permute.xlu0 %6057
    %v6059 = vlaneseq
    %v6060 = vshrl.u32 %v6059, 7
    %v6061 = vsub.s32 %v196, %v6060
    %v6062 = vrot.slane %v6052, %v6061
    %v6063 = vlaneseq
    %v6064 = vshrl.u32 %v6063, 7
    %v6065 = vsub.s32 %v196, %v6064
    %v6066 = vrot.slane %v6055, %v6065
    %v6067 = vlaneseq
    %v6068 = vshrl.u32 %v6067, 7
    %v6069 = vsub.s32 %v196, %v6068
    %v6070 = vrot.slane %v6058, %v6069
    %v6071 = vsel %vm808, %v6066, %v6062
    %v6072 = vsel %vm810, %v6070, %v6071
    %v6074 = vsel %vm2380, %v6072, -inf
    %6075 = vmax.xlane.f32.xlu0 %v6074
    %v6076 = vpop.xlane.xlu0 %6075
    %v6078 = vlaneseq
    %v6079 = vshrl.u32 %v6078, 7
    %v6080 = vsub.s32 0, %v6079
    %v6081 = vrot.slane %v6076, %v6080
    %v6082 = vlaneseq
    %v6083 = vshrl.u32 %v6082, 7
    %v6084 = vsub.s32 1, %v6083
    %v6085 = vrot.slane %v6076, %v6084
    %v6086 = vlaneseq
    %v6087 = vshrl.u32 %v6086, 7
    %v6088 = vsub.s32 2, %v6087
    %v6089 = vrot.slane %v6076, %v6088
    %v6093 = vsub.f32 %v6044, %v6081
    %v6094 = vsub.f32 %v6045, %v6085
    %v6095 = vsub.f32 %v6046, %v6089
    %v6096 = vmul.f32 %v6093, 1.442695
    %v6097 = vpow.pop %v6096
    %v6098 = vmul.f32 %v6094, 1.442695
    %v6099 = vpow.pop %v6098
    %v6100 = vmul.f32 %v6095, 1.442695
    %v6101 = vpow.pop %v6100
    %6105 = vset.pattern.permute.xlu0 0
    %6106 = vperm.xlu0 %6105, %v6097
    %v6107 = vpop.permute.xlu0 %6106
    %6108 = vset.pattern.permute.xlu0 0
    %6109 = vperm.xlu0 %6108, %v6099
    %v6110 = vpop.permute.xlu0 %6109
    %6111 = vset.pattern.permute.xlu0 0
    %6112 = vperm.xlu0 %6111, %v6101
    %v6113 = vpop.permute.xlu0 %6112
    %v6114 = vlaneseq
    %v6115 = vshrl.u32 %v6114, 7
    %v6116 = vsub.s32 %v196, %v6115
    %v6117 = vrot.slane %v6107, %v6116
    %v6118 = vlaneseq
    %v6119 = vshrl.u32 %v6118, 7
    %v6120 = vsub.s32 %v196, %v6119
    %v6121 = vrot.slane %v6110, %v6120
    %v6122 = vlaneseq
    %v6123 = vshrl.u32 %v6122, 7
    %v6124 = vsub.s32 %v196, %v6123
    %v6125 = vrot.slane %v6113, %v6124
    %v6126 = vsel %vm808, %v6121, %v6117
    %v6127 = vsel %vm810, %v6125, %v6126
    %v6129 = vsel %vm2380, %v6127, 0.0
    %6130 = vadd.xlane.f32.xlu0 %v6129
    %v6131 = vpop.xlane.xlu0 %6130
    %v6133 = vlaneseq
    %v6134 = vshrl.u32 %v6133, 7
    %v6135 = vsub.s32 0, %v6134
    %v6136 = vrot.slane %v6131, %v6135
    %v6137 = vlaneseq
    %v6138 = vshrl.u32 %v6137, 7
    %v6139 = vsub.s32 1, %v6138
    %v6140 = vrot.slane %v6131, %v6139
    %v6141 = vlaneseq
    %v6142 = vshrl.u32 %v6141, 7
    %v6143 = vsub.s32 2, %v6142
    %v6144 = vrot.slane %v6131, %v6143
    %v6148 = vrcp.pop %v6136
    %v6149 = vmul.f32 %v6097, %v6148
    %v6150 = vrcp.pop %v6140
    %v6151 = vmul.f32 %v6099, %v6150
    %v6152 = vrcp.pop %v6144
    %v6153 = vmul.f32 %v6101, %v6152
    %6155 = vset.pattern.permute.xlu0 0
    %6156 = vperm.xlu0 %6155, %v6149
    %v6157 = vpop.permute.xlu0 %6156
    %6160 = vset.pattern.permute.xlu0 0
    %6161 = vperm.xlu0 %6160, %v6151
    %v6162 = vpop.permute.xlu0 %6161
    %6165 = vset.pattern.permute.xlu0 0
    %6166 = vperm.xlu0 %6165, %v6153
    %v6167 = vpop.permute.xlu0 %6166
    %v6169 = vmul.f32 %v6157, %v5981
    %v6170 = vmul.f32 %v6162, %v5981
    %v6171 = vmul.f32 %v6167, %v5981
    %v6172 = vsel %vm2138, %v6169, 0.0
    %v6173 = vrot.slane %v6172, 4
    %v6174 = vadd.f32 %v6172, %v6173
    %v6175 = vrot.slane %v6174, 2
    %v6176 = vadd.f32 %v6174, %v6175
    %v6177 = vrot.slane %v6176, 1
    %v6178 = vadd.f32 %v6176, %v6177
    %v6179 = vsel %vm2138, %v6170, 0.0
    %v6180 = vrot.slane %v6179, 4
    %v6181 = vadd.f32 %v6179, %v6180
    %v6182 = vrot.slane %v6181, 2
    %v6183 = vadd.f32 %v6181, %v6182
    %v6184 = vrot.slane %v6183, 1
    %v6185 = vadd.f32 %v6183, %v6184
    %v6186 = vsel %vm2138, %v6171, 0.0
    %v6187 = vrot.slane %v6186, 4
    %v6188 = vadd.f32 %v6186, %v6187
    %v6189 = vrot.slane %v6188, 2
    %v6190 = vadd.f32 %v6188, %v6189
    %v6191 = vrot.slane %v6190, 1
    %v6192 = vadd.f32 %v6190, %v6191
    %6196 = vrot.lane.b32.xlu0 %v6023, 120
    %v6197 = vpop.permute.xlu0 %6196
    %6198 = vrot.lane.b32.xlu0 %v6024, 120
    %v6199 = vpop.permute.xlu0 %6198
    %6200 = vrot.lane.b32.xlu0 %v6025, 120
    %v6201 = vpop.permute.xlu0 %6200
    %v6205 = vsel %vm2138, %v6197, 0.0
    %6206 = vadd.xlane.f32.xlu0 %v6205
    %v6207 = vpop.xlane.xlu0 %6206
    %v6208 = vsel %vm2138, %v6199, 0.0
    %6209 = vadd.xlane.f32.xlu0 %v6208
    %v6210 = vpop.xlane.xlu0 %6209
    %v6211 = vsel %vm2138, %v6201, 0.0
    %6212 = vadd.xlane.f32.xlu0 %v6211
    %v6213 = vpop.xlane.xlu0 %6212
    %v6214 = vadd.f32 %v6207, %v6042
    %v6215 = vadd.f32 %v6210, %v6042
    %v6216 = vadd.f32 %v6213, %v6042
    %6220 = vset.pattern.permute.xlu0 0
    %6221 = vperm.xlu0 %6220, %v6214
    %v6222 = vpop.permute.xlu0 %6221
    %6223 = vset.pattern.permute.xlu0 0
    %6224 = vperm.xlu0 %6223, %v6215
    %v6225 = vpop.permute.xlu0 %6224
    %6226 = vset.pattern.permute.xlu0 0
    %6227 = vperm.xlu0 %6226, %v6216
    %v6228 = vpop.permute.xlu0 %6227
    %v6229 = vlaneseq
    %v6230 = vshrl.u32 %v6229, 7
    %v6231 = vsub.s32 %v196, %v6230
    %v6232 = vrot.slane %v6222, %v6231
    %v6233 = vlaneseq
    %v6234 = vshrl.u32 %v6233, 7
    %v6235 = vsub.s32 %v196, %v6234
    %v6236 = vrot.slane %v6225, %v6235
    %v6237 = vlaneseq
    %v6238 = vshrl.u32 %v6237, 7
    %v6239 = vsub.s32 %v196, %v6238
    %v6240 = vrot.slane %v6228, %v6239
    %v6241 = vsel %vm808, %v6236, %v6232
    %v6242 = vsel %vm810, %v6240, %v6241
    %v6244 = vsel %vm2380, %v6242, -inf
    %6245 = vmax.xlane.f32.xlu0 %v6244
    %v6246 = vpop.xlane.xlu0 %6245
    %v6248 = vlaneseq
    %v6249 = vshrl.u32 %v6248, 7
    %v6250 = vsub.s32 0, %v6249
    %v6251 = vrot.slane %v6246, %v6250
    %v6252 = vlaneseq
    %v6253 = vshrl.u32 %v6252, 7
    %v6254 = vsub.s32 1, %v6253
    %v6255 = vrot.slane %v6246, %v6254
    %v6256 = vlaneseq
    %v6257 = vshrl.u32 %v6256, 7
    %v6258 = vsub.s32 2, %v6257
    %v6259 = vrot.slane %v6246, %v6258
    %v6263 = vsub.f32 %v6214, %v6251
    %v6264 = vsub.f32 %v6215, %v6255
    %v6265 = vsub.f32 %v6216, %v6259
    %v6266 = vmul.f32 %v6263, 1.442695
    %v6267 = vpow.pop %v6266
    %v6268 = vmul.f32 %v6264, 1.442695
    %v6269 = vpow.pop %v6268
    %v6270 = vmul.f32 %v6265, 1.442695
    %v6271 = vpow.pop %v6270
    %6275 = vset.pattern.permute.xlu0 0
    %6276 = vperm.xlu0 %6275, %v6267
    %v6277 = vpop.permute.xlu0 %6276
    %6278 = vset.pattern.permute.xlu0 0
    %6279 = vperm.xlu0 %6278, %v6269
    %v6280 = vpop.permute.xlu0 %6279
    %6281 = vset.pattern.permute.xlu0 0
    %6282 = vperm.xlu0 %6281, %v6271
    %v6283 = vpop.permute.xlu0 %6282
    %v6284 = vlaneseq
    %v6285 = vshrl.u32 %v6284, 7
    %v6286 = vsub.s32 %v196, %v6285
    %v6287 = vrot.slane %v6277, %v6286
    %v6288 = vlaneseq
    %v6289 = vshrl.u32 %v6288, 7
    %v6290 = vsub.s32 %v196, %v6289
    %v6291 = vrot.slane %v6280, %v6290
    %v6292 = vlaneseq
    %v6293 = vshrl.u32 %v6292, 7
    %v6294 = vsub.s32 %v196, %v6293
    %v6295 = vrot.slane %v6283, %v6294
    %v6296 = vsel %vm808, %v6291, %v6287
    %v6297 = vsel %vm810, %v6295, %v6296
    %v6299 = vsel %vm2380, %v6297, 0.0
    %6300 = vadd.xlane.f32.xlu0 %v6299
    %v6301 = vpop.xlane.xlu0 %6300
    %v6303 = vlaneseq
    %v6304 = vshrl.u32 %v6303, 7
    %v6305 = vsub.s32 0, %v6304
    %v6306 = vrot.slane %v6301, %v6305
    %v6307 = vlaneseq
    %v6308 = vshrl.u32 %v6307, 7
    %v6309 = vsub.s32 1, %v6308
    %v6310 = vrot.slane %v6301, %v6309
    %v6311 = vlaneseq
    %v6312 = vshrl.u32 %v6311, 7
    %v6313 = vsub.s32 2, %v6312
    %v6314 = vrot.slane %v6301, %v6313
    %v6318 = vrcp.pop %v6306
    %v6319 = vmul.f32 %v6267, %v6318
    %v6320 = vrcp.pop %v6310
    %v6321 = vmul.f32 %v6269, %v6320
    %v6322 = vrcp.pop %v6314
    %v6323 = vmul.f32 %v6271, %v6322
    %6325 = vset.pattern.permute.xlu0 0
    %6326 = vperm.xlu0 %6325, %v6319
    %v6327 = vpop.permute.xlu0 %6326
    %6330 = vset.pattern.permute.xlu0 0
    %6331 = vperm.xlu0 %6330, %v6321
    %v6332 = vpop.permute.xlu0 %6331
    %6335 = vset.pattern.permute.xlu0 0
    %6336 = vperm.xlu0 %6335, %v6323
    %v6337 = vpop.permute.xlu0 %6336
    %v6339 = vmul.f32 %v6327, %v5981
    %v6340 = vmul.f32 %v6332, %v5981
    %v6341 = vmul.f32 %v6337, %v5981
    %v6342 = vsel %vm2649, %v6339, 0.0
    %v6343 = vrot.slane %v6342, 4
    %v6344 = vadd.f32 %v6342, %v6343
    %v6345 = vrot.slane %v6344, 2
    %v6346 = vadd.f32 %v6344, %v6345
    %v6347 = vrot.slane %v6346, 1
    %v6348 = vadd.f32 %v6346, %v6347
    %v6349 = vsel %vm2649, %v6340, 0.0
    %v6350 = vrot.slane %v6349, 4
    %v6351 = vadd.f32 %v6349, %v6350
    %v6352 = vrot.slane %v6351, 2
    %v6353 = vadd.f32 %v6351, %v6352
    %v6354 = vrot.slane %v6353, 1
    %v6355 = vadd.f32 %v6353, %v6354
    %v6356 = vsel %vm2649, %v6341, 0.0
    %v6357 = vrot.slane %v6356, 4
    %v6358 = vadd.f32 %v6356, %v6357
    %v6359 = vrot.slane %v6358, 2
    %v6360 = vadd.f32 %v6358, %v6359
    %v6361 = vrot.slane %v6360, 1
    %v6362 = vadd.f32 %v6360, %v6361
    %6363 = vrot.lane.b32.xlu0 %v6023, 112
    %v6364 = vpop.permute.xlu0 %6363
    %6365 = vrot.lane.b32.xlu0 %v6024, 112
    %v6366 = vpop.permute.xlu0 %6365
    %6367 = vrot.lane.b32.xlu0 %v6025, 112
    %v6368 = vpop.permute.xlu0 %6367
    %v6372 = vsel %vm2138, %v6364, 0.0
    %6373 = vadd.xlane.f32.xlu0 %v6372
    %v6374 = vpop.xlane.xlu0 %6373
    %v6375 = vsel %vm2138, %v6366, 0.0
    %6376 = vadd.xlane.f32.xlu0 %v6375
    %v6377 = vpop.xlane.xlu0 %6376
    %v6378 = vsel %vm2138, %v6368, 0.0
    %6379 = vadd.xlane.f32.xlu0 %v6378
    %v6380 = vpop.xlane.xlu0 %6379
    %v6381 = vadd.f32 %v6374, %v6042
    %v6382 = vadd.f32 %v6377, %v6042
    %v6383 = vadd.f32 %v6380, %v6042
    %6387 = vset.pattern.permute.xlu0 0
    %6388 = vperm.xlu0 %6387, %v6381
    %v6389 = vpop.permute.xlu0 %6388
    %6390 = vset.pattern.permute.xlu0 0
    %6391 = vperm.xlu0 %6390, %v6382
    %v6392 = vpop.permute.xlu0 %6391
    %6393 = vset.pattern.permute.xlu0 0
    %6394 = vperm.xlu0 %6393, %v6383
    %v6395 = vpop.permute.xlu0 %6394
    %v6396 = vlaneseq
    %v6397 = vshrl.u32 %v6396, 7
    %v6398 = vsub.s32 %v196, %v6397
    %v6399 = vrot.slane %v6389, %v6398
    %v6400 = vlaneseq
    %v6401 = vshrl.u32 %v6400, 7
    %v6402 = vsub.s32 %v196, %v6401
    %v6403 = vrot.slane %v6392, %v6402
    %v6404 = vlaneseq
    %v6405 = vshrl.u32 %v6404, 7
    %v6406 = vsub.s32 %v196, %v6405
    %v6407 = vrot.slane %v6395, %v6406
    %v6408 = vsel %vm808, %v6403, %v6399
    %v6409 = vsel %vm810, %v6407, %v6408
    %v6411 = vsel %vm2380, %v6409, -inf
    %6412 = vmax.xlane.f32.xlu0 %v6411
    %v6413 = vpop.xlane.xlu0 %6412
    %v6415 = vlaneseq
    %v6416 = vshrl.u32 %v6415, 7
    %v6417 = vsub.s32 0, %v6416
    %v6418 = vrot.slane %v6413, %v6417
    %v6419 = vlaneseq
    %v6420 = vshrl.u32 %v6419, 7
    %v6421 = vsub.s32 1, %v6420
    %v6422 = vrot.slane %v6413, %v6421
    %v6423 = vlaneseq
    %v6424 = vshrl.u32 %v6423, 7
    %v6425 = vsub.s32 2, %v6424
    %v6426 = vrot.slane %v6413, %v6425
    %v6430 = vsub.f32 %v6381, %v6418
    %v6431 = vsub.f32 %v6382, %v6422
    %v6432 = vsub.f32 %v6383, %v6426
    %v6433 = vmul.f32 %v6430, 1.442695
    %v6434 = vpow.pop %v6433
    %v6435 = vmul.f32 %v6431, 1.442695
    %v6436 = vpow.pop %v6435
    %v6437 = vmul.f32 %v6432, 1.442695
    %v6438 = vpow.pop %v6437
    %6442 = vset.pattern.permute.xlu0 0
    %6443 = vperm.xlu0 %6442, %v6434
    %v6444 = vpop.permute.xlu0 %6443
    %6445 = vset.pattern.permute.xlu0 0
    %6446 = vperm.xlu0 %6445, %v6436
    %v6447 = vpop.permute.xlu0 %6446
    %6448 = vset.pattern.permute.xlu0 0
    %6449 = vperm.xlu0 %6448, %v6438
    %v6450 = vpop.permute.xlu0 %6449
    %v6451 = vlaneseq
    %v6452 = vshrl.u32 %v6451, 7
    %v6453 = vsub.s32 %v196, %v6452
    %v6454 = vrot.slane %v6444, %v6453
    %v6455 = vlaneseq
    %v6456 = vshrl.u32 %v6455, 7
    %v6457 = vsub.s32 %v196, %v6456
    %v6458 = vrot.slane %v6447, %v6457
    %v6459 = vlaneseq
    %v6460 = vshrl.u32 %v6459, 7
    %v6461 = vsub.s32 %v196, %v6460
    %v6462 = vrot.slane %v6450, %v6461
    %v6463 = vsel %vm808, %v6458, %v6454
    %v6464 = vsel %vm810, %v6462, %v6463
    %v6466 = vsel %vm2380, %v6464, 0.0
    %6467 = vadd.xlane.f32.xlu0 %v6466
    %v6468 = vpop.xlane.xlu0 %6467
    %v6470 = vlaneseq
    %v6471 = vshrl.u32 %v6470, 7
    %v6472 = vsub.s32 0, %v6471
    %v6473 = vrot.slane %v6468, %v6472
    %v6474 = vlaneseq
    %v6475 = vshrl.u32 %v6474, 7
    %v6476 = vsub.s32 1, %v6475
    %v6477 = vrot.slane %v6468, %v6476
    %v6478 = vlaneseq
    %v6479 = vshrl.u32 %v6478, 7
    %v6480 = vsub.s32 2, %v6479
    %v6481 = vrot.slane %v6468, %v6480
    %v6485 = vrcp.pop %v6473
    %v6486 = vmul.f32 %v6434, %v6485
    %v6487 = vrcp.pop %v6477
    %v6488 = vmul.f32 %v6436, %v6487
    %v6489 = vrcp.pop %v6481
    %v6490 = vmul.f32 %v6438, %v6489
    %6492 = vset.pattern.permute.xlu0 0
    %6493 = vperm.xlu0 %6492, %v6486
    %v6494 = vpop.permute.xlu0 %6493
    %6497 = vset.pattern.permute.xlu0 0
    %6498 = vperm.xlu0 %6497, %v6488
    %v6499 = vpop.permute.xlu0 %6498
    %6502 = vset.pattern.permute.xlu0 0
    %6503 = vperm.xlu0 %6502, %v6490
    %v6504 = vpop.permute.xlu0 %6503
    %v6506 = vmul.f32 %v6494, %v5981
    %v6507 = vmul.f32 %v6499, %v5981
    %v6508 = vmul.f32 %v6504, %v5981
    %v6509 = vsel %vm2817, %v6506, 0.0
    %v6510 = vrot.slane %v6509, 4
    %v6511 = vadd.f32 %v6509, %v6510
    %v6512 = vrot.slane %v6511, 2
    %v6513 = vadd.f32 %v6511, %v6512
    %v6514 = vrot.slane %v6513, 1
    %v6515 = vadd.f32 %v6513, %v6514
    %v6516 = vsel %vm2817, %v6507, 0.0
    %v6517 = vrot.slane %v6516, 4
    %v6518 = vadd.f32 %v6516, %v6517
    %v6519 = vrot.slane %v6518, 2
    %v6520 = vadd.f32 %v6518, %v6519
    %v6521 = vrot.slane %v6520, 1
    %v6522 = vadd.f32 %v6520, %v6521
    %v6523 = vsel %vm2817, %v6508, 0.0
    %v6524 = vrot.slane %v6523, 4
    %v6525 = vadd.f32 %v6523, %v6524
    %v6526 = vrot.slane %v6525, 2
    %v6527 = vadd.f32 %v6525, %v6526
    %v6528 = vrot.slane %v6527, 1
    %v6529 = vadd.f32 %v6527, %v6528
    %6530 = vrot.lane.b32.xlu0 %v6023, 104
    %v6531 = vpop.permute.xlu0 %6530
    %6532 = vrot.lane.b32.xlu0 %v6024, 104
    %v6533 = vpop.permute.xlu0 %6532
    %6534 = vrot.lane.b32.xlu0 %v6025, 104
    %v6535 = vpop.permute.xlu0 %6534
    %v6539 = vsel %vm2138, %v6531, 0.0
    %6540 = vadd.xlane.f32.xlu0 %v6539
    %v6541 = vpop.xlane.xlu0 %6540
    %v6542 = vsel %vm2138, %v6533, 0.0
    %6543 = vadd.xlane.f32.xlu0 %v6542
    %v6544 = vpop.xlane.xlu0 %6543
    %v6545 = vsel %vm2138, %v6535, 0.0
    %6546 = vadd.xlane.f32.xlu0 %v6545
    %v6547 = vpop.xlane.xlu0 %6546
    %v6548 = vadd.f32 %v6541, %v6042
    %v6549 = vadd.f32 %v6544, %v6042
    %v6550 = vadd.f32 %v6547, %v6042
    %6554 = vset.pattern.permute.xlu0 0
    %6555 = vperm.xlu0 %6554, %v6548
    %v6556 = vpop.permute.xlu0 %6555
    %6557 = vset.pattern.permute.xlu0 0
    %6558 = vperm.xlu0 %6557, %v6549
    %v6559 = vpop.permute.xlu0 %6558
    %6560 = vset.pattern.permute.xlu0 0
    %6561 = vperm.xlu0 %6560, %v6550
    %v6562 = vpop.permute.xlu0 %6561
    %v6563 = vlaneseq
    %v6564 = vshrl.u32 %v6563, 7
    %v6565 = vsub.s32 %v196, %v6564
    %v6566 = vrot.slane %v6556, %v6565
    %v6567 = vlaneseq
    %v6568 = vshrl.u32 %v6567, 7
    %v6569 = vsub.s32 %v196, %v6568
    %v6570 = vrot.slane %v6559, %v6569
    %v6571 = vlaneseq
    %v6572 = vshrl.u32 %v6571, 7
    %v6573 = vsub.s32 %v196, %v6572
    %v6574 = vrot.slane %v6562, %v6573
    %v6575 = vsel %vm808, %v6570, %v6566
    %v6576 = vsel %vm810, %v6574, %v6575
    %v6578 = vsel %vm2380, %v6576, -inf
    %6579 = vmax.xlane.f32.xlu0 %v6578
    %v6580 = vpop.xlane.xlu0 %6579
    %v6582 = vlaneseq
    %v6583 = vshrl.u32 %v6582, 7
    %v6584 = vsub.s32 0, %v6583
    %v6585 = vrot.slane %v6580, %v6584
    %v6586 = vlaneseq
    %v6587 = vshrl.u32 %v6586, 7
    %v6588 = vsub.s32 1, %v6587
    %v6589 = vrot.slane %v6580, %v6588
    %v6590 = vlaneseq
    %v6591 = vshrl.u32 %v6590, 7
    %v6592 = vsub.s32 2, %v6591
    %v6593 = vrot.slane %v6580, %v6592
    %v6597 = vsub.f32 %v6548, %v6585
    %v6598 = vsub.f32 %v6549, %v6589
    %v6599 = vsub.f32 %v6550, %v6593
    %v6600 = vmul.f32 %v6597, 1.442695
    %v6601 = vpow.pop %v6600
    %v6602 = vmul.f32 %v6598, 1.442695
    %v6603 = vpow.pop %v6602
    %v6604 = vmul.f32 %v6599, 1.442695
    %v6605 = vpow.pop %v6604
    %6609 = vset.pattern.permute.xlu0 0
    %6610 = vperm.xlu0 %6609, %v6601
    %v6611 = vpop.permute.xlu0 %6610
    %6612 = vset.pattern.permute.xlu0 0
    %6613 = vperm.xlu0 %6612, %v6603
    %v6614 = vpop.permute.xlu0 %6613
    %6615 = vset.pattern.permute.xlu0 0
    %6616 = vperm.xlu0 %6615, %v6605
    %v6617 = vpop.permute.xlu0 %6616
    %v6618 = vlaneseq
    %v6619 = vshrl.u32 %v6618, 7
    %v6620 = vsub.s32 %v196, %v6619
    %v6621 = vrot.slane %v6611, %v6620
    %v6622 = vlaneseq
    %v6623 = vshrl.u32 %v6622, 7
    %v6624 = vsub.s32 %v196, %v6623
    %v6625 = vrot.slane %v6614, %v6624
    %v6626 = vlaneseq
    %v6627 = vshrl.u32 %v6626, 7
    %v6628 = vsub.s32 %v196, %v6627
    %v6629 = vrot.slane %v6617, %v6628
    %v6630 = vsel %vm808, %v6625, %v6621
    %v6631 = vsel %vm810, %v6629, %v6630
    %v6633 = vsel %vm2380, %v6631, 0.0
    %6634 = vadd.xlane.f32.xlu0 %v6633
    %v6635 = vpop.xlane.xlu0 %6634
    %v6637 = vlaneseq
    %v6638 = vshrl.u32 %v6637, 7
    %v6639 = vsub.s32 0, %v6638
    %v6640 = vrot.slane %v6635, %v6639
    %v6641 = vlaneseq
    %v6642 = vshrl.u32 %v6641, 7
    %v6643 = vsub.s32 1, %v6642
    %v6644 = vrot.slane %v6635, %v6643
    %v6645 = vlaneseq
    %v6646 = vshrl.u32 %v6645, 7
    %v6647 = vsub.s32 2, %v6646
    %v6648 = vrot.slane %v6635, %v6647
    %v6652 = vrcp.pop %v6640
    %v6653 = vmul.f32 %v6601, %v6652
    %v6654 = vrcp.pop %v6644
    %v6655 = vmul.f32 %v6603, %v6654
    %v6656 = vrcp.pop %v6648
    %v6657 = vmul.f32 %v6605, %v6656
    %6659 = vset.pattern.permute.xlu0 0
    %6660 = vperm.xlu0 %6659, %v6653
    %v6661 = vpop.permute.xlu0 %6660
    %6664 = vset.pattern.permute.xlu0 0
    %6665 = vperm.xlu0 %6664, %v6655
    %v6666 = vpop.permute.xlu0 %6665
    %6669 = vset.pattern.permute.xlu0 0
    %6670 = vperm.xlu0 %6669, %v6657
    %v6671 = vpop.permute.xlu0 %6670
    %v6673 = vmul.f32 %v6661, %v5981
    %v6674 = vmul.f32 %v6666, %v5981
    %v6675 = vmul.f32 %v6671, %v5981
    %v6676 = vsel %vm2985, %v6673, 0.0
    %v6677 = vrot.slane %v6676, 4
    %v6678 = vadd.f32 %v6676, %v6677
    %v6679 = vrot.slane %v6678, 2
    %v6680 = vadd.f32 %v6678, %v6679
    %v6681 = vrot.slane %v6680, 1
    %v6682 = vadd.f32 %v6680, %v6681
    %v6683 = vsel %vm2985, %v6674, 0.0
    %v6684 = vrot.slane %v6683, 4
    %v6685 = vadd.f32 %v6683, %v6684
    %v6686 = vrot.slane %v6685, 2
    %v6687 = vadd.f32 %v6685, %v6686
    %v6688 = vrot.slane %v6687, 1
    %v6689 = vadd.f32 %v6687, %v6688
    %v6690 = vsel %vm2985, %v6675, 0.0
    %v6691 = vrot.slane %v6690, 4
    %v6692 = vadd.f32 %v6690, %v6691
    %v6693 = vrot.slane %v6692, 2
    %v6694 = vadd.f32 %v6692, %v6693
    %v6695 = vrot.slane %v6694, 1
    %v6696 = vadd.f32 %v6694, %v6695
    %v6700 = vsel %vm808, %v6185, %v6178
    %v6701 = vsel %vm810, %v6192, %v6700
    %v6706 = vsel %vm808, %v6355, %v6348
    %v6707 = vsel %vm810, %v6362, %v6706
    %v6712 = vsel %vm808, %v6522, %v6515
    %v6713 = vsel %vm810, %v6529, %v6712
    %v6718 = vsel %vm808, %v6689, %v6682
    %v6719 = vsel %vm810, %v6696, %v6718
    %v6721 = vsel %vm2138, %v6701, %v6707
    %v6722 = vsel %vm2140, %v6721, %v6713
    %v6723 = vsel %vm2142, %v6722, %v6719
    %v6724 = vcombine.high %v5968, %v5968
    %v6726 = vunpack.c.l.s4 1966171168
    %v6727 = vunpack.c.0.s8 %v6726
    %v6728 = vlaneseq
    %v6729 = vshrl.u32 %v6728, 7
    %v6730 = vsub.s32 %v6727, %v6729
    %v6731 = vrot.slane %v6724, %v6730
    %v6732 = vcombine.high %v6731, %v6731
    %v6734 = vunpack.c.l.s4 1966171168
    %v6735 = vunpack.c.0.s8 %v6734
    %v6736 = vlaneseq
    %v6737 = vshrl.u32 %v6736, 7
    %v6738 = vsub.s32 %v6735, %v6737
    %v6739 = vrot.slane %v6731, %v6738
    %v6741 = vunpack.c.l.s4 1966171168
    %v6742 = vunpack.c.0.s8 %v6741
    %v6743 = vlaneseq
    %v6744 = vshrl.u32 %v6743, 7
    %v6745 = vsub.s32 %v6742, %v6744
    %v6746 = vrot.slane %v6732, %v6745
    %v6747 = vcombine.high %v6006, %v6006
    %v6748 = vlaneseq
    %v6749 = vshrl.u32 %v6748, 7
    %v6750 = vsub.s32 0, %v6749
    %v6751 = vrot.slane %v6747, %v6750
    %v6752 = vlaneseq
    %v6753 = vshrl.u32 %v6752, 7
    %v6754 = vsub.s32 0, %v6753
    %v6755 = vrot.slane %v6739, %v6754
    %v6756 = vlaneseq
    %v6757 = vshrl.u32 %v6756, 7
    %v6758 = vsub.s32 0, %v6757
    %v6759 = vrot.slane %v6746, %v6758
    %v6763 = vmul.f32 %v6751, %v5977
    %v6764 = vmul.f32 %v6755, %v5977
    %v6765 = vmul.f32 %v6759, %v5977
    %v6766 = vsel %vm2138, %v6763, 0.0
    %6767 = vadd.xlane.f32.xlu0 %v6766
    %v6768 = vpop.xlane.xlu0 %6767
    %v6769 = vsel %vm2138, %v6764, 0.0
    %6770 = vadd.xlane.f32.xlu0 %v6769
    %v6771 = vpop.xlane.xlu0 %6770
    %v6772 = vsel %vm2138, %v6765, 0.0
    %6773 = vadd.xlane.f32.xlu0 %v6772
    %v6774 = vpop.xlane.xlu0 %6773
    %v6775 = vlaneseq
    %v6776 = vshrl.u32 %v6775, 7
    %v6777 = vsub.s32 1, %v6776
    %v6778 = vrot.slane %v5983, %v6777
    %6781 = vbcast.lane.b32.xlu0 %v6778, 256
    %v6782 = vpop.permute.xlu0 %6781
    %v6784 = vadd.f32 %v6768, %v6782
    %v6785 = vadd.f32 %v6771, %v6782
    %v6786 = vadd.f32 %v6774, %v6782
    %6790 = vset.pattern.permute.xlu0 0
    %6791 = vperm.xlu0 %6790, %v6784
    %v6792 = vpop.permute.xlu0 %6791
    %6793 = vset.pattern.permute.xlu0 0
    %6794 = vperm.xlu0 %6793, %v6785
    %v6795 = vpop.permute.xlu0 %6794
    %6796 = vset.pattern.permute.xlu0 0
    %6797 = vperm.xlu0 %6796, %v6786
    %v6798 = vpop.permute.xlu0 %6797
    %v6799 = vlaneseq
    %v6800 = vshrl.u32 %v6799, 7
    %v6801 = vsub.s32 %v196, %v6800
    %v6802 = vrot.slane %v6792, %v6801
    %v6803 = vlaneseq
    %v6804 = vshrl.u32 %v6803, 7
    %v6805 = vsub.s32 %v196, %v6804
    %v6806 = vrot.slane %v6795, %v6805
    %v6807 = vlaneseq
    %v6808 = vshrl.u32 %v6807, 7
    %v6809 = vsub.s32 %v196, %v6808
    %v6810 = vrot.slane %v6798, %v6809
    %v6811 = vsel %vm808, %v6806, %v6802
    %v6812 = vsel %vm810, %v6810, %v6811
    %v6814 = vsel %vm2380, %v6812, -inf
    %6815 = vmax.xlane.f32.xlu0 %v6814
    %v6816 = vpop.xlane.xlu0 %6815
    %v6818 = vlaneseq
    %v6819 = vshrl.u32 %v6818, 7
    %v6820 = vsub.s32 0, %v6819
    %v6821 = vrot.slane %v6816, %v6820
    %v6822 = vlaneseq
    %v6823 = vshrl.u32 %v6822, 7
    %v6824 = vsub.s32 1, %v6823
    %v6825 = vrot.slane %v6816, %v6824
    %v6826 = vlaneseq
    %v6827 = vshrl.u32 %v6826, 7
    %v6828 = vsub.s32 2, %v6827
    %v6829 = vrot.slane %v6816, %v6828
    %v6833 = vsub.f32 %v6784, %v6821
    %v6834 = vsub.f32 %v6785, %v6825
    %v6835 = vsub.f32 %v6786, %v6829
    %v6836 = vmul.f32 %v6833, 1.442695
    %v6837 = vpow.pop %v6836
    %v6838 = vmul.f32 %v6834, 1.442695
    %v6839 = vpow.pop %v6838
    %v6840 = vmul.f32 %v6835, 1.442695
    %v6841 = vpow.pop %v6840
    %6845 = vset.pattern.permute.xlu0 0
    %6846 = vperm.xlu0 %6845, %v6837
    %v6847 = vpop.permute.xlu0 %6846
    %6848 = vset.pattern.permute.xlu0 0
    %6849 = vperm.xlu0 %6848, %v6839
    %v6850 = vpop.permute.xlu0 %6849
    %6851 = vset.pattern.permute.xlu0 0
    %6852 = vperm.xlu0 %6851, %v6841
    %v6853 = vpop.permute.xlu0 %6852
    %v6854 = vlaneseq
    %v6855 = vshrl.u32 %v6854, 7
    %v6856 = vsub.s32 %v196, %v6855
    %v6857 = vrot.slane %v6847, %v6856
    %v6858 = vlaneseq
    %v6859 = vshrl.u32 %v6858, 7
    %v6860 = vsub.s32 %v196, %v6859
    %v6861 = vrot.slane %v6850, %v6860
    %v6862 = vlaneseq
    %v6863 = vshrl.u32 %v6862, 7
    %v6864 = vsub.s32 %v196, %v6863
    %v6865 = vrot.slane %v6853, %v6864
    %v6866 = vsel %vm808, %v6861, %v6857
    %v6867 = vsel %vm810, %v6865, %v6866
    %v6869 = vsel %vm2380, %v6867, 0.0
    %6870 = vadd.xlane.f32.xlu0 %v6869
    %v6871 = vpop.xlane.xlu0 %6870
    %v6873 = vlaneseq
    %v6874 = vshrl.u32 %v6873, 7
    %v6875 = vsub.s32 0, %v6874
    %v6876 = vrot.slane %v6871, %v6875
    %v6877 = vlaneseq
    %v6878 = vshrl.u32 %v6877, 7
    %v6879 = vsub.s32 1, %v6878
    %v6880 = vrot.slane %v6871, %v6879
    %v6881 = vlaneseq
    %v6882 = vshrl.u32 %v6881, 7
    %v6883 = vsub.s32 2, %v6882
    %v6884 = vrot.slane %v6871, %v6883
    %v6888 = vrcp.pop %v6876
    %v6889 = vmul.f32 %v6837, %v6888
    %v6890 = vrcp.pop %v6880
    %v6891 = vmul.f32 %v6839, %v6890
    %v6892 = vrcp.pop %v6884
    %v6893 = vmul.f32 %v6841, %v6892
    %6895 = vset.pattern.permute.xlu0 0
    %6896 = vperm.xlu0 %6895, %v6889
    %v6897 = vpop.permute.xlu0 %6896
    %6900 = vset.pattern.permute.xlu0 0
    %6901 = vperm.xlu0 %6900, %v6891
    %v6902 = vpop.permute.xlu0 %6901
    %6905 = vset.pattern.permute.xlu0 0
    %6906 = vperm.xlu0 %6905, %v6893
    %v6907 = vpop.permute.xlu0 %6906
    %v6909 = vmul.f32 %v6897, %v5982
    %v6910 = vmul.f32 %v6902, %v5982
    %v6911 = vmul.f32 %v6907, %v5982
    %v6912 = vsel %vm2138, %v6909, 0.0
    %v6913 = vrot.slane %v6912, 4
    %v6914 = vadd.f32 %v6912, %v6913
    %v6915 = vrot.slane %v6914, 2
    %v6916 = vadd.f32 %v6914, %v6915
    %v6917 = vrot.slane %v6916, 1
    %v6918 = vadd.f32 %v6916, %v6917
    %v6919 = vsel %vm2138, %v6910, 0.0
    %v6920 = vrot.slane %v6919, 4
    %v6921 = vadd.f32 %v6919, %v6920
    %v6922 = vrot.slane %v6921, 2
    %v6923 = vadd.f32 %v6921, %v6922
    %v6924 = vrot.slane %v6923, 1
    %v6925 = vadd.f32 %v6923, %v6924
    %v6926 = vsel %vm2138, %v6911, 0.0
    %v6927 = vrot.slane %v6926, 4
    %v6928 = vadd.f32 %v6926, %v6927
    %v6929 = vrot.slane %v6928, 2
    %v6930 = vadd.f32 %v6928, %v6929
    %v6931 = vrot.slane %v6930, 1
    %v6932 = vadd.f32 %v6930, %v6931
    %6936 = vrot.lane.b32.xlu0 %v6763, 120
    %v6937 = vpop.permute.xlu0 %6936
    %6938 = vrot.lane.b32.xlu0 %v6764, 120
    %v6939 = vpop.permute.xlu0 %6938
    %6940 = vrot.lane.b32.xlu0 %v6765, 120
    %v6941 = vpop.permute.xlu0 %6940
    %v6945 = vsel %vm2138, %v6937, 0.0
    %6946 = vadd.xlane.f32.xlu0 %v6945
    %v6947 = vpop.xlane.xlu0 %6946
    %v6948 = vsel %vm2138, %v6939, 0.0
    %6949 = vadd.xlane.f32.xlu0 %v6948
    %v6950 = vpop.xlane.xlu0 %6949
    %v6951 = vsel %vm2138, %v6941, 0.0
    %6952 = vadd.xlane.f32.xlu0 %v6951
    %v6953 = vpop.xlane.xlu0 %6952
    %v6954 = vadd.f32 %v6947, %v6782
    %v6955 = vadd.f32 %v6950, %v6782
    %v6956 = vadd.f32 %v6953, %v6782
    %6960 = vset.pattern.permute.xlu0 0
    %6961 = vperm.xlu0 %6960, %v6954
    %v6962 = vpop.permute.xlu0 %6961
    %6963 = vset.pattern.permute.xlu0 0
    %6964 = vperm.xlu0 %6963, %v6955
    %v6965 = vpop.permute.xlu0 %6964
    %6966 = vset.pattern.permute.xlu0 0
    %6967 = vperm.xlu0 %6966, %v6956
    %v6968 = vpop.permute.xlu0 %6967
    %v6969 = vlaneseq
    %v6970 = vshrl.u32 %v6969, 7
    %v6971 = vsub.s32 %v196, %v6970
    %v6972 = vrot.slane %v6962, %v6971
    %v6973 = vlaneseq
    %v6974 = vshrl.u32 %v6973, 7
    %v6975 = vsub.s32 %v196, %v6974
    %v6976 = vrot.slane %v6965, %v6975
    %v6977 = vlaneseq
    %v6978 = vshrl.u32 %v6977, 7
    %v6979 = vsub.s32 %v196, %v6978
    %v6980 = vrot.slane %v6968, %v6979
    %v6981 = vsel %vm808, %v6976, %v6972
    %v6982 = vsel %vm810, %v6980, %v6981
    %v6984 = vsel %vm2380, %v6982, -inf
    %6985 = vmax.xlane.f32.xlu0 %v6984
    %v6986 = vpop.xlane.xlu0 %6985
    %v6988 = vlaneseq
    %v6989 = vshrl.u32 %v6988, 7
    %v6990 = vsub.s32 0, %v6989
    %v6991 = vrot.slane %v6986, %v6990
    %v6992 = vlaneseq
    %v6993 = vshrl.u32 %v6992, 7
    %v6994 = vsub.s32 1, %v6993
    %v6995 = vrot.slane %v6986, %v6994
    %v6996 = vlaneseq
    %v6997 = vshrl.u32 %v6996, 7
    %v6998 = vsub.s32 2, %v6997
    %v6999 = vrot.slane %v6986, %v6998
    %v7003 = vsub.f32 %v6954, %v6991
    %v7004 = vsub.f32 %v6955, %v6995
    %v7005 = vsub.f32 %v6956, %v6999
    %v7006 = vmul.f32 %v7003, 1.442695
    %v7007 = vpow.pop %v7006
    %v7008 = vmul.f32 %v7004, 1.442695
    %v7009 = vpow.pop %v7008
    %v7010 = vmul.f32 %v7005, 1.442695
    %v7011 = vpow.pop %v7010
    %7015 = vset.pattern.permute.xlu0 0
    %7016 = vperm.xlu0 %7015, %v7007
    %v7017 = vpop.permute.xlu0 %7016
    %7018 = vset.pattern.permute.xlu0 0
    %7019 = vperm.xlu0 %7018, %v7009
    %v7020 = vpop.permute.xlu0 %7019
    %7021 = vset.pattern.permute.xlu0 0
    %7022 = vperm.xlu0 %7021, %v7011
    %v7023 = vpop.permute.xlu0 %7022
    %v7024 = vlaneseq
    %v7025 = vshrl.u32 %v7024, 7
    %v7026 = vsub.s32 %v196, %v7025
    %v7027 = vrot.slane %v7017, %v7026
    %v7028 = vlaneseq
    %v7029 = vshrl.u32 %v7028, 7
    %v7030 = vsub.s32 %v196, %v7029
    %v7031 = vrot.slane %v7020, %v7030
    %v7032 = vlaneseq
    %v7033 = vshrl.u32 %v7032, 7
    %v7034 = vsub.s32 %v196, %v7033
    %v7035 = vrot.slane %v7023, %v7034
    %v7036 = vsel %vm808, %v7031, %v7027
    %v7037 = vsel %vm810, %v7035, %v7036
    %v7039 = vsel %vm2380, %v7037, 0.0
    %7040 = vadd.xlane.f32.xlu0 %v7039
    %v7041 = vpop.xlane.xlu0 %7040
    %v7043 = vlaneseq
    %v7044 = vshrl.u32 %v7043, 7
    %v7045 = vsub.s32 0, %v7044
    %v7046 = vrot.slane %v7041, %v7045
    %v7047 = vlaneseq
    %v7048 = vshrl.u32 %v7047, 7
    %v7049 = vsub.s32 1, %v7048
    %v7050 = vrot.slane %v7041, %v7049
    %v7051 = vlaneseq
    %v7052 = vshrl.u32 %v7051, 7
    %v7053 = vsub.s32 2, %v7052
    %v7054 = vrot.slane %v7041, %v7053
    %v7058 = vrcp.pop %v7046
    %v7059 = vmul.f32 %v7007, %v7058
    %v7060 = vrcp.pop %v7050
    %v7061 = vmul.f32 %v7009, %v7060
    %v7062 = vrcp.pop %v7054
    %v7063 = vmul.f32 %v7011, %v7062
    %7065 = vset.pattern.permute.xlu0 0
    %7066 = vperm.xlu0 %7065, %v7059
    %v7067 = vpop.permute.xlu0 %7066
    %7070 = vset.pattern.permute.xlu0 0
    %7071 = vperm.xlu0 %7070, %v7061
    %v7072 = vpop.permute.xlu0 %7071
    %7075 = vset.pattern.permute.xlu0 0
    %7076 = vperm.xlu0 %7075, %v7063
    %v7077 = vpop.permute.xlu0 %7076
    %v7079 = vmul.f32 %v7067, %v5982
    %v7080 = vmul.f32 %v7072, %v5982
    %v7081 = vmul.f32 %v7077, %v5982
    %v7082 = vsel %vm2649, %v7079, 0.0
    %v7083 = vrot.slane %v7082, 4
    %v7084 = vadd.f32 %v7082, %v7083
    %v7085 = vrot.slane %v7084, 2
    %v7086 = vadd.f32 %v7084, %v7085
    %v7087 = vrot.slane %v7086, 1
    %v7088 = vadd.f32 %v7086, %v7087
    %v7089 = vsel %vm2649, %v7080, 0.0
    %v7090 = vrot.slane %v7089, 4
    %v7091 = vadd.f32 %v7089, %v7090
    %v7092 = vrot.slane %v7091, 2
    %v7093 = vadd.f32 %v7091, %v7092
    %v7094 = vrot.slane %v7093, 1
    %v7095 = vadd.f32 %v7093, %v7094
    %v7096 = vsel %vm2649, %v7081, 0.0
    %v7097 = vrot.slane %v7096, 4
    %v7098 = vadd.f32 %v7096, %v7097
    %v7099 = vrot.slane %v7098, 2
    %v7100 = vadd.f32 %v7098, %v7099
    %v7101 = vrot.slane %v7100, 1
    %v7102 = vadd.f32 %v7100, %v7101
    %7103 = vrot.lane.b32.xlu0 %v6763, 112
    %v7104 = vpop.permute.xlu0 %7103
    %7105 = vrot.lane.b32.xlu0 %v6764, 112
    %v7106 = vpop.permute.xlu0 %7105
    %7107 = vrot.lane.b32.xlu0 %v6765, 112
    %v7108 = vpop.permute.xlu0 %7107
    %v7112 = vsel %vm2138, %v7104, 0.0
    %7113 = vadd.xlane.f32.xlu0 %v7112
    %v7114 = vpop.xlane.xlu0 %7113
    %v7115 = vsel %vm2138, %v7106, 0.0
    %7116 = vadd.xlane.f32.xlu0 %v7115
    %v7117 = vpop.xlane.xlu0 %7116
    %v7118 = vsel %vm2138, %v7108, 0.0
    %7119 = vadd.xlane.f32.xlu0 %v7118
    %v7120 = vpop.xlane.xlu0 %7119
    %v7121 = vadd.f32 %v7114, %v6782
    %v7122 = vadd.f32 %v7117, %v6782
    %v7123 = vadd.f32 %v7120, %v6782
    %7127 = vset.pattern.permute.xlu0 0
    %7128 = vperm.xlu0 %7127, %v7121
    %v7129 = vpop.permute.xlu0 %7128
    %7130 = vset.pattern.permute.xlu0 0
    %7131 = vperm.xlu0 %7130, %v7122
    %v7132 = vpop.permute.xlu0 %7131
    %7133 = vset.pattern.permute.xlu0 0
    %7134 = vperm.xlu0 %7133, %v7123
    %v7135 = vpop.permute.xlu0 %7134
    %v7136 = vlaneseq
    %v7137 = vshrl.u32 %v7136, 7
    %v7138 = vsub.s32 %v196, %v7137
    %v7139 = vrot.slane %v7129, %v7138
    %v7140 = vlaneseq
    %v7141 = vshrl.u32 %v7140, 7
    %v7142 = vsub.s32 %v196, %v7141
    %v7143 = vrot.slane %v7132, %v7142
    %v7144 = vlaneseq
    %v7145 = vshrl.u32 %v7144, 7
    %v7146 = vsub.s32 %v196, %v7145
    %v7147 = vrot.slane %v7135, %v7146
    %v7148 = vsel %vm808, %v7143, %v7139
    %v7149 = vsel %vm810, %v7147, %v7148
    %v7151 = vsel %vm2380, %v7149, -inf
    %7152 = vmax.xlane.f32.xlu0 %v7151
    %v7153 = vpop.xlane.xlu0 %7152
    %v7155 = vlaneseq
    %v7156 = vshrl.u32 %v7155, 7
    %v7157 = vsub.s32 0, %v7156
    %v7158 = vrot.slane %v7153, %v7157
    %v7159 = vlaneseq
    %v7160 = vshrl.u32 %v7159, 7
    %v7161 = vsub.s32 1, %v7160
    %v7162 = vrot.slane %v7153, %v7161
    %v7163 = vlaneseq
    %v7164 = vshrl.u32 %v7163, 7
    %v7165 = vsub.s32 2, %v7164
    %v7166 = vrot.slane %v7153, %v7165
    %v7170 = vsub.f32 %v7121, %v7158
    %v7171 = vsub.f32 %v7122, %v7162
    %v7172 = vsub.f32 %v7123, %v7166
    %v7173 = vmul.f32 %v7170, 1.442695
    %v7174 = vpow.pop %v7173
    %v7175 = vmul.f32 %v7171, 1.442695
    %v7176 = vpow.pop %v7175
    %v7177 = vmul.f32 %v7172, 1.442695
    %v7178 = vpow.pop %v7177
    %7182 = vset.pattern.permute.xlu0 0
    %7183 = vperm.xlu0 %7182, %v7174
    %v7184 = vpop.permute.xlu0 %7183
    %7185 = vset.pattern.permute.xlu0 0
    %7186 = vperm.xlu0 %7185, %v7176
    %v7187 = vpop.permute.xlu0 %7186
    %7188 = vset.pattern.permute.xlu0 0
    %7189 = vperm.xlu0 %7188, %v7178
    %v7190 = vpop.permute.xlu0 %7189
    %v7191 = vlaneseq
    %v7192 = vshrl.u32 %v7191, 7
    %v7193 = vsub.s32 %v196, %v7192
    %v7194 = vrot.slane %v7184, %v7193
    %v7195 = vlaneseq
    %v7196 = vshrl.u32 %v7195, 7
    %v7197 = vsub.s32 %v196, %v7196
    %v7198 = vrot.slane %v7187, %v7197
    %v7199 = vlaneseq
    %v7200 = vshrl.u32 %v7199, 7
    %v7201 = vsub.s32 %v196, %v7200
    %v7202 = vrot.slane %v7190, %v7201
    %v7203 = vsel %vm808, %v7198, %v7194
    %v7204 = vsel %vm810, %v7202, %v7203
    %v7206 = vsel %vm2380, %v7204, 0.0
    %7207 = vadd.xlane.f32.xlu0 %v7206
    %v7208 = vpop.xlane.xlu0 %7207
    %v7210 = vlaneseq
    %v7211 = vshrl.u32 %v7210, 7
    %v7212 = vsub.s32 0, %v7211
    %v7213 = vrot.slane %v7208, %v7212
    %v7214 = vlaneseq
    %v7215 = vshrl.u32 %v7214, 7
    %v7216 = vsub.s32 1, %v7215
    %v7217 = vrot.slane %v7208, %v7216
    %v7218 = vlaneseq
    %v7219 = vshrl.u32 %v7218, 7
    %v7220 = vsub.s32 2, %v7219
    %v7221 = vrot.slane %v7208, %v7220
    %v7225 = vrcp.pop %v7213
    %v7226 = vmul.f32 %v7174, %v7225
    %v7227 = vrcp.pop %v7217
    %v7228 = vmul.f32 %v7176, %v7227
    %v7229 = vrcp.pop %v7221
    %v7230 = vmul.f32 %v7178, %v7229
    %7232 = vset.pattern.permute.xlu0 0
    %7233 = vperm.xlu0 %7232, %v7226
    %v7234 = vpop.permute.xlu0 %7233
    %7237 = vset.pattern.permute.xlu0 0
    %7238 = vperm.xlu0 %7237, %v7228
    %v7239 = vpop.permute.xlu0 %7238
    %7242 = vset.pattern.permute.xlu0 0
    %7243 = vperm.xlu0 %7242, %v7230
    %v7244 = vpop.permute.xlu0 %7243
    %v7246 = vmul.f32 %v7234, %v5982
    %v7247 = vmul.f32 %v7239, %v5982
    %v7248 = vmul.f32 %v7244, %v5982
    %v7249 = vsel %vm2817, %v7246, 0.0
    %v7250 = vrot.slane %v7249, 4
    %v7251 = vadd.f32 %v7249, %v7250
    %v7252 = vrot.slane %v7251, 2
    %v7253 = vadd.f32 %v7251, %v7252
    %v7254 = vrot.slane %v7253, 1
    %v7255 = vadd.f32 %v7253, %v7254
    %v7256 = vsel %vm2817, %v7247, 0.0
    %v7257 = vrot.slane %v7256, 4
    %v7258 = vadd.f32 %v7256, %v7257
    %v7259 = vrot.slane %v7258, 2
    %v7260 = vadd.f32 %v7258, %v7259
    %v7261 = vrot.slane %v7260, 1
    %v7262 = vadd.f32 %v7260, %v7261
    %v7263 = vsel %vm2817, %v7248, 0.0
    %v7264 = vrot.slane %v7263, 4
    %v7265 = vadd.f32 %v7263, %v7264
    %v7266 = vrot.slane %v7265, 2
    %v7267 = vadd.f32 %v7265, %v7266
    %v7268 = vrot.slane %v7267, 1
    %v7269 = vadd.f32 %v7267, %v7268
    %7270 = vrot.lane.b32.xlu0 %v6763, 104
    %v7271 = vpop.permute.xlu0 %7270
    %7272 = vrot.lane.b32.xlu0 %v6764, 104
    %v7273 = vpop.permute.xlu0 %7272
    %7274 = vrot.lane.b32.xlu0 %v6765, 104
    %v7275 = vpop.permute.xlu0 %7274
    %v7279 = vsel %vm2138, %v7271, 0.0
    %7280 = vadd.xlane.f32.xlu0 %v7279
    %v7281 = vpop.xlane.xlu0 %7280
    %v7282 = vsel %vm2138, %v7273, 0.0
    %7283 = vadd.xlane.f32.xlu0 %v7282
    %v7284 = vpop.xlane.xlu0 %7283
    %v7285 = vsel %vm2138, %v7275, 0.0
    %7286 = vadd.xlane.f32.xlu0 %v7285
    %v7287 = vpop.xlane.xlu0 %7286
    %v7288 = vadd.f32 %v7281, %v6782
    %v7289 = vadd.f32 %v7284, %v6782
    %v7290 = vadd.f32 %v7287, %v6782
    %7294 = vset.pattern.permute.xlu0 0
    %7295 = vperm.xlu0 %7294, %v7288
    %v7296 = vpop.permute.xlu0 %7295
    %7297 = vset.pattern.permute.xlu0 0
    %7298 = vperm.xlu0 %7297, %v7289
    %v7299 = vpop.permute.xlu0 %7298
    %7300 = vset.pattern.permute.xlu0 0
    %7301 = vperm.xlu0 %7300, %v7290
    %v7302 = vpop.permute.xlu0 %7301
    %v7303 = vlaneseq
    %v7304 = vshrl.u32 %v7303, 7
    %v7305 = vsub.s32 %v196, %v7304
    %v7306 = vrot.slane %v7296, %v7305
    %v7307 = vlaneseq
    %v7308 = vshrl.u32 %v7307, 7
    %v7309 = vsub.s32 %v196, %v7308
    %v7310 = vrot.slane %v7299, %v7309
    %v7311 = vlaneseq
    %v7312 = vshrl.u32 %v7311, 7
    %v7313 = vsub.s32 %v196, %v7312
    %v7314 = vrot.slane %v7302, %v7313
    %v7315 = vsel %vm808, %v7310, %v7306
    %v7316 = vsel %vm810, %v7314, %v7315
    %v7318 = vsel %vm2380, %v7316, -inf
    %7319 = vmax.xlane.f32.xlu0 %v7318
    %v7320 = vpop.xlane.xlu0 %7319
    %v7322 = vlaneseq
    %v7323 = vshrl.u32 %v7322, 7
    %v7324 = vsub.s32 0, %v7323
    %v7325 = vrot.slane %v7320, %v7324
    %v7326 = vlaneseq
    %v7327 = vshrl.u32 %v7326, 7
    %v7328 = vsub.s32 1, %v7327
    %v7329 = vrot.slane %v7320, %v7328
    %v7330 = vlaneseq
    %v7331 = vshrl.u32 %v7330, 7
    %v7332 = vsub.s32 2, %v7331
    %v7333 = vrot.slane %v7320, %v7332
    %v7337 = vsub.f32 %v7288, %v7325
    %v7338 = vsub.f32 %v7289, %v7329
    %v7339 = vsub.f32 %v7290, %v7333
    %v7340 = vmul.f32 %v7337, 1.442695
    %v7341 = vpow.pop %v7340
    %v7342 = vmul.f32 %v7338, 1.442695
    %v7343 = vpow.pop %v7342
    %v7344 = vmul.f32 %v7339, 1.442695
    %v7345 = vpow.pop %v7344
    %7349 = vset.pattern.permute.xlu0 0
    %7350 = vperm.xlu0 %7349, %v7341
    %v7351 = vpop.permute.xlu0 %7350
    %7352 = vset.pattern.permute.xlu0 0
    %7353 = vperm.xlu0 %7352, %v7343
    %v7354 = vpop.permute.xlu0 %7353
    %7355 = vset.pattern.permute.xlu0 0
    %7356 = vperm.xlu0 %7355, %v7345
    %v7357 = vpop.permute.xlu0 %7356
    %v7358 = vlaneseq
    %v7359 = vshrl.u32 %v7358, 7
    %v7360 = vsub.s32 %v196, %v7359
    %v7361 = vrot.slane %v7351, %v7360
    %v7362 = vlaneseq
    %v7363 = vshrl.u32 %v7362, 7
    %v7364 = vsub.s32 %v196, %v7363
    %v7365 = vrot.slane %v7354, %v7364
    %v7366 = vlaneseq
    %v7367 = vshrl.u32 %v7366, 7
    %v7368 = vsub.s32 %v196, %v7367
    %v7369 = vrot.slane %v7357, %v7368
    %v7370 = vsel %vm808, %v7365, %v7361
    %v7371 = vsel %vm810, %v7369, %v7370
    %v7373 = vsel %vm2380, %v7371, 0.0
    %7374 = vadd.xlane.f32.xlu0 %v7373
    %v7375 = vpop.xlane.xlu0 %7374
    %v7377 = vlaneseq
    %v7378 = vshrl.u32 %v7377, 7
    %v7379 = vsub.s32 0, %v7378
    %v7380 = vrot.slane %v7375, %v7379
    %v7381 = vlaneseq
    %v7382 = vshrl.u32 %v7381, 7
    %v7383 = vsub.s32 1, %v7382
    %v7384 = vrot.slane %v7375, %v7383
    %v7385 = vlaneseq
    %v7386 = vshrl.u32 %v7385, 7
    %v7387 = vsub.s32 2, %v7386
    %v7388 = vrot.slane %v7375, %v7387
    %v7392 = vrcp.pop %v7380
    %v7393 = vmul.f32 %v7341, %v7392
    %v7394 = vrcp.pop %v7384
    %v7395 = vmul.f32 %v7343, %v7394
    %v7396 = vrcp.pop %v7388
    %v7397 = vmul.f32 %v7345, %v7396
    %7399 = vset.pattern.permute.xlu0 0
    %7400 = vperm.xlu0 %7399, %v7393
    %v7401 = vpop.permute.xlu0 %7400
    %7404 = vset.pattern.permute.xlu0 0
    %7405 = vperm.xlu0 %7404, %v7395
    %v7406 = vpop.permute.xlu0 %7405
    %7409 = vset.pattern.permute.xlu0 0
    %7410 = vperm.xlu0 %7409, %v7397
    %v7411 = vpop.permute.xlu0 %7410
    %v7413 = vmul.f32 %v7401, %v5982
    %v7414 = vmul.f32 %v7406, %v5982
    %v7415 = vmul.f32 %v7411, %v5982
    %v7416 = vsel %vm2985, %v7413, 0.0
    %v7417 = vrot.slane %v7416, 4
    %v7418 = vadd.f32 %v7416, %v7417
    %v7419 = vrot.slane %v7418, 2
    %v7420 = vadd.f32 %v7418, %v7419
    %v7421 = vrot.slane %v7420, 1
    %v7422 = vadd.f32 %v7420, %v7421
    %v7423 = vsel %vm2985, %v7414, 0.0
    %v7424 = vrot.slane %v7423, 4
    %v7425 = vadd.f32 %v7423, %v7424
    %v7426 = vrot.slane %v7425, 2
    %v7427 = vadd.f32 %v7425, %v7426
    %v7428 = vrot.slane %v7427, 1
    %v7429 = vadd.f32 %v7427, %v7428
    %v7430 = vsel %vm2985, %v7415, 0.0
    %v7431 = vrot.slane %v7430, 4
    %v7432 = vadd.f32 %v7430, %v7431
    %v7433 = vrot.slane %v7432, 2
    %v7434 = vadd.f32 %v7432, %v7433
    %v7435 = vrot.slane %v7434, 1
    %v7436 = vadd.f32 %v7434, %v7435
    %v7440 = vsel %vm808, %v6925, %v6918
    %v7441 = vsel %vm810, %v6932, %v7440
    %v7446 = vsel %vm808, %v7095, %v7088
    %v7447 = vsel %vm810, %v7102, %v7446
    %v7452 = vsel %vm808, %v7262, %v7255
    %v7453 = vsel %vm810, %v7269, %v7452
    %v7458 = vsel %vm808, %v7429, %v7422
    %v7459 = vsel %vm810, %v7436, %v7458
    %v7461 = vsel %vm2138, %v7441, %v7447
    %v7462 = vsel %vm2140, %v7461, %v7453
    %v7463 = vsel %vm2142, %v7462, %v7459
    %v7465 = vrot.slane %v7463, 5
    %v7467 = vsel %vm143, %v6723, %v7465
    %v7468 = vpack.c.bf16 %v7467, %v7467
    %s7469 = scalar_lea.vmem %s17, 16
    %v7470 = vld [vmem:[%s7469] sm:$0xf]
    %v7471 = vld [vmem:[%s7469 + $0x4] sm:$0xf]
    %v7472 = vld [vmem:[%s7469 + $0x8] sm:$0xf]
    %v7473 = vld [vmem:[%s7469 + $0xc] sm:$0xf]
    %v7478 = vunpack.c.l.b16 %v7470
    %v7479 = vunpack.c.l.b16 %v7471
    %v7480 = vunpack.c.l.b16 %v7472
    %v7481 = vunpack.c.l.b16 %v7473
    %v7482 = vpack.c.b16 %v7479, %v7478
    %v7483 = vpack.c.b16 %v7481, %v7480
    %v7487 = vsel %vm245, %v7468, 0
    %7489 = vmatprep.subr.bf16.mxu0 0
    %7490 = vmatpush1.bf16.msra.mxu0 %v7482
    %7491 = vmatprep.subr.bf16.mxu0 0
    %7492 = vmatpush1.bf16.msra.mxu0 %v7483
    %7493 = vmatprep.subr.bf16.mxu0 0
    %7494 = vmatpush1.bf16.msra.mxu0 0
    %7495 = vmatprep.subr.bf16.mxu0 0
    %7496 = vmatpush1.bf16.msra.mxu0 0
    %7497 = vmatprep.subr.bf16.mxu0 0
    %7498 = vmatpush1.bf16.msra.mxu0 0
    %7499 = vmatprep.subr.bf16.mxu0 0
    %7500 = vmatpush1.bf16.msra.mxu0 0
    %7501 = vmatprep.subr.bf16.mxu0 0
    %7502 = vmatpush1.bf16.msra.mxu0 0
    %7503 = vmatprep.subr.bf16.mxu0 0
    %7504 = vmatpush1.bf16.msra.mxu0 0
    %7505 = vmatprep.subr.bf16.mxu0 0
    %7506 = vmatpush1.bf16.msra.mxu0 0
    %7507 = vmatprep.subr.bf16.mxu0 0
    %7508 = vmatpush1.bf16.msra.mxu0 0
    %7509 = vmatprep.subr.bf16.mxu0 0
    %7510 = vmatpush1.bf16.msra.mxu0 0
    %7511 = vmatprep.subr.bf16.mxu0 0
    %7512 = vmatpush1.bf16.msra.mxu0 0
    %7513 = vmatprep.subr.bf16.mxu0 0
    %7514 = vmatpush1.bf16.msra.mxu0 0
    %7515 = vmatprep.subr.bf16.mxu0 0
    %7516 = vmatpush1.bf16.msra.mxu0 0
    %7517 = vmatprep.subr.bf16.mxu0 0
    %7518 = vmatpush1.bf16.msra.mxu0 0
    %7519 = vmatprep.subr.bf16.mxu0 0
    %7520 = vmatpush1.bf16.msra.mxu0 0
    %7521 = vmatprep.mubr.bf16.mxu0 0
    %7522 = vmatmul.mubr.bf16.gmra.mrb[0].mxu0 %v7487
    %v7523 = vpop.f32.mrb[0].mxu0
    %v7524 = vadd.f32 0.0, %v7523
    %v7525 = vpop.f32.mrb[0].mxu0
    %v7526 = vpop.f32.mrb[0].mxu0
    %v7527 = vpop.f32.mrb[0].mxu0
    %7528 = vdwg.mxu0
    %v7529 = vadd.f32 %v5894, %v7524
    %s7530 = scalar_lea.vmem %s18, 1
    %v7531 = vld [vmem:[%s7530] sm:$0x1]
    %v7532 = vmul.f32 %v7529, %v7529
    %v7533 = vsel %vm212, %v7532, 0.0
    %7534 = vadd.xlane.f32.xlu0 %v7533
    %v7535 = vpop.xlane.xlu0 %7534
    %v7536 = vmul.f32 %v7535, %v216
    %v7537 = vadd.f32 %v7536, 1e-06
    %v7538 = vrsqrt.pop %v7537
    %v7539 = vmul.f32 %v7529, %v7538
    %v7541 = vlaneseq
    %v7542 = vshrl.u32 %v7541, 7
    %v7543 = vsub.s32 0, %v7542
    %v7544 = vrot.slane %v7531, %v7543
    %v7546 = vmul.f32 %v7539, %v7544
    %v7547 = vpack.c.bf16 %v7546, %v7546
    %s7548 = scalar_lea.vmem %s19, 16
    %v7549 = vld [vmem:[%s7548] sm:$0xf]
    %v7550 = vld [vmem:[%s7548 + $0x4] sm:$0xf]
    %v7551 = vld [vmem:[%s7548 + $0x8] sm:$0xf]
    %v7552 = vld [vmem:[%s7548 + $0xc] sm:$0xf]
    %v7557 = vunpack.c.l.b16 %v7549
    %v7558 = vunpack.c.l.b16 %v7550
    %v7559 = vunpack.c.l.b16 %v7551
    %v7560 = vunpack.c.l.b16 %v7552
    %v7561 = vpack.c.b16 %v7558, %v7557
    %v7562 = vpack.c.b16 %v7560, %v7559
    %v7566 = vsel %vm245, %v7547, 0
    %7568 = vmatprep.subr.bf16.mxu0 0
    %7569 = vmatpush1.bf16.msra.mxu0 %v7561
    %7570 = vmatprep.subr.bf16.mxu0 0
    %7571 = vmatpush1.bf16.msra.mxu0 %v7562
    %7572 = vmatprep.subr.bf16.mxu0 0
    %7573 = vmatpush1.bf16.msra.mxu0 0
    %7574 = vmatprep.subr.bf16.mxu0 0
    %7575 = vmatpush1.bf16.msra.mxu0 0
    %7576 = vmatprep.subr.bf16.mxu0 0
    %7577 = vmatpush1.bf16.msra.mxu0 0
    %7578 = vmatprep.subr.bf16.mxu0 0
    %7579 = vmatpush1.bf16.msra.mxu0 0
    %7580 = vmatprep.subr.bf16.mxu0 0
    %7581 = vmatpush1.bf16.msra.mxu0 0
    %7582 = vmatprep.subr.bf16.mxu0 0
    %7583 = vmatpush1.bf16.msra.mxu0 0
    %7584 = vmatprep.subr.bf16.mxu0 0
    %7585 = vmatpush1.bf16.msra.mxu0 0
    %7586 = vmatprep.subr.bf16.mxu0 0
    %7587 = vmatpush1.bf16.msra.mxu0 0
    %7588 = vmatprep.subr.bf16.mxu0 0
    %7589 = vmatpush1.bf16.msra.mxu0 0
    %7590 = vmatprep.subr.bf16.mxu0 0
    %7591 = vmatpush1.bf16.msra.mxu0 0
    %7592 = vmatprep.subr.bf16.mxu0 0
    %7593 = vmatpush1.bf16.msra.mxu0 0
    %7594 = vmatprep.subr.bf16.mxu0 0
    %7595 = vmatpush1.bf16.msra.mxu0 0
    %7596 = vmatprep.subr.bf16.mxu0 0
    %7597 = vmatpush1.bf16.msra.mxu0 0
    %7598 = vmatprep.subr.bf16.mxu0 0
    %7599 = vmatpush1.bf16.msra.mxu0 0
    %7600 = vmatprep.mubr.bf16.mxu0 0
    %7601 = vmatmul.mubr.bf16.gmra.mrb[0].mxu0 %v7566
    %v7602 = vpop.f32.mrb[0].mxu0
    %v7603 = vadd.f32 0.0, %v7602
    %v7604 = vpop.f32.mrb[0].mxu0
    %v7605 = vpop.f32.mrb[0].mxu0
    %v7606 = vpop.f32.mrb[0].mxu0
    %7607 = vdwg.mxu0
    %v7608 = vmax.f32 %v7603, 0.0
    %v7609 = vpack.c.bf16 %v7608, %v7608
    %s7610 = scalar_lea.vmem %s20, 32
    %v7611 = vld [vmem:[%s7610] sm:$0xf]
    %v7612 = vld [vmem:[%s7610 + $0x4] sm:$0xf]
    %v7613 = vld [vmem:[%s7610 + $0x8] sm:$0xf]
    %v7614 = vld [vmem:[%s7610 + $0xc] sm:$0xf]
    %v7615 = vld [vmem:[%s7610 + $0x10] sm:$0xf]
    %v7616 = vld [vmem:[%s7610 + $0x14] sm:$0xf]
    %v7617 = vld [vmem:[%s7610 + $0x18] sm:$0xf]
    %v7618 = vld [vmem:[%s7610 + $0x1c] sm:$0xf]
    %v7627 = vunpack.c.l.b16 %v7611
    %v7628 = vunpack.c.l.b16 %v7612
    %v7629 = vunpack.c.l.b16 %v7613
    %v7630 = vunpack.c.l.b16 %v7614
    %v7631 = vunpack.c.l.b16 %v7615
    %v7632 = vunpack.c.l.b16 %v7616
    %v7633 = vunpack.c.l.b16 %v7617
    %v7634 = vunpack.c.l.b16 %v7618
    %v7635 = vpack.c.b16 %v7628, %v7627
    %v7636 = vpack.c.b16 %v7630, %v7629
    %v7637 = vpack.c.b16 %v7632, %v7631
    %v7638 = vpack.c.b16 %v7634, %v7633
    %v7644 = vsel %vm3949, %v7609, 0
    %7646 = vmatprep.subr.bf16.mxu0 0
    %7647 = vmatpush1.bf16.msra.mxu0 %v7635
    %7648 = vmatprep.subr.bf16.mxu0 0
    %7649 = vmatpush1.bf16.msra.mxu0 %v7636
    %7650 = vmatprep.subr.bf16.mxu0 0
    %7651 = vmatpush1.bf16.msra.mxu0 %v7637
    %7652 = vmatprep.subr.bf16.mxu0 0
    %7653 = vmatpush1.bf16.msra.mxu0 %v7638
    %7654 = vmatprep.subr.bf16.mxu0 0
    %7655 = vmatpush1.bf16.msra.mxu0 0
    %7656 = vmatprep.subr.bf16.mxu0 0
    %7657 = vmatpush1.bf16.msra.mxu0 0
    %7658 = vmatprep.subr.bf16.mxu0 0
    %7659 = vmatpush1.bf16.msra.mxu0 0
    %7660 = vmatprep.subr.bf16.mxu0 0
    %7661 = vmatpush1.bf16.msra.mxu0 0
    %7662 = vmatprep.subr.bf16.mxu0 0
    %7663 = vmatpush1.bf16.msra.mxu0 0
    %7664 = vmatprep.subr.bf16.mxu0 0
    %7665 = vmatpush1.bf16.msra.mxu0 0
    %7666 = vmatprep.subr.bf16.mxu0 0
    %7667 = vmatpush1.bf16.msra.mxu0 0
    %7668 = vmatprep.subr.bf16.mxu0 0
    %7669 = vmatpush1.bf16.msra.mxu0 0
    %7670 = vmatprep.subr.bf16.mxu0 0
    %7671 = vmatpush1.bf16.msra.mxu0 0
    %7672 = vmatprep.subr.bf16.mxu0 0
    %7673 = vmatpush1.bf16.msra.mxu0 0
    %7674 = vmatprep.subr.bf16.mxu0 0
    %7675 = vmatpush1.bf16.msra.mxu0 0
    %7676 = vmatprep.subr.bf16.mxu0 0
    %7677 = vmatpush1.bf16.msra.mxu0 0
    %7678 = vmatprep.mubr.bf16.mxu0 0
    %7679 = vmatmul.mubr.bf16.gmra.mrb[0].mxu0 %v7644
    %v7680 = vpop.f32.mrb[0].mxu0
    %v7681 = vadd.f32 0.0, %v7680
    %v7682 = vpop.f32.mrb[0].mxu0
    %v7683 = vpop.f32.mrb[0].mxu0
    %v7684 = vpop.f32.mrb[0].mxu0
    %7685 = vdwg.mxu0
    %v7686 = vadd.f32 %v7529, %v7681
    %v7687 = vld [vmem:[%s21] sm:$0x1]
    %v7688 = vmul.f32 %v7686, %v7686
    %v7689 = vsel %vm212, %v7688, 0.0
    %7690 = vadd.xlane.f32.xlu0 %v7689
    %v7691 = vpop.xlane.xlu0 %7690
    %v7692 = vmul.f32 %v7691, %v216
    %v7693 = vadd.f32 %v7692, 1e-06
    %v7694 = vrsqrt.pop %v7693
    %v7695 = vmul.f32 %v7686, %v7694
    %v7697 = vlaneseq
    %v7698 = vshrl.u32 %v7697, 7
    %v7699 = vsub.s32 0, %v7698
    %v7700 = vrot.slane %v7687, %v7699
    %v7702 = vmul.f32 %v7695, %v7700
    %v7703 = vmul.f32 %v7702, 0.17677669
    %v7704 = vpack.c.bf16 %v7703, %v7703
    %v7705 = vld [vmem:[%s22] sm:$0xf]
    %v7706 = vld [vmem:[%s22 + $0x4] sm:$0xf]
    %v7707 = vld [vmem:[%s22 + $0x8] sm:$0xf]
    %v7708 = vld [vmem:[%s22 + $0xc] sm:$0xf]
    %v7713 = vunpack.c.l.b16 %v7705
    %v7714 = vunpack.c.l.b16 %v7706
    %v7715 = vunpack.c.l.b16 %v7707
    %v7716 = vunpack.c.l.b16 %v7708
    %v7717 = vpack.c.b16 %v7714, %v7713
    %v7718 = vpack.c.b16 %v7716, %v7715
    %v7722 = vsel %vm245, %v7704, 0
    %7724 = vmatprep.subr.bf16.mxu0 0
    %7725 = vmatpush1.bf16.msra.mxu0 %v7717
    %7726 = vmatprep.subr.bf16.mxu0 0
    %7727 = vmatpush1.bf16.msra.mxu0 %v7718
    %7728 = vmatprep.subr.bf16.mxu0 0
    %7729 = vmatpush1.bf16.msra.mxu0 0
    %7730 = vmatprep.subr.bf16.mxu0 0
    %7731 = vmatpush1.bf16.msra.mxu0 0
    %7732 = vmatprep.subr.bf16.mxu0 0
    %7733 = vmatpush1.bf16.msra.mxu0 0
    %7734 = vmatprep.subr.bf16.mxu0 0
    %7735 = vmatpush1.bf16.msra.mxu0 0
    %7736 = vmatprep.subr.bf16.mxu0 0
    %7737 = vmatpush1.bf16.msra.mxu0 0
    %7738 = vmatprep.subr.bf16.mxu0 0
    %7739 = vmatpush1.bf16.msra.mxu0 0
    %7740 = vmatprep.subr.bf16.mxu0 0
    %7741 = vmatpush1.bf16.msra.mxu0 0
    %7742 = vmatprep.subr.bf16.mxu0 0
    %7743 = vmatpush1.bf16.msra.mxu0 0
    %7744 = vmatprep.subr.bf16.mxu0 0
    %7745 = vmatpush1.bf16.msra.mxu0 0
    %7746 = vmatprep.subr.bf16.mxu0 0
    %7747 = vmatpush1.bf16.msra.mxu0 0
    %7748 = vmatprep.subr.bf16.mxu0 0
    %7749 = vmatpush1.bf16.msra.mxu0 0
    %7750 = vmatprep.subr.bf16.mxu0 0
    %7751 = vmatpush1.bf16.msra.mxu0 0
    %7752 = vmatprep.subr.bf16.mxu0 0
    %7753 = vmatpush1.bf16.msra.mxu0 0
    %7754 = vmatprep.subr.bf16.mxu0 0
    %7755 = vmatpush1.bf16.msra.mxu0 0
    %7756 = vmatprep.mubr.bf16.mxu0 0
    %7757 = vmatmul.mubr.bf16.gmra.mrb[0].mxu0 %v7722
    %v7758 = vpop.f32.mrb[0].mxu0
    %v7759 = vadd.f32 0.0, %v7758
    %v7760 = vpop.f32.mrb[0].mxu0
    %v7761 = vpop.f32.mrb[0].mxu0
    %v7762 = vpop.f32.mrb[0].mxu0
    %7763 = vdwg.mxu0
    %vm7764 = vcmask 521216
    %v7765 = vsel %vm7764, %v7759, -inf
    %7766 = vmax.xlane.f32.xlu0 %v7765
    %v7767 = vpop.xlane.xlu0 %7766
    %v7768 = vsub.f32 %v7759, %v7767
    %v7769 = vmul.f32 %v7768, 1.442695
    %v7770 = vpow.pop %v7769
    %v7771 = vsel %vm7764, %v7770, 0.0
    %7772 = vadd.xlane.f32.xlu0 %v7771
    %v7773 = vpop.xlane.xlu0 %7772
    %v7774 = vlog2.pop %v7773
    %v7775 = vmul.f32 %v7774, 0.6931472
    %v7776 = vsub.f32 %v7768, %v7775
    %7777 = vst.msk [vmem:[%s23] sm:$0x3f] %vm7764, %v7776
    // Predicated region
    $region102: #{generate.9} parent=1 // pred_check
      _
    $region103: #{generate.9} parent=1 // pred_check_branch
      %7779 = sbr.rel (0) target = $region105
    $region104: #{generate.9} parent=1 // pred_region
      _
    $region105: #{generate.9} parent=1 // pred_fallthru
      _
    // Predicated region
    $region106: #{generate.9} parent=1 // pred_check
      _
    $region107: #{generate.9} parent=1 // pred_check_branch
      %7781 = sbr.rel (0) target = $region109
    $region108: #{generate.9} parent=1 // pred_region
      _
    $region109: #{generate.9} parent=1 // pred_fallthru
      _
    // Predicated region
    $region110: #{generate.9} parent=1 // pred_check
      _
    $region111: #{generate.9} parent=1 // pred_check_branch
      %7783 = sbr.rel (0) target = $region113
    $region112: #{generate.9} parent=1 // pred_region
      _
    $region113: #{generate.9} parent=1 // pred_fallthru
      _
    // Predicated region
    $region114: #{generate.9} parent=1 // pred_check
      _
    $region115: #{generate.9} parent=1 // pred_check_branch
      %7785 = sbr.rel (0) target = $region117
    $region116: #{generate.9} parent=1 // pred_region
      _
    $region117: #{generate.9} parent=1 // pred_fallthru
      _
    // Predicated region
    $region118: #{generate.9} parent=1 // pred_check
      _
    $region119: #{generate.9} parent=1 // pred_check_branch
      %7787 = sbr.rel (0) target = $region121
    $region120: #{generate.9} parent=1 // pred_region
      _
    $region121: #{generate.9} parent=1 // pred_fallthru
      _
    // Predicated region
    $region122: #{generate.9} parent=1 // pred_check
      _
    $region123: #{generate.9} parent=1 // pred_check_branch
      %7789 = sbr.rel (0) target = $region125
    $region124: #{generate.9} parent=1 // pred_region
      _
    $region125: #{generate.9} parent=1 // pred_fallthru
      _
    // Predicated region
    $region126: #{generate.9} parent=1 // pred_check
      _
    $region127: #{generate.9} parent=1 // pred_check_branch
      %7791 = sbr.rel (0) target = $region129
    $region128: #{generate.9} parent=1 // pred_region
      _
    $region129: #{generate.9} parent=1 // pred_fallthru
      _
    // Predicated region
    $region130: #{generate.9} parent=1 // pred_check
      _
    $region131: #{generate.9} parent=1 // pred_check_branch
      %7793 = sbr.rel (0) target = $region133
    $region132: #{generate.9} parent=1 // pred_region
      _
    $region133: #{generate.9} parent=1 // pred_fallthru
      _
    %7794 = vsyncpa [#allocation4], 1
    %7795 = vsyncpa [#allocation6], 1

</llo_original>
